<compile_context>
chip_gen: v5e
topology: v5e:2x2
jax: 0.10.0
libtpu: 0.0.40
codegen_flags: <defaults>
</compile_context>

<pallas_src>
import jax
import jax.numpy as jnp
from jax.experimental import pallas as pl
from jax.experimental.pallas import tpu as pltpu

NEG_SLOPE = 0.01                    # nn.LeakyReLU(0.01)
KPAD1 = 32                          # conv1 contraction 5*5*1  = 25  -> 32
KPAD2 = 896                         # conv2 contraction 5*5*32 = 800 -> 896 (= 7*128)
TILE_P1 = 128                       # pooled positions per grid step (conv1) -> 512 patch rows
TILE_P2 = 128                       # pooled positions per grid step (conv2)
HEAD_TILE = 256                     # batch rows per grid step (fused head)
VMEM_LIMIT = 32 * 1024 * 1024


# ---------------------------------------------------------------------------
# Pallas kernels
# ---------------------------------------------------------------------------
def _conv_pool_kernel(a0_ref, a1_ref, a2_ref, a3_ref, w_ref, b_ref, o_ref):
    """Fused Conv2d (as matmul) + bias + LeakyReLU + MaxPool2d(2, 2).

    a*_ref : (TM, Kpad)  bf16  im2col patches for the 4 taps of each 2x2 window
    w_ref  : (Kpad, Cout) bf16
    b_ref  : (1, Cout)    f32
    o_ref  : (TM, Cout)   f32  pooled activations
    """
    w = w_ref[...]

    def mm(a_ref):
        return jnp.dot(a_ref[...], w, preferred_element_type=jnp.float32)

    # max over the 4 window taps; bias add and LeakyReLU commute with the max.
    y = jnp.maximum(jnp.maximum(mm(a0_ref), mm(a1_ref)),
                    jnp.maximum(mm(a2_ref), mm(a3_ref)))
    y = y + b_ref[...]
    o_ref[...] = jnp.where(y >= 0, y, NEG_SLOPE * y).astype(o_ref.dtype)


def _head_kernel(flat_ref, cls_ref, wc1_ref, bc1_ref, wc2_ref, bc2_ref,
                 wl1_ref, bl1_ref, wl2_ref, bl2_ref, o_ref):
    """Fused head: conditional (Linear-Tanh-Linear-Tanh), Flatten(x)+c,
    label_head (Linear-LeakyReLU-Linear).  MXU operands bf16, math in f32."""
    f32 = jnp.float32
    bf16 = jnp.bfloat16

    c = jnp.dot(cls_ref[...].astype(bf16), wc1_ref[...],
                preferred_element_type=f32) + bc1_ref[...]
    c = jnp.tanh(c)
    c = jnp.dot(c.astype(bf16), wc2_ref[...],
                preferred_element_type=f32) + bc2_ref[...]
    c = jnp.tanh(c)

    h = flat_ref[...] + c                                # Flatten(temp_x) + temp_c
    h = jnp.dot(h.astype(bf16), wl1_ref[...],
                preferred_element_type=f32) + bl1_ref[...]
    h = jnp.where(h >= 0, h, NEG_SLOPE * h)              # LeakyReLU(0.01)

    y = jnp.dot(h.astype(bf16), wl2_ref[...],
                preferred_element_type=f32) + bl2_ref[...]
    o_ref[...] = y.astype(o_ref.dtype)


# ---------------------------------------------------------------------------
# Wrappers
# ---------------------------------------------------------------------------
def conv_leaky_maxpool(taps, w, b, cout, tile_p):
    """taps: 4 x (M_pooled, Kpad) bf16; w: (Kpad, cout) bf16; b: (cout,) f32."""
    m, kpad = taps[0].shape
    tile = m if m <= tile_p else tile_p                  # tile_p is a multiple of 8
    grid = (pl.cdiv(m, tile),)
    tap_spec = pl.BlockSpec((tile, kpad), lambda i: (i, 0))
    cost = pl.CostEstimate(
        flops=2 * 4 * m * kpad * cout,
        transcendentals=0,
        bytes_accessed=4 * m * kpad * 2 + kpad * cout * 2 + m * cout * 4 + cout * 4)
    return pl.pallas_call(
        _conv_pool_kernel,
        out_shape=jax.ShapeDtypeStruct((m, cout), jnp.float32),
        grid=grid,
        in_specs=[tap_spec, tap_spec, tap_spec, tap_spec,
                  pl.BlockSpec(w.shape, lambda i: (0, 0)),        # weight resident
                  pl.BlockSpec((1, cout), lambda i: (0, 0))],     # bias resident
        out_specs=pl.BlockSpec((tile, cout), lambda i: (i, 0)),
        compiler_params=pltpu.CompilerParams(
            dimension_semantics=("parallel",),
            vmem_limit_bytes=VMEM_LIMIT),
        cost_estimate=cost,
    )(taps[0], taps[1], taps[2], taps[3], w, b.reshape(1, cout))


def fused_head(flat, classes, params):
    n = flat.shape[0]
    cs = classes.shape[1]
    tile = n if n <= HEAD_TILE else HEAD_TILE
    grid = (pl.cdiv(n, tile),)

    def row_spec(width):
        return pl.BlockSpec((tile, width), lambda i: (i, 0))

    def full_spec(arr):
        return pl.BlockSpec(arr.shape, lambda i: (0, 0))

    wc1, wc2 = params["wc1"], params["wc2"]
    wl1, wl2 = params["wl1"], params["wl2"]
    bc1 = params["bc1"].reshape(1, -1)
    bc2 = params["bc2"].reshape(1, -1)
    bl1 = params["bl1"].reshape(1, -1)
    bl2 = params["bl2"].reshape(1, -1)

    weight_bytes = 2 * (cs * 1024 + 1024 * 1024 + 1024 * 1024 + 1024)
    cost = pl.CostEstimate(
        flops=2 * n * (cs * 1024 + 1024 * 1024 + 1024 * 1024 + 1024),
        transcendentals=2 * n * 1024,
        bytes_accessed=n * (1024 + cs + 1) * 4 + weight_bytes + (3 * 1024 + 1) * 4)

    return pl.pallas_call(
        _head_kernel,
        out_shape=jax.ShapeDtypeStruct((n, 1), jnp.float32),
        grid=grid,
        in_specs=[row_spec(flat.shape[1]), row_spec(cs),
                  full_spec(wc1), full_spec(bc1),
                  full_spec(wc2), full_spec(bc2),
                  full_spec(wl1), full_spec(bl1),
                  full_spec(wl2), full_spec(bl2)],
        out_specs=pl.BlockSpec((tile, 1), lambda i: (i, 0)),
        compiler_params=pltpu.CompilerParams(
            dimension_semantics=("parallel",),
            vmem_limit_bytes=VMEM_LIMIT),
        cost_estimate=cost,
    )(flat, classes, wc1, bc1, wc2, bc2, wl1, bl1, wl2, bl2)


# ---------------------------------------------------------------------------
# im2col glue (per pooling-window tap) and dtype/padding prep
# ---------------------------------------------------------------------------
def im2col_pool_taps(x, k):
    """Per-tap im2col for VALID conv (stride 1) followed by 2x2/2 maxpool.

    x: (N, H, W, C) channels-last.  Returns ([t00, t01, t10, t11], (N, Po, Qo));
    each tap matrix is (N*Po*Qo, k*k*C), rows ordered (n, pooled_row, pooled_col),
    features ordered (di, dj, cin) to match the conv weight layout.
    """
    n, h, w, c = x.shape
    ho, wo = h - k + 1, w - k + 1
    po, qo = ho // 2, wo // 2
    patches = jnp.stack(
        [x[:, di:di + ho, dj:dj + wo, :] for di in range(k) for dj in range(k)],
        axis=3)                                          # (N, Ho, Wo, k*k, C)
    patches = patches.reshape(n, po, 2, qo, 2, k * k * c)
    taps = [patches[:, :, a, :, b, :].reshape(n * po * qo, k * k * c)
            for a in range(2) for b in range(2)]
    return taps, (n, po, qo)


def _pad_cast_bf16(m, kpad):
    k = m.shape[1]
    if k < kpad:
        m = jnp.pad(m, ((0, 0), (0, kpad - k)))
    return m.astype(jnp.bfloat16)


# ---------------------------------------------------------------------------
# Parameters (deterministic synthetic init, PyTorch-shaped then converted)
# ---------------------------------------------------------------------------
def _linear_params(key, fan_in, fan_out):
    kw, kb = jax.random.split(key)
    bound = 1.0 / float(fan_in) ** 0.5
    w = jax.random.uniform(kw, (fan_out, fan_in), jnp.float32, -bound, bound)
    b = jax.random.uniform(kb, (fan_out,), jnp.float32, -bound, bound)
    return w, b


def _conv_params(key, cin, cout, k):
    kw, kb = jax.random.split(key)
    fan_in = cin * k * k
    bound = 1.0 / float(fan_in) ** 0.5
    w = jax.random.uniform(kw, (cout, cin, k, k), jnp.float32, -bound, bound)
    b = jax.random.uniform(kb, (cout,), jnp.float32, -bound, bound)
    return w, b


def init_params(key, class_size):
    keys = jax.random.split(key, 6)
    w1, b1 = _conv_params(keys[0], 1, 32, 5)        # Conv2d(1, 32, 5)
    w2, b2 = _conv_params(keys[1], 32, 64, 5)       # Conv2d(32, 64, 5)
    wl1, bl1 = _linear_params(keys[2], 1024, 1024)  # label_head Linear(1024,1024)
    wl2, bl2 = _linear_params(keys[3], 1024, 1)     # label_head Linear(1024,1)
    wc1, bc1 = _linear_params(keys[4], class_size, 1024)  # cond Linear(cls,1024)
    wc2, bc2 = _linear_params(keys[5], 1024, 1024)         # cond Linear(1024,1024)

    # Conv weight (Cout,Cin,kh,kw) -> im2col matmul weight (kh*kw*Cin, Cout),
    # matching the (di, dj, cin) patch ordering; zero-pad K to the lane pad.
    def conv_to_mat(w, kpad):
        cout, cin, kh, kw_ = w.shape
        m = jnp.transpose(w, (2, 3, 1, 0)).reshape(kh * kw_ * cin, cout)
        m = jnp.pad(m, ((0, kpad - m.shape[0]), (0, 0)))
        return m.astype(jnp.bfloat16)

    # label_head first Linear expects PyTorch's (C,H,W) Flatten order; our conv
    # output is NHWC-flattened, so permute the weight ROWS to (H,W,C) order once.
    wl1_in_out = wl1.T                                            # (in, out), rows in (c,h,w)
    wl1_hwc = wl1_in_out.reshape(64, 4, 4, 1024).transpose(1, 2, 0, 3).reshape(1024, 1024)

    return {
        "w1": conv_to_mat(w1, KPAD1), "b1": b1,
        "w2": conv_to_mat(w2, KPAD2), "b2": b2,
        "wc1": wc1.T.astype(jnp.bfloat16), "bc1": bc1,
        "wc2": wc2.T.astype(jnp.bfloat16), "bc2": bc2,
        "wl1": wl1_hwc.astype(jnp.bfloat16), "bl1": bl1,
        "wl2": wl2.T.astype(jnp.bfloat16), "bl2": bl2,
    }


# ---------------------------------------------------------------------------
# Forward pass (mirrors Discriminator.forward)
# ---------------------------------------------------------------------------
def discriminator_forward(params, x, classes):
    n = x.shape[0]
    # Unflatten(-1, 1, 28, 28): NCHW, then channels-last for the kernels.
    x = x.reshape(n, 1, 28, 28).transpose(0, 2, 3, 1)             # (N, 28, 28, 1)

    # Conv2d(1,32,5) + LeakyReLU + MaxPool2d(2,2)  (single fused kernel)
    taps1, (_, po1, qo1) = im2col_pool_taps(x, 5)                 # 4 x (N*144, 25)
    taps1 = [_pad_cast_bf16(t, KPAD1) for t in taps1]
    h1 = conv_leaky_maxpool(taps1, params["w1"], params["b1"], 32, TILE_P1)
    h1 = h1.reshape(n, po1, qo1, 32)                              # (N, 12, 12, 32)

    # Conv2d(32,64,5) + LeakyReLU + MaxPool2d(2,2)  (single fused kernel)
    taps2, (_, po2, qo2) = im2col_pool_taps(h1, 5)                # 4 x (N*16, 800)
    taps2 = [_pad_cast_bf16(t, KPAD2) for t in taps2]
    h2 = conv_leaky_maxpool(taps2, params["w2"], params["b2"], 64, TILE_P2)
    h2 = h2.reshape(n, po2, qo2, 64)                              # (N, 4, 4, 64) NHWC

    features = jnp.transpose(h2, (0, 3, 1, 2))                    # (N, 64, 4, 4) NCHW
    flat_hwc = h2.reshape(n, 64 * 4 * 4)                          # NHWC flatten; wl1 rows pre-permuted

    # conditional + label_head, fully fused into one kernel
    labels = fused_head(flat_hwc, classes, params)                # (N, 1)
    return features, labels


# ---------------------------------------------------------------------------
if __name__ == "__main__":
    class_size = 10
    batch = 2

    key = jax.random.PRNGKey(0)
    k_params, k_x, k_c = jax.random.split(key, 3)

    params = init_params(k_params, class_size)
    x = jax.random.normal(k_x, (batch, 784), dtype=jnp.float32)          # flattened 28x28
    classes = jax.random.normal(k_c, (batch, class_size), dtype=jnp.float32)

    fwd = jax.jit(discriminator_forward)
    features, labels = fwd(params, x, classes)
    jax.block_until_ready((features, labels))

    assert features.shape == (batch, 64, 4, 4)
    assert labels.shape == (batch, 1)
    print("KERNEL_OK")
</pallas_src>

<mosaic_0001>
module attributes {stable_mosaic.version = 11 : i64} {
  func.func @_conv_pool_kernel(%arg0: i32, %arg1: memref<128x32xbf16, #tpu.memory_space<vmem>>, %arg2: memref<128x32xbf16, #tpu.memory_space<vmem>>, %arg3: memref<128x32xbf16, #tpu.memory_space<vmem>>, %arg4: memref<128x32xbf16, #tpu.memory_space<vmem>>, %arg5: memref<32x32xbf16, #tpu.memory_space<vmem>>, %arg6: memref<1x32xf32, #tpu.memory_space<vmem>>, %arg7: memref<128x32xf32, #tpu.memory_space<vmem>>) attributes {dimension_semantics = [#tpu.dimension_semantics<parallel>], iteration_bounds = array<i64: 3>, scalar_prefetch = 0 : i64, scratch_operands = 0 : i64, tpu.core_type = #tpu.core_type<tc>, window_params = [{transform_indices = @transform_0, window_bounds = array<i64: 128, 32>}, {transform_indices = @transform_1, window_bounds = array<i64: 128, 32>}, {transform_indices = @transform_2, window_bounds = array<i64: 128, 32>}, {transform_indices = @transform_3, window_bounds = array<i64: 128, 32>}, {pipeline_mode = #tpu.pipeline_mode<synchronous>, transform_indices = @transform_4, window_bounds = array<i64: 32, 32>}, {pipeline_mode = #tpu.pipeline_mode<synchronous>, transform_indices = @transform_5, window_bounds = array<i64: 1, 32>}, {transform_indices = @transform_6, window_bounds = array<i64: 128, 32>}]} {
    %c0 = arith.constant 0 : index
    %c0_0 = arith.constant 0 : index
    %0 = vector.load %arg5[%c0, %c0_0] : memref<32x32xbf16, #tpu.memory_space<vmem>>, vector<32x32xbf16>
    %c0_1 = arith.constant 0 : index
    %c0_2 = arith.constant 0 : index
    %1 = vector.load %arg1[%c0_1, %c0_2] : memref<128x32xbf16, #tpu.memory_space<vmem>>, vector<128x32xbf16>
    %cst = arith.constant dense<0.000000e+00> : vector<128x32xf32>
    %2 = tpu.matmul %1, %0, %cst {dimension_numbers = #tpu.dot_dimension_numbers<[1], [0], [0], [1], [0, 0, 1, 1], [], []>} : vector<128x32xbf16>, vector<32x32xbf16>, vector<128x32xf32> -> vector<128x32xf32>
    %c0_3 = arith.constant 0 : index
    %c0_4 = arith.constant 0 : index
    %3 = vector.load %arg2[%c0_3, %c0_4] : memref<128x32xbf16, #tpu.memory_space<vmem>>, vector<128x32xbf16>
    %cst_5 = arith.constant dense<0.000000e+00> : vector<128x32xf32>
    %4 = tpu.matmul %3, %0, %cst_5 {dimension_numbers = #tpu.dot_dimension_numbers<[1], [0], [0], [1], [0, 0, 1, 1], [], []>} : vector<128x32xbf16>, vector<32x32xbf16>, vector<128x32xf32> -> vector<128x32xf32>
    %5 = arith.maximumf %2, %4 : vector<128x32xf32>
    %c0_6 = arith.constant 0 : index
    %c0_7 = arith.constant 0 : index
    %6 = vector.load %arg3[%c0_6, %c0_7] : memref<128x32xbf16, #tpu.memory_space<vmem>>, vector<128x32xbf16>
    %cst_8 = arith.constant dense<0.000000e+00> : vector<128x32xf32>
    %7 = tpu.matmul %6, %0, %cst_8 {dimension_numbers = #tpu.dot_dimension_numbers<[1], [0], [0], [1], [0, 0, 1, 1], [], []>} : vector<128x32xbf16>, vector<32x32xbf16>, vector<128x32xf32> -> vector<128x32xf32>
    %c0_9 = arith.constant 0 : index
    %c0_10 = arith.constant 0 : index
    %8 = vector.load %arg4[%c0_9, %c0_10] : memref<128x32xbf16, #tpu.memory_space<vmem>>, vector<128x32xbf16>
    %cst_11 = arith.constant dense<0.000000e+00> : vector<128x32xf32>
    %9 = tpu.matmul %8, %0, %cst_11 {dimension_numbers = #tpu.dot_dimension_numbers<[1], [0], [0], [1], [0, 0, 1, 1], [], []>} : vector<128x32xbf16>, vector<32x32xbf16>, vector<128x32xf32> -> vector<128x32xf32>
    %10 = arith.maximumf %7, %9 : vector<128x32xf32>
    %11 = arith.maximumf %5, %10 : vector<128x32xf32>
    %c0_12 = arith.constant 0 : index
    %c0_13 = arith.constant 0 : index
    %12 = vector.load %arg6[%c0_12, %c0_13] : memref<1x32xf32, #tpu.memory_space<vmem>>, vector<1x32xf32>
    %13 = vector.broadcast %12 : vector<1x32xf32> to vector<128x32xf32>
    %14 = arith.addf %11, %13 : vector<128x32xf32>
    %cst_14 = arith.constant 0.000000e+00 : f32
    %15 = vector.broadcast %cst_14 : f32 to vector<128x32xf32>
    %16 = arith.cmpf oge, %14, %15 : vector<128x32xf32>
    %cst_15 = arith.constant 0.00999999977 : f32
    %17 = vector.broadcast %cst_15 : f32 to vector<128x32xf32>
    %18 = arith.mulf %17, %14 : vector<128x32xf32>
    %19 = arith.select %16, %14, %18 : vector<128x32xi1>, vector<128x32xf32>
    %c0_16 = arith.constant 0 : index
    %c0_17 = arith.constant 0 : index
    %20 = vector.load %arg7[%c0_16, %c0_17] : memref<128x32xf32, #tpu.memory_space<vmem>>, vector<128x32xf32>
    tpu.vector_store %arg7[%c0_16, %c0_17], %19 {strides = array<i32>} : memref<128x32xf32, #tpu.memory_space<vmem>>, vector<128x32xf32>,
    return
  }
  func.func @transform_0(%arg0: i32) -> (i32, i32) {
    %c0_i32 = arith.constant 0 : i32
    %c0_i32_0 = arith.constant 0 : i32
    return %arg0, %c0_i32 : i32, i32
  }
  func.func @transform_1(%arg0: i32) -> (i32, i32) {
    %c0_i32 = arith.constant 0 : i32
    %c0_i32_0 = arith.constant 0 : i32
    return %arg0, %c0_i32 : i32, i32
  }
  func.func @transform_2(%arg0: i32) -> (i32, i32) {
    %c0_i32 = arith.constant 0 : i32
    %c0_i32_0 = arith.constant 0 : i32
    return %arg0, %c0_i32 : i32, i32
  }
  func.func @transform_3(%arg0: i32) -> (i32, i32) {
    %c0_i32 = arith.constant 0 : i32
    %c0_i32_0 = arith.constant 0 : i32
    return %arg0, %c0_i32 : i32, i32
  }
  func.func @transform_4(%arg0: i32) -> (i32, i32) {
    %c0_i32 = arith.constant 0 : i32
    %c0_i32_0 = arith.constant 0 : i32
    %c0_i32_1 = arith.constant 0 : i32
    return %c0_i32, %c0_i32_0 : i32, i32
  }
  func.func @transform_5(%arg0: i32) -> (i32, i32) {
    %c0_i32 = arith.constant 0 : i32
    %c0_i32_0 = arith.constant 0 : i32
    %c0_i32_1 = arith.constant 0 : i32
    return %c0_i32, %c0_i32_0 : i32, i32
  }
  func.func @transform_6(%arg0: i32) -> (i32, i32) {
    %c0_i32 = arith.constant 0 : i32
    %c0_i32_0 = arith.constant 0 : i32
    return %arg0, %c0_i32 : i32, i32
  }
}

module attributes {stable_mosaic.version = 11 : i64} {
  func.func @_conv_pool_kernel(%arg0: i32, %arg1: memref<32x896xbf16, #tpu.memory_space<vmem>>, %arg2: memref<32x896xbf16, #tpu.memory_space<vmem>>, %arg3: memref<32x896xbf16, #tpu.memory_space<vmem>>, %arg4: memref<32x896xbf16, #tpu.memory_space<vmem>>, %arg5: memref<896x64xbf16, #tpu.memory_space<vmem>>, %arg6: memref<1x64xf32, #tpu.memory_space<vmem>>, %arg7: memref<32x64xf32, #tpu.memory_space<vmem>>) attributes {dimension_semantics = [#tpu.dimension_semantics<parallel>], iteration_bounds = array<i64: 1>, scalar_prefetch = 0 : i64, scratch_operands = 0 : i64, tpu.core_type = #tpu.core_type<tc>, window_params = [{transform_indices = @transform_0, window_bounds = array<i64: 32, 896>}, {transform_indices = @transform_1, window_bounds = array<i64: 32, 896>}, {transform_indices = @transform_2, window_bounds = array<i64: 32, 896>}, {transform_indices = @transform_3, window_bounds = array<i64: 32, 896>}, {pipeline_mode = #tpu.pipeline_mode<synchronous>, transform_indices = @transform_4, window_bounds = array<i64: 896, 64>}, {pipeline_mode = #tpu.pipeline_mode<synchronous>, transform_indices = @transform_5, window_bounds = array<i64: 1, 64>}, {transform_indices = @transform_6, window_bounds = array<i64: 32, 64>}]} {
    %c0 = arith.constant 0 : index
    %c0_0 = arith.constant 0 : index
    %0 = vector.load %arg5[%c0, %c0_0] : memref<896x64xbf16, #tpu.memory_space<vmem>>, vector<896x64xbf16>
    %c0_1 = arith.constant 0 : index
    %c0_2 = arith.constant 0 : index
    %1 = vector.load %arg1[%c0_1, %c0_2] : memref<32x896xbf16, #tpu.memory_space<vmem>>, vector<32x896xbf16>
    %cst = arith.constant dense<0.000000e+00> : vector<32x64xf32>
    %2 = tpu.matmul %1, %0, %cst {dimension_numbers = #tpu.dot_dimension_numbers<[1], [0], [0], [1], [0, 0, 1, 1], [], []>} : vector<32x896xbf16>, vector<896x64xbf16>, vector<32x64xf32> -> vector<32x64xf32>
    %c0_3 = arith.constant 0 : index
    %c0_4 = arith.constant 0 : index
    %3 = vector.load %arg2[%c0_3, %c0_4] : memref<32x896xbf16, #tpu.memory_space<vmem>>, vector<32x896xbf16>
    %cst_5 = arith.constant dense<0.000000e+00> : vector<32x64xf32>
    %4 = tpu.matmul %3, %0, %cst_5 {dimension_numbers = #tpu.dot_dimension_numbers<[1], [0], [0], [1], [0, 0, 1, 1], [], []>} : vector<32x896xbf16>, vector<896x64xbf16>, vector<32x64xf32> -> vector<32x64xf32>
    %5 = arith.maximumf %2, %4 : vector<32x64xf32>
    %c0_6 = arith.constant 0 : index
    %c0_7 = arith.constant 0 : index
    %6 = vector.load %arg3[%c0_6, %c0_7] : memref<32x896xbf16, #tpu.memory_space<vmem>>, vector<32x896xbf16>
    %cst_8 = arith.constant dense<0.000000e+00> : vector<32x64xf32>
    %7 = tpu.matmul %6, %0, %cst_8 {dimension_numbers = #tpu.dot_dimension_numbers<[1], [0], [0], [1], [0, 0, 1, 1], [], []>} : vector<32x896xbf16>, vector<896x64xbf16>, vector<32x64xf32> -> vector<32x64xf32>
    %c0_9 = arith.constant 0 : index
    %c0_10 = arith.constant 0 : index
    %8 = vector.load %arg4[%c0_9, %c0_10] : memref<32x896xbf16, #tpu.memory_space<vmem>>, vector<32x896xbf16>
    %cst_11 = arith.constant dense<0.000000e+00> : vector<32x64xf32>
    %9 = tpu.matmul %8, %0, %cst_11 {dimension_numbers = #tpu.dot_dimension_numbers<[1], [0], [0], [1], [0, 0, 1, 1], [], []>} : vector<32x896xbf16>, vector<896x64xbf16>, vector<32x64xf32> -> vector<32x64xf32>
    %10 = arith.maximumf %7, %9 : vector<32x64xf32>
    %11 = arith.maximumf %5, %10 : vector<32x64xf32>
    %c0_12 = arith.constant 0 : index
    %c0_13 = arith.constant 0 : index
    %12 = vector.load %arg6[%c0_12, %c0_13] : memref<1x64xf32, #tpu.memory_space<vmem>>, vector<1x64xf32>
    %13 = vector.broadcast %12 : vector<1x64xf32> to vector<32x64xf32>
    %14 = arith.addf %11, %13 : vector<32x64xf32>
    %cst_14 = arith.constant 0.000000e+00 : f32
    %15 = vector.broadcast %cst_14 : f32 to vector<32x64xf32>
    %16 = arith.cmpf oge, %14, %15 : vector<32x64xf32>
    %cst_15 = arith.constant 0.00999999977 : f32
    %17 = vector.broadcast %cst_15 : f32 to vector<32x64xf32>
    %18 = arith.mulf %17, %14 : vector<32x64xf32>
    %19 = arith.select %16, %14, %18 : vector<32x64xi1>, vector<32x64xf32>
    %c0_16 = arith.constant 0 : index
    %c0_17 = arith.constant 0 : index
    %20 = vector.load %arg7[%c0_16, %c0_17] : memref<32x64xf32, #tpu.memory_space<vmem>>, vector<32x64xf32>
    tpu.vector_store %arg7[%c0_16, %c0_17], %19 {strides = array<i32>} : memref<32x64xf32, #tpu.memory_space<vmem>>, vector<32x64xf32>,
    return
  }
  func.func @transform_0(%arg0: i32) -> (i32, i32) {
    %c0_i32 = arith.constant 0 : i32
    %c0_i32_0 = arith.constant 0 : i32
    return %arg0, %c0_i32 : i32, i32
  }
  func.func @transform_1(%arg0: i32) -> (i32, i32) {
    %c0_i32 = arith.constant 0 : i32
    %c0_i32_0 = arith.constant 0 : i32
    return %arg0, %c0_i32 : i32, i32
  }
  func.func @transform_2(%arg0: i32) -> (i32, i32) {
    %c0_i32 = arith.constant 0 : i32
    %c0_i32_0 = arith.constant 0 : i32
    return %arg0, %c0_i32 : i32, i32
  }
  func.func @transform_3(%arg0: i32) -> (i32, i32) {
    %c0_i32 = arith.constant 0 : i32
    %c0_i32_0 = arith.constant 0 : i32
    return %arg0, %c0_i32 : i32, i32
  }
  func.func @transform_4(%arg0: i32) -> (i32, i32) {
    %c0_i32 = arith.constant 0 : i32
    %c0_i32_0 = arith.constant 0 : i32
    %c0_i32_1 = arith.constant 0 : i32
    return %c0_i32, %c0_i32_0 : i32, i32
  }
  func.func @transform_5(%arg0: i32) -> (i32, i32) {
    %c0_i32 = arith.constant 0 : i32
    %c0_i32_0 = arith.constant 0 : i32
    %c0_i32_1 = arith.constant 0 : i32
    return %c0_i32, %c0_i32_0 : i32, i32
  }
  func.func @transform_6(%arg0: i32) -> (i32, i32) {
    %c0_i32 = arith.constant 0 : i32
    %c0_i32_0 = arith.constant 0 : i32
    return %arg0, %c0_i32 : i32, i32
  }
}

module attributes {stable_mosaic.version = 11 : i64} {
  func.func @_head_kernel(%arg0: i32, %arg1: memref<2x1024xf32, #tpu.memory_space<vmem>>, %arg2: memref<2x10xf32, #tpu.memory_space<vmem>>, %arg3: memref<10x1024xbf16, #tpu.memory_space<vmem>>, %arg4: memref<1x1024xf32, #tpu.memory_space<vmem>>, %arg5: memref<1024x1024xbf16, #tpu.memory_space<vmem>>, %arg6: memref<1x1024xf32, #tpu.memory_space<vmem>>, %arg7: memref<1024x1024xbf16, #tpu.memory_space<vmem>>, %arg8: memref<1x1024xf32, #tpu.memory_space<vmem>>, %arg9: memref<1024x1xbf16, #tpu.memory_space<vmem>>, %arg10: memref<1x1xf32, #tpu.memory_space<vmem>>, %arg11: memref<2x1xf32, #tpu.memory_space<vmem>>) attributes {dimension_semantics = [#tpu.dimension_semantics<parallel>], iteration_bounds = array<i64: 1>, scalar_prefetch = 0 : i64, scratch_operands = 0 : i64, tpu.core_type = #tpu.core_type<tc>, window_params = [{transform_indices = @transform_0, window_bounds = array<i64: 2, 1024>}, {transform_indices = @transform_1, window_bounds = array<i64: 2, 10>}, {pipeline_mode = #tpu.pipeline_mode<synchronous>, transform_indices = @transform_2, window_bounds = array<i64: 10, 1024>}, {pipeline_mode = #tpu.pipeline_mode<synchronous>, transform_indices = @transform_3, window_bounds = array<i64: 1, 1024>}, {pipeline_mode = #tpu.pipeline_mode<synchronous>, transform_indices = @transform_4, window_bounds = array<i64: 1024, 1024>}, {pipeline_mode = #tpu.pipeline_mode<synchronous>, transform_indices = @transform_5, window_bounds = array<i64: 1, 1024>}, {pipeline_mode = #tpu.pipeline_mode<synchronous>, transform_indices = @transform_6, window_bounds = array<i64: 1024, 1024>}, {pipeline_mode = #tpu.pipeline_mode<synchronous>, transform_indices = @transform_7, window_bounds = array<i64: 1, 1024>}, {pipeline_mode = #tpu.pipeline_mode<synchronous>, transform_indices = @transform_8, window_bounds = array<i64: 1024, 1>}, {pipeline_mode = #tpu.pipeline_mode<synchronous>, transform_indices = @transform_9, window_bounds = array<i64: 1, 1>}, {transform_indices = @transform_10, window_bounds = array<i64: 2, 1>}]} {
    %c0 = arith.constant 0 : index
    %c0_0 = arith.constant 0 : index
    %0 = vector.load %arg2[%c0, %c0_0] : memref<2x10xf32, #tpu.memory_space<vmem>>, vector<2x10xf32>
    %1 = arith.truncf %0 : vector<2x10xf32> to vector<2x10xbf16>
    %c0_1 = arith.constant 0 : index
    %c0_2 = arith.constant 0 : index
    %2 = vector.load %arg3[%c0_1, %c0_2] : memref<10x1024xbf16, #tpu.memory_space<vmem>>, vector<10x1024xbf16>
    %cst = arith.constant dense<0.000000e+00> : vector<2x1024xf32>
    %3 = tpu.matmul %1, %2, %cst {dimension_numbers = #tpu.dot_dimension_numbers<[1], [0], [0], [1], [0, 0, 1, 1], [], []>} : vector<2x10xbf16>, vector<10x1024xbf16>, vector<2x1024xf32> -> vector<2x1024xf32>
    %c0_3 = arith.constant 0 : index
    %c0_4 = arith.constant 0 : index
    %4 = vector.load %arg4[%c0_3, %c0_4] : memref<1x1024xf32, #tpu.memory_space<vmem>>, vector<1x1024xf32>
    %5 = vector.broadcast %4 : vector<1x1024xf32> to vector<2x1024xf32>
    %6 = arith.addf %3, %5 : vector<2x1024xf32>
    %7 = math.tanh %6 : vector<2x1024xf32>
    %8 = arith.truncf %7 : vector<2x1024xf32> to vector<2x1024xbf16>
    %c0_5 = arith.constant 0 : index
    %c0_6 = arith.constant 0 : index
    %9 = vector.load %arg5[%c0_5, %c0_6] : memref<1024x1024xbf16, #tpu.memory_space<vmem>>, vector<1024x1024xbf16>
    %cst_7 = arith.constant dense<0.000000e+00> : vector<2x1024xf32>
    %10 = tpu.matmul %8, %9, %cst_7 {dimension_numbers = #tpu.dot_dimension_numbers<[1], [0], [0], [1], [0, 0, 1, 1], [], []>} : vector<2x1024xbf16>, vector<1024x1024xbf16>, vector<2x1024xf32> -> vector<2x1024xf32>
    %c0_8 = arith.constant 0 : index
    %c0_9 = arith.constant 0 : index
    %11 = vector.load %arg6[%c0_8, %c0_9] : memref<1x1024xf32, #tpu.memory_space<vmem>>, vector<1x1024xf32>
    %12 = vector.broadcast %11 : vector<1x1024xf32> to vector<2x1024xf32>
    %13 = arith.addf %10, %12 : vector<2x1024xf32>
    %14 = math.tanh %13 : vector<2x1024xf32>
    %c0_10 = arith.constant 0 : index
    %c0_11 = arith.constant 0 : index
    %15 = vector.load %arg1[%c0_10, %c0_11] : memref<2x1024xf32, #tpu.memory_space<vmem>>, vector<2x1024xf32>
    %16 = arith.addf %15, %14 : vector<2x1024xf32>
    %17 = arith.truncf %16 : vector<2x1024xf32> to vector<2x1024xbf16>
    %c0_12 = arith.constant 0 : index
    %c0_13 = arith.constant 0 : index
    %18 = vector.load %arg7[%c0_12, %c0_13] : memref<1024x1024xbf16, #tpu.memory_space<vmem>>, vector<1024x1024xbf16>
    %cst_14 = arith.constant dense<0.000000e+00> : vector<2x1024xf32>
    %19 = tpu.matmul %17, %18, %cst_14 {dimension_numbers = #tpu.dot_dimension_numbers<[1], [0], [0], [1], [0, 0, 1, 1], [], []>} : vector<2x1024xbf16>, vector<1024x1024xbf16>, vector<2x1024xf32> -> vector<2x1024xf32>
    %c0_15 = arith.constant 0 : index
    %c0_16 = arith.constant 0 : index
    %20 = vector.load %arg8[%c0_15, %c0_16] : memref<1x1024xf32, #tpu.memory_space<vmem>>, vector<1x1024xf32>
    %21 = vector.broadcast %20 : vector<1x1024xf32> to vector<2x1024xf32>
    %22 = arith.addf %19, %21 : vector<2x1024xf32>
    %cst_17 = arith.constant 0.000000e+00 : f32
    %23 = vector.broadcast %cst_17 : f32 to vector<2x1024xf32>
    %24 = arith.cmpf oge, %22, %23 : vector<2x1024xf32>
    %cst_18 = arith.constant 0.00999999977 : f32
    %25 = vector.broadcast %cst_18 : f32 to vector<2x1024xf32>
    %26 = arith.mulf %25, %22 : vector<2x1024xf32>
    %27 = arith.select %24, %22, %26 : vector<2x1024xi1>, vector<2x1024xf32>
    %28 = arith.truncf %27 : vector<2x1024xf32> to vector<2x1024xbf16>
    %c0_19 = arith.constant 0 : index
    %c0_20 = arith.constant 0 : index
    %29 = vector.load %arg9[%c0_19, %c0_20] : memref<1024x1xbf16, #tpu.memory_space<vmem>>, vector<1024x1xbf16>
    %cst_21 = arith.constant dense<0.000000e+00> : vector<2x1xf32>
    %30 = tpu.matmul %28, %29, %cst_21 {dimension_numbers = #tpu.dot_dimension_numbers<[1], [0], [0], [1], [0, 0, 1, 1], [], []>} : vector<2x1024xbf16>, vector<1024x1xbf16>, vector<2x1xf32> -> vector<2x1xf32>
    %c0_22 = arith.constant 0 : index
    %c0_23 = arith.constant 0 : index
    %31 = vector.load %arg10[%c0_22, %c0_23] : memref<1x1xf32, #tpu.memory_space<vmem>>, vector<1x1xf32>
    %32 = vector.broadcast %31 : vector<1x1xf32> to vector<2x1xf32>
    %33 = arith.addf %30, %32 : vector<2x1xf32>
    %c0_24 = arith.constant 0 : index
    %c0_25 = arith.constant 0 : index
    %34 = vector.load %arg11[%c0_24, %c0_25] : memref<2x1xf32, #tpu.memory_space<vmem>>, vector<2x1xf32>
    tpu.vector_store %arg11[%c0_24, %c0_25], %33 {strides = array<i32>} : memref<2x1xf32, #tpu.memory_space<vmem>>, vector<2x1xf32>,
    return
  }
  func.func @transform_0(%arg0: i32) -> (i32, i32) {
    %c0_i32 = arith.constant 0 : i32
    %c0_i32_0 = arith.constant 0 : i32
    return %arg0, %c0_i32 : i32, i32
  }
  func.func @transform_1(%arg0: i32) -> (i32, i32) {
    %c0_i32 = arith.constant 0 : i32
    %c0_i32_0 = arith.constant 0 : i32
    return %arg0, %c0_i32 : i32, i32
  }
  func.func @transform_2(%arg0: i32) -> (i32, i32) {
    %c0_i32 = arith.constant 0 : i32
    %c0_i32_0 = arith.constant 0 : i32
    %c0_i32_1 = arith.constant 0 : i32
    return %c0_i32, %c0_i32_0 : i32, i32
  }
  func.func @transform_3(%arg0: i32) -> (i32, i32) {
    %c0_i32 = arith.constant 0 : i32
    %c0_i32_0 = arith.constant 0 : i32
    %c0_i32_1 = arith.constant 0 : i32
    return %c0_i32, %c0_i32_0 : i32, i32
  }
  func.func @transform_4(%arg0: i32) -> (i32, i32) {
    %c0_i32 = arith.constant 0 : i32
    %c0_i32_0 = arith.constant 0 : i32
    %c0_i32_1 = arith.constant 0 : i32
    return %c0_i32, %c0_i32_0 : i32, i32
  }
  func.func @transform_5(%arg0: i32) -> (i32, i32) {
    %c0_i32 = arith.constant 0 : i32
    %c0_i32_0 = arith.constant 0 : i32
    %c0_i32_1 = arith.constant 0 : i32
    return %c0_i32, %c0_i32_0 : i32, i32
  }
  func.func @transform_6(%arg0: i32) -> (i32, i32) {
    %c0_i32 = arith.constant 0 : i32
    %c0_i32_0 = arith.constant 0 : i32
    %c0_i32_1 = arith.constant 0 : i32
    return %c0_i32, %c0_i32_0 : i32, i32
  }
  func.func @transform_7(%arg0: i32) -> (i32, i32) {
    %c0_i32 = arith.constant 0 : i32
    %c0_i32_0 = arith.constant 0 : i32
    %c0_i32_1 = arith.constant 0 : i32
    return %c0_i32, %c0_i32_0 : i32, i32
  }
  func.func @transform_8(%arg0: i32) -> (i32, i32) {
    %c0_i32 = arith.constant 0 : i32
    %c0_i32_0 = arith.constant 0 : i32
    %c0_i32_1 = arith.constant 0 : i32
    return %c0_i32, %c0_i32_0 : i32, i32
  }
  func.func @transform_9(%arg0: i32) -> (i32, i32) {
    %c0_i32 = arith.constant 0 : i32
    %c0_i32_0 = arith.constant 0 : i32
    %c0_i32_1 = arith.constant 0 : i32
    return %c0_i32, %c0_i32_0 : i32, i32
  }
  func.func @transform_10(%arg0: i32) -> (i32, i32) {
    %c0_i32 = arith.constant 0 : i32
    %c0_i32_0 = arith.constant 0 : i32
    return %arg0, %c0_i32 : i32, i32
  }
}

</mosaic_0001>

<llo_original>
// kernel: squeeze.4
$region0: #{squeeze.4}
  %s0 = inlined_call_operand.vmem [shape: bf16[2,12,12,25], index: 0, kind: input, shape index: {}]
  %s1 = inlined_call_operand.vmem [shape: bf16[288,25], index: 1, kind: output, shape index: {}]
  $region1: #{squeeze.4} parent=0
    #allocation0 [shape = 'u8[147456]{0}', space=vmem, size = 0x24000, scoped, tag = 'scoped mem for output reshape']
    #allocation1 [shape = 'u8[196608]{0}', space=vmem, size = 0x30000, scoped, tag = 'scoped mem for input reshape']
    %s3 = ssub.s32 256, 1
    %s4 = scalar_lea.vmem %s0, 188
    %s5 = sshrl.u32 %s3, 1
    %s6 = sor.u32 %s3, %s5
    %s7 = sand.u32 %s6, 85
    %s8 = sshrl.u32 %s7, 1
    %s9 = sor.u32 %s7, %s8
    %s10 = sand.u32 51, %s9
    %s11 = sshrl.u32 %s10, 2
    %s12 = sor.u32 %s10, %s11
    %s13 = sand.u32 15, %s12
    %v14 = vld [vmem:[%s4] sm:%s13]
    %v15 = vunpack.c.l.bf16 %v14
    %v16 = vunpack.c.h.bf16 %v14
    %s17 = scalar_lea.vmem [#allocation1], 376
    %18 = vst [vmem:[%s17] sm:%s3] %v15
    %s19 = scalar_lea.vmem %s0, 184
    %s20 = sshrl.u32 %s3, 1
    %s21 = sor.u32 %s3, %s20
    %s22 = sand.u32 %s21, 85
    %s23 = sshrl.u32 %s22, 1
    %s24 = sor.u32 %s22, %s23
    %s25 = sand.u32 51, %s24
    %s26 = sshrl.u32 %s25, 2
    %s27 = sor.u32 %s25, %s26
    %s28 = sand.u32 15, %s27
    %v29 = vld [vmem:[%s19] sm:%s28]
    %v30 = vunpack.c.l.bf16 %v29
    %v31 = vunpack.c.h.bf16 %v29
    %s32 = scalar_lea.vmem [#allocation1], 368
    %33 = vst [vmem:[%s32] sm:%s3] %v30
    %s34 = scalar_lea.vmem %s0, 180
    %s35 = sshrl.u32 %s3, 1
    %s36 = sor.u32 %s3, %s35
    %s37 = sand.u32 %s36, 85
    %s38 = sshrl.u32 %s37, 1
    %s39 = sor.u32 %s37, %s38
    %s40 = sand.u32 51, %s39
    %s41 = sshrl.u32 %s40, 2
    %s42 = sor.u32 %s40, %s41
    %s43 = sand.u32 15, %s42
    %v44 = vld [vmem:[%s34] sm:%s43]
    %v45 = vunpack.c.l.bf16 %v44
    %v46 = vunpack.c.h.bf16 %v44
    %s47 = scalar_lea.vmem [#allocation1], 360
    %48 = vst [vmem:[%s47] sm:%s3] %v45
    %s49 = scalar_lea.vmem %s0, 176
    %s50 = sshrl.u32 %s3, 1
    %s51 = sor.u32 %s3, %s50
    %s52 = sand.u32 %s51, 85
    %s53 = sshrl.u32 %s52, 1
    %s54 = sor.u32 %s52, %s53
    %s55 = sand.u32 51, %s54
    %s56 = sshrl.u32 %s55, 2
    %s57 = sor.u32 %s55, %s56
    %s58 = sand.u32 15, %s57
    %v59 = vld [vmem:[%s49] sm:%s58]
    %v60 = vunpack.c.l.bf16 %v59
    %v61 = vunpack.c.h.bf16 %v59
    %s62 = scalar_lea.vmem [#allocation1], 352
    %63 = vst [vmem:[%s62] sm:%s3] %v60
    %s64 = scalar_lea.vmem %s0, 172
    %s65 = sshrl.u32 %s3, 1
    %s66 = sor.u32 %s3, %s65
    %s67 = sand.u32 %s66, 85
    %s68 = sshrl.u32 %s67, 1
    %s69 = sor.u32 %s67, %s68
    %s70 = sand.u32 51, %s69
    %s71 = sshrl.u32 %s70, 2
    %s72 = sor.u32 %s70, %s71
    %s73 = sand.u32 15, %s72
    %v74 = vld [vmem:[%s64] sm:%s73]
    %v75 = vunpack.c.l.bf16 %v74
    %v76 = vunpack.c.h.bf16 %v74
    %s77 = scalar_lea.vmem [#allocation1], 344
    %78 = vst [vmem:[%s77] sm:%s3] %v75
    %s79 = scalar_lea.vmem %s0, 168
    %s80 = sshrl.u32 %s3, 1
    %s81 = sor.u32 %s3, %s80
    %s82 = sand.u32 %s81, 85
    %s83 = sshrl.u32 %s82, 1
    %s84 = sor.u32 %s82, %s83
    %s85 = sand.u32 51, %s84
    %s86 = sshrl.u32 %s85, 2
    %s87 = sor.u32 %s85, %s86
    %s88 = sand.u32 15, %s87
    %v89 = vld [vmem:[%s79] sm:%s88]
    %v90 = vunpack.c.l.bf16 %v89
    %v91 = vunpack.c.h.bf16 %v89
    %s92 = scalar_lea.vmem [#allocation1], 336
    %93 = vst [vmem:[%s92] sm:%s3] %v90
    %s94 = scalar_lea.vmem %s0, 164
    %s95 = sshrl.u32 %s3, 1
    %s96 = sor.u32 %s3, %s95
    %s97 = sand.u32 %s96, 85
    %s98 = sshrl.u32 %s97, 1
    %s99 = sor.u32 %s97, %s98
    %s100 = sand.u32 51, %s99
    %s101 = sshrl.u32 %s100, 2
    %s102 = sor.u32 %s100, %s101
    %s103 = sand.u32 15, %s102
    %v104 = vld [vmem:[%s94] sm:%s103]
    %v105 = vunpack.c.l.bf16 %v104
    %v106 = vunpack.c.h.bf16 %v104
    %s107 = scalar_lea.vmem [#allocation1], 328
    %108 = vst [vmem:[%s107] sm:%s3] %v105
    %s109 = scalar_lea.vmem %s0, 160
    %s110 = sshrl.u32 %s3, 1
    %s111 = sor.u32 %s3, %s110
    %s112 = sand.u32 %s111, 85
    %s113 = sshrl.u32 %s112, 1
    %s114 = sor.u32 %s112, %s113
    %s115 = sand.u32 51, %s114
    %s116 = sshrl.u32 %s115, 2
    %s117 = sor.u32 %s115, %s116
    %s118 = sand.u32 15, %s117
    %v119 = vld [vmem:[%s109] sm:%s118]
    %v120 = vunpack.c.l.bf16 %v119
    %v121 = vunpack.c.h.bf16 %v119
    %s122 = scalar_lea.vmem [#allocation1], 320
    %123 = vst [vmem:[%s122] sm:%s3] %v120
    %s124 = scalar_lea.vmem %s0, 156
    %s125 = sshrl.u32 %s3, 1
    %s126 = sor.u32 %s3, %s125
    %s127 = sand.u32 %s126, 85
    %s128 = sshrl.u32 %s127, 1
    %s129 = sor.u32 %s127, %s128
    %s130 = sand.u32 51, %s129
    %s131 = sshrl.u32 %s130, 2
    %s132 = sor.u32 %s130, %s131
    %s133 = sand.u32 15, %s132
    %v134 = vld [vmem:[%s124] sm:%s133]
    %v135 = vunpack.c.l.bf16 %v134
    %v136 = vunpack.c.h.bf16 %v134
    %s137 = scalar_lea.vmem [#allocation1], 312
    %138 = vst [vmem:[%s137] sm:%s3] %v135
    %s139 = scalar_lea.vmem %s0, 152
    %s140 = sshrl.u32 %s3, 1
    %s141 = sor.u32 %s3, %s140
    %s142 = sand.u32 %s141, 85
    %s143 = sshrl.u32 %s142, 1
    %s144 = sor.u32 %s142, %s143
    %s145 = sand.u32 51, %s144
    %s146 = sshrl.u32 %s145, 2
    %s147 = sor.u32 %s145, %s146
    %s148 = sand.u32 15, %s147
    %v149 = vld [vmem:[%s139] sm:%s148]
    %v150 = vunpack.c.l.bf16 %v149
    %v151 = vunpack.c.h.bf16 %v149
    %s152 = scalar_lea.vmem [#allocation1], 304
    %153 = vst [vmem:[%s152] sm:%s3] %v150
    %s154 = scalar_lea.vmem %s0, 148
    %s155 = sshrl.u32 %s3, 1
    %s156 = sor.u32 %s3, %s155
    %s157 = sand.u32 %s156, 85
    %s158 = sshrl.u32 %s157, 1
    %s159 = sor.u32 %s157, %s158
    %s160 = sand.u32 51, %s159
    %s161 = sshrl.u32 %s160, 2
    %s162 = sor.u32 %s160, %s161
    %s163 = sand.u32 15, %s162
    %v164 = vld [vmem:[%s154] sm:%s163]
    %v165 = vunpack.c.l.bf16 %v164
    %v166 = vunpack.c.h.bf16 %v164
    %s167 = scalar_lea.vmem [#allocation1], 296
    %168 = vst [vmem:[%s167] sm:%s3] %v165
    %s169 = scalar_lea.vmem %s0, 144
    %s170 = sshrl.u32 %s3, 1
    %s171 = sor.u32 %s3, %s170
    %s172 = sand.u32 %s171, 85
    %s173 = sshrl.u32 %s172, 1
    %s174 = sor.u32 %s172, %s173
    %s175 = sand.u32 51, %s174
    %s176 = sshrl.u32 %s175, 2
    %s177 = sor.u32 %s175, %s176
    %s178 = sand.u32 15, %s177
    %v179 = vld [vmem:[%s169] sm:%s178]
    %v180 = vunpack.c.l.bf16 %v179
    %v181 = vunpack.c.h.bf16 %v179
    %s182 = scalar_lea.vmem [#allocation1], 288
    %183 = vst [vmem:[%s182] sm:%s3] %v180
    %s184 = scalar_lea.vmem %s0, 140
    %s185 = sshrl.u32 %s3, 1
    %s186 = sor.u32 %s3, %s185
    %s187 = sand.u32 %s186, 85
    %s188 = sshrl.u32 %s187, 1
    %s189 = sor.u32 %s187, %s188
    %s190 = sand.u32 51, %s189
    %s191 = sshrl.u32 %s190, 2
    %s192 = sor.u32 %s190, %s191
    %s193 = sand.u32 15, %s192
    %v194 = vld [vmem:[%s184] sm:%s193]
    %v195 = vunpack.c.l.bf16 %v194
    %v196 = vunpack.c.h.bf16 %v194
    %s197 = scalar_lea.vmem [#allocation1], 280
    %198 = vst [vmem:[%s197] sm:%s3] %v195
    %s199 = scalar_lea.vmem %s0, 136
    %s200 = sshrl.u32 %s3, 1
    %s201 = sor.u32 %s3, %s200
    %s202 = sand.u32 %s201, 85
    %s203 = sshrl.u32 %s202, 1
    %s204 = sor.u32 %s202, %s203
    %s205 = sand.u32 51, %s204
    %s206 = sshrl.u32 %s205, 2
    %s207 = sor.u32 %s205, %s206
    %s208 = sand.u32 15, %s207
    %v209 = vld [vmem:[%s199] sm:%s208]
    %v210 = vunpack.c.l.bf16 %v209
    %v211 = vunpack.c.h.bf16 %v209
    %s212 = scalar_lea.vmem [#allocation1], 272
    %213 = vst [vmem:[%s212] sm:%s3] %v210
    %s214 = scalar_lea.vmem %s0, 132
    %s215 = sshrl.u32 %s3, 1
    %s216 = sor.u32 %s3, %s215
    %s217 = sand.u32 %s216, 85
    %s218 = sshrl.u32 %s217, 1
    %s219 = sor.u32 %s217, %s218
    %s220 = sand.u32 51, %s219
    %s221 = sshrl.u32 %s220, 2
    %s222 = sor.u32 %s220, %s221
    %s223 = sand.u32 15, %s222
    %v224 = vld [vmem:[%s214] sm:%s223]
    %v225 = vunpack.c.l.bf16 %v224
    %v226 = vunpack.c.h.bf16 %v224
    %s227 = scalar_lea.vmem [#allocation1], 264
    %228 = vst [vmem:[%s227] sm:%s3] %v225
    %s229 = scalar_lea.vmem %s0, 128
    %s230 = sshrl.u32 %s3, 1
    %s231 = sor.u32 %s3, %s230
    %s232 = sand.u32 %s231, 85
    %s233 = sshrl.u32 %s232, 1
    %s234 = sor.u32 %s232, %s233
    %s235 = sand.u32 51, %s234
    %s236 = sshrl.u32 %s235, 2
    %s237 = sor.u32 %s235, %s236
    %s238 = sand.u32 15, %s237
    %v239 = vld [vmem:[%s229] sm:%s238]
    %v240 = vunpack.c.l.bf16 %v239
    %v241 = vunpack.c.h.bf16 %v239
    %s242 = scalar_lea.vmem [#allocation1], 256
    %243 = vst [vmem:[%s242] sm:%s3] %v240
    %s244 = scalar_lea.vmem %s0, 124
    %s245 = sshrl.u32 %s3, 1
    %s246 = sor.u32 %s3, %s245
    %s247 = sand.u32 %s246, 85
    %s248 = sshrl.u32 %s247, 1
    %s249 = sor.u32 %s247, %s248
    %s250 = sand.u32 51, %s249
    %s251 = sshrl.u32 %s250, 2
    %s252 = sor.u32 %s250, %s251
    %s253 = sand.u32 15, %s252
    %v254 = vld [vmem:[%s244] sm:%s253]
    %v255 = vunpack.c.l.bf16 %v254
    %v256 = vunpack.c.h.bf16 %v254
    %s257 = scalar_lea.vmem [#allocation1], 248
    %258 = vst [vmem:[%s257] sm:%s3] %v255
    %s259 = scalar_lea.vmem %s0, 120
    %s260 = sshrl.u32 %s3, 1
    %s261 = sor.u32 %s3, %s260
    %s262 = sand.u32 %s261, 85
    %s263 = sshrl.u32 %s262, 1
    %s264 = sor.u32 %s262, %s263
    %s265 = sand.u32 51, %s264
    %s266 = sshrl.u32 %s265, 2
    %s267 = sor.u32 %s265, %s266
    %s268 = sand.u32 15, %s267
    %v269 = vld [vmem:[%s259] sm:%s268]
    %v270 = vunpack.c.l.bf16 %v269
    %v271 = vunpack.c.h.bf16 %v269
    %s272 = scalar_lea.vmem [#allocation1], 240
    %273 = vst [vmem:[%s272] sm:%s3] %v270
    %s274 = scalar_lea.vmem %s0, 116
    %s275 = sshrl.u32 %s3, 1
    %s276 = sor.u32 %s3, %s275
    %s277 = sand.u32 %s276, 85
    %s278 = sshrl.u32 %s277, 1
    %s279 = sor.u32 %s277, %s278
    %s280 = sand.u32 51, %s279
    %s281 = sshrl.u32 %s280, 2
    %s282 = sor.u32 %s280, %s281
    %s283 = sand.u32 15, %s282
    %v284 = vld [vmem:[%s274] sm:%s283]
    %v285 = vunpack.c.l.bf16 %v284
    %v286 = vunpack.c.h.bf16 %v284
    %s287 = scalar_lea.vmem [#allocation1], 232
    %288 = vst [vmem:[%s287] sm:%s3] %v285
    %s289 = scalar_lea.vmem %s0, 112
    %s290 = sshrl.u32 %s3, 1
    %s291 = sor.u32 %s3, %s290
    %s292 = sand.u32 %s291, 85
    %s293 = sshrl.u32 %s292, 1
    %s294 = sor.u32 %s292, %s293
    %s295 = sand.u32 51, %s294
    %s296 = sshrl.u32 %s295, 2
    %s297 = sor.u32 %s295, %s296
    %s298 = sand.u32 15, %s297
    %v299 = vld [vmem:[%s289] sm:%s298]
    %v300 = vunpack.c.l.bf16 %v299
    %v301 = vunpack.c.h.bf16 %v299
    %s302 = scalar_lea.vmem [#allocation1], 224
    %303 = vst [vmem:[%s302] sm:%s3] %v300
    %s304 = scalar_lea.vmem %s0, 108
    %s305 = sshrl.u32 %s3, 1
    %s306 = sor.u32 %s3, %s305
    %s307 = sand.u32 %s306, 85
    %s308 = sshrl.u32 %s307, 1
    %s309 = sor.u32 %s307, %s308
    %s310 = sand.u32 51, %s309
    %s311 = sshrl.u32 %s310, 2
    %s312 = sor.u32 %s310, %s311
    %s313 = sand.u32 15, %s312
    %v314 = vld [vmem:[%s304] sm:%s313]
    %v315 = vunpack.c.l.bf16 %v314
    %v316 = vunpack.c.h.bf16 %v314
    %s317 = scalar_lea.vmem [#allocation1], 216
    %318 = vst [vmem:[%s317] sm:%s3] %v315
    %s319 = scalar_lea.vmem %s0, 104
    %s320 = sshrl.u32 %s3, 1
    %s321 = sor.u32 %s3, %s320
    %s322 = sand.u32 %s321, 85
    %s323 = sshrl.u32 %s322, 1
    %s324 = sor.u32 %s322, %s323
    %s325 = sand.u32 51, %s324
    %s326 = sshrl.u32 %s325, 2
    %s327 = sor.u32 %s325, %s326
    %s328 = sand.u32 15, %s327
    %v329 = vld [vmem:[%s319] sm:%s328]
    %v330 = vunpack.c.l.bf16 %v329
    %v331 = vunpack.c.h.bf16 %v329
    %s332 = scalar_lea.vmem [#allocation1], 208
    %333 = vst [vmem:[%s332] sm:%s3] %v330
    %s334 = scalar_lea.vmem %s0, 100
    %s335 = sshrl.u32 %s3, 1
    %s336 = sor.u32 %s3, %s335
    %s337 = sand.u32 %s336, 85
    %s338 = sshrl.u32 %s337, 1
    %s339 = sor.u32 %s337, %s338
    %s340 = sand.u32 51, %s339
    %s341 = sshrl.u32 %s340, 2
    %s342 = sor.u32 %s340, %s341
    %s343 = sand.u32 15, %s342
    %v344 = vld [vmem:[%s334] sm:%s343]
    %v345 = vunpack.c.l.bf16 %v344
    %v346 = vunpack.c.h.bf16 %v344
    %s347 = scalar_lea.vmem [#allocation1], 200
    %348 = vst [vmem:[%s347] sm:%s3] %v345
    %s349 = scalar_lea.vmem %s0, 96
    %s350 = sshrl.u32 %s3, 1
    %s351 = sor.u32 %s3, %s350
    %s352 = sand.u32 %s351, 85
    %s353 = sshrl.u32 %s352, 1
    %s354 = sor.u32 %s352, %s353
    %s355 = sand.u32 51, %s354
    %s356 = sshrl.u32 %s355, 2
    %s357 = sor.u32 %s355, %s356
    %s358 = sand.u32 15, %s357
    %v359 = vld [vmem:[%s349] sm:%s358]
    %v360 = vunpack.c.l.bf16 %v359
    %v361 = vunpack.c.h.bf16 %v359
    %s362 = scalar_lea.vmem [#allocation1], 192
    %363 = vst [vmem:[%s362] sm:%s3] %v360
    %s364 = scalar_lea.vmem %s0, 92
    %s365 = sshrl.u32 %s3, 1
    %s366 = sor.u32 %s3, %s365
    %s367 = sand.u32 %s366, 85
    %s368 = sshrl.u32 %s367, 1
    %s369 = sor.u32 %s367, %s368
    %s370 = sand.u32 51, %s369
    %s371 = sshrl.u32 %s370, 2
    %s372 = sor.u32 %s370, %s371
    %s373 = sand.u32 15, %s372
    %v374 = vld [vmem:[%s364] sm:%s373]
    %v375 = vunpack.c.l.bf16 %v374
    %v376 = vunpack.c.h.bf16 %v374
    %s377 = scalar_lea.vmem [#allocation1], 184
    %378 = vst [vmem:[%s377] sm:%s3] %v375
    %s379 = scalar_lea.vmem %s0, 88
    %s380 = sshrl.u32 %s3, 1
    %s381 = sor.u32 %s3, %s380
    %s382 = sand.u32 %s381, 85
    %s383 = sshrl.u32 %s382, 1
    %s384 = sor.u32 %s382, %s383
    %s385 = sand.u32 51, %s384
    %s386 = sshrl.u32 %s385, 2
    %s387 = sor.u32 %s385, %s386
    %s388 = sand.u32 15, %s387
    %v389 = vld [vmem:[%s379] sm:%s388]
    %v390 = vunpack.c.l.bf16 %v389
    %v391 = vunpack.c.h.bf16 %v389
    %s392 = scalar_lea.vmem [#allocation1], 176
    %393 = vst [vmem:[%s392] sm:%s3] %v390
    %s394 = scalar_lea.vmem %s0, 84
    %s395 = sshrl.u32 %s3, 1
    %s396 = sor.u32 %s3, %s395
    %s397 = sand.u32 %s396, 85
    %s398 = sshrl.u32 %s397, 1
    %s399 = sor.u32 %s397, %s398
    %s400 = sand.u32 51, %s399
    %s401 = sshrl.u32 %s400, 2
    %s402 = sor.u32 %s400, %s401
    %s403 = sand.u32 15, %s402
    %v404 = vld [vmem:[%s394] sm:%s403]
    %v405 = vunpack.c.l.bf16 %v404
    %v406 = vunpack.c.h.bf16 %v404
    %s407 = scalar_lea.vmem [#allocation1], 168
    %408 = vst [vmem:[%s407] sm:%s3] %v405
    %s409 = scalar_lea.vmem %s0, 80
    %s410 = sshrl.u32 %s3, 1
    %s411 = sor.u32 %s3, %s410
    %s412 = sand.u32 %s411, 85
    %s413 = sshrl.u32 %s412, 1
    %s414 = sor.u32 %s412, %s413
    %s415 = sand.u32 51, %s414
    %s416 = sshrl.u32 %s415, 2
    %s417 = sor.u32 %s415, %s416
    %s418 = sand.u32 15, %s417
    %v419 = vld [vmem:[%s409] sm:%s418]
    %v420 = vunpack.c.l.bf16 %v419
    %v421 = vunpack.c.h.bf16 %v419
    %s422 = scalar_lea.vmem [#allocation1], 160
    %423 = vst [vmem:[%s422] sm:%s3] %v420
    %s424 = scalar_lea.vmem %s0, 76
    %s425 = sshrl.u32 %s3, 1
    %s426 = sor.u32 %s3, %s425
    %s427 = sand.u32 %s426, 85
    %s428 = sshrl.u32 %s427, 1
    %s429 = sor.u32 %s427, %s428
    %s430 = sand.u32 51, %s429
    %s431 = sshrl.u32 %s430, 2
    %s432 = sor.u32 %s430, %s431
    %s433 = sand.u32 15, %s432
    %v434 = vld [vmem:[%s424] sm:%s433]
    %v435 = vunpack.c.l.bf16 %v434
    %v436 = vunpack.c.h.bf16 %v434
    %s437 = scalar_lea.vmem [#allocation1], 152
    %438 = vst [vmem:[%s437] sm:%s3] %v435
    %s439 = scalar_lea.vmem %s0, 72
    %s440 = sshrl.u32 %s3, 1
    %s441 = sor.u32 %s3, %s440
    %s442 = sand.u32 %s441, 85
    %s443 = sshrl.u32 %s442, 1
    %s444 = sor.u32 %s442, %s443
    %s445 = sand.u32 51, %s444
    %s446 = sshrl.u32 %s445, 2
    %s447 = sor.u32 %s445, %s446
    %s448 = sand.u32 15, %s447
    %v449 = vld [vmem:[%s439] sm:%s448]
    %v450 = vunpack.c.l.bf16 %v449
    %v451 = vunpack.c.h.bf16 %v449
    %s452 = scalar_lea.vmem [#allocation1], 144
    %453 = vst [vmem:[%s452] sm:%s3] %v450
    %s454 = scalar_lea.vmem %s0, 68
    %s455 = sshrl.u32 %s3, 1
    %s456 = sor.u32 %s3, %s455
    %s457 = sand.u32 %s456, 85
    %s458 = sshrl.u32 %s457, 1
    %s459 = sor.u32 %s457, %s458
    %s460 = sand.u32 51, %s459
    %s461 = sshrl.u32 %s460, 2
    %s462 = sor.u32 %s460, %s461
    %s463 = sand.u32 15, %s462
    %v464 = vld [vmem:[%s454] sm:%s463]
    %v465 = vunpack.c.l.bf16 %v464
    %v466 = vunpack.c.h.bf16 %v464
    %s467 = scalar_lea.vmem [#allocation1], 136
    %468 = vst [vmem:[%s467] sm:%s3] %v465
    %s469 = scalar_lea.vmem %s0, 64
    %s470 = sshrl.u32 %s3, 1
    %s471 = sor.u32 %s3, %s470
    %s472 = sand.u32 %s471, 85
    %s473 = sshrl.u32 %s472, 1
    %s474 = sor.u32 %s472, %s473
    %s475 = sand.u32 51, %s474
    %s476 = sshrl.u32 %s475, 2
    %s477 = sor.u32 %s475, %s476
    %s478 = sand.u32 15, %s477
    %v479 = vld [vmem:[%s469] sm:%s478]
    %v480 = vunpack.c.l.bf16 %v479
    %v481 = vunpack.c.h.bf16 %v479
    %s482 = scalar_lea.vmem [#allocation1], 128
    %483 = vst [vmem:[%s482] sm:%s3] %v480
    %s484 = scalar_lea.vmem %s0, 60
    %s485 = sshrl.u32 %s3, 1
    %s486 = sor.u32 %s3, %s485
    %s487 = sand.u32 %s486, 85
    %s488 = sshrl.u32 %s487, 1
    %s489 = sor.u32 %s487, %s488
    %s490 = sand.u32 51, %s489
    %s491 = sshrl.u32 %s490, 2
    %s492 = sor.u32 %s490, %s491
    %s493 = sand.u32 15, %s492
    %v494 = vld [vmem:[%s484] sm:%s493]
    %v495 = vunpack.c.l.bf16 %v494
    %v496 = vunpack.c.h.bf16 %v494
    %s497 = scalar_lea.vmem [#allocation1], 120
    %498 = vst [vmem:[%s497] sm:%s3] %v495
    %s499 = scalar_lea.vmem %s0, 56
    %s500 = sshrl.u32 %s3, 1
    %s501 = sor.u32 %s3, %s500
    %s502 = sand.u32 %s501, 85
    %s503 = sshrl.u32 %s502, 1
    %s504 = sor.u32 %s502, %s503
    %s505 = sand.u32 51, %s504
    %s506 = sshrl.u32 %s505, 2
    %s507 = sor.u32 %s505, %s506
    %s508 = sand.u32 15, %s507
    %v509 = vld [vmem:[%s499] sm:%s508]
    %v510 = vunpack.c.l.bf16 %v509
    %v511 = vunpack.c.h.bf16 %v509
    %s512 = scalar_lea.vmem [#allocation1], 112
    %513 = vst [vmem:[%s512] sm:%s3] %v510
    %s514 = scalar_lea.vmem %s0, 52
    %s515 = sshrl.u32 %s3, 1
    %s516 = sor.u32 %s3, %s515
    %s517 = sand.u32 %s516, 85
    %s518 = sshrl.u32 %s517, 1
    %s519 = sor.u32 %s517, %s518
    %s520 = sand.u32 51, %s519
    %s521 = sshrl.u32 %s520, 2
    %s522 = sor.u32 %s520, %s521
    %s523 = sand.u32 15, %s522
    %v524 = vld [vmem:[%s514] sm:%s523]
    %v525 = vunpack.c.l.bf16 %v524
    %v526 = vunpack.c.h.bf16 %v524
    %s527 = scalar_lea.vmem [#allocation1], 104
    %528 = vst [vmem:[%s527] sm:%s3] %v525
    %s529 = scalar_lea.vmem %s0, 48
    %s530 = sshrl.u32 %s3, 1
    %s531 = sor.u32 %s3, %s530
    %s532 = sand.u32 %s531, 85
    %s533 = sshrl.u32 %s532, 1
    %s534 = sor.u32 %s532, %s533
    %s535 = sand.u32 51, %s534
    %s536 = sshrl.u32 %s535, 2
    %s537 = sor.u32 %s535, %s536
    %s538 = sand.u32 15, %s537
    %v539 = vld [vmem:[%s529] sm:%s538]
    %v540 = vunpack.c.l.bf16 %v539
    %v541 = vunpack.c.h.bf16 %v539
    %s542 = scalar_lea.vmem [#allocation1], 96
    %543 = vst [vmem:[%s542] sm:%s3] %v540
    %s544 = scalar_lea.vmem %s0, 44
    %s545 = sshrl.u32 %s3, 1
    %s546 = sor.u32 %s3, %s545
    %s547 = sand.u32 %s546, 85
    %s548 = sshrl.u32 %s547, 1
    %s549 = sor.u32 %s547, %s548
    %s550 = sand.u32 51, %s549
    %s551 = sshrl.u32 %s550, 2
    %s552 = sor.u32 %s550, %s551
    %s553 = sand.u32 15, %s552
    %v554 = vld [vmem:[%s544] sm:%s553]
    %v555 = vunpack.c.l.bf16 %v554
    %v556 = vunpack.c.h.bf16 %v554
    %s557 = scalar_lea.vmem [#allocation1], 88
    %558 = vst [vmem:[%s557] sm:%s3] %v555
    %s559 = scalar_lea.vmem %s0, 40
    %s560 = sshrl.u32 %s3, 1
    %s561 = sor.u32 %s3, %s560
    %s562 = sand.u32 %s561, 85
    %s563 = sshrl.u32 %s562, 1
    %s564 = sor.u32 %s562, %s563
    %s565 = sand.u32 51, %s564
    %s566 = sshrl.u32 %s565, 2
    %s567 = sor.u32 %s565, %s566
    %s568 = sand.u32 15, %s567
    %v569 = vld [vmem:[%s559] sm:%s568]
    %v570 = vunpack.c.l.bf16 %v569
    %v571 = vunpack.c.h.bf16 %v569
    %s572 = scalar_lea.vmem [#allocation1], 80
    %573 = vst [vmem:[%s572] sm:%s3] %v570
    %s574 = scalar_lea.vmem %s0, 36
    %s575 = sshrl.u32 %s3, 1
    %s576 = sor.u32 %s3, %s575
    %s577 = sand.u32 %s576, 85
    %s578 = sshrl.u32 %s577, 1
    %s579 = sor.u32 %s577, %s578
    %s580 = sand.u32 51, %s579
    %s581 = sshrl.u32 %s580, 2
    %s582 = sor.u32 %s580, %s581
    %s583 = sand.u32 15, %s582
    %v584 = vld [vmem:[%s574] sm:%s583]
    %v585 = vunpack.c.l.bf16 %v584
    %v586 = vunpack.c.h.bf16 %v584
    %s587 = scalar_lea.vmem [#allocation1], 72
    %588 = vst [vmem:[%s587] sm:%s3] %v585
    %s589 = scalar_lea.vmem %s0, 32
    %s590 = sshrl.u32 %s3, 1
    %s591 = sor.u32 %s3, %s590
    %s592 = sand.u32 %s591, 85
    %s593 = sshrl.u32 %s592, 1
    %s594 = sor.u32 %s592, %s593
    %s595 = sand.u32 51, %s594
    %s596 = sshrl.u32 %s595, 2
    %s597 = sor.u32 %s595, %s596
    %s598 = sand.u32 15, %s597
    %v599 = vld [vmem:[%s589] sm:%s598]
    %v600 = vunpack.c.l.bf16 %v599
    %v601 = vunpack.c.h.bf16 %v599
    %s602 = scalar_lea.vmem [#allocation1], 64
    %603 = vst [vmem:[%s602] sm:%s3] %v600
    %s604 = scalar_lea.vmem %s0, 28
    %s605 = sshrl.u32 %s3, 1
    %s606 = sor.u32 %s3, %s605
    %s607 = sand.u32 %s606, 85
    %s608 = sshrl.u32 %s607, 1
    %s609 = sor.u32 %s607, %s608
    %s610 = sand.u32 51, %s609
    %s611 = sshrl.u32 %s610, 2
    %s612 = sor.u32 %s610, %s611
    %s613 = sand.u32 15, %s612
    %v614 = vld [vmem:[%s604] sm:%s613]
    %v615 = vunpack.c.l.bf16 %v614
    %v616 = vunpack.c.h.bf16 %v614
    %s617 = scalar_lea.vmem [#allocation1], 56
    %618 = vst [vmem:[%s617] sm:%s3] %v615
    %s619 = scalar_lea.vmem %s0, 24
    %s620 = sshrl.u32 %s3, 1
    %s621 = sor.u32 %s3, %s620
    %s622 = sand.u32 %s621, 85
    %s623 = sshrl.u32 %s622, 1
    %s624 = sor.u32 %s622, %s623
    %s625 = sand.u32 51, %s624
    %s626 = sshrl.u32 %s625, 2
    %s627 = sor.u32 %s625, %s626
    %s628 = sand.u32 15, %s627
    %v629 = vld [vmem:[%s619] sm:%s628]
    %v630 = vunpack.c.l.bf16 %v629
    %v631 = vunpack.c.h.bf16 %v629
    %s632 = scalar_lea.vmem [#allocation1], 48
    %633 = vst [vmem:[%s632] sm:%s3] %v630
    %s634 = scalar_lea.vmem %s0, 20
    %s635 = sshrl.u32 %s3, 1
    %s636 = sor.u32 %s3, %s635
    %s637 = sand.u32 %s636, 85
    %s638 = sshrl.u32 %s637, 1
    %s639 = sor.u32 %s637, %s638
    %s640 = sand.u32 51, %s639
    %s641 = sshrl.u32 %s640, 2
    %s642 = sor.u32 %s640, %s641
    %s643 = sand.u32 15, %s642
    %v644 = vld [vmem:[%s634] sm:%s643]
    %v645 = vunpack.c.l.bf16 %v644
    %v646 = vunpack.c.h.bf16 %v644
    %s647 = scalar_lea.vmem [#allocation1], 40
    %648 = vst [vmem:[%s647] sm:%s3] %v645
    %s649 = scalar_lea.vmem %s0, 16
    %s650 = sshrl.u32 %s3, 1
    %s651 = sor.u32 %s3, %s650
    %s652 = sand.u32 %s651, 85
    %s653 = sshrl.u32 %s652, 1
    %s654 = sor.u32 %s652, %s653
    %s655 = sand.u32 51, %s654
    %s656 = sshrl.u32 %s655, 2
    %s657 = sor.u32 %s655, %s656
    %s658 = sand.u32 15, %s657
    %v659 = vld [vmem:[%s649] sm:%s658]
    %v660 = vunpack.c.l.bf16 %v659
    %v661 = vunpack.c.h.bf16 %v659
    %s662 = scalar_lea.vmem [#allocation1], 32
    %663 = vst [vmem:[%s662] sm:%s3] %v660
    %s664 = scalar_lea.vmem %s0, 12
    %s665 = sshrl.u32 %s3, 1
    %s666 = sor.u32 %s3, %s665
    %s667 = sand.u32 %s666, 85
    %s668 = sshrl.u32 %s667, 1
    %s669 = sor.u32 %s667, %s668
    %s670 = sand.u32 51, %s669
    %s671 = sshrl.u32 %s670, 2
    %s672 = sor.u32 %s670, %s671
    %s673 = sand.u32 15, %s672
    %v674 = vld [vmem:[%s664] sm:%s673]
    %v675 = vunpack.c.l.bf16 %v674
    %v676 = vunpack.c.h.bf16 %v674
    %s677 = scalar_lea.vmem [#allocation1], 24
    %678 = vst [vmem:[%s677] sm:%s3] %v675
    %s679 = scalar_lea.vmem %s0, 8
    %s680 = sshrl.u32 %s3, 1
    %s681 = sor.u32 %s3, %s680
    %s682 = sand.u32 %s681, 85
    %s683 = sshrl.u32 %s682, 1
    %s684 = sor.u32 %s682, %s683
    %s685 = sand.u32 51, %s684
    %s686 = sshrl.u32 %s685, 2
    %s687 = sor.u32 %s685, %s686
    %s688 = sand.u32 15, %s687
    %v689 = vld [vmem:[%s679] sm:%s688]
    %v690 = vunpack.c.l.bf16 %v689
    %v691 = vunpack.c.h.bf16 %v689
    %s692 = scalar_lea.vmem [#allocation1], 16
    %693 = vst [vmem:[%s692] sm:%s3] %v690
    %s694 = scalar_lea.vmem %s0, 4
    %s695 = sshrl.u32 %s3, 1
    %s696 = sor.u32 %s3, %s695
    %s697 = sand.u32 %s696, 85
    %s698 = sshrl.u32 %s697, 1
    %s699 = sor.u32 %s697, %s698
    %s700 = sand.u32 51, %s699
    %s701 = sshrl.u32 %s700, 2
    %s702 = sor.u32 %s700, %s701
    %s703 = sand.u32 15, %s702
    %v704 = vld [vmem:[%s694] sm:%s703]
    %v705 = vunpack.c.l.bf16 %v704
    %v706 = vunpack.c.h.bf16 %v704
    %s707 = scalar_lea.vmem [#allocation1], 8
    %708 = vst [vmem:[%s707] sm:%s3] %v705
    %s709 = sshrl.u32 %s3, 1
    %s710 = sor.u32 %s3, %s709
    %s711 = sand.u32 %s710, 85
    %s712 = sshrl.u32 %s711, 1
    %s713 = sor.u32 %s711, %s712
    %s714 = sand.u32 51, %s713
    %s715 = sshrl.u32 %s714, 2
    %s716 = sor.u32 %s714, %s715
    %s717 = sand.u32 15, %s716
    %v718 = vld [vmem:[%s0] sm:%s717]
    %v719 = vunpack.c.l.bf16 %v718
    %v720 = vunpack.c.h.bf16 %v718
    %721 = vst [vmem:[#allocation1] sm:%s3] %v719
    %v722 = vld [vmem:[#allocation1] sm:$0xff]
    %vm723 = vcmask 203776
    %724 = vst.msk [vmem:[#allocation0] sm:$0xff] %vm723, %v722
    %s725 = scalar_lea.vmem [#allocation1], 8
    %v726 = vld [vmem:[%s725] sm:$0xf]
    %vm727 = vcmask 203776
    %s728 = scalar_lea.vmem [#allocation0], 8
    %729 = vst.msk [vmem:[%s728] sm:$0xf] %vm727, %v726
    %s730 = scalar_lea.vmem [#allocation1], 16
    %v731 = vld [vmem:[%s730] sm:$0xff]
    %vm732 = vcmask 203776
    %s733 = scalar_lea.vmem [#allocation0], 12
    %734 = vst.msk [vmem:[%s733] sm:$0xff] %vm732, %v731
    %s735 = scalar_lea.vmem [#allocation1], 24
    %v736 = vld [vmem:[%s735] sm:$0xf]
    %vm737 = vcmask 203776
    %s738 = scalar_lea.vmem [#allocation0], 20
    %739 = vst.msk [vmem:[%s738] sm:$0xf] %vm737, %v736
    %s740 = scalar_lea.vmem [#allocation1], 32
    %v741 = vld [vmem:[%s740] sm:$0xff]
    %vm742 = vcmask 203776
    %s743 = scalar_lea.vmem [#allocation0], 24
    %744 = vst.msk [vmem:[%s743] sm:$0xff] %vm742, %v741
    %s745 = scalar_lea.vmem [#allocation1], 40
    %v746 = vld [vmem:[%s745] sm:$0xf]
    %vm747 = vcmask 203776
    %s748 = scalar_lea.vmem [#allocation0], 32
    %749 = vst.msk [vmem:[%s748] sm:$0xf] %vm747, %v746
    %s750 = scalar_lea.vmem [#allocation1], 48
    %v751 = vld [vmem:[%s750] sm:$0xff]
    %vm752 = vcmask 203776
    %s753 = scalar_lea.vmem [#allocation0], 36
    %754 = vst.msk [vmem:[%s753] sm:$0xff] %vm752, %v751
    %s755 = scalar_lea.vmem [#allocation1], 56
    %v756 = vld [vmem:[%s755] sm:$0xf]
    %vm757 = vcmask 203776
    %s758 = scalar_lea.vmem [#allocation0], 44
    %759 = vst.msk [vmem:[%s758] sm:$0xf] %vm757, %v756
    %s760 = scalar_lea.vmem [#allocation1], 64
    %v761 = vld [vmem:[%s760] sm:$0xff]
    %vm762 = vcmask 203776
    %s763 = scalar_lea.vmem [#allocation0], 48
    %764 = vst.msk [vmem:[%s763] sm:$0xff] %vm762, %v761
    %s765 = scalar_lea.vmem [#allocation1], 72
    %v766 = vld [vmem:[%s765] sm:$0xf]
    %vm767 = vcmask 203776
    %s768 = scalar_lea.vmem [#allocation0], 56
    %769 = vst.msk [vmem:[%s768] sm:$0xf] %vm767, %v766
    %s770 = scalar_lea.vmem [#allocation1], 80
    %v771 = vld [vmem:[%s770] sm:$0xff]
    %vm772 = vcmask 203776
    %s773 = scalar_lea.vmem [#allocation0], 60
    %774 = vst.msk [vmem:[%s773] sm:$0xff] %vm772, %v771
    %s775 = scalar_lea.vmem [#allocation1], 88
    %v776 = vld [vmem:[%s775] sm:$0xf]
    %vm777 = vcmask 203776
    %s778 = scalar_lea.vmem [#allocation0], 68
    %779 = vst.msk [vmem:[%s778] sm:$0xf] %vm777, %v776
    %s780 = scalar_lea.vmem [#allocation1], 96
    %v781 = vld [vmem:[%s780] sm:$0xff]
    %vm782 = vcmask 203776
    %s783 = scalar_lea.vmem [#allocation0], 72
    %784 = vst.msk [vmem:[%s783] sm:$0xff] %vm782, %v781
    %s785 = scalar_lea.vmem [#allocation1], 104
    %v786 = vld [vmem:[%s785] sm:$0xf]
    %vm787 = vcmask 203776
    %s788 = scalar_lea.vmem [#allocation0], 80
    %789 = vst.msk [vmem:[%s788] sm:$0xf] %vm787, %v786
    %s790 = scalar_lea.vmem [#allocation1], 112
    %v791 = vld [vmem:[%s790] sm:$0xff]
    %vm792 = vcmask 203776
    %s793 = scalar_lea.vmem [#allocation0], 84
    %794 = vst.msk [vmem:[%s793] sm:$0xff] %vm792, %v791
    %s795 = scalar_lea.vmem [#allocation1], 120
    %v796 = vld [vmem:[%s795] sm:$0xf]
    %vm797 = vcmask 203776
    %s798 = scalar_lea.vmem [#allocation0], 92
    %799 = vst.msk [vmem:[%s798] sm:$0xf] %vm797, %v796
    %s800 = scalar_lea.vmem [#allocation1], 128
    %v801 = vld [vmem:[%s800] sm:$0xff]
    %vm802 = vcmask 203776
    %s803 = scalar_lea.vmem [#allocation0], 96
    %804 = vst.msk [vmem:[%s803] sm:$0xff] %vm802, %v801
    %s805 = scalar_lea.vmem [#allocation1], 136
    %v806 = vld [vmem:[%s805] sm:$0xf]
    %vm807 = vcmask 203776
    %s808 = scalar_lea.vmem [#allocation0], 104
    %809 = vst.msk [vmem:[%s808] sm:$0xf] %vm807, %v806
    %s810 = scalar_lea.vmem [#allocation1], 144
    %v811 = vld [vmem:[%s810] sm:$0xff]
    %vm812 = vcmask 203776
    %s813 = scalar_lea.vmem [#allocation0], 108
    %814 = vst.msk [vmem:[%s813] sm:$0xff] %vm812, %v811
    %s815 = scalar_lea.vmem [#allocation1], 152
    %v816 = vld [vmem:[%s815] sm:$0xf]
    %vm817 = vcmask 203776
    %s818 = scalar_lea.vmem [#allocation0], 116
    %819 = vst.msk [vmem:[%s818] sm:$0xf] %vm817, %v816
    %s820 = scalar_lea.vmem [#allocation1], 160
    %v821 = vld [vmem:[%s820] sm:$0xff]
    %vm822 = vcmask 203776
    %s823 = scalar_lea.vmem [#allocation0], 120
    %824 = vst.msk [vmem:[%s823] sm:$0xff] %vm822, %v821
    %s825 = scalar_lea.vmem [#allocation1], 168
    %v826 = vld [vmem:[%s825] sm:$0xf]
    %vm827 = vcmask 203776
    %s828 = scalar_lea.vmem [#allocation0], 128
    %829 = vst.msk [vmem:[%s828] sm:$0xf] %vm827, %v826
    %s830 = scalar_lea.vmem [#allocation1], 176
    %v831 = vld [vmem:[%s830] sm:$0xff]
    %vm832 = vcmask 203776
    %s833 = scalar_lea.vmem [#allocation0], 132
    %834 = vst.msk [vmem:[%s833] sm:$0xff] %vm832, %v831
    %s835 = scalar_lea.vmem [#allocation1], 184
    %v836 = vld [vmem:[%s835] sm:$0xf]
    %vm837 = vcmask 203776
    %s838 = scalar_lea.vmem [#allocation0], 140
    %839 = vst.msk [vmem:[%s838] sm:$0xf] %vm837, %v836
    %s840 = scalar_lea.vmem [#allocation1], 192
    %v841 = vld [vmem:[%s840] sm:$0xff]
    %vm842 = vcmask 203776
    %s843 = scalar_lea.vmem [#allocation0], 144
    %844 = vst.msk [vmem:[%s843] sm:$0xff] %vm842, %v841
    %s845 = scalar_lea.vmem [#allocation1], 200
    %v846 = vld [vmem:[%s845] sm:$0xf]
    %vm847 = vcmask 203776
    %s848 = scalar_lea.vmem [#allocation0], 152
    %849 = vst.msk [vmem:[%s848] sm:$0xf] %vm847, %v846
    %s850 = scalar_lea.vmem [#allocation1], 208
    %v851 = vld [vmem:[%s850] sm:$0xff]
    %vm852 = vcmask 203776
    %s853 = scalar_lea.vmem [#allocation0], 156
    %854 = vst.msk [vmem:[%s853] sm:$0xff] %vm852, %v851
    %s855 = scalar_lea.vmem [#allocation1], 216
    %v856 = vld [vmem:[%s855] sm:$0xf]
    %vm857 = vcmask 203776
    %s858 = scalar_lea.vmem [#allocation0], 164
    %859 = vst.msk [vmem:[%s858] sm:$0xf] %vm857, %v856
    %s860 = scalar_lea.vmem [#allocation1], 224
    %v861 = vld [vmem:[%s860] sm:$0xff]
    %vm862 = vcmask 203776
    %s863 = scalar_lea.vmem [#allocation0], 168
    %864 = vst.msk [vmem:[%s863] sm:$0xff] %vm862, %v861
    %s865 = scalar_lea.vmem [#allocation1], 232
    %v866 = vld [vmem:[%s865] sm:$0xf]
    %vm867 = vcmask 203776
    %s868 = scalar_lea.vmem [#allocation0], 176
    %869 = vst.msk [vmem:[%s868] sm:$0xf] %vm867, %v866
    %s870 = scalar_lea.vmem [#allocation1], 240
    %v871 = vld [vmem:[%s870] sm:$0xff]
    %vm872 = vcmask 203776
    %s873 = scalar_lea.vmem [#allocation0], 180
    %874 = vst.msk [vmem:[%s873] sm:$0xff] %vm872, %v871
    %s875 = scalar_lea.vmem [#allocation1], 248
    %v876 = vld [vmem:[%s875] sm:$0xf]
    %vm877 = vcmask 203776
    %s878 = scalar_lea.vmem [#allocation0], 188
    %879 = vst.msk [vmem:[%s878] sm:$0xf] %vm877, %v876
    %s880 = scalar_lea.vmem [#allocation1], 256
    %v881 = vld [vmem:[%s880] sm:$0xff]
    %vm882 = vcmask 203776
    %s883 = scalar_lea.vmem [#allocation0], 192
    %884 = vst.msk [vmem:[%s883] sm:$0xff] %vm882, %v881
    %s885 = scalar_lea.vmem [#allocation1], 264
    %v886 = vld [vmem:[%s885] sm:$0xf]
    %vm887 = vcmask 203776
    %s888 = scalar_lea.vmem [#allocation0], 200
    %889 = vst.msk [vmem:[%s888] sm:$0xf] %vm887, %v886
    %s890 = scalar_lea.vmem [#allocation1], 272
    %v891 = vld [vmem:[%s890] sm:$0xff]
    %vm892 = vcmask 203776
    %s893 = scalar_lea.vmem [#allocation0], 204
    %894 = vst.msk [vmem:[%s893] sm:$0xff] %vm892, %v891
    %s895 = scalar_lea.vmem [#allocation1], 280
    %v896 = vld [vmem:[%s895] sm:$0xf]
    %vm897 = vcmask 203776
    %s898 = scalar_lea.vmem [#allocation0], 212
    %899 = vst.msk [vmem:[%s898] sm:$0xf] %vm897, %v896
    %s900 = scalar_lea.vmem [#allocation1], 288
    %v901 = vld [vmem:[%s900] sm:$0xff]
    %vm902 = vcmask 203776
    %s903 = scalar_lea.vmem [#allocation0], 216
    %904 = vst.msk [vmem:[%s903] sm:$0xff] %vm902, %v901
    %s905 = scalar_lea.vmem [#allocation1], 296
    %v906 = vld [vmem:[%s905] sm:$0xf]
    %vm907 = vcmask 203776
    %s908 = scalar_lea.vmem [#allocation0], 224
    %909 = vst.msk [vmem:[%s908] sm:$0xf] %vm907, %v906
    %s910 = scalar_lea.vmem [#allocation1], 304
    %v911 = vld [vmem:[%s910] sm:$0xff]
    %vm912 = vcmask 203776
    %s913 = scalar_lea.vmem [#allocation0], 228
    %914 = vst.msk [vmem:[%s913] sm:$0xff] %vm912, %v911
    %s915 = scalar_lea.vmem [#allocation1], 312
    %v916 = vld [vmem:[%s915] sm:$0xf]
    %vm917 = vcmask 203776
    %s918 = scalar_lea.vmem [#allocation0], 236
    %919 = vst.msk [vmem:[%s918] sm:$0xf] %vm917, %v916
    %s920 = scalar_lea.vmem [#allocation1], 320
    %v921 = vld [vmem:[%s920] sm:$0xff]
    %vm922 = vcmask 203776
    %s923 = scalar_lea.vmem [#allocation0], 240
    %924 = vst.msk [vmem:[%s923] sm:$0xff] %vm922, %v921
    %s925 = scalar_lea.vmem [#allocation1], 328
    %v926 = vld [vmem:[%s925] sm:$0xf]
    %vm927 = vcmask 203776
    %s928 = scalar_lea.vmem [#allocation0], 248
    %929 = vst.msk [vmem:[%s928] sm:$0xf] %vm927, %v926
    %s930 = scalar_lea.vmem [#allocation1], 336
    %v931 = vld [vmem:[%s930] sm:$0xff]
    %vm932 = vcmask 203776
    %s933 = scalar_lea.vmem [#allocation0], 252
    %934 = vst.msk [vmem:[%s933] sm:$0xff] %vm932, %v931
    %s935 = scalar_lea.vmem [#allocation1], 344
    %v936 = vld [vmem:[%s935] sm:$0xf]
    %vm937 = vcmask 203776
    %s938 = scalar_lea.vmem [#allocation0], 260
    %939 = vst.msk [vmem:[%s938] sm:$0xf] %vm937, %v936
    %s940 = scalar_lea.vmem [#allocation1], 352
    %v941 = vld [vmem:[%s940] sm:$0xff]
    %vm942 = vcmask 203776
    %s943 = scalar_lea.vmem [#allocation0], 264
    %944 = vst.msk [vmem:[%s943] sm:$0xff] %vm942, %v941
    %s945 = scalar_lea.vmem [#allocation1], 360
    %v946 = vld [vmem:[%s945] sm:$0xf]
    %vm947 = vcmask 203776
    %s948 = scalar_lea.vmem [#allocation0], 272
    %949 = vst.msk [vmem:[%s948] sm:$0xf] %vm947, %v946
    %s950 = scalar_lea.vmem [#allocation1], 368
    %v951 = vld [vmem:[%s950] sm:$0xff]
    %vm952 = vcmask 203776
    %s953 = scalar_lea.vmem [#allocation0], 276
    %954 = vst.msk [vmem:[%s953] sm:$0xff] %vm952, %v951
    %s955 = scalar_lea.vmem [#allocation1], 376
    %v956 = vld [vmem:[%s955] sm:$0xf]
    %vm957 = vcmask 203776
    %s958 = scalar_lea.vmem [#allocation0], 284
    %959 = vst.msk [vmem:[%s958] sm:$0xf] %vm957, %v956
    %s961 = ssub.s32 256, 1
    %v962 = vld [vmem:[#allocation0] sm:%s961]
    %v963 = vpack.c.bf16 0.0, %v962
    %s965 = ssub.s32 16, 1
    %966 = vst [vmem:[%s1] sm:%s965] %v963
    %s967 = scalar_lea.vmem [#allocation0], 8
    %v968 = vld [vmem:[%s967] sm:%s961]
    %v969 = vpack.c.bf16 0.0, %v968
    %s971 = ssub.s32 16, 1
    %s972 = scalar_lea.vmem %s1, 4
    %973 = vst [vmem:[%s972] sm:%s971] %v969
    %s974 = scalar_lea.vmem [#allocation0], 16
    %v975 = vld [vmem:[%s974] sm:%s961]
    %v976 = vpack.c.bf16 0.0, %v975
    %s978 = ssub.s32 16, 1
    %s979 = scalar_lea.vmem %s1, 8
    %980 = vst [vmem:[%s979] sm:%s978] %v976
    %s981 = scalar_lea.vmem [#allocation0], 24
    %v982 = vld [vmem:[%s981] sm:%s961]
    %v983 = vpack.c.bf16 0.0, %v982
    %s985 = ssub.s32 16, 1
    %s986 = scalar_lea.vmem %s1, 12
    %987 = vst [vmem:[%s986] sm:%s985] %v983
    %s988 = scalar_lea.vmem [#allocation0], 32
    %v989 = vld [vmem:[%s988] sm:%s961]
    %v990 = vpack.c.bf16 0.0, %v989
    %s992 = ssub.s32 16, 1
    %s993 = scalar_lea.vmem %s1, 16
    %994 = vst [vmem:[%s993] sm:%s992] %v990
    %s995 = scalar_lea.vmem [#allocation0], 40
    %v996 = vld [vmem:[%s995] sm:%s961]
    %v997 = vpack.c.bf16 0.0, %v996
    %s999 = ssub.s32 16, 1
    %s1000 = scalar_lea.vmem %s1, 20
    %1001 = vst [vmem:[%s1000] sm:%s999] %v997
    %s1002 = scalar_lea.vmem [#allocation0], 48
    %v1003 = vld [vmem:[%s1002] sm:%s961]
    %v1004 = vpack.c.bf16 0.0, %v1003
    %s1006 = ssub.s32 16, 1
    %s1007 = scalar_lea.vmem %s1, 24
    %1008 = vst [vmem:[%s1007] sm:%s1006] %v1004
    %s1009 = scalar_lea.vmem [#allocation0], 56
    %v1010 = vld [vmem:[%s1009] sm:%s961]
    %v1011 = vpack.c.bf16 0.0, %v1010
    %s1013 = ssub.s32 16, 1
    %s1014 = scalar_lea.vmem %s1, 28
    %1015 = vst [vmem:[%s1014] sm:%s1013] %v1011
    %s1016 = scalar_lea.vmem [#allocation0], 64
    %v1017 = vld [vmem:[%s1016] sm:%s961]
    %v1018 = vpack.c.bf16 0.0, %v1017
    %s1020 = ssub.s32 16, 1
    %s1021 = scalar_lea.vmem %s1, 32
    %1022 = vst [vmem:[%s1021] sm:%s1020] %v1018
    %s1023 = scalar_lea.vmem [#allocation0], 72
    %v1024 = vld [vmem:[%s1023] sm:%s961]
    %v1025 = vpack.c.bf16 0.0, %v1024
    %s1027 = ssub.s32 16, 1
    %s1028 = scalar_lea.vmem %s1, 36
    %1029 = vst [vmem:[%s1028] sm:%s1027] %v1025
    %s1030 = scalar_lea.vmem [#allocation0], 80
    %v1031 = vld [vmem:[%s1030] sm:%s961]
    %v1032 = vpack.c.bf16 0.0, %v1031
    %s1034 = ssub.s32 16, 1
    %s1035 = scalar_lea.vmem %s1, 40
    %1036 = vst [vmem:[%s1035] sm:%s1034] %v1032
    %s1037 = scalar_lea.vmem [#allocation0], 88
    %v1038 = vld [vmem:[%s1037] sm:%s961]
    %v1039 = vpack.c.bf16 0.0, %v1038
    %s1041 = ssub.s32 16, 1
    %s1042 = scalar_lea.vmem %s1, 44
    %1043 = vst [vmem:[%s1042] sm:%s1041] %v1039
    %s1044 = scalar_lea.vmem [#allocation0], 96
    %v1045 = vld [vmem:[%s1044] sm:%s961]
    %v1046 = vpack.c.bf16 0.0, %v1045
    %s1048 = ssub.s32 16, 1
    %s1049 = scalar_lea.vmem %s1, 48
    %1050 = vst [vmem:[%s1049] sm:%s1048] %v1046
    %s1051 = scalar_lea.vmem [#allocation0], 104
    %v1052 = vld [vmem:[%s1051] sm:%s961]
    %v1053 = vpack.c.bf16 0.0, %v1052
    %s1055 = ssub.s32 16, 1
    %s1056 = scalar_lea.vmem %s1, 52
    %1057 = vst [vmem:[%s1056] sm:%s1055] %v1053
    %s1058 = scalar_lea.vmem [#allocation0], 112
    %v1059 = vld [vmem:[%s1058] sm:%s961]
    %v1060 = vpack.c.bf16 0.0, %v1059
    %s1062 = ssub.s32 16, 1
    %s1063 = scalar_lea.vmem %s1, 56
    %1064 = vst [vmem:[%s1063] sm:%s1062] %v1060
    %s1065 = scalar_lea.vmem [#allocation0], 120
    %v1066 = vld [vmem:[%s1065] sm:%s961]
    %v1067 = vpack.c.bf16 0.0, %v1066
    %s1069 = ssub.s32 16, 1
    %s1070 = scalar_lea.vmem %s1, 60
    %1071 = vst [vmem:[%s1070] sm:%s1069] %v1067
    %s1072 = scalar_lea.vmem [#allocation0], 128
    %v1073 = vld [vmem:[%s1072] sm:%s961]
    %v1074 = vpack.c.bf16 0.0, %v1073
    %s1076 = ssub.s32 16, 1
    %s1077 = scalar_lea.vmem %s1, 64
    %1078 = vst [vmem:[%s1077] sm:%s1076] %v1074
    %s1079 = scalar_lea.vmem [#allocation0], 136
    %v1080 = vld [vmem:[%s1079] sm:%s961]
    %v1081 = vpack.c.bf16 0.0, %v1080
    %s1083 = ssub.s32 16, 1
    %s1084 = scalar_lea.vmem %s1, 68
    %1085 = vst [vmem:[%s1084] sm:%s1083] %v1081
    %s1086 = scalar_lea.vmem [#allocation0], 144
    %v1087 = vld [vmem:[%s1086] sm:%s961]
    %v1088 = vpack.c.bf16 0.0, %v1087
    %s1090 = ssub.s32 16, 1
    %s1091 = scalar_lea.vmem %s1, 72
    %1092 = vst [vmem:[%s1091] sm:%s1090] %v1088
    %s1093 = scalar_lea.vmem [#allocation0], 152
    %v1094 = vld [vmem:[%s1093] sm:%s961]
    %v1095 = vpack.c.bf16 0.0, %v1094
    %s1097 = ssub.s32 16, 1
    %s1098 = scalar_lea.vmem %s1, 76
    %1099 = vst [vmem:[%s1098] sm:%s1097] %v1095
    %s1100 = scalar_lea.vmem [#allocation0], 160
    %v1101 = vld [vmem:[%s1100] sm:%s961]
    %v1102 = vpack.c.bf16 0.0, %v1101
    %s1104 = ssub.s32 16, 1
    %s1105 = scalar_lea.vmem %s1, 80
    %1106 = vst [vmem:[%s1105] sm:%s1104] %v1102
    %s1107 = scalar_lea.vmem [#allocation0], 168
    %v1108 = vld [vmem:[%s1107] sm:%s961]
    %v1109 = vpack.c.bf16 0.0, %v1108
    %s1111 = ssub.s32 16, 1
    %s1112 = scalar_lea.vmem %s1, 84
    %1113 = vst [vmem:[%s1112] sm:%s1111] %v1109
    %s1114 = scalar_lea.vmem [#allocation0], 176
    %v1115 = vld [vmem:[%s1114] sm:%s961]
    %v1116 = vpack.c.bf16 0.0, %v1115
    %s1118 = ssub.s32 16, 1
    %s1119 = scalar_lea.vmem %s1, 88
    %1120 = vst [vmem:[%s1119] sm:%s1118] %v1116
    %s1121 = scalar_lea.vmem [#allocation0], 184
    %v1122 = vld [vmem:[%s1121] sm:%s961]
    %v1123 = vpack.c.bf16 0.0, %v1122
    %s1125 = ssub.s32 16, 1
    %s1126 = scalar_lea.vmem %s1, 92
    %1127 = vst [vmem:[%s1126] sm:%s1125] %v1123
    %s1128 = scalar_lea.vmem [#allocation0], 192
    %v1129 = vld [vmem:[%s1128] sm:%s961]
    %v1130 = vpack.c.bf16 0.0, %v1129
    %s1132 = ssub.s32 16, 1
    %s1133 = scalar_lea.vmem %s1, 96
    %1134 = vst [vmem:[%s1133] sm:%s1132] %v1130
    %s1135 = scalar_lea.vmem [#allocation0], 200
    %v1136 = vld [vmem:[%s1135] sm:%s961]
    %v1137 = vpack.c.bf16 0.0, %v1136
    %s1139 = ssub.s32 16, 1
    %s1140 = scalar_lea.vmem %s1, 100
    %1141 = vst [vmem:[%s1140] sm:%s1139] %v1137
    %s1142 = scalar_lea.vmem [#allocation0], 208
    %v1143 = vld [vmem:[%s1142] sm:%s961]
    %v1144 = vpack.c.bf16 0.0, %v1143
    %s1146 = ssub.s32 16, 1
    %s1147 = scalar_lea.vmem %s1, 104
    %1148 = vst [vmem:[%s1147] sm:%s1146] %v1144
    %s1149 = scalar_lea.vmem [#allocation0], 216
    %v1150 = vld [vmem:[%s1149] sm:%s961]
    %v1151 = vpack.c.bf16 0.0, %v1150
    %s1153 = ssub.s32 16, 1
    %s1154 = scalar_lea.vmem %s1, 108
    %1155 = vst [vmem:[%s1154] sm:%s1153] %v1151
    %s1156 = scalar_lea.vmem [#allocation0], 224
    %v1157 = vld [vmem:[%s1156] sm:%s961]
    %v1158 = vpack.c.bf16 0.0, %v1157
    %s1160 = ssub.s32 16, 1
    %s1161 = scalar_lea.vmem %s1, 112
    %1162 = vst [vmem:[%s1161] sm:%s1160] %v1158
    %s1163 = scalar_lea.vmem [#allocation0], 232
    %v1164 = vld [vmem:[%s1163] sm:%s961]
    %v1165 = vpack.c.bf16 0.0, %v1164
    %s1167 = ssub.s32 16, 1
    %s1168 = scalar_lea.vmem %s1, 116
    %1169 = vst [vmem:[%s1168] sm:%s1167] %v1165
    %s1170 = scalar_lea.vmem [#allocation0], 240
    %v1171 = vld [vmem:[%s1170] sm:%s961]
    %v1172 = vpack.c.bf16 0.0, %v1171
    %s1174 = ssub.s32 16, 1
    %s1175 = scalar_lea.vmem %s1, 120
    %1176 = vst [vmem:[%s1175] sm:%s1174] %v1172
    %s1177 = scalar_lea.vmem [#allocation0], 248
    %v1178 = vld [vmem:[%s1177] sm:%s961]
    %v1179 = vpack.c.bf16 0.0, %v1178
    %s1181 = ssub.s32 16, 1
    %s1182 = scalar_lea.vmem %s1, 124
    %1183 = vst [vmem:[%s1182] sm:%s1181] %v1179
    %s1184 = scalar_lea.vmem [#allocation0], 256
    %v1185 = vld [vmem:[%s1184] sm:%s961]
    %v1186 = vpack.c.bf16 0.0, %v1185
    %s1188 = ssub.s32 16, 1
    %s1189 = scalar_lea.vmem %s1, 128
    %1190 = vst [vmem:[%s1189] sm:%s1188] %v1186
    %s1191 = scalar_lea.vmem [#allocation0], 264
    %v1192 = vld [vmem:[%s1191] sm:%s961]
    %v1193 = vpack.c.bf16 0.0, %v1192
    %s1195 = ssub.s32 16, 1
    %s1196 = scalar_lea.vmem %s1, 132
    %1197 = vst [vmem:[%s1196] sm:%s1195] %v1193
    %s1198 = scalar_lea.vmem [#allocation0], 272
    %v1199 = vld [vmem:[%s1198] sm:%s961]
    %v1200 = vpack.c.bf16 0.0, %v1199
    %s1202 = ssub.s32 16, 1
    %s1203 = scalar_lea.vmem %s1, 136
    %1204 = vst [vmem:[%s1203] sm:%s1202] %v1200
    %s1205 = scalar_lea.vmem [#allocation0], 280
    %v1206 = vld [vmem:[%s1205] sm:%s961]
    %v1207 = vpack.c.bf16 0.0, %v1206
    %s1209 = ssub.s32 16, 1
    %s1210 = scalar_lea.vmem %s1, 140
    %1211 = vst [vmem:[%s1210] sm:%s1209] %v1207

// kernel: discriminator_forward.3
$region0: #{discriminator_forward.3}
  #allocation0 [shape = 'u32[]', space=smem, size = 0x4, offset = 0x4, fixed_abs, tag = 'smem constant byte address 0x4 - core index']
  #allocation1 [shape = 'u32[72,128]{1,0:T(1,128)}', space=vmem, size = 0x9000, scoped, tag = 'internal scratch']
  %s0 = inlined_call_operand.vmem [shape: bf16[288,32], index: 0, kind: input, shape index: {}]
  %s1 = inlined_call_operand.vmem [shape: bf16[288,32], index: 1, kind: input, shape index: {}]
  %s2 = inlined_call_operand.vmem [shape: bf16[288,32], index: 2, kind: input, shape index: {}]
  %s3 = inlined_call_operand.vmem [shape: bf16[288,32], index: 3, kind: input, shape index: {}]
  %s4 = inlined_call_operand.vmem [shape: bf16[32,32], index: 4, kind: input, shape index: {}]
  %s5 = inlined_call_operand.vmem [shape: f32[1,32], index: 5, kind: input, shape index: {}]
  %s6 = inlined_call_operand.vmem [shape: f32[288,32], index: 6, kind: output, shape index: {}]
  %s7 = sld [smem:[#allocation0]]
  $region105: #{discriminator_forward.3} parent=0
    _
  %s9 = ssub.s32 1, %s7
  %s10 = scalar_select 0, %s9, %s7
  $region1: #{discriminator_forward.3} parent=0
    #allocation2 [shape = 'u8[131072]{0}', space=vmem, size = 0x20000, scoped, tag = 'output window, operand 0']
    loop: start=0, step=1, limit=5
    $region2: #{discriminator_forward.3} parent=1 // loop_pre_header
      _
    $region3: #{discriminator_forward.3} parent=1 // loop_header
      %s12 = sphi 0, %s16
      %p13 = scmp.ge.s32.totalorder %s12, 5
      %s22 = sphi 0, %s24
      %s25 = sphi 0, %s22
      %s26 = sphi 0, %s25
      %s42 = sphi 0, %s26
      %s48 = sphi 0, %s50
      %s51 = sphi 0, %s48
      %s52 = sphi 0, %s51
      %s68 = sphi 0, %s52
      %s74 = sphi 0, %s76
      %s77 = sphi 0, %s74
      %s78 = sphi 0, %s77
      %s94 = sphi 0, %s78
      %s100 = sphi 0, %s102
      %s103 = sphi 0, %s100
      %s104 = sphi 0, %s103
      %s120 = sphi 0, %s104
      %s124 = sphi 0, %s124
      %s126 = sphi 0, %s124
      %s127 = sphi 0, %s126
      %s141 = sphi 0, %s127
      %s145 = sphi 0, %s145
      %s147 = sphi 0, %s145
      %s148 = sphi 0, %s147
      %s162 = sphi 0, %s148
      %s168 = sphi 0, %s170
      %s171 = sphi 0, %s168
      %s172 = sphi 0, %s171
      %s188 = sphi 0, %s172
    $region4: #{discriminator_forward.3} parent=1 // loop_header_branch
      %15 = sbr.rel (%p13) target = $region8
    $region5: #{discriminator_forward.3} parent=1 // loop_body
      %s17 = ssub.s32 %s12, 1
      %s18 = ssub.s32 %s12, 2
      %s19 = sadd.s32 %s12, 1
      %s20 = ssub.s32 %s12, %s19
      %p21 = scmp.eq.s32.totalorder %s20, 0
      %s23 = sadd.s32 %s22, 1
      %s24 = scalar_select %p21, %s22, %s23
      %p27 = pneg %p21
      %p28 = scmp.eq.s32.totalorder %s12, 2
      %p29 = por %p27, %p28
      %p30 = scmp.ne.s32.totalorder %s22, %s25
      %p31 = scmp.eq.s32.totalorder %s12, 0
      %p32 = por %p30, %p31
      %p33 = scmp.ne.s32.totalorder %s22, %s25
      %p34 = scmp.eq.s32.totalorder %s17, 2
      %p35 = por %p33, %p34
      %p36 = scmp.ne.s32.totalorder %s25, %s26
      %p37 = scmp.eq.s32.totalorder %s17, 0
      %p38 = por %p36, %p37
      %p39 = scmp.ne.s32.totalorder %s25, %s26
      %p40 = scmp.eq.s32.totalorder %s18, 2
      %p41 = por %p39, %p40
      %p43 = scmp.ne.s32.totalorder %s26, %s42
      %p44 = scmp.eq.s32.totalorder %s18, 0
      %p45 = por %p43, %p44
      %s46 = ssub.s32 %s12, %s19
      %p47 = scmp.eq.s32.totalorder %s46, 0
      %s49 = sadd.s32 %s48, 1
      %s50 = scalar_select %p47, %s48, %s49
      %p53 = pneg %p47
      %p54 = scmp.eq.s32.totalorder %s12, 2
      %p55 = por %p53, %p54
      %p56 = scmp.ne.s32.totalorder %s48, %s51
      %p57 = scmp.eq.s32.totalorder %s12, 0
      %p58 = por %p56, %p57
      %p59 = scmp.ne.s32.totalorder %s48, %s51
      %p60 = scmp.eq.s32.totalorder %s17, 2
      %p61 = por %p59, %p60
      %p62 = scmp.ne.s32.totalorder %s51, %s52
      %p63 = scmp.eq.s32.totalorder %s17, 0
      %p64 = por %p62, %p63
      %p65 = scmp.ne.s32.totalorder %s51, %s52
      %p66 = scmp.eq.s32.totalorder %s18, 2
      %p67 = por %p65, %p66
      %p69 = scmp.ne.s32.totalorder %s52, %s68
      %p70 = scmp.eq.s32.totalorder %s18, 0
      %p71 = por %p69, %p70
      %s72 = ssub.s32 %s12, %s19
      %p73 = scmp.eq.s32.totalorder %s72, 0
      %s75 = sadd.s32 %s74, 1
      %s76 = scalar_select %p73, %s74, %s75
      %p79 = pneg %p73
      %p80 = scmp.eq.s32.totalorder %s12, 2
      %p81 = por %p79, %p80
      %p82 = scmp.ne.s32.totalorder %s74, %s77
      %p83 = scmp.eq.s32.totalorder %s12, 0
      %p84 = por %p82, %p83
      %p85 = scmp.ne.s32.totalorder %s74, %s77
      %p86 = scmp.eq.s32.totalorder %s17, 2
      %p87 = por %p85, %p86
      %p88 = scmp.ne.s32.totalorder %s77, %s78
      %p89 = scmp.eq.s32.totalorder %s17, 0
      %p90 = por %p88, %p89
      %p91 = scmp.ne.s32.totalorder %s77, %s78
      %p92 = scmp.eq.s32.totalorder %s18, 2
      %p93 = por %p91, %p92
      %p95 = scmp.ne.s32.totalorder %s78, %s94
      %p96 = scmp.eq.s32.totalorder %s18, 0
      %p97 = por %p95, %p96
      %s98 = ssub.s32 %s12, %s19
      %p99 = scmp.eq.s32.totalorder %s98, 0
      %s101 = sadd.s32 %s100, 1
      %s102 = scalar_select %p99, %s100, %s101
      %p105 = pneg %p99
      %p106 = scmp.eq.s32.totalorder %s12, 2
      %p107 = por %p105, %p106
      %p108 = scmp.ne.s32.totalorder %s100, %s103
      %p109 = scmp.eq.s32.totalorder %s12, 0
      %p110 = por %p108, %p109
      %p111 = scmp.ne.s32.totalorder %s100, %s103
      %p112 = scmp.eq.s32.totalorder %s17, 2
      %p113 = por %p111, %p112
      %p114 = scmp.ne.s32.totalorder %s103, %s104
      %p115 = scmp.eq.s32.totalorder %s17, 0
      %p116 = por %p114, %p115
      %p117 = scmp.ne.s32.totalorder %s103, %s104
      %p118 = scmp.eq.s32.totalorder %s18, 2
      %p119 = por %p117, %p118
      %p121 = scmp.ne.s32.totalorder %s104, %s120
      %p122 = scmp.eq.s32.totalorder %s18, 0
      %p123 = por %p121, %p122
      %s125 = sadd.s32 %s124, 1
      %p128 = scmp.eq.s32.totalorder %s12, 2
      %p129 = scmp.ne.s32.totalorder %s124, %s126
      %p130 = scmp.eq.s32.totalorder %s12, 0
      %p131 = por %p129, %p130
      %p132 = scmp.ne.s32.totalorder %s124, %s126
      %p133 = scmp.eq.s32.totalorder %s17, 2
      %p134 = por %p132, %p133
      %p135 = scmp.ne.s32.totalorder %s126, %s127
      %p136 = scmp.eq.s32.totalorder %s17, 0
      %p137 = por %p135, %p136
      %p138 = scmp.ne.s32.totalorder %s126, %s127
      %p139 = scmp.eq.s32.totalorder %s18, 2
      %p140 = por %p138, %p139
      %p142 = scmp.ne.s32.totalorder %s127, %s141
      %p143 = scmp.eq.s32.totalorder %s18, 0
      %p144 = por %p142, %p143
      %s146 = sadd.s32 %s145, 1
      %p149 = scmp.eq.s32.totalorder %s12, 2
      %p150 = scmp.ne.s32.totalorder %s145, %s147
      %p151 = scmp.eq.s32.totalorder %s12, 0
      %p152 = por %p150, %p151
      %p153 = scmp.ne.s32.totalorder %s145, %s147
      %p154 = scmp.eq.s32.totalorder %s17, 2
      %p155 = por %p153, %p154
      %p156 = scmp.ne.s32.totalorder %s147, %s148
      %p157 = scmp.eq.s32.totalorder %s17, 0
      %p158 = por %p156, %p157
      %p159 = scmp.ne.s32.totalorder %s147, %s148
      %p160 = scmp.eq.s32.totalorder %s18, 2
      %p161 = por %p159, %p160
      %p163 = scmp.ne.s32.totalorder %s148, %s162
      %p164 = scmp.eq.s32.totalorder %s18, 0
      %p165 = por %p163, %p164
      %s166 = ssub.s32 %s12, %s19
      %p167 = scmp.eq.s32.totalorder %s166, 0
      %s169 = sadd.s32 %s168, 1
      %s170 = scalar_select %p167, %s168, %s169
      %p173 = pneg %p167
      %p174 = scmp.eq.s32.totalorder %s12, 2
      %p175 = por %p173, %p174
      %p176 = scmp.ne.s32.totalorder %s168, %s171
      %p177 = scmp.eq.s32.totalorder %s12, 0
      %p178 = por %p176, %p177
      %p179 = scmp.ne.s32.totalorder %s168, %s171
      %p180 = scmp.eq.s32.totalorder %s17, 2
      %p181 = por %p179, %p180
      %p182 = scmp.ne.s32.totalorder %s171, %s172
      %p183 = scmp.eq.s32.totalorder %s17, 0
      %p184 = por %p182, %p183
      %p185 = scmp.ne.s32.totalorder %s171, %s172
      %p186 = scmp.eq.s32.totalorder %s18, 2
      %p187 = por %p185, %p186
      %p189 = scmp.ne.s32.totalorder %s172, %s188
      %p190 = scmp.eq.s32.totalorder %s18, 0
      %p191 = por %p189, %p190
      %p192 = scmp.le.s32.totalorder 1, %s12
      %p193 = scmp.lt.s32.totalorder %s12, 4
      %p194 = pnand %p192, %p193
      %p195 = pneg %p194
      // Predicated region
      $region9: #{discriminator_forward.3} parent=5 // pred_check
        _
      $region10: #{discriminator_forward.3} parent=5 // pred_check_branch
        %197 = sbr.rel (%p194) target = $region12
      $region11: #{discriminator_forward.3} parent=5 // pred_region
        %s198 = ssub.s32 %s12, 1
        // Predicated region
        $region13: #{discriminator_forward.3} parent=11 // pred_check
          %p199 = pneg %p137
        $region14: #{discriminator_forward.3} parent=11 // pred_check_branch
          %201 = sbr.rel (%p199) target = $region16
        $region15: #{discriminator_forward.3} parent=11 // pred_region
          _
        $region16: #{discriminator_forward.3} parent=11 // pred_fallthru
          _
        // Predicated region
        $region17: #{discriminator_forward.3} parent=11 // pred_check
          %p202 = pneg %p158
        $region18: #{discriminator_forward.3} parent=11 // pred_check_branch
          %204 = sbr.rel (%p202) target = $region20
        $region19: #{discriminator_forward.3} parent=11 // pred_region
          _
        $region20: #{discriminator_forward.3} parent=11 // pred_fallthru
          _
      $region12: #{discriminator_forward.3} parent=5 // pred_fallthru
        _
      %p205 = scmp.lt.s32.totalorder %s12, 3
      // Predicated region
      $region21: #{discriminator_forward.3} parent=5 // pred_check
        %p206 = pneg %p205
      $region22: #{discriminator_forward.3} parent=5 // pred_check_branch
        %208 = sbr.rel (%p206) target = $region24
      $region23: #{discriminator_forward.3} parent=5 // pred_region
        // Predicated region
        $region25: #{discriminator_forward.3} parent=23 // pred_check
          %p209 = pneg %p32
        $region26: #{discriminator_forward.3} parent=23 // pred_check_branch
          %211 = sbr.rel (%p209) target = $region28
        $region27: #{discriminator_forward.3} parent=23 // pred_region
          %s212 = smul.u32 16, %s12
          %s213 = ssub.s32 36, %s212
          %p214 = scmp.lt.s32.totalorder %s213, 16
          %s215 = scalar_select %p214, %s213, 16
          %s216 = smul.u32 4, %s215
          %p217 = scmp.lt.s32.totalorder %s212, 35
          %s218 = scalar_select %p217, %s212, 35
          %s219 = smul.addr %s218, 4
          %s220 = scalar_lea.vmem %s0, %s219
          %s221 = smul.u32 16, %s12
          %s222 = ssub.s32 36, %s221
          %p223 = scmp.lt.s32.totalorder %s222, 16
          %s224 = scalar_select %p223, %s222, 16
          %s225 = smul.u32 4, %s224
        $region28: #{discriminator_forward.3} parent=23 // pred_fallthru
          _
        // Predicated region
        $region29: #{discriminator_forward.3} parent=23 // pred_check
          %p226 = pneg %p58
        $region30: #{discriminator_forward.3} parent=23 // pred_check_branch
          %228 = sbr.rel (%p226) target = $region32
        $region31: #{discriminator_forward.3} parent=23 // pred_region
          %s229 = smul.u32 16, %s12
          %s230 = ssub.s32 36, %s229
          %p231 = scmp.lt.s32.totalorder %s230, 16
          %s232 = scalar_select %p231, %s230, 16
          %s233 = smul.u32 4, %s232
          %p234 = scmp.lt.s32.totalorder %s229, 35
          %s235 = scalar_select %p234, %s229, 35
          %s236 = smul.addr %s235, 4
          %s237 = scalar_lea.vmem %s1, %s236
          %s238 = smul.u32 16, %s12
          %s239 = ssub.s32 36, %s238
          %p240 = scmp.lt.s32.totalorder %s239, 16
          %s241 = scalar_select %p240, %s239, 16
          %s242 = smul.u32 4, %s241
        $region32: #{discriminator_forward.3} parent=23 // pred_fallthru
          _
        // Predicated region
        $region33: #{discriminator_forward.3} parent=23 // pred_check
          %p243 = pneg %p84
        $region34: #{discriminator_forward.3} parent=23 // pred_check_branch
          %245 = sbr.rel (%p243) target = $region36
        $region35: #{discriminator_forward.3} parent=23 // pred_region
          %s246 = smul.u32 16, %s12
          %s247 = ssub.s32 36, %s246
          %p248 = scmp.lt.s32.totalorder %s247, 16
          %s249 = scalar_select %p248, %s247, 16
          %s250 = smul.u32 4, %s249
          %p251 = scmp.lt.s32.totalorder %s246, 35
          %s252 = scalar_select %p251, %s246, 35
          %s253 = smul.addr %s252, 4
          %s254 = scalar_lea.vmem %s2, %s253
          %s255 = smul.u32 16, %s12
          %s256 = ssub.s32 36, %s255
          %p257 = scmp.lt.s32.totalorder %s256, 16
          %s258 = scalar_select %p257, %s256, 16
          %s259 = smul.u32 4, %s258
        $region36: #{discriminator_forward.3} parent=23 // pred_fallthru
          _
        // Predicated region
        $region37: #{discriminator_forward.3} parent=23 // pred_check
          %p260 = pneg %p110
        $region38: #{discriminator_forward.3} parent=23 // pred_check_branch
          %262 = sbr.rel (%p260) target = $region40
        $region39: #{discriminator_forward.3} parent=23 // pred_region
          %s263 = smul.u32 16, %s12
          %s264 = ssub.s32 36, %s263
          %p265 = scmp.lt.s32.totalorder %s264, 16
          %s266 = scalar_select %p265, %s264, 16
          %s267 = smul.u32 4, %s266
          %p268 = scmp.lt.s32.totalorder %s263, 35
          %s269 = scalar_select %p268, %s263, 35
          %s270 = smul.addr %s269, 4
          %s271 = scalar_lea.vmem %s3, %s270
          %s272 = smul.u32 16, %s12
          %s273 = ssub.s32 36, %s272
          %p274 = scmp.lt.s32.totalorder %s273, 16
          %s275 = scalar_select %p274, %s273, 16
          %s276 = smul.u32 4, %s275
        $region40: #{discriminator_forward.3} parent=23 // pred_fallthru
          _
      $region24: #{discriminator_forward.3} parent=5 // pred_fallthru
        _
      %p277 = scmp.le.s32.totalorder 1, %s12
      %p278 = scmp.lt.s32.totalorder %s12, 4
      %p279 = pnand %p277, %p278
      %p280 = pneg %p279
      // Predicated region
      $region41: #{discriminator_forward.3} parent=5 // pred_check
        _
      $region42: #{discriminator_forward.3} parent=5 // pred_check_branch
        %282 = sbr.rel (%p279) target = $region44
      $region43: #{discriminator_forward.3} parent=5 // pred_region
        %s283 = ssub.s32 %s12, 1
        %s284 = smul.u32 16, %s17
        %s285 = ssub.s32 36, %s284
        %p286 = scmp.lt.s32.totalorder %s285, 16
        %s287 = scalar_select %p286, %s285, 16
        %s288 = smul.u32 4, %s287
        %p289 = scmp.lt.s32.totalorder %s284, 35
        %s290 = scalar_select %p289, %s284, 35
        %s291 = smul.addr %s290, 4
        %s292 = scalar_lea.vmem %s0, %s291
        %p293 = pneg %p38
        %p294 = pneg %p35
        %s295 = smul.u32 16, %s17
        %s296 = ssub.s32 36, %s295
        %p297 = scmp.lt.s32.totalorder %s296, 16
        %s298 = scalar_select %p297, %s296, 16
        %s299 = smul.u32 4, %s298
        %p300 = scmp.lt.s32.totalorder %s295, 35
        %s301 = scalar_select %p300, %s295, 35
        %s302 = smul.addr %s301, 4
        %s303 = scalar_lea.vmem %s1, %s302
        %p304 = pneg %p64
        %p305 = pneg %p61
        %s306 = smul.u32 16, %s17
        %s307 = ssub.s32 36, %s306
        %p308 = scmp.lt.s32.totalorder %s307, 16
        %s309 = scalar_select %p308, %s307, 16
        %s310 = smul.u32 4, %s309
        %p311 = scmp.lt.s32.totalorder %s306, 35
        %s312 = scalar_select %p311, %s306, 35
        %s313 = smul.addr %s312, 4
        %s314 = scalar_lea.vmem %s2, %s313
        %p315 = pneg %p90
        %p316 = pneg %p87
        %s317 = smul.u32 16, %s17
        %s318 = ssub.s32 36, %s317
        %p319 = scmp.lt.s32.totalorder %s318, 16
        %s320 = scalar_select %p319, %s318, 16
        %s321 = smul.u32 4, %s320
        %p322 = scmp.lt.s32.totalorder %s317, 35
        %s323 = scalar_select %p322, %s317, 35
        %s324 = smul.addr %s323, 4
        %s325 = scalar_lea.vmem %s3, %s324
        %p326 = pneg %p116
        %p327 = pneg %p113
        %p328 = pneg %p137
        %p329 = pneg %p134
        %p330 = pneg %p158
        %p331 = pneg %p155
        %p332 = pneg %p184
        %p333 = pneg %p181
        %s334 = sand.u32 %s171, 1
        %s335 = sand.u32 %s171, 1
        %s336 = smul.addr %s335, 128
        %s337 = scalar_lea.vmem [#allocation2], %s336
        %s338 = smul.u32 16, %s17
        %s339 = ssub.s32 36, %s338
        %p340 = scmp.lt.s32.totalorder %s339, 16
        %s341 = scalar_select %p340, %s339, 16
        %s342 = smul.u32 4, %s341
        %p343 = scmp.lt.s32.totalorder %s338, 35
        %s344 = scalar_select %p343, %s338, 35
        %s345 = smul.addr %s344, 4
        %s346 = scalar_lea.vmem %s0, %s345
        %s347 = smul.u32 16, %s17
        %s348 = ssub.s32 36, %s347
        %p349 = scmp.lt.s32.totalorder %s348, 16
        %s350 = scalar_select %p349, %s348, 16
        %s351 = smul.u32 4, %s350
        %s352 = smul.u32 16, %s17
        %s353 = ssub.s32 36, %s352
        %p354 = scmp.lt.s32.totalorder %s353, 16
        %s355 = scalar_select %p354, %s353, 16
        %s356 = smul.u32 4, %s355
        %p357 = scmp.lt.s32.totalorder %s352, 35
        %s358 = scalar_select %p357, %s352, 35
        %s359 = smul.addr %s358, 4
        %s360 = scalar_lea.vmem %s1, %s359
        %s361 = smul.u32 16, %s17
        %s362 = ssub.s32 36, %s361
        %p363 = scmp.lt.s32.totalorder %s362, 16
        %s364 = scalar_select %p363, %s362, 16
        %s365 = smul.u32 4, %s364
        %s366 = smul.u32 16, %s17
        %s367 = ssub.s32 36, %s366
        %p368 = scmp.lt.s32.totalorder %s367, 16
        %s369 = scalar_select %p368, %s367, 16
        %s370 = smul.u32 4, %s369
        %p371 = scmp.lt.s32.totalorder %s366, 35
        %s372 = scalar_select %p371, %s366, 35
        %s373 = smul.addr %s372, 4
        %s374 = scalar_lea.vmem %s2, %s373
        %s375 = smul.u32 16, %s17
        %s376 = ssub.s32 36, %s375
        %p377 = scmp.lt.s32.totalorder %s376, 16
        %s378 = scalar_select %p377, %s376, 16
        %s379 = smul.u32 4, %s378
        %s380 = smul.u32 16, %s17
        %s381 = ssub.s32 36, %s380
        %p382 = scmp.lt.s32.totalorder %s381, 16
        %s383 = scalar_select %p382, %s381, 16
        %s384 = smul.u32 4, %s383
        %p385 = scmp.lt.s32.totalorder %s380, 35
        %s386 = scalar_select %p385, %s380, 35
        %s387 = smul.addr %s386, 4
        %s388 = scalar_lea.vmem %s3, %s387
        %s389 = smul.u32 16, %s17
        %s390 = ssub.s32 36, %s389
        %p391 = scmp.lt.s32.totalorder %s390, 16
        %s392 = scalar_select %p391, %s390, 16
        %s393 = smul.u32 4, %s392
        %s394 = smul.u32 16, %s17
        %s395 = ssub.s32 36, %s394
        %p396 = scmp.lt.s32.totalorder %s395, 16
        %s397 = scalar_select %p396, %s395, 16
        %s398 = smul.u32 8, %s397
        %v400 = vld [vmem:[%s4] sm:$0xf]
        %v401 = vld [vmem:[%s4 + $0x4] sm:$0xf]
        %v402 = vld [vmem:[%s4 + $0x8] sm:$0xf]
        %v403 = vld [vmem:[%s4 + $0xc] sm:$0xf]
        %v404 = vld [vmem:[%s346] sm:$0xf]
        %v405 = vld [vmem:[%s346 + $0x4] sm:$0xf]
        %v406 = vld [vmem:[%s346 + $0x8] sm:$0xf]
        %v407 = vld [vmem:[%s346 + $0xc] sm:$0xf]
        %v408 = vld [vmem:[%s346 + $0x10] sm:$0xf]
        %v409 = vld [vmem:[%s346 + $0x14] sm:$0xf]
        %v410 = vld [vmem:[%s346 + $0x18] sm:$0xf]
        %v411 = vld [vmem:[%s346 + $0x1c] sm:$0xf]
        %v412 = vld [vmem:[%s346 + $0x20] sm:$0xf]
        %v413 = vld [vmem:[%s346 + $0x24] sm:$0xf]
        %v414 = vld [vmem:[%s346 + $0x28] sm:$0xf]
        %v415 = vld [vmem:[%s346 + $0x2c] sm:$0xf]
        %v416 = vld [vmem:[%s346 + $0x30] sm:$0xf]
        %v417 = vld [vmem:[%s346 + $0x34] sm:$0xf]
        %v418 = vld [vmem:[%s346 + $0x38] sm:$0xf]
        %v419 = vld [vmem:[%s346 + $0x3c] sm:$0xf]
        %v436 = vunpack.c.l.b16 %v404
        %v437 = vunpack.c.l.b16 %v405
        %v438 = vunpack.c.l.b16 %v406
        %v439 = vunpack.c.l.b16 %v407
        %v440 = vunpack.c.l.b16 %v408
        %v441 = vunpack.c.l.b16 %v409
        %v442 = vunpack.c.l.b16 %v410
        %v443 = vunpack.c.l.b16 %v411
        %v444 = vunpack.c.l.b16 %v412
        %v445 = vunpack.c.l.b16 %v413
        %v446 = vunpack.c.l.b16 %v414
        %v447 = vunpack.c.l.b16 %v415
        %v448 = vunpack.c.l.b16 %v416
        %v449 = vunpack.c.l.b16 %v417
        %v450 = vunpack.c.l.b16 %v418
        %v451 = vunpack.c.l.b16 %v419
        %v452 = vpack.c.b16 %v437, %v436
        %v453 = vpack.c.b16 %v439, %v438
        %v454 = vpack.c.b16 %v441, %v440
        %v455 = vpack.c.b16 %v443, %v442
        %v456 = vpack.c.b16 %v445, %v444
        %v457 = vpack.c.b16 %v447, %v446
        %v458 = vpack.c.b16 %v449, %v448
        %v459 = vpack.c.b16 %v451, %v450
        %v464 = vunpack.c.l.b16 %v400
        %v465 = vunpack.c.l.b16 %v401
        %v466 = vunpack.c.l.b16 %v402
        %v467 = vunpack.c.l.b16 %v403
        %v468 = vpack.c.b16 %v465, %v464
        %v469 = vpack.c.b16 %v467, %v466
        %vm472 = vcmask 261120
        %v474 = vsel %vm472, %v452, 0
        %v477 = vsel %vm472, %v453, 0
        %v480 = vsel %vm472, %v454, 0
        %v483 = vsel %vm472, %v455, 0
        %v486 = vsel %vm472, %v456, 0
        %v489 = vsel %vm472, %v457, 0
        %v492 = vsel %vm472, %v458, 0
        %v495 = vsel %vm472, %v459, 0
        %497 = vmatpush.bf16.msra.mxu0 0
        %498 = vmatpush.bf16.msra.mxu0 0
        %499 = vmatpush.bf16.msra.mxu0 0
        %500 = vmatpush.bf16.msra.mxu0 0
        %501 = vmatpush.bf16.msra.mxu0 0
        %502 = vmatpush.bf16.msra.mxu0 0
        %503 = vmatpush.bf16.msra.mxu0 %v469
        %504 = vmatpush.bf16.msra.mxu0 %v468
        %505 = vmatmul.bf16.gmra.mxu0 %v474
        %v506 = vpop.f32.mrf.mxu0
        %v507 = vadd.f32 0.0, %v506
        %v508 = vpop.f32.mrf.mxu0
        %v509 = vadd.f32 0.0, %v508
        %510 = vmatmul.bf16.gmra.mxu0 %v477
        %v511 = vpop.f32.mrf.mxu0
        %v512 = vadd.f32 0.0, %v511
        %v513 = vpop.f32.mrf.mxu0
        %v514 = vadd.f32 0.0, %v513
        %515 = vmatmul.bf16.gmra.mxu0 %v480
        %v516 = vpop.f32.mrf.mxu0
        %v517 = vadd.f32 0.0, %v516
        %v518 = vpop.f32.mrf.mxu0
        %v519 = vadd.f32 0.0, %v518
        %520 = vmatmul.bf16.gmra.mxu0 %v483
        %v521 = vpop.f32.mrf.mxu0
        %v522 = vadd.f32 0.0, %v521
        %v523 = vpop.f32.mrf.mxu0
        %v524 = vadd.f32 0.0, %v523
        %525 = vmatmul.bf16.gmra.mxu0 %v486
        %v526 = vpop.f32.mrf.mxu0
        %v527 = vadd.f32 0.0, %v526
        %v528 = vpop.f32.mrf.mxu0
        %v529 = vadd.f32 0.0, %v528
        %530 = vmatmul.bf16.gmra.mxu0 %v489
        %v531 = vpop.f32.mrf.mxu0
        %v532 = vadd.f32 0.0, %v531
        %v533 = vpop.f32.mrf.mxu0
        %v534 = vadd.f32 0.0, %v533
        %535 = vmatmul.bf16.gmra.mxu0 %v492
        %v536 = vpop.f32.mrf.mxu0
        %v537 = vadd.f32 0.0, %v536
        %v538 = vpop.f32.mrf.mxu0
        %v539 = vadd.f32 0.0, %v538
        %540 = vmatmul.bf16.gmra.mxu0 %v495
        %v541 = vpop.f32.mrf.mxu0
        %v542 = vadd.f32 0.0, %v541
        %v543 = vpop.f32.mrf.mxu0
        %v544 = vadd.f32 0.0, %v543
        %545 = vdwg.mxu0
        %v546 = vld [vmem:[%s360] sm:$0xf]
        %v547 = vld [vmem:[%s360 + $0x4] sm:$0xf]
        %v548 = vld [vmem:[%s360 + $0x8] sm:$0xf]
        %v549 = vld [vmem:[%s360 + $0xc] sm:$0xf]
        %v550 = vld [vmem:[%s360 + $0x10] sm:$0xf]
        %v551 = vld [vmem:[%s360 + $0x14] sm:$0xf]
        %v552 = vld [vmem:[%s360 + $0x18] sm:$0xf]
        %v553 = vld [vmem:[%s360 + $0x1c] sm:$0xf]
        %v554 = vld [vmem:[%s360 + $0x20] sm:$0xf]
        %v555 = vld [vmem:[%s360 + $0x24] sm:$0xf]
        %v556 = vld [vmem:[%s360 + $0x28] sm:$0xf]
        %v557 = vld [vmem:[%s360 + $0x2c] sm:$0xf]
        %v558 = vld [vmem:[%s360 + $0x30] sm:$0xf]
        %v559 = vld [vmem:[%s360 + $0x34] sm:$0xf]
        %v560 = vld [vmem:[%s360 + $0x38] sm:$0xf]
        %v561 = vld [vmem:[%s360 + $0x3c] sm:$0xf]
        %v578 = vunpack.c.l.b16 %v546
        %v579 = vunpack.c.l.b16 %v547
        %v580 = vunpack.c.l.b16 %v548
        %v581 = vunpack.c.l.b16 %v549
        %v582 = vunpack.c.l.b16 %v550
        %v583 = vunpack.c.l.b16 %v551
        %v584 = vunpack.c.l.b16 %v552
        %v585 = vunpack.c.l.b16 %v553
        %v586 = vunpack.c.l.b16 %v554
        %v587 = vunpack.c.l.b16 %v555
        %v588 = vunpack.c.l.b16 %v556
        %v589 = vunpack.c.l.b16 %v557
        %v590 = vunpack.c.l.b16 %v558
        %v591 = vunpack.c.l.b16 %v559
        %v592 = vunpack.c.l.b16 %v560
        %v593 = vunpack.c.l.b16 %v561
        %v594 = vpack.c.b16 %v579, %v578
        %v595 = vpack.c.b16 %v581, %v580
        %v596 = vpack.c.b16 %v583, %v582
        %v597 = vpack.c.b16 %v585, %v584
        %v598 = vpack.c.b16 %v587, %v586
        %v599 = vpack.c.b16 %v589, %v588
        %v600 = vpack.c.b16 %v591, %v590
        %v601 = vpack.c.b16 %v593, %v592
        %v603 = vsel %vm472, %v594, 0
        %v606 = vsel %vm472, %v595, 0
        %v609 = vsel %vm472, %v596, 0
        %v612 = vsel %vm472, %v597, 0
        %v615 = vsel %vm472, %v598, 0
        %v618 = vsel %vm472, %v599, 0
        %v621 = vsel %vm472, %v600, 0
        %v624 = vsel %vm472, %v601, 0
        %626 = vmatpush.bf16.msra.mxu0 0
        %627 = vmatpush.bf16.msra.mxu0 0
        %628 = vmatpush.bf16.msra.mxu0 0
        %629 = vmatpush.bf16.msra.mxu0 0
        %630 = vmatpush.bf16.msra.mxu0 0
        %631 = vmatpush.bf16.msra.mxu0 0
        %632 = vmatpush.bf16.msra.mxu0 %v469
        %633 = vmatpush.bf16.msra.mxu0 %v468
        %634 = vmatmul.bf16.gmra.mxu0 %v603
        %v635 = vpop.f32.mrf.mxu0
        %v636 = vadd.f32 0.0, %v635
        %v637 = vpop.f32.mrf.mxu0
        %v638 = vadd.f32 0.0, %v637
        %639 = vmatmul.bf16.gmra.mxu0 %v606
        %v640 = vpop.f32.mrf.mxu0
        %v641 = vadd.f32 0.0, %v640
        %v642 = vpop.f32.mrf.mxu0
        %v643 = vadd.f32 0.0, %v642
        %644 = vmatmul.bf16.gmra.mxu0 %v609
        %v645 = vpop.f32.mrf.mxu0
        %v646 = vadd.f32 0.0, %v645
        %v647 = vpop.f32.mrf.mxu0
        %v648 = vadd.f32 0.0, %v647
        %649 = vmatmul.bf16.gmra.mxu0 %v612
        %v650 = vpop.f32.mrf.mxu0
        %v651 = vadd.f32 0.0, %v650
        %v652 = vpop.f32.mrf.mxu0
        %v653 = vadd.f32 0.0, %v652
        %654 = vmatmul.bf16.gmra.mxu0 %v615
        %v655 = vpop.f32.mrf.mxu0
        %v656 = vadd.f32 0.0, %v655
        %v657 = vpop.f32.mrf.mxu0
        %v658 = vadd.f32 0.0, %v657
        %659 = vmatmul.bf16.gmra.mxu0 %v618
        %v660 = vpop.f32.mrf.mxu0
        %v661 = vadd.f32 0.0, %v660
        %v662 = vpop.f32.mrf.mxu0
        %v663 = vadd.f32 0.0, %v662
        %664 = vmatmul.bf16.gmra.mxu0 %v621
        %v665 = vpop.f32.mrf.mxu0
        %v666 = vadd.f32 0.0, %v665
        %v667 = vpop.f32.mrf.mxu0
        %v668 = vadd.f32 0.0, %v667
        %669 = vmatmul.bf16.gmra.mxu0 %v624
        %v670 = vpop.f32.mrf.mxu0
        %v671 = vadd.f32 0.0, %v670
        %v672 = vpop.f32.mrf.mxu0
        %v673 = vadd.f32 0.0, %v672
        %674 = vdwg.mxu0
        %v675 = vmax.f32 %v507, %v636
        %v676 = vmax.f32 %v509, %v638
        %v677 = vmax.f32 %v512, %v641
        %v678 = vmax.f32 %v514, %v643
        %v679 = vmax.f32 %v517, %v646
        %v680 = vmax.f32 %v519, %v648
        %v681 = vmax.f32 %v522, %v651
        %v682 = vmax.f32 %v524, %v653
        %v683 = vmax.f32 %v527, %v656
        %v684 = vmax.f32 %v529, %v658
        %v685 = vmax.f32 %v532, %v661
        %v686 = vmax.f32 %v534, %v663
        %v687 = vmax.f32 %v537, %v666
        %v688 = vmax.f32 %v539, %v668
        %v689 = vmax.f32 %v542, %v671
        %v690 = vmax.f32 %v544, %v673
        %v691 = vld [vmem:[%s374] sm:$0xf]
        %v692 = vld [vmem:[%s374 + $0x4] sm:$0xf]
        %v693 = vld [vmem:[%s374 + $0x8] sm:$0xf]
        %v694 = vld [vmem:[%s374 + $0xc] sm:$0xf]
        %v695 = vld [vmem:[%s374 + $0x10] sm:$0xf]
        %v696 = vld [vmem:[%s374 + $0x14] sm:$0xf]
        %v697 = vld [vmem:[%s374 + $0x18] sm:$0xf]
        %v698 = vld [vmem:[%s374 + $0x1c] sm:$0xf]
        %v699 = vld [vmem:[%s374 + $0x20] sm:$0xf]
        %v700 = vld [vmem:[%s374 + $0x24] sm:$0xf]
        %v701 = vld [vmem:[%s374 + $0x28] sm:$0xf]
        %v702 = vld [vmem:[%s374 + $0x2c] sm:$0xf]
        %v703 = vld [vmem:[%s374 + $0x30] sm:$0xf]
        %v704 = vld [vmem:[%s374 + $0x34] sm:$0xf]
        %v705 = vld [vmem:[%s374 + $0x38] sm:$0xf]
        %v706 = vld [vmem:[%s374 + $0x3c] sm:$0xf]
        %v723 = vunpack.c.l.b16 %v691
        %v724 = vunpack.c.l.b16 %v692
        %v725 = vunpack.c.l.b16 %v693
        %v726 = vunpack.c.l.b16 %v694
        %v727 = vunpack.c.l.b16 %v695
        %v728 = vunpack.c.l.b16 %v696
        %v729 = vunpack.c.l.b16 %v697
        %v730 = vunpack.c.l.b16 %v698
        %v731 = vunpack.c.l.b16 %v699
        %v732 = vunpack.c.l.b16 %v700
        %v733 = vunpack.c.l.b16 %v701
        %v734 = vunpack.c.l.b16 %v702
        %v735 = vunpack.c.l.b16 %v703
        %v736 = vunpack.c.l.b16 %v704
        %v737 = vunpack.c.l.b16 %v705
        %v738 = vunpack.c.l.b16 %v706
        %v739 = vpack.c.b16 %v724, %v723
        %v740 = vpack.c.b16 %v726, %v725
        %v741 = vpack.c.b16 %v728, %v727
        %v742 = vpack.c.b16 %v730, %v729
        %v743 = vpack.c.b16 %v732, %v731
        %v744 = vpack.c.b16 %v734, %v733
        %v745 = vpack.c.b16 %v736, %v735
        %v746 = vpack.c.b16 %v738, %v737
        %v748 = vsel %vm472, %v739, 0
        %v751 = vsel %vm472, %v740, 0
        %v754 = vsel %vm472, %v741, 0
        %v757 = vsel %vm472, %v742, 0
        %v760 = vsel %vm472, %v743, 0
        %v763 = vsel %vm472, %v744, 0
        %v766 = vsel %vm472, %v745, 0
        %v769 = vsel %vm472, %v746, 0
        %771 = vmatpush.bf16.msra.mxu0 0
        %772 = vmatpush.bf16.msra.mxu0 0
        %773 = vmatpush.bf16.msra.mxu0 0
        %774 = vmatpush.bf16.msra.mxu0 0
        %775 = vmatpush.bf16.msra.mxu0 0
        %776 = vmatpush.bf16.msra.mxu0 0
        %777 = vmatpush.bf16.msra.mxu0 %v469
        %778 = vmatpush.bf16.msra.mxu0 %v468
        %779 = vmatmul.bf16.gmra.mxu0 %v748
        %v780 = vpop.f32.mrf.mxu0
        %v781 = vadd.f32 0.0, %v780
        %v782 = vpop.f32.mrf.mxu0
        %v783 = vadd.f32 0.0, %v782
        %784 = vmatmul.bf16.gmra.mxu0 %v751
        %v785 = vpop.f32.mrf.mxu0
        %v786 = vadd.f32 0.0, %v785
        %v787 = vpop.f32.mrf.mxu0
        %v788 = vadd.f32 0.0, %v787
        %789 = vmatmul.bf16.gmra.mxu0 %v754
        %v790 = vpop.f32.mrf.mxu0
        %v791 = vadd.f32 0.0, %v790
        %v792 = vpop.f32.mrf.mxu0
        %v793 = vadd.f32 0.0, %v792
        %794 = vmatmul.bf16.gmra.mxu0 %v757
        %v795 = vpop.f32.mrf.mxu0
        %v796 = vadd.f32 0.0, %v795
        %v797 = vpop.f32.mrf.mxu0
        %v798 = vadd.f32 0.0, %v797
        %799 = vmatmul.bf16.gmra.mxu0 %v760
        %v800 = vpop.f32.mrf.mxu0
        %v801 = vadd.f32 0.0, %v800
        %v802 = vpop.f32.mrf.mxu0
        %v803 = vadd.f32 0.0, %v802
        %804 = vmatmul.bf16.gmra.mxu0 %v763
        %v805 = vpop.f32.mrf.mxu0
        %v806 = vadd.f32 0.0, %v805
        %v807 = vpop.f32.mrf.mxu0
        %v808 = vadd.f32 0.0, %v807
        %809 = vmatmul.bf16.gmra.mxu0 %v766
        %v810 = vpop.f32.mrf.mxu0
        %v811 = vadd.f32 0.0, %v810
        %v812 = vpop.f32.mrf.mxu0
        %v813 = vadd.f32 0.0, %v812
        %814 = vmatmul.bf16.gmra.mxu0 %v769
        %v815 = vpop.f32.mrf.mxu0
        %v816 = vadd.f32 0.0, %v815
        %v817 = vpop.f32.mrf.mxu0
        %v818 = vadd.f32 0.0, %v817
        %819 = vdwg.mxu0
        %v820 = vld [vmem:[%s388] sm:$0xf]
        %v821 = vld [vmem:[%s388 + $0x4] sm:$0xf]
        %v822 = vld [vmem:[%s388 + $0x8] sm:$0xf]
        %v823 = vld [vmem:[%s388 + $0xc] sm:$0xf]
        %v824 = vld [vmem:[%s388 + $0x10] sm:$0xf]
        %v825 = vld [vmem:[%s388 + $0x14] sm:$0xf]
        %v826 = vld [vmem:[%s388 + $0x18] sm:$0xf]
        %v827 = vld [vmem:[%s388 + $0x1c] sm:$0xf]
        %v828 = vld [vmem:[%s388 + $0x20] sm:$0xf]
        %v829 = vld [vmem:[%s388 + $0x24] sm:$0xf]
        %v830 = vld [vmem:[%s388 + $0x28] sm:$0xf]
        %v831 = vld [vmem:[%s388 + $0x2c] sm:$0xf]
        %v832 = vld [vmem:[%s388 + $0x30] sm:$0xf]
        %v833 = vld [vmem:[%s388 + $0x34] sm:$0xf]
        %v834 = vld [vmem:[%s388 + $0x38] sm:$0xf]
        %v835 = vld [vmem:[%s388 + $0x3c] sm:$0xf]
        %v852 = vunpack.c.l.b16 %v820
        %v853 = vunpack.c.l.b16 %v821
        %v854 = vunpack.c.l.b16 %v822
        %v855 = vunpack.c.l.b16 %v823
        %v856 = vunpack.c.l.b16 %v824
        %v857 = vunpack.c.l.b16 %v825
        %v858 = vunpack.c.l.b16 %v826
        %v859 = vunpack.c.l.b16 %v827
        %v860 = vunpack.c.l.b16 %v828
        %v861 = vunpack.c.l.b16 %v829
        %v862 = vunpack.c.l.b16 %v830
        %v863 = vunpack.c.l.b16 %v831
        %v864 = vunpack.c.l.b16 %v832
        %v865 = vunpack.c.l.b16 %v833
        %v866 = vunpack.c.l.b16 %v834
        %v867 = vunpack.c.l.b16 %v835
        %v868 = vpack.c.b16 %v853, %v852
        %v869 = vpack.c.b16 %v855, %v854
        %v870 = vpack.c.b16 %v857, %v856
        %v871 = vpack.c.b16 %v859, %v858
        %v872 = vpack.c.b16 %v861, %v860
        %v873 = vpack.c.b16 %v863, %v862
        %v874 = vpack.c.b16 %v865, %v864
        %v875 = vpack.c.b16 %v867, %v866
        %v877 = vsel %vm472, %v868, 0
        %v880 = vsel %vm472, %v869, 0
        %v883 = vsel %vm472, %v870, 0
        %v886 = vsel %vm472, %v871, 0
        %v889 = vsel %vm472, %v872, 0
        %v892 = vsel %vm472, %v873, 0
        %v895 = vsel %vm472, %v874, 0
        %v898 = vsel %vm472, %v875, 0
        %900 = vmatpush.bf16.msra.mxu0 0
        %901 = vmatpush.bf16.msra.mxu0 0
        %902 = vmatpush.bf16.msra.mxu0 0
        %903 = vmatpush.bf16.msra.mxu0 0
        %904 = vmatpush.bf16.msra.mxu0 0
        %905 = vmatpush.bf16.msra.mxu0 0
        %906 = vmatpush.bf16.msra.mxu0 %v469
        %907 = vmatpush.bf16.msra.mxu0 %v468
        %908 = vmatmul.bf16.gmra.mxu0 %v877
        %v909 = vpop.f32.mrf.mxu0
        %v910 = vadd.f32 0.0, %v909
        %v911 = vpop.f32.mrf.mxu0
        %v912 = vadd.f32 0.0, %v911
        %913 = vmatmul.bf16.gmra.mxu0 %v880
        %v914 = vpop.f32.mrf.mxu0
        %v915 = vadd.f32 0.0, %v914
        %v916 = vpop.f32.mrf.mxu0
        %v917 = vadd.f32 0.0, %v916
        %918 = vmatmul.bf16.gmra.mxu0 %v883
        %v919 = vpop.f32.mrf.mxu0
        %v920 = vadd.f32 0.0, %v919
        %v921 = vpop.f32.mrf.mxu0
        %v922 = vadd.f32 0.0, %v921
        %923 = vmatmul.bf16.gmra.mxu0 %v886
        %v924 = vpop.f32.mrf.mxu0
        %v925 = vadd.f32 0.0, %v924
        %v926 = vpop.f32.mrf.mxu0
        %v927 = vadd.f32 0.0, %v926
        %928 = vmatmul.bf16.gmra.mxu0 %v889
        %v929 = vpop.f32.mrf.mxu0
        %v930 = vadd.f32 0.0, %v929
        %v931 = vpop.f32.mrf.mxu0
        %v932 = vadd.f32 0.0, %v931
        %933 = vmatmul.bf16.gmra.mxu0 %v892
        %v934 = vpop.f32.mrf.mxu0
        %v935 = vadd.f32 0.0, %v934
        %v936 = vpop.f32.mrf.mxu0
        %v937 = vadd.f32 0.0, %v936
        %938 = vmatmul.bf16.gmra.mxu0 %v895
        %v939 = vpop.f32.mrf.mxu0
        %v940 = vadd.f32 0.0, %v939
        %v941 = vpop.f32.mrf.mxu0
        %v942 = vadd.f32 0.0, %v941
        %943 = vmatmul.bf16.gmra.mxu0 %v898
        %v944 = vpop.f32.mrf.mxu0
        %v945 = vadd.f32 0.0, %v944
        %v946 = vpop.f32.mrf.mxu0
        %v947 = vadd.f32 0.0, %v946
        %948 = vdwg.mxu0
        %v949 = vmax.f32 %v781, %v910
        %v950 = vmax.f32 %v783, %v912
        %v951 = vmax.f32 %v786, %v915
        %v952 = vmax.f32 %v788, %v917
        %v953 = vmax.f32 %v791, %v920
        %v954 = vmax.f32 %v793, %v922
        %v955 = vmax.f32 %v796, %v925
        %v956 = vmax.f32 %v798, %v927
        %v957 = vmax.f32 %v801, %v930
        %v958 = vmax.f32 %v803, %v932
        %v959 = vmax.f32 %v806, %v935
        %v960 = vmax.f32 %v808, %v937
        %v961 = vmax.f32 %v811, %v940
        %v962 = vmax.f32 %v813, %v942
        %v963 = vmax.f32 %v816, %v945
        %v964 = vmax.f32 %v818, %v947
        %v965 = vmax.f32 %v675, %v949
        %v966 = vmax.f32 %v676, %v950
        %v967 = vmax.f32 %v677, %v951
        %v968 = vmax.f32 %v678, %v952
        %v969 = vmax.f32 %v679, %v953
        %v970 = vmax.f32 %v680, %v954
        %v971 = vmax.f32 %v681, %v955
        %v972 = vmax.f32 %v682, %v956
        %v973 = vmax.f32 %v683, %v957
        %v974 = vmax.f32 %v684, %v958
        %v975 = vmax.f32 %v685, %v959
        %v976 = vmax.f32 %v686, %v960
        %v977 = vmax.f32 %v687, %v961
        %v978 = vmax.f32 %v688, %v962
        %v979 = vmax.f32 %v689, %v963
        %v980 = vmax.f32 %v690, %v964
        %v981 = vld [vmem:[%s5] sm:$0x1]
        %v983 = vperm.slane %v981, 0
        %v985 = vadd.f32 %v965, %v983
        %v986 = vadd.f32 %v966, %v983
        %v987 = vadd.f32 %v967, %v983
        %v988 = vadd.f32 %v968, %v983
        %v989 = vadd.f32 %v969, %v983
        %v990 = vadd.f32 %v970, %v983
        %v991 = vadd.f32 %v971, %v983
        %v992 = vadd.f32 %v972, %v983
        %v993 = vadd.f32 %v973, %v983
        %v994 = vadd.f32 %v974, %v983
        %v995 = vadd.f32 %v975, %v983
        %v996 = vadd.f32 %v976, %v983
        %v997 = vadd.f32 %v977, %v983
        %v998 = vadd.f32 %v978, %v983
        %v999 = vadd.f32 %v979, %v983
        %v1000 = vadd.f32 %v980, %v983
        %vm1001 = vcmp.ge.f32.partialorder %v985, 0.0
        %vm1002 = vcmp.ge.f32.partialorder %v986, 0.0
        %vm1003 = vcmp.ge.f32.partialorder %v987, 0.0
        %vm1004 = vcmp.ge.f32.partialorder %v988, 0.0
        %vm1005 = vcmp.ge.f32.partialorder %v989, 0.0
        %vm1006 = vcmp.ge.f32.partialorder %v990, 0.0
        %vm1007 = vcmp.ge.f32.partialorder %v991, 0.0
        %vm1008 = vcmp.ge.f32.partialorder %v992, 0.0
        %vm1009 = vcmp.ge.f32.partialorder %v993, 0.0
        %vm1010 = vcmp.ge.f32.partialorder %v994, 0.0
        %vm1011 = vcmp.ge.f32.partialorder %v995, 0.0
        %vm1012 = vcmp.ge.f32.partialorder %v996, 0.0
        %vm1013 = vcmp.ge.f32.partialorder %v997, 0.0
        %vm1014 = vcmp.ge.f32.partialorder %v998, 0.0
        %vm1015 = vcmp.ge.f32.partialorder %v999, 0.0
        %vm1016 = vcmp.ge.f32.partialorder %v1000, 0.0
        %v1017 = vmul.f32 %v985, 0.01
        %v1018 = vmul.f32 %v986, 0.01
        %v1019 = vmul.f32 %v987, 0.01
        %v1020 = vmul.f32 %v988, 0.01
        %v1021 = vmul.f32 %v989, 0.01
        %v1022 = vmul.f32 %v990, 0.01
        %v1023 = vmul.f32 %v991, 0.01
        %v1024 = vmul.f32 %v992, 0.01
        %v1025 = vmul.f32 %v993, 0.01
        %v1026 = vmul.f32 %v994, 0.01
        %v1027 = vmul.f32 %v995, 0.01
        %v1028 = vmul.f32 %v996, 0.01
        %v1029 = vmul.f32 %v997, 0.01
        %v1030 = vmul.f32 %v998, 0.01
        %v1031 = vmul.f32 %v999, 0.01
        %v1032 = vmul.f32 %v1000, 0.01
        %v1033 = vsel %vm1001, %v985, %v1017
        %v1034 = vsel %vm1002, %v986, %v1018
        %v1035 = vsel %vm1003, %v987, %v1019
        %v1036 = vsel %vm1004, %v988, %v1020
        %v1037 = vsel %vm1005, %v989, %v1021
        %v1038 = vsel %vm1006, %v990, %v1022
        %v1039 = vsel %vm1007, %v991, %v1023
        %v1040 = vsel %vm1008, %v992, %v1024
        %v1041 = vsel %vm1009, %v993, %v1025
        %v1042 = vsel %vm1010, %v994, %v1026
        %v1043 = vsel %vm1011, %v995, %v1027
        %v1044 = vsel %vm1012, %v996, %v1028
        %v1045 = vsel %vm1013, %v997, %v1029
        %v1046 = vsel %vm1014, %v998, %v1030
        %v1047 = vsel %vm1015, %v999, %v1031
        %v1048 = vsel %vm1016, %v1000, %v1032
        %1049 = vst.msk [vmem:[%s337] sm:$0xff] %vm472, %v1033
        %1050 = vst.msk [vmem:[%s337 + $0x8] sm:$0xff] %vm472, %v1034
        %1051 = vst.msk [vmem:[%s337 + $0x10] sm:$0xff] %vm472, %v1035
        %1052 = vst.msk [vmem:[%s337 + $0x18] sm:$0xff] %vm472, %v1036
        %1053 = vst.msk [vmem:[%s337 + $0x20] sm:$0xff] %vm472, %v1037
        %1054 = vst.msk [vmem:[%s337 + $0x28] sm:$0xff] %vm472, %v1038
        %1055 = vst.msk [vmem:[%s337 + $0x30] sm:$0xff] %vm472, %v1039
        %1056 = vst.msk [vmem:[%s337 + $0x38] sm:$0xff] %vm472, %v1040
        %1057 = vst.msk [vmem:[%s337 + $0x40] sm:$0xff] %vm472, %v1041
        %1058 = vst.msk [vmem:[%s337 + $0x48] sm:$0xff] %vm472, %v1042
        %1059 = vst.msk [vmem:[%s337 + $0x50] sm:$0xff] %vm472, %v1043
        %1060 = vst.msk [vmem:[%s337 + $0x58] sm:$0xff] %vm472, %v1044
        %1061 = vst.msk [vmem:[%s337 + $0x60] sm:$0xff] %vm472, %v1045
        %1062 = vst.msk [vmem:[%s337 + $0x68] sm:$0xff] %vm472, %v1046
        %1063 = vst.msk [vmem:[%s337 + $0x70] sm:$0xff] %vm472, %v1047
        %1064 = vst.msk [vmem:[%s337 + $0x78] sm:$0xff] %vm472, %v1048
        %s1065 = sand.u32 %s171, 1
        %s1066 = sand.u32 %s171, 1
        %s1067 = smul.addr %s1066, 128
        %s1068 = scalar_lea.vmem [#allocation2], %s1067
        // Predicated region
        $region45: #{discriminator_forward.3} parent=43 // pred_check
          %p1069 = pneg %p181
        $region46: #{discriminator_forward.3} parent=43 // pred_check_branch
          %1071 = sbr.rel (%p1069) target = $region48
        $region47: #{discriminator_forward.3} parent=43 // pred_region
          %s1072 = smul.u32 16, %s17
          %s1073 = ssub.s32 36, %s1072
          %p1074 = scmp.lt.s32.totalorder %s1073, 16
          %s1075 = scalar_select %p1074, %s1073, 16
          %s1076 = smul.u32 8, %s1075
          %p1077 = scmp.ne.s32.totalorder 0, %s1076
          %s1078 = smul.addr %s1072, 8
          %s1079 = scalar_lea.vmem %s6, %s1078
          // Predicated region
          $region49: #{discriminator_forward.3} parent=47 // pred_check
            %p1080 = pneg %p1077
          $region50: #{discriminator_forward.3} parent=47 // pred_check_branch
            %1082 = sbr.rel (%p1080) target = $region52
          $region51: #{discriminator_forward.3} parent=47 // pred_region
            // Predicated region
            $region53: #{discriminator_forward.3} parent=51 // pred_check
              _
            $region54: #{discriminator_forward.3} parent=51 // pred_check_branch
              %1084 = sbr.rel (0) target = $region56
            $region55: #{discriminator_forward.3} parent=51 // pred_region
              // Predicated region
              $region75: #{discriminator_forward.3} parent=55 // pred_check
                _
              $region76: #{discriminator_forward.3} parent=55 // pred_check_branch
                %1164 = sbr.rel (0) target = $region78
              $region77: #{discriminator_forward.3} parent=55 // pred_region
                %s1165 = sshrl.u32 %s1075, 4
                // While loop
                $region79: #{discriminator_forward.3} parent=77 // loop_pre_header
                  _
                $region80: #{discriminator_forward.3} parent=77 // loop_header
                  %s1167 = sphi 0, %s1169
                  %p1168 = scmp.ge.s32.totalorder %s1167, %s1165
                  %s1172 = sphi 0, %s1209
                  %s1173 = sphi %s1068, %s1212
                  %s1174 = sphi %s1079, %s1213
                $region81: #{discriminator_forward.3} parent=77 // loop_header_branch
                  %1171 = sbr.rel (%p1168) target = $region85
                $region82: #{discriminator_forward.3} parent=77 // loop_body
                  %v1175 = vld [vmem:[%s1173] sm:$0xff]
                  %1176 = vst [vmem:[%s1174] sm:$0xff] %v1175
                  %v1177 = vld [vmem:[%s1173 + $0x8] sm:$0xff]
                  %1178 = vst [vmem:[%s1174 + $0x8] sm:$0xff] %v1177
                  %v1179 = vld [vmem:[%s1173 + $0x10] sm:$0xff]
                  %1180 = vst [vmem:[%s1174 + $0x10] sm:$0xff] %v1179
                  %v1181 = vld [vmem:[%s1173 + $0x18] sm:$0xff]
                  %1182 = vst [vmem:[%s1174 + $0x18] sm:$0xff] %v1181
                  %v1183 = vld [vmem:[%s1173 + $0x20] sm:$0xff]
                  %1184 = vst [vmem:[%s1174 + $0x20] sm:$0xff] %v1183
                  %v1185 = vld [vmem:[%s1173 + $0x28] sm:$0xff]
                  %1186 = vst [vmem:[%s1174 + $0x28] sm:$0xff] %v1185
                  %v1187 = vld [vmem:[%s1173 + $0x30] sm:$0xff]
                  %1188 = vst [vmem:[%s1174 + $0x30] sm:$0xff] %v1187
                  %v1189 = vld [vmem:[%s1173 + $0x38] sm:$0xff]
                  %1190 = vst [vmem:[%s1174 + $0x38] sm:$0xff] %v1189
                  %v1191 = vld [vmem:[%s1173 + $0x40] sm:$0xff]
                  %1192 = vst [vmem:[%s1174 + $0x40] sm:$0xff] %v1191
                  %v1193 = vld [vmem:[%s1173 + $0x48] sm:$0xff]
                  %1194 = vst [vmem:[%s1174 + $0x48] sm:$0xff] %v1193
                  %v1195 = vld [vmem:[%s1173 + $0x50] sm:$0xff]
                  %1196 = vst [vmem:[%s1174 + $0x50] sm:$0xff] %v1195
                  %v1197 = vld [vmem:[%s1173 + $0x58] sm:$0xff]
                  %1198 = vst [vmem:[%s1174 + $0x58] sm:$0xff] %v1197
                  %v1199 = vld [vmem:[%s1173 + $0x60] sm:$0xff]
                  %1200 = vst [vmem:[%s1174 + $0x60] sm:$0xff] %v1199
                  %v1201 = vld [vmem:[%s1173 + $0x68] sm:$0xff]
                  %1202 = vst [vmem:[%s1174 + $0x68] sm:$0xff] %v1201
                  %v1203 = vld [vmem:[%s1173 + $0x70] sm:$0xff]
                  %1204 = vst [vmem:[%s1174 + $0x70] sm:$0xff] %v1203
                  %v1205 = vld [vmem:[%s1173 + $0x78] sm:$0xff]
                  %1206 = vst [vmem:[%s1174 + $0x78] sm:$0xff] %v1205
                  %s1207 = sadd.s32 1, %s1172
                  %p1208 = scmp.ge.s32.totalorder %s1207, %s1165
                  %s1209 = scalar_select %p1208, 0, %s1207
                  %s1210 = smul.u32 %s1209, 128
                  %s1211 = smul.u32 %s1209, 128
                  %s1212 = scalar_lea.vmem %s1068, %s1210 [#allocation2]
                  %s1213 = scalar_lea.vmem %s1079, %s1211
                $region83: #{discriminator_forward.3} parent=77 // loop_footer
                  %s1169 = sadd.s32 %s1167, 1
                $region84: #{discriminator_forward.3} parent=77 // loop_footer_branch
                  %1166 = sbr.rel target = $region80
                $region85: #{discriminator_forward.3} parent=77 // loop_exit
                  _
                %s1214 = sshrl.u32 %s1075, 4
                %s1215 = sand.u32 %s1075, 15
                %s1216 = smul.u32 %s1214, 16
                %s1217 = smul.u32 8, %s1216
                %s1218 = scalar_lea.vmem %s1068, %s1217 [#allocation2]
                %s1219 = smul.u32 8, %s1216
                %s1220 = scalar_lea.vmem %s1079, %s1219
                // While loop
                $region86: #{discriminator_forward.3} parent=77 // loop_pre_header
                  _
                $region87: #{discriminator_forward.3} parent=77 // loop_header
                  %s1222 = sphi 0, %s1224
                  %p1223 = scmp.ge.s32.totalorder %s1222, %s1215
                  %s1227 = sphi 0, %s1234
                  %s1228 = sphi %s1218, %s1237
                  %s1229 = sphi %s1220, %s1238
                $region88: #{discriminator_forward.3} parent=77 // loop_header_branch
                  %1226 = sbr.rel (%p1223) target = $region92
                $region89: #{discriminator_forward.3} parent=77 // loop_body
                  %v1230 = vld [vmem:[%s1228] sm:$0xff]
                  %1231 = vst [vmem:[%s1229] sm:$0xff] %v1230
                  %s1232 = sadd.s32 1, %s1227
                  %p1233 = scmp.ge.s32.totalorder %s1232, %s1215
                  %s1234 = scalar_select %p1233, 0, %s1232
                  %s1235 = smul.u32 %s1234, 8
                  %s1236 = smul.u32 %s1234, 8
                  %s1237 = scalar_lea.vmem %s1218, %s1235 [#allocation2]
                  %s1238 = scalar_lea.vmem %s1220, %s1236
                $region90: #{discriminator_forward.3} parent=77 // loop_footer
                  %s1224 = sadd.s32 %s1222, 1
                $region91: #{discriminator_forward.3} parent=77 // loop_footer_branch
                  %1221 = sbr.rel target = $region87
                $region92: #{discriminator_forward.3} parent=77 // loop_exit
                  _
              $region78: #{discriminator_forward.3} parent=55 // pred_fallthru
                _
              // Predicated region
              $region93: #{discriminator_forward.3} parent=55 // pred_check
                _
              $region94: #{discriminator_forward.3} parent=55 // pred_check_branch
                %1240 = sbr.rel target = $region96
              $region95: #{discriminator_forward.3} parent=55 // pred_region
                _
              $region96: #{discriminator_forward.3} parent=55 // pred_fallthru
                _
            $region56: #{discriminator_forward.3} parent=51 // pred_fallthru
              _
            // Predicated region
            $region57: #{discriminator_forward.3} parent=51 // pred_check
              _
            $region58: #{discriminator_forward.3} parent=51 // pred_check_branch
              %1086 = sbr.rel target = $region60
            $region59: #{discriminator_forward.3} parent=51 // pred_region
              %s1088 = ssub.s32 256, 1
              %s1089 = sshrl.u32 %s1075, 4
              // While loop
              $region61: #{discriminator_forward.3} parent=59 // loop_pre_header
                _
              $region62: #{discriminator_forward.3} parent=59 // loop_header
                %s1091 = sphi 0, %s1093
                %p1092 = scmp.ge.s32.totalorder %s1091, %s1089
                %s1096 = sphi 0, %s1133
                %s1097 = sphi %s1068, %s1136
                %s1098 = sphi %s1079, %s1137
              $region63: #{discriminator_forward.3} parent=59 // loop_header_branch
                %1095 = sbr.rel (%p1092) target = $region67
              $region64: #{discriminator_forward.3} parent=59 // loop_body
                %v1099 = vld [vmem:[%s1097] sm:%s1088]
                %1100 = vst [vmem:[%s1098] sm:%s1088] %v1099
                %v1101 = vld [vmem:[%s1097 + $0x8] sm:%s1088]
                %1102 = vst [vmem:[%s1098 + $0x8] sm:%s1088] %v1101
                %v1103 = vld [vmem:[%s1097 + $0x10] sm:%s1088]
                %1104 = vst [vmem:[%s1098 + $0x10] sm:%s1088] %v1103
                %v1105 = vld [vmem:[%s1097 + $0x18] sm:%s1088]
                %1106 = vst [vmem:[%s1098 + $0x18] sm:%s1088] %v1105
                %v1107 = vld [vmem:[%s1097 + $0x20] sm:%s1088]
                %1108 = vst [vmem:[%s1098 + $0x20] sm:%s1088] %v1107
                %v1109 = vld [vmem:[%s1097 + $0x28] sm:%s1088]
                %1110 = vst [vmem:[%s1098 + $0x28] sm:%s1088] %v1109
                %v1111 = vld [vmem:[%s1097 + $0x30] sm:%s1088]
                %1112 = vst [vmem:[%s1098 + $0x30] sm:%s1088] %v1111
                %v1113 = vld [vmem:[%s1097 + $0x38] sm:%s1088]
                %1114 = vst [vmem:[%s1098 + $0x38] sm:%s1088] %v1113
                %v1115 = vld [vmem:[%s1097 + $0x40] sm:%s1088]
                %1116 = vst [vmem:[%s1098 + $0x40] sm:%s1088] %v1115
                %v1117 = vld [vmem:[%s1097 + $0x48] sm:%s1088]
                %1118 = vst [vmem:[%s1098 + $0x48] sm:%s1088] %v1117
                %v1119 = vld [vmem:[%s1097 + $0x50] sm:%s1088]
                %1120 = vst [vmem:[%s1098 + $0x50] sm:%s1088] %v1119
                %v1121 = vld [vmem:[%s1097 + $0x58] sm:%s1088]
                %1122 = vst [vmem:[%s1098 + $0x58] sm:%s1088] %v1121
                %v1123 = vld [vmem:[%s1097 + $0x60] sm:%s1088]
                %1124 = vst [vmem:[%s1098 + $0x60] sm:%s1088] %v1123
                %v1125 = vld [vmem:[%s1097 + $0x68] sm:%s1088]
                %1126 = vst [vmem:[%s1098 + $0x68] sm:%s1088] %v1125
                %v1127 = vld [vmem:[%s1097 + $0x70] sm:%s1088]
                %1128 = vst [vmem:[%s1098 + $0x70] sm:%s1088] %v1127
                %v1129 = vld [vmem:[%s1097 + $0x78] sm:%s1088]
                %1130 = vst [vmem:[%s1098 + $0x78] sm:%s1088] %v1129
                %s1131 = sadd.s32 1, %s1096
                %p1132 = scmp.ge.s32.totalorder %s1131, %s1089
                %s1133 = scalar_select %p1132, 0, %s1131
                %s1134 = smul.u32 %s1133, 128
                %s1135 = smul.u32 %s1133, 128
                %s1136 = scalar_lea.vmem %s1068, %s1134 [#allocation2]
                %s1137 = scalar_lea.vmem %s1079, %s1135
              $region65: #{discriminator_forward.3} parent=59 // loop_footer
                %s1093 = sadd.s32 %s1091, 1
              $region66: #{discriminator_forward.3} parent=59 // loop_footer_branch
                %1090 = sbr.rel target = $region62
              $region67: #{discriminator_forward.3} parent=59 // loop_exit
                _
              %s1138 = sshrl.u32 %s1075, 4
              %s1139 = sand.u32 %s1075, 15
              %s1140 = smul.u32 %s1138, 16
              %s1141 = smul.u32 8, %s1140
              %s1142 = scalar_lea.vmem %s1068, %s1141 [#allocation2]
              %s1143 = smul.u32 8, %s1140
              %s1144 = scalar_lea.vmem %s1079, %s1143
              // While loop
              $region68: #{discriminator_forward.3} parent=59 // loop_pre_header
                _
              $region69: #{discriminator_forward.3} parent=59 // loop_header
                %s1146 = sphi 0, %s1148
                %p1147 = scmp.ge.s32.totalorder %s1146, %s1139
                %s1151 = sphi 0, %s1158
                %s1152 = sphi %s1142, %s1161
                %s1153 = sphi %s1144, %s1162
              $region70: #{discriminator_forward.3} parent=59 // loop_header_branch
                %1150 = sbr.rel (%p1147) target = $region74
              $region71: #{discriminator_forward.3} parent=59 // loop_body
                %v1154 = vld [vmem:[%s1152] sm:%s1088]
                %1155 = vst [vmem:[%s1153] sm:%s1088] %v1154
                %s1156 = sadd.s32 1, %s1151
                %p1157 = scmp.ge.s32.totalorder %s1156, %s1139
                %s1158 = scalar_select %p1157, 0, %s1156
                %s1159 = smul.u32 %s1158, 8
                %s1160 = smul.u32 %s1158, 8
                %s1161 = scalar_lea.vmem %s1142, %s1159 [#allocation2]
                %s1162 = scalar_lea.vmem %s1144, %s1160
              $region72: #{discriminator_forward.3} parent=59 // loop_footer
                %s1148 = sadd.s32 %s1146, 1
              $region73: #{discriminator_forward.3} parent=59 // loop_footer_branch
                %1145 = sbr.rel target = $region69
              $region74: #{discriminator_forward.3} parent=59 // loop_exit
                _
            $region60: #{discriminator_forward.3} parent=51 // pred_fallthru
              _
          $region52: #{discriminator_forward.3} parent=47 // pred_fallthru
            _
          %1241 = vnop
        $region48: #{discriminator_forward.3} parent=43 // pred_fallthru
          _
      $region44: #{discriminator_forward.3} parent=5 // pred_fallthru
        _
      %p1242 = scmp.le.s32.totalorder 2, %s12
      // Predicated region
      $region97: #{discriminator_forward.3} parent=5 // pred_check
        %p1243 = pneg %p1242
      $region98: #{discriminator_forward.3} parent=5 // pred_check_branch
        %1245 = sbr.rel (%p1243) target = $region100
      $region99: #{discriminator_forward.3} parent=5 // pred_region
        %s1246 = ssub.s32 %s12, 2
        // Predicated region
        $region101: #{discriminator_forward.3} parent=99 // pred_check
          %p1247 = pneg %p187
        $region102: #{discriminator_forward.3} parent=99 // pred_check_branch
          %1249 = sbr.rel (%p1247) target = $region104
        $region103: #{discriminator_forward.3} parent=99 // pred_region
          %s1250 = sand.u32 %s172, 1
          %s1251 = sand.u32 %s172, 1
          %s1252 = smul.addr %s1251, 128
          %s1253 = scalar_lea.vmem [#allocation2], %s1252
        $region104: #{discriminator_forward.3} parent=99 // pred_fallthru
          _
      $region100: #{discriminator_forward.3} parent=5 // pred_fallthru
        _
    $region6: #{discriminator_forward.3} parent=1 // loop_footer
      %s16 = sadd.s32 1, %s12
    $region7: #{discriminator_forward.3} parent=1 // loop_footer_branch
      %11 = sbr.rel target = $region3
    $region8: #{discriminator_forward.3} parent=1 // loop_exit
      _

// kernel: squeeze.0
$region0: #{squeeze.0}
  %s0 = inlined_call_operand.vmem [shape: bf16[2,4,4,800], index: 0, kind: input, shape index: {}]
  %s1 = inlined_call_operand.vmem [shape: bf16[32,800], index: 1, kind: output, shape index: {}]
  $region1: #{squeeze.0} parent=0
    #allocation0 [shape = 'u8[114688]{0}', space=vmem, size = 0x1c000, scoped, tag = 'scoped mem for output reshape']
    #allocation1 [shape = 'u8[229376]{0}', space=vmem, size = 0x38000, scoped, tag = 'scoped mem for input reshape']
    %s3 = ssub.s32 16, 1
    %s4 = scalar_lea.vmem %s0, 110
    %s5 = sshrl.u32 %s3, 1
    %s6 = sor.u32 %s3, %s5
    %s7 = sand.u32 %s6, 85
    %s8 = sshrl.u32 %s7, 1
    %s9 = sor.u32 %s7, %s8
    %s10 = sand.u32 51, %s9
    %s11 = sshrl.u32 %s10, 2
    %s12 = sor.u32 %s10, %s11
    %s13 = sand.u32 15, %s12
    %v14 = vld [vmem:[%s4] sm:%s13]
    %v15 = vunpack.c.l.bf16 %v14
    %v16 = vunpack.c.h.bf16 %v14
    %s17 = scalar_lea.vmem [#allocation1], 440
    %18 = vst [vmem:[%s17] sm:%s3] %v15
    %s19 = scalar_lea.vmem %s0, 108
    %s20 = sshrl.u32 %s3, 1
    %s21 = sor.u32 %s3, %s20
    %s22 = sand.u32 %s21, 85
    %s23 = sshrl.u32 %s22, 1
    %s24 = sor.u32 %s22, %s23
    %s25 = sand.u32 51, %s24
    %s26 = sshrl.u32 %s25, 2
    %s27 = sor.u32 %s25, %s26
    %s28 = sand.u32 15, %s27
    %v29 = vld [vmem:[%s19] sm:%s28]
    %v30 = vunpack.c.l.bf16 %v29
    %v31 = vunpack.c.h.bf16 %v29
    %s32 = scalar_lea.vmem [#allocation1], 432
    %33 = vst [vmem:[%s32] sm:%s3] %v30
    %s34 = scalar_lea.vmem %s0, 106
    %s35 = sshrl.u32 %s3, 1
    %s36 = sor.u32 %s3, %s35
    %s37 = sand.u32 %s36, 85
    %s38 = sshrl.u32 %s37, 1
    %s39 = sor.u32 %s37, %s38
    %s40 = sand.u32 51, %s39
    %s41 = sshrl.u32 %s40, 2
    %s42 = sor.u32 %s40, %s41
    %s43 = sand.u32 15, %s42
    %v44 = vld [vmem:[%s34] sm:%s43]
    %v45 = vunpack.c.l.bf16 %v44
    %v46 = vunpack.c.h.bf16 %v44
    %s47 = scalar_lea.vmem [#allocation1], 424
    %48 = vst [vmem:[%s47] sm:%s3] %v45
    %s49 = scalar_lea.vmem %s0, 104
    %s50 = sshrl.u32 %s3, 1
    %s51 = sor.u32 %s3, %s50
    %s52 = sand.u32 %s51, 85
    %s53 = sshrl.u32 %s52, 1
    %s54 = sor.u32 %s52, %s53
    %s55 = sand.u32 51, %s54
    %s56 = sshrl.u32 %s55, 2
    %s57 = sor.u32 %s55, %s56
    %s58 = sand.u32 15, %s57
    %v59 = vld [vmem:[%s49] sm:%s58]
    %v60 = vunpack.c.l.bf16 %v59
    %v61 = vunpack.c.h.bf16 %v59
    %s62 = scalar_lea.vmem [#allocation1], 416
    %63 = vst [vmem:[%s62] sm:%s3] %v60
    %s64 = scalar_lea.vmem %s0, 102
    %s65 = sshrl.u32 %s3, 1
    %s66 = sor.u32 %s3, %s65
    %s67 = sand.u32 %s66, 85
    %s68 = sshrl.u32 %s67, 1
    %s69 = sor.u32 %s67, %s68
    %s70 = sand.u32 51, %s69
    %s71 = sshrl.u32 %s70, 2
    %s72 = sor.u32 %s70, %s71
    %s73 = sand.u32 15, %s72
    %v74 = vld [vmem:[%s64] sm:%s73]
    %v75 = vunpack.c.l.bf16 %v74
    %v76 = vunpack.c.h.bf16 %v74
    %s77 = scalar_lea.vmem [#allocation1], 408
    %78 = vst [vmem:[%s77] sm:%s3] %v75
    %s79 = scalar_lea.vmem %s0, 100
    %s80 = sshrl.u32 %s3, 1
    %s81 = sor.u32 %s3, %s80
    %s82 = sand.u32 %s81, 85
    %s83 = sshrl.u32 %s82, 1
    %s84 = sor.u32 %s82, %s83
    %s85 = sand.u32 51, %s84
    %s86 = sshrl.u32 %s85, 2
    %s87 = sor.u32 %s85, %s86
    %s88 = sand.u32 15, %s87
    %v89 = vld [vmem:[%s79] sm:%s88]
    %v90 = vunpack.c.l.bf16 %v89
    %v91 = vunpack.c.h.bf16 %v89
    %s92 = scalar_lea.vmem [#allocation1], 400
    %93 = vst [vmem:[%s92] sm:%s3] %v90
    %s94 = scalar_lea.vmem %s0, 98
    %s95 = sshrl.u32 %s3, 1
    %s96 = sor.u32 %s3, %s95
    %s97 = sand.u32 %s96, 85
    %s98 = sshrl.u32 %s97, 1
    %s99 = sor.u32 %s97, %s98
    %s100 = sand.u32 51, %s99
    %s101 = sshrl.u32 %s100, 2
    %s102 = sor.u32 %s100, %s101
    %s103 = sand.u32 15, %s102
    %v104 = vld [vmem:[%s94] sm:%s103]
    %v105 = vunpack.c.l.bf16 %v104
    %v106 = vunpack.c.h.bf16 %v104
    %s107 = scalar_lea.vmem [#allocation1], 392
    %108 = vst [vmem:[%s107] sm:%s3] %v105
    %s109 = scalar_lea.vmem %s0, 96
    %s110 = sshrl.u32 %s3, 1
    %s111 = sor.u32 %s3, %s110
    %s112 = sand.u32 %s111, 85
    %s113 = sshrl.u32 %s112, 1
    %s114 = sor.u32 %s112, %s113
    %s115 = sand.u32 51, %s114
    %s116 = sshrl.u32 %s115, 2
    %s117 = sor.u32 %s115, %s116
    %s118 = sand.u32 15, %s117
    %v119 = vld [vmem:[%s109] sm:%s118]
    %v120 = vunpack.c.l.bf16 %v119
    %v121 = vunpack.c.h.bf16 %v119
    %s122 = scalar_lea.vmem [#allocation1], 384
    %123 = vst [vmem:[%s122] sm:%s3] %v120
    %s124 = scalar_lea.vmem %s0, 94
    %s125 = sshrl.u32 %s3, 1
    %s126 = sor.u32 %s3, %s125
    %s127 = sand.u32 %s126, 85
    %s128 = sshrl.u32 %s127, 1
    %s129 = sor.u32 %s127, %s128
    %s130 = sand.u32 51, %s129
    %s131 = sshrl.u32 %s130, 2
    %s132 = sor.u32 %s130, %s131
    %s133 = sand.u32 15, %s132
    %v134 = vld [vmem:[%s124] sm:%s133]
    %v135 = vunpack.c.l.bf16 %v134
    %v136 = vunpack.c.h.bf16 %v134
    %s137 = scalar_lea.vmem [#allocation1], 376
    %138 = vst [vmem:[%s137] sm:%s3] %v135
    %s139 = scalar_lea.vmem %s0, 92
    %s140 = sshrl.u32 %s3, 1
    %s141 = sor.u32 %s3, %s140
    %s142 = sand.u32 %s141, 85
    %s143 = sshrl.u32 %s142, 1
    %s144 = sor.u32 %s142, %s143
    %s145 = sand.u32 51, %s144
    %s146 = sshrl.u32 %s145, 2
    %s147 = sor.u32 %s145, %s146
    %s148 = sand.u32 15, %s147
    %v149 = vld [vmem:[%s139] sm:%s148]
    %v150 = vunpack.c.l.bf16 %v149
    %v151 = vunpack.c.h.bf16 %v149
    %s152 = scalar_lea.vmem [#allocation1], 368
    %153 = vst [vmem:[%s152] sm:%s3] %v150
    %s154 = scalar_lea.vmem %s0, 90
    %s155 = sshrl.u32 %s3, 1
    %s156 = sor.u32 %s3, %s155
    %s157 = sand.u32 %s156, 85
    %s158 = sshrl.u32 %s157, 1
    %s159 = sor.u32 %s157, %s158
    %s160 = sand.u32 51, %s159
    %s161 = sshrl.u32 %s160, 2
    %s162 = sor.u32 %s160, %s161
    %s163 = sand.u32 15, %s162
    %v164 = vld [vmem:[%s154] sm:%s163]
    %v165 = vunpack.c.l.bf16 %v164
    %v166 = vunpack.c.h.bf16 %v164
    %s167 = scalar_lea.vmem [#allocation1], 360
    %168 = vst [vmem:[%s167] sm:%s3] %v165
    %s169 = scalar_lea.vmem %s0, 88
    %s170 = sshrl.u32 %s3, 1
    %s171 = sor.u32 %s3, %s170
    %s172 = sand.u32 %s171, 85
    %s173 = sshrl.u32 %s172, 1
    %s174 = sor.u32 %s172, %s173
    %s175 = sand.u32 51, %s174
    %s176 = sshrl.u32 %s175, 2
    %s177 = sor.u32 %s175, %s176
    %s178 = sand.u32 15, %s177
    %v179 = vld [vmem:[%s169] sm:%s178]
    %v180 = vunpack.c.l.bf16 %v179
    %v181 = vunpack.c.h.bf16 %v179
    %s182 = scalar_lea.vmem [#allocation1], 352
    %183 = vst [vmem:[%s182] sm:%s3] %v180
    %s184 = scalar_lea.vmem %s0, 86
    %s185 = sshrl.u32 %s3, 1
    %s186 = sor.u32 %s3, %s185
    %s187 = sand.u32 %s186, 85
    %s188 = sshrl.u32 %s187, 1
    %s189 = sor.u32 %s187, %s188
    %s190 = sand.u32 51, %s189
    %s191 = sshrl.u32 %s190, 2
    %s192 = sor.u32 %s190, %s191
    %s193 = sand.u32 15, %s192
    %v194 = vld [vmem:[%s184] sm:%s193]
    %v195 = vunpack.c.l.bf16 %v194
    %v196 = vunpack.c.h.bf16 %v194
    %s197 = scalar_lea.vmem [#allocation1], 344
    %198 = vst [vmem:[%s197] sm:%s3] %v195
    %s199 = scalar_lea.vmem %s0, 84
    %s200 = sshrl.u32 %s3, 1
    %s201 = sor.u32 %s3, %s200
    %s202 = sand.u32 %s201, 85
    %s203 = sshrl.u32 %s202, 1
    %s204 = sor.u32 %s202, %s203
    %s205 = sand.u32 51, %s204
    %s206 = sshrl.u32 %s205, 2
    %s207 = sor.u32 %s205, %s206
    %s208 = sand.u32 15, %s207
    %v209 = vld [vmem:[%s199] sm:%s208]
    %v210 = vunpack.c.l.bf16 %v209
    %v211 = vunpack.c.h.bf16 %v209
    %s212 = scalar_lea.vmem [#allocation1], 336
    %213 = vst [vmem:[%s212] sm:%s3] %v210
    %s214 = scalar_lea.vmem %s0, 82
    %s215 = sshrl.u32 %s3, 1
    %s216 = sor.u32 %s3, %s215
    %s217 = sand.u32 %s216, 85
    %s218 = sshrl.u32 %s217, 1
    %s219 = sor.u32 %s217, %s218
    %s220 = sand.u32 51, %s219
    %s221 = sshrl.u32 %s220, 2
    %s222 = sor.u32 %s220, %s221
    %s223 = sand.u32 15, %s222
    %v224 = vld [vmem:[%s214] sm:%s223]
    %v225 = vunpack.c.l.bf16 %v224
    %v226 = vunpack.c.h.bf16 %v224
    %s227 = scalar_lea.vmem [#allocation1], 328
    %228 = vst [vmem:[%s227] sm:%s3] %v225
    %s229 = scalar_lea.vmem %s0, 80
    %s230 = sshrl.u32 %s3, 1
    %s231 = sor.u32 %s3, %s230
    %s232 = sand.u32 %s231, 85
    %s233 = sshrl.u32 %s232, 1
    %s234 = sor.u32 %s232, %s233
    %s235 = sand.u32 51, %s234
    %s236 = sshrl.u32 %s235, 2
    %s237 = sor.u32 %s235, %s236
    %s238 = sand.u32 15, %s237
    %v239 = vld [vmem:[%s229] sm:%s238]
    %v240 = vunpack.c.l.bf16 %v239
    %v241 = vunpack.c.h.bf16 %v239
    %s242 = scalar_lea.vmem [#allocation1], 320
    %243 = vst [vmem:[%s242] sm:%s3] %v240
    %s244 = scalar_lea.vmem %s0, 78
    %s245 = sshrl.u32 %s3, 1
    %s246 = sor.u32 %s3, %s245
    %s247 = sand.u32 %s246, 85
    %s248 = sshrl.u32 %s247, 1
    %s249 = sor.u32 %s247, %s248
    %s250 = sand.u32 51, %s249
    %s251 = sshrl.u32 %s250, 2
    %s252 = sor.u32 %s250, %s251
    %s253 = sand.u32 15, %s252
    %v254 = vld [vmem:[%s244] sm:%s253]
    %v255 = vunpack.c.l.bf16 %v254
    %v256 = vunpack.c.h.bf16 %v254
    %s257 = scalar_lea.vmem [#allocation1], 312
    %258 = vst [vmem:[%s257] sm:%s3] %v255
    %s259 = scalar_lea.vmem %s0, 76
    %s260 = sshrl.u32 %s3, 1
    %s261 = sor.u32 %s3, %s260
    %s262 = sand.u32 %s261, 85
    %s263 = sshrl.u32 %s262, 1
    %s264 = sor.u32 %s262, %s263
    %s265 = sand.u32 51, %s264
    %s266 = sshrl.u32 %s265, 2
    %s267 = sor.u32 %s265, %s266
    %s268 = sand.u32 15, %s267
    %v269 = vld [vmem:[%s259] sm:%s268]
    %v270 = vunpack.c.l.bf16 %v269
    %v271 = vunpack.c.h.bf16 %v269
    %s272 = scalar_lea.vmem [#allocation1], 304
    %273 = vst [vmem:[%s272] sm:%s3] %v270
    %s274 = scalar_lea.vmem %s0, 74
    %s275 = sshrl.u32 %s3, 1
    %s276 = sor.u32 %s3, %s275
    %s277 = sand.u32 %s276, 85
    %s278 = sshrl.u32 %s277, 1
    %s279 = sor.u32 %s277, %s278
    %s280 = sand.u32 51, %s279
    %s281 = sshrl.u32 %s280, 2
    %s282 = sor.u32 %s280, %s281
    %s283 = sand.u32 15, %s282
    %v284 = vld [vmem:[%s274] sm:%s283]
    %v285 = vunpack.c.l.bf16 %v284
    %v286 = vunpack.c.h.bf16 %v284
    %s287 = scalar_lea.vmem [#allocation1], 296
    %288 = vst [vmem:[%s287] sm:%s3] %v285
    %s289 = scalar_lea.vmem %s0, 72
    %s290 = sshrl.u32 %s3, 1
    %s291 = sor.u32 %s3, %s290
    %s292 = sand.u32 %s291, 85
    %s293 = sshrl.u32 %s292, 1
    %s294 = sor.u32 %s292, %s293
    %s295 = sand.u32 51, %s294
    %s296 = sshrl.u32 %s295, 2
    %s297 = sor.u32 %s295, %s296
    %s298 = sand.u32 15, %s297
    %v299 = vld [vmem:[%s289] sm:%s298]
    %v300 = vunpack.c.l.bf16 %v299
    %v301 = vunpack.c.h.bf16 %v299
    %s302 = scalar_lea.vmem [#allocation1], 288
    %303 = vst [vmem:[%s302] sm:%s3] %v300
    %s304 = scalar_lea.vmem %s0, 70
    %s305 = sshrl.u32 %s3, 1
    %s306 = sor.u32 %s3, %s305
    %s307 = sand.u32 %s306, 85
    %s308 = sshrl.u32 %s307, 1
    %s309 = sor.u32 %s307, %s308
    %s310 = sand.u32 51, %s309
    %s311 = sshrl.u32 %s310, 2
    %s312 = sor.u32 %s310, %s311
    %s313 = sand.u32 15, %s312
    %v314 = vld [vmem:[%s304] sm:%s313]
    %v315 = vunpack.c.l.bf16 %v314
    %v316 = vunpack.c.h.bf16 %v314
    %s317 = scalar_lea.vmem [#allocation1], 280
    %318 = vst [vmem:[%s317] sm:%s3] %v315
    %s319 = scalar_lea.vmem %s0, 68
    %s320 = sshrl.u32 %s3, 1
    %s321 = sor.u32 %s3, %s320
    %s322 = sand.u32 %s321, 85
    %s323 = sshrl.u32 %s322, 1
    %s324 = sor.u32 %s322, %s323
    %s325 = sand.u32 51, %s324
    %s326 = sshrl.u32 %s325, 2
    %s327 = sor.u32 %s325, %s326
    %s328 = sand.u32 15, %s327
    %v329 = vld [vmem:[%s319] sm:%s328]
    %v330 = vunpack.c.l.bf16 %v329
    %v331 = vunpack.c.h.bf16 %v329
    %s332 = scalar_lea.vmem [#allocation1], 272
    %333 = vst [vmem:[%s332] sm:%s3] %v330
    %s334 = scalar_lea.vmem %s0, 66
    %s335 = sshrl.u32 %s3, 1
    %s336 = sor.u32 %s3, %s335
    %s337 = sand.u32 %s336, 85
    %s338 = sshrl.u32 %s337, 1
    %s339 = sor.u32 %s337, %s338
    %s340 = sand.u32 51, %s339
    %s341 = sshrl.u32 %s340, 2
    %s342 = sor.u32 %s340, %s341
    %s343 = sand.u32 15, %s342
    %v344 = vld [vmem:[%s334] sm:%s343]
    %v345 = vunpack.c.l.bf16 %v344
    %v346 = vunpack.c.h.bf16 %v344
    %s347 = scalar_lea.vmem [#allocation1], 264
    %348 = vst [vmem:[%s347] sm:%s3] %v345
    %s349 = scalar_lea.vmem %s0, 64
    %s350 = sshrl.u32 %s3, 1
    %s351 = sor.u32 %s3, %s350
    %s352 = sand.u32 %s351, 85
    %s353 = sshrl.u32 %s352, 1
    %s354 = sor.u32 %s352, %s353
    %s355 = sand.u32 51, %s354
    %s356 = sshrl.u32 %s355, 2
    %s357 = sor.u32 %s355, %s356
    %s358 = sand.u32 15, %s357
    %v359 = vld [vmem:[%s349] sm:%s358]
    %v360 = vunpack.c.l.bf16 %v359
    %v361 = vunpack.c.h.bf16 %v359
    %s362 = scalar_lea.vmem [#allocation1], 256
    %363 = vst [vmem:[%s362] sm:%s3] %v360
    %s364 = scalar_lea.vmem %s0, 62
    %s365 = sshrl.u32 %s3, 1
    %s366 = sor.u32 %s3, %s365
    %s367 = sand.u32 %s366, 85
    %s368 = sshrl.u32 %s367, 1
    %s369 = sor.u32 %s367, %s368
    %s370 = sand.u32 51, %s369
    %s371 = sshrl.u32 %s370, 2
    %s372 = sor.u32 %s370, %s371
    %s373 = sand.u32 15, %s372
    %v374 = vld [vmem:[%s364] sm:%s373]
    %v375 = vunpack.c.l.bf16 %v374
    %v376 = vunpack.c.h.bf16 %v374
    %s377 = scalar_lea.vmem [#allocation1], 248
    %378 = vst [vmem:[%s377] sm:%s3] %v375
    %s379 = scalar_lea.vmem %s0, 60
    %s380 = sshrl.u32 %s3, 1
    %s381 = sor.u32 %s3, %s380
    %s382 = sand.u32 %s381, 85
    %s383 = sshrl.u32 %s382, 1
    %s384 = sor.u32 %s382, %s383
    %s385 = sand.u32 51, %s384
    %s386 = sshrl.u32 %s385, 2
    %s387 = sor.u32 %s385, %s386
    %s388 = sand.u32 15, %s387
    %v389 = vld [vmem:[%s379] sm:%s388]
    %v390 = vunpack.c.l.bf16 %v389
    %v391 = vunpack.c.h.bf16 %v389
    %s392 = scalar_lea.vmem [#allocation1], 240
    %393 = vst [vmem:[%s392] sm:%s3] %v390
    %s394 = scalar_lea.vmem %s0, 58
    %s395 = sshrl.u32 %s3, 1
    %s396 = sor.u32 %s3, %s395
    %s397 = sand.u32 %s396, 85
    %s398 = sshrl.u32 %s397, 1
    %s399 = sor.u32 %s397, %s398
    %s400 = sand.u32 51, %s399
    %s401 = sshrl.u32 %s400, 2
    %s402 = sor.u32 %s400, %s401
    %s403 = sand.u32 15, %s402
    %v404 = vld [vmem:[%s394] sm:%s403]
    %v405 = vunpack.c.l.bf16 %v404
    %v406 = vunpack.c.h.bf16 %v404
    %s407 = scalar_lea.vmem [#allocation1], 232
    %408 = vst [vmem:[%s407] sm:%s3] %v405
    %s409 = scalar_lea.vmem %s0, 56
    %s410 = sshrl.u32 %s3, 1
    %s411 = sor.u32 %s3, %s410
    %s412 = sand.u32 %s411, 85
    %s413 = sshrl.u32 %s412, 1
    %s414 = sor.u32 %s412, %s413
    %s415 = sand.u32 51, %s414
    %s416 = sshrl.u32 %s415, 2
    %s417 = sor.u32 %s415, %s416
    %s418 = sand.u32 15, %s417
    %v419 = vld [vmem:[%s409] sm:%s418]
    %v420 = vunpack.c.l.bf16 %v419
    %v421 = vunpack.c.h.bf16 %v419
    %s422 = scalar_lea.vmem [#allocation1], 224
    %423 = vst [vmem:[%s422] sm:%s3] %v420
    %s424 = scalar_lea.vmem %s0, 54
    %s425 = sshrl.u32 %s3, 1
    %s426 = sor.u32 %s3, %s425
    %s427 = sand.u32 %s426, 85
    %s428 = sshrl.u32 %s427, 1
    %s429 = sor.u32 %s427, %s428
    %s430 = sand.u32 51, %s429
    %s431 = sshrl.u32 %s430, 2
    %s432 = sor.u32 %s430, %s431
    %s433 = sand.u32 15, %s432
    %v434 = vld [vmem:[%s424] sm:%s433]
    %v435 = vunpack.c.l.bf16 %v434
    %v436 = vunpack.c.h.bf16 %v434
    %s437 = scalar_lea.vmem [#allocation1], 216
    %438 = vst [vmem:[%s437] sm:%s3] %v435
    %s439 = scalar_lea.vmem %s0, 52
    %s440 = sshrl.u32 %s3, 1
    %s441 = sor.u32 %s3, %s440
    %s442 = sand.u32 %s441, 85
    %s443 = sshrl.u32 %s442, 1
    %s444 = sor.u32 %s442, %s443
    %s445 = sand.u32 51, %s444
    %s446 = sshrl.u32 %s445, 2
    %s447 = sor.u32 %s445, %s446
    %s448 = sand.u32 15, %s447
    %v449 = vld [vmem:[%s439] sm:%s448]
    %v450 = vunpack.c.l.bf16 %v449
    %v451 = vunpack.c.h.bf16 %v449
    %s452 = scalar_lea.vmem [#allocation1], 208
    %453 = vst [vmem:[%s452] sm:%s3] %v450
    %s454 = scalar_lea.vmem %s0, 50
    %s455 = sshrl.u32 %s3, 1
    %s456 = sor.u32 %s3, %s455
    %s457 = sand.u32 %s456, 85
    %s458 = sshrl.u32 %s457, 1
    %s459 = sor.u32 %s457, %s458
    %s460 = sand.u32 51, %s459
    %s461 = sshrl.u32 %s460, 2
    %s462 = sor.u32 %s460, %s461
    %s463 = sand.u32 15, %s462
    %v464 = vld [vmem:[%s454] sm:%s463]
    %v465 = vunpack.c.l.bf16 %v464
    %v466 = vunpack.c.h.bf16 %v464
    %s467 = scalar_lea.vmem [#allocation1], 200
    %468 = vst [vmem:[%s467] sm:%s3] %v465
    %s469 = scalar_lea.vmem %s0, 48
    %s470 = sshrl.u32 %s3, 1
    %s471 = sor.u32 %s3, %s470
    %s472 = sand.u32 %s471, 85
    %s473 = sshrl.u32 %s472, 1
    %s474 = sor.u32 %s472, %s473
    %s475 = sand.u32 51, %s474
    %s476 = sshrl.u32 %s475, 2
    %s477 = sor.u32 %s475, %s476
    %s478 = sand.u32 15, %s477
    %v479 = vld [vmem:[%s469] sm:%s478]
    %v480 = vunpack.c.l.bf16 %v479
    %v481 = vunpack.c.h.bf16 %v479
    %s482 = scalar_lea.vmem [#allocation1], 192
    %483 = vst [vmem:[%s482] sm:%s3] %v480
    %s484 = scalar_lea.vmem %s0, 46
    %s485 = sshrl.u32 %s3, 1
    %s486 = sor.u32 %s3, %s485
    %s487 = sand.u32 %s486, 85
    %s488 = sshrl.u32 %s487, 1
    %s489 = sor.u32 %s487, %s488
    %s490 = sand.u32 51, %s489
    %s491 = sshrl.u32 %s490, 2
    %s492 = sor.u32 %s490, %s491
    %s493 = sand.u32 15, %s492
    %v494 = vld [vmem:[%s484] sm:%s493]
    %v495 = vunpack.c.l.bf16 %v494
    %v496 = vunpack.c.h.bf16 %v494
    %s497 = scalar_lea.vmem [#allocation1], 184
    %498 = vst [vmem:[%s497] sm:%s3] %v495
    %s499 = scalar_lea.vmem %s0, 44
    %s500 = sshrl.u32 %s3, 1
    %s501 = sor.u32 %s3, %s500
    %s502 = sand.u32 %s501, 85
    %s503 = sshrl.u32 %s502, 1
    %s504 = sor.u32 %s502, %s503
    %s505 = sand.u32 51, %s504
    %s506 = sshrl.u32 %s505, 2
    %s507 = sor.u32 %s505, %s506
    %s508 = sand.u32 15, %s507
    %v509 = vld [vmem:[%s499] sm:%s508]
    %v510 = vunpack.c.l.bf16 %v509
    %v511 = vunpack.c.h.bf16 %v509
    %s512 = scalar_lea.vmem [#allocation1], 176
    %513 = vst [vmem:[%s512] sm:%s3] %v510
    %s514 = scalar_lea.vmem %s0, 42
    %s515 = sshrl.u32 %s3, 1
    %s516 = sor.u32 %s3, %s515
    %s517 = sand.u32 %s516, 85
    %s518 = sshrl.u32 %s517, 1
    %s519 = sor.u32 %s517, %s518
    %s520 = sand.u32 51, %s519
    %s521 = sshrl.u32 %s520, 2
    %s522 = sor.u32 %s520, %s521
    %s523 = sand.u32 15, %s522
    %v524 = vld [vmem:[%s514] sm:%s523]
    %v525 = vunpack.c.l.bf16 %v524
    %v526 = vunpack.c.h.bf16 %v524
    %s527 = scalar_lea.vmem [#allocation1], 168
    %528 = vst [vmem:[%s527] sm:%s3] %v525
    %s529 = scalar_lea.vmem %s0, 40
    %s530 = sshrl.u32 %s3, 1
    %s531 = sor.u32 %s3, %s530
    %s532 = sand.u32 %s531, 85
    %s533 = sshrl.u32 %s532, 1
    %s534 = sor.u32 %s532, %s533
    %s535 = sand.u32 51, %s534
    %s536 = sshrl.u32 %s535, 2
    %s537 = sor.u32 %s535, %s536
    %s538 = sand.u32 15, %s537
    %v539 = vld [vmem:[%s529] sm:%s538]
    %v540 = vunpack.c.l.bf16 %v539
    %v541 = vunpack.c.h.bf16 %v539
    %s542 = scalar_lea.vmem [#allocation1], 160
    %543 = vst [vmem:[%s542] sm:%s3] %v540
    %s544 = scalar_lea.vmem %s0, 38
    %s545 = sshrl.u32 %s3, 1
    %s546 = sor.u32 %s3, %s545
    %s547 = sand.u32 %s546, 85
    %s548 = sshrl.u32 %s547, 1
    %s549 = sor.u32 %s547, %s548
    %s550 = sand.u32 51, %s549
    %s551 = sshrl.u32 %s550, 2
    %s552 = sor.u32 %s550, %s551
    %s553 = sand.u32 15, %s552
    %v554 = vld [vmem:[%s544] sm:%s553]
    %v555 = vunpack.c.l.bf16 %v554
    %v556 = vunpack.c.h.bf16 %v554
    %s557 = scalar_lea.vmem [#allocation1], 152
    %558 = vst [vmem:[%s557] sm:%s3] %v555
    %s559 = scalar_lea.vmem %s0, 36
    %s560 = sshrl.u32 %s3, 1
    %s561 = sor.u32 %s3, %s560
    %s562 = sand.u32 %s561, 85
    %s563 = sshrl.u32 %s562, 1
    %s564 = sor.u32 %s562, %s563
    %s565 = sand.u32 51, %s564
    %s566 = sshrl.u32 %s565, 2
    %s567 = sor.u32 %s565, %s566
    %s568 = sand.u32 15, %s567
    %v569 = vld [vmem:[%s559] sm:%s568]
    %v570 = vunpack.c.l.bf16 %v569
    %v571 = vunpack.c.h.bf16 %v569
    %s572 = scalar_lea.vmem [#allocation1], 144
    %573 = vst [vmem:[%s572] sm:%s3] %v570
    %s574 = scalar_lea.vmem %s0, 34
    %s575 = sshrl.u32 %s3, 1
    %s576 = sor.u32 %s3, %s575
    %s577 = sand.u32 %s576, 85
    %s578 = sshrl.u32 %s577, 1
    %s579 = sor.u32 %s577, %s578
    %s580 = sand.u32 51, %s579
    %s581 = sshrl.u32 %s580, 2
    %s582 = sor.u32 %s580, %s581
    %s583 = sand.u32 15, %s582
    %v584 = vld [vmem:[%s574] sm:%s583]
    %v585 = vunpack.c.l.bf16 %v584
    %v586 = vunpack.c.h.bf16 %v584
    %s587 = scalar_lea.vmem [#allocation1], 136
    %588 = vst [vmem:[%s587] sm:%s3] %v585
    %s589 = scalar_lea.vmem %s0, 32
    %s590 = sshrl.u32 %s3, 1
    %s591 = sor.u32 %s3, %s590
    %s592 = sand.u32 %s591, 85
    %s593 = sshrl.u32 %s592, 1
    %s594 = sor.u32 %s592, %s593
    %s595 = sand.u32 51, %s594
    %s596 = sshrl.u32 %s595, 2
    %s597 = sor.u32 %s595, %s596
    %s598 = sand.u32 15, %s597
    %v599 = vld [vmem:[%s589] sm:%s598]
    %v600 = vunpack.c.l.bf16 %v599
    %v601 = vunpack.c.h.bf16 %v599
    %s602 = scalar_lea.vmem [#allocation1], 128
    %603 = vst [vmem:[%s602] sm:%s3] %v600
    %s604 = scalar_lea.vmem %s0, 30
    %s605 = sshrl.u32 %s3, 1
    %s606 = sor.u32 %s3, %s605
    %s607 = sand.u32 %s606, 85
    %s608 = sshrl.u32 %s607, 1
    %s609 = sor.u32 %s607, %s608
    %s610 = sand.u32 51, %s609
    %s611 = sshrl.u32 %s610, 2
    %s612 = sor.u32 %s610, %s611
    %s613 = sand.u32 15, %s612
    %v614 = vld [vmem:[%s604] sm:%s613]
    %v615 = vunpack.c.l.bf16 %v614
    %v616 = vunpack.c.h.bf16 %v614
    %s617 = scalar_lea.vmem [#allocation1], 120
    %618 = vst [vmem:[%s617] sm:%s3] %v615
    %s619 = scalar_lea.vmem %s0, 28
    %s620 = sshrl.u32 %s3, 1
    %s621 = sor.u32 %s3, %s620
    %s622 = sand.u32 %s621, 85
    %s623 = sshrl.u32 %s622, 1
    %s624 = sor.u32 %s622, %s623
    %s625 = sand.u32 51, %s624
    %s626 = sshrl.u32 %s625, 2
    %s627 = sor.u32 %s625, %s626
    %s628 = sand.u32 15, %s627
    %v629 = vld [vmem:[%s619] sm:%s628]
    %v630 = vunpack.c.l.bf16 %v629
    %v631 = vunpack.c.h.bf16 %v629
    %s632 = scalar_lea.vmem [#allocation1], 112
    %633 = vst [vmem:[%s632] sm:%s3] %v630
    %s634 = scalar_lea.vmem %s0, 26
    %s635 = sshrl.u32 %s3, 1
    %s636 = sor.u32 %s3, %s635
    %s637 = sand.u32 %s636, 85
    %s638 = sshrl.u32 %s637, 1
    %s639 = sor.u32 %s637, %s638
    %s640 = sand.u32 51, %s639
    %s641 = sshrl.u32 %s640, 2
    %s642 = sor.u32 %s640, %s641
    %s643 = sand.u32 15, %s642
    %v644 = vld [vmem:[%s634] sm:%s643]
    %v645 = vunpack.c.l.bf16 %v644
    %v646 = vunpack.c.h.bf16 %v644
    %s647 = scalar_lea.vmem [#allocation1], 104
    %648 = vst [vmem:[%s647] sm:%s3] %v645
    %s649 = scalar_lea.vmem %s0, 24
    %s650 = sshrl.u32 %s3, 1
    %s651 = sor.u32 %s3, %s650
    %s652 = sand.u32 %s651, 85
    %s653 = sshrl.u32 %s652, 1
    %s654 = sor.u32 %s652, %s653
    %s655 = sand.u32 51, %s654
    %s656 = sshrl.u32 %s655, 2
    %s657 = sor.u32 %s655, %s656
    %s658 = sand.u32 15, %s657
    %v659 = vld [vmem:[%s649] sm:%s658]
    %v660 = vunpack.c.l.bf16 %v659
    %v661 = vunpack.c.h.bf16 %v659
    %s662 = scalar_lea.vmem [#allocation1], 96
    %663 = vst [vmem:[%s662] sm:%s3] %v660
    %s664 = scalar_lea.vmem %s0, 22
    %s665 = sshrl.u32 %s3, 1
    %s666 = sor.u32 %s3, %s665
    %s667 = sand.u32 %s666, 85
    %s668 = sshrl.u32 %s667, 1
    %s669 = sor.u32 %s667, %s668
    %s670 = sand.u32 51, %s669
    %s671 = sshrl.u32 %s670, 2
    %s672 = sor.u32 %s670, %s671
    %s673 = sand.u32 15, %s672
    %v674 = vld [vmem:[%s664] sm:%s673]
    %v675 = vunpack.c.l.bf16 %v674
    %v676 = vunpack.c.h.bf16 %v674
    %s677 = scalar_lea.vmem [#allocation1], 88
    %678 = vst [vmem:[%s677] sm:%s3] %v675
    %s679 = scalar_lea.vmem %s0, 20
    %s680 = sshrl.u32 %s3, 1
    %s681 = sor.u32 %s3, %s680
    %s682 = sand.u32 %s681, 85
    %s683 = sshrl.u32 %s682, 1
    %s684 = sor.u32 %s682, %s683
    %s685 = sand.u32 51, %s684
    %s686 = sshrl.u32 %s685, 2
    %s687 = sor.u32 %s685, %s686
    %s688 = sand.u32 15, %s687
    %v689 = vld [vmem:[%s679] sm:%s688]
    %v690 = vunpack.c.l.bf16 %v689
    %v691 = vunpack.c.h.bf16 %v689
    %s692 = scalar_lea.vmem [#allocation1], 80
    %693 = vst [vmem:[%s692] sm:%s3] %v690
    %s694 = scalar_lea.vmem %s0, 18
    %s695 = sshrl.u32 %s3, 1
    %s696 = sor.u32 %s3, %s695
    %s697 = sand.u32 %s696, 85
    %s698 = sshrl.u32 %s697, 1
    %s699 = sor.u32 %s697, %s698
    %s700 = sand.u32 51, %s699
    %s701 = sshrl.u32 %s700, 2
    %s702 = sor.u32 %s700, %s701
    %s703 = sand.u32 15, %s702
    %v704 = vld [vmem:[%s694] sm:%s703]
    %v705 = vunpack.c.l.bf16 %v704
    %v706 = vunpack.c.h.bf16 %v704
    %s707 = scalar_lea.vmem [#allocation1], 72
    %708 = vst [vmem:[%s707] sm:%s3] %v705
    %s709 = scalar_lea.vmem %s0, 16
    %s710 = sshrl.u32 %s3, 1
    %s711 = sor.u32 %s3, %s710
    %s712 = sand.u32 %s711, 85
    %s713 = sshrl.u32 %s712, 1
    %s714 = sor.u32 %s712, %s713
    %s715 = sand.u32 51, %s714
    %s716 = sshrl.u32 %s715, 2
    %s717 = sor.u32 %s715, %s716
    %s718 = sand.u32 15, %s717
    %v719 = vld [vmem:[%s709] sm:%s718]
    %v720 = vunpack.c.l.bf16 %v719
    %v721 = vunpack.c.h.bf16 %v719
    %s722 = scalar_lea.vmem [#allocation1], 64
    %723 = vst [vmem:[%s722] sm:%s3] %v720
    %s724 = scalar_lea.vmem %s0, 14
    %s725 = sshrl.u32 %s3, 1
    %s726 = sor.u32 %s3, %s725
    %s727 = sand.u32 %s726, 85
    %s728 = sshrl.u32 %s727, 1
    %s729 = sor.u32 %s727, %s728
    %s730 = sand.u32 51, %s729
    %s731 = sshrl.u32 %s730, 2
    %s732 = sor.u32 %s730, %s731
    %s733 = sand.u32 15, %s732
    %v734 = vld [vmem:[%s724] sm:%s733]
    %v735 = vunpack.c.l.bf16 %v734
    %v736 = vunpack.c.h.bf16 %v734
    %s737 = scalar_lea.vmem [#allocation1], 56
    %738 = vst [vmem:[%s737] sm:%s3] %v735
    %s739 = scalar_lea.vmem %s0, 12
    %s740 = sshrl.u32 %s3, 1
    %s741 = sor.u32 %s3, %s740
    %s742 = sand.u32 %s741, 85
    %s743 = sshrl.u32 %s742, 1
    %s744 = sor.u32 %s742, %s743
    %s745 = sand.u32 51, %s744
    %s746 = sshrl.u32 %s745, 2
    %s747 = sor.u32 %s745, %s746
    %s748 = sand.u32 15, %s747
    %v749 = vld [vmem:[%s739] sm:%s748]
    %v750 = vunpack.c.l.bf16 %v749
    %v751 = vunpack.c.h.bf16 %v749
    %s752 = scalar_lea.vmem [#allocation1], 48
    %753 = vst [vmem:[%s752] sm:%s3] %v750
    %s754 = scalar_lea.vmem %s0, 10
    %s755 = sshrl.u32 %s3, 1
    %s756 = sor.u32 %s3, %s755
    %s757 = sand.u32 %s756, 85
    %s758 = sshrl.u32 %s757, 1
    %s759 = sor.u32 %s757, %s758
    %s760 = sand.u32 51, %s759
    %s761 = sshrl.u32 %s760, 2
    %s762 = sor.u32 %s760, %s761
    %s763 = sand.u32 15, %s762
    %v764 = vld [vmem:[%s754] sm:%s763]
    %v765 = vunpack.c.l.bf16 %v764
    %v766 = vunpack.c.h.bf16 %v764
    %s767 = scalar_lea.vmem [#allocation1], 40
    %768 = vst [vmem:[%s767] sm:%s3] %v765
    %s769 = scalar_lea.vmem %s0, 8
    %s770 = sshrl.u32 %s3, 1
    %s771 = sor.u32 %s3, %s770
    %s772 = sand.u32 %s771, 85
    %s773 = sshrl.u32 %s772, 1
    %s774 = sor.u32 %s772, %s773
    %s775 = sand.u32 51, %s774
    %s776 = sshrl.u32 %s775, 2
    %s777 = sor.u32 %s775, %s776
    %s778 = sand.u32 15, %s777
    %v779 = vld [vmem:[%s769] sm:%s778]
    %v780 = vunpack.c.l.bf16 %v779
    %v781 = vunpack.c.h.bf16 %v779
    %s782 = scalar_lea.vmem [#allocation1], 32
    %783 = vst [vmem:[%s782] sm:%s3] %v780
    %s784 = scalar_lea.vmem %s0, 6
    %s785 = sshrl.u32 %s3, 1
    %s786 = sor.u32 %s3, %s785
    %s787 = sand.u32 %s786, 85
    %s788 = sshrl.u32 %s787, 1
    %s789 = sor.u32 %s787, %s788
    %s790 = sand.u32 51, %s789
    %s791 = sshrl.u32 %s790, 2
    %s792 = sor.u32 %s790, %s791
    %s793 = sand.u32 15, %s792
    %v794 = vld [vmem:[%s784] sm:%s793]
    %v795 = vunpack.c.l.bf16 %v794
    %v796 = vunpack.c.h.bf16 %v794
    %s797 = scalar_lea.vmem [#allocation1], 24
    %798 = vst [vmem:[%s797] sm:%s3] %v795
    %s799 = scalar_lea.vmem %s0, 4
    %s800 = sshrl.u32 %s3, 1
    %s801 = sor.u32 %s3, %s800
    %s802 = sand.u32 %s801, 85
    %s803 = sshrl.u32 %s802, 1
    %s804 = sor.u32 %s802, %s803
    %s805 = sand.u32 51, %s804
    %s806 = sshrl.u32 %s805, 2
    %s807 = sor.u32 %s805, %s806
    %s808 = sand.u32 15, %s807
    %v809 = vld [vmem:[%s799] sm:%s808]
    %v810 = vunpack.c.l.bf16 %v809
    %v811 = vunpack.c.h.bf16 %v809
    %s812 = scalar_lea.vmem [#allocation1], 16
    %813 = vst [vmem:[%s812] sm:%s3] %v810
    %s814 = scalar_lea.vmem %s0, 2
    %s815 = sshrl.u32 %s3, 1
    %s816 = sor.u32 %s3, %s815
    %s817 = sand.u32 %s816, 85
    %s818 = sshrl.u32 %s817, 1
    %s819 = sor.u32 %s817, %s818
    %s820 = sand.u32 51, %s819
    %s821 = sshrl.u32 %s820, 2
    %s822 = sor.u32 %s820, %s821
    %s823 = sand.u32 15, %s822
    %v824 = vld [vmem:[%s814] sm:%s823]
    %v825 = vunpack.c.l.bf16 %v824
    %v826 = vunpack.c.h.bf16 %v824
    %s827 = scalar_lea.vmem [#allocation1], 8
    %828 = vst [vmem:[%s827] sm:%s3] %v825
    %s829 = sshrl.u32 %s3, 1
    %s830 = sor.u32 %s3, %s829
    %s831 = sand.u32 %s830, 85
    %s832 = sshrl.u32 %s831, 1
    %s833 = sor.u32 %s831, %s832
    %s834 = sand.u32 51, %s833
    %s835 = sshrl.u32 %s834, 2
    %s836 = sor.u32 %s834, %s835
    %s837 = sand.u32 15, %s836
    %v838 = vld [vmem:[%s0] sm:%s837]
    %v839 = vunpack.c.l.bf16 %v838
    %v840 = vunpack.c.h.bf16 %v838
    %841 = vst [vmem:[#allocation1] sm:%s3] %v839
    %s842 = scalar_lea.vmem [#allocation1], 48
    %v843 = vld [vmem:[%s842] sm:$0xf]
    %vm844 = vcmask 261120
    %s845 = scalar_lea.vmem [#allocation0], 48
    %846 = vst.msk [vmem:[%s845] sm:$0xf] %vm844, %v843
    %s847 = scalar_lea.vmem [#allocation1], 104
    %v848 = vld [vmem:[%s847] sm:$0xf]
    %vm849 = vcmask 261120
    %s850 = scalar_lea.vmem [#allocation0], 52
    %851 = vst.msk [vmem:[%s850] sm:$0xf] %vm849, %v848
    %s852 = scalar_lea.vmem [#allocation1], 160
    %v853 = vld [vmem:[%s852] sm:$0xf]
    %vm854 = vcmask 261120
    %s855 = scalar_lea.vmem [#allocation0], 104
    %856 = vst.msk [vmem:[%s855] sm:$0xf] %vm854, %v853
    %s857 = scalar_lea.vmem [#allocation1], 216
    %v858 = vld [vmem:[%s857] sm:$0xf]
    %vm859 = vcmask 261120
    %s860 = scalar_lea.vmem [#allocation0], 108
    %861 = vst.msk [vmem:[%s860] sm:$0xf] %vm859, %v858
    %s862 = scalar_lea.vmem [#allocation1], 272
    %v863 = vld [vmem:[%s862] sm:$0xf]
    %vm864 = vcmask 261120
    %s865 = scalar_lea.vmem [#allocation0], 160
    %866 = vst.msk [vmem:[%s865] sm:$0xf] %vm864, %v863
    %s867 = scalar_lea.vmem [#allocation1], 328
    %v868 = vld [vmem:[%s867] sm:$0xf]
    %vm869 = vcmask 261120
    %s870 = scalar_lea.vmem [#allocation0], 164
    %871 = vst.msk [vmem:[%s870] sm:$0xf] %vm869, %v868
    %s872 = scalar_lea.vmem [#allocation1], 384
    %v873 = vld [vmem:[%s872] sm:$0xf]
    %vm874 = vcmask 261120
    %s875 = scalar_lea.vmem [#allocation0], 216
    %876 = vst.msk [vmem:[%s875] sm:$0xf] %vm874, %v873
    %s877 = scalar_lea.vmem [#allocation1], 440
    %v878 = vld [vmem:[%s877] sm:$0xf]
    %vm879 = vcmask 261120
    %s880 = scalar_lea.vmem [#allocation0], 220
    %881 = vst.msk [vmem:[%s880] sm:$0xf] %vm879, %v878
    %v882 = vld [vmem:[#allocation1] sm:$0xf]
    %883 = vst [vmem:[#allocation0] sm:$0xf] %v882
    %s884 = scalar_lea.vmem [#allocation1], 8
    %v885 = vld [vmem:[%s884] sm:$0xf]
    %s886 = scalar_lea.vmem [#allocation0], 8
    %887 = vst [vmem:[%s886] sm:$0xf] %v885
    %s888 = scalar_lea.vmem [#allocation1], 16
    %v889 = vld [vmem:[%s888] sm:$0xf]
    %s890 = scalar_lea.vmem [#allocation0], 16
    %891 = vst [vmem:[%s890] sm:$0xf] %v889
    %s892 = scalar_lea.vmem [#allocation1], 24
    %v893 = vld [vmem:[%s892] sm:$0xf]
    %s894 = scalar_lea.vmem [#allocation0], 24
    %895 = vst [vmem:[%s894] sm:$0xf] %v893
    %s896 = scalar_lea.vmem [#allocation1], 32
    %v897 = vld [vmem:[%s896] sm:$0xf]
    %s898 = scalar_lea.vmem [#allocation0], 32
    %899 = vst [vmem:[%s898] sm:$0xf] %v897
    %s900 = scalar_lea.vmem [#allocation1], 40
    %v901 = vld [vmem:[%s900] sm:$0xf]
    %s902 = scalar_lea.vmem [#allocation0], 40
    %903 = vst [vmem:[%s902] sm:$0xf] %v901
    %s904 = scalar_lea.vmem [#allocation1], 56
    %v905 = vld [vmem:[%s904] sm:$0xf]
    %s906 = scalar_lea.vmem [#allocation0], 4
    %907 = vst [vmem:[%s906] sm:$0xf] %v905
    %s908 = scalar_lea.vmem [#allocation1], 64
    %v909 = vld [vmem:[%s908] sm:$0xf]
    %s910 = scalar_lea.vmem [#allocation0], 12
    %911 = vst [vmem:[%s910] sm:$0xf] %v909
    %s912 = scalar_lea.vmem [#allocation1], 72
    %v913 = vld [vmem:[%s912] sm:$0xf]
    %s914 = scalar_lea.vmem [#allocation0], 20
    %915 = vst [vmem:[%s914] sm:$0xf] %v913
    %s916 = scalar_lea.vmem [#allocation1], 80
    %v917 = vld [vmem:[%s916] sm:$0xf]
    %s918 = scalar_lea.vmem [#allocation0], 28
    %919 = vst [vmem:[%s918] sm:$0xf] %v917
    %s920 = scalar_lea.vmem [#allocation1], 88
    %v921 = vld [vmem:[%s920] sm:$0xf]
    %s922 = scalar_lea.vmem [#allocation0], 36
    %923 = vst [vmem:[%s922] sm:$0xf] %v921
    %s924 = scalar_lea.vmem [#allocation1], 96
    %v925 = vld [vmem:[%s924] sm:$0xf]
    %s926 = scalar_lea.vmem [#allocation0], 44
    %927 = vst [vmem:[%s926] sm:$0xf] %v925
    %s928 = scalar_lea.vmem [#allocation1], 112
    %v929 = vld [vmem:[%s928] sm:$0xf]
    %s930 = scalar_lea.vmem [#allocation0], 56
    %931 = vst [vmem:[%s930] sm:$0xf] %v929
    %s932 = scalar_lea.vmem [#allocation1], 120
    %v933 = vld [vmem:[%s932] sm:$0xf]
    %s934 = scalar_lea.vmem [#allocation0], 64
    %935 = vst [vmem:[%s934] sm:$0xf] %v933
    %s936 = scalar_lea.vmem [#allocation1], 128
    %v937 = vld [vmem:[%s936] sm:$0xf]
    %s938 = scalar_lea.vmem [#allocation0], 72
    %939 = vst [vmem:[%s938] sm:$0xf] %v937
    %s940 = scalar_lea.vmem [#allocation1], 136
    %v941 = vld [vmem:[%s940] sm:$0xf]
    %s942 = scalar_lea.vmem [#allocation0], 80
    %943 = vst [vmem:[%s942] sm:$0xf] %v941
    %s944 = scalar_lea.vmem [#allocation1], 144
    %v945 = vld [vmem:[%s944] sm:$0xf]
    %s946 = scalar_lea.vmem [#allocation0], 88
    %947 = vst [vmem:[%s946] sm:$0xf] %v945
    %s948 = scalar_lea.vmem [#allocation1], 152
    %v949 = vld [vmem:[%s948] sm:$0xf]
    %s950 = scalar_lea.vmem [#allocation0], 96
    %951 = vst [vmem:[%s950] sm:$0xf] %v949
    %s952 = scalar_lea.vmem [#allocation1], 168
    %v953 = vld [vmem:[%s952] sm:$0xf]
    %s954 = scalar_lea.vmem [#allocation0], 60
    %955 = vst [vmem:[%s954] sm:$0xf] %v953
    %s956 = scalar_lea.vmem [#allocation1], 176
    %v957 = vld [vmem:[%s956] sm:$0xf]
    %s958 = scalar_lea.vmem [#allocation0], 68
    %959 = vst [vmem:[%s958] sm:$0xf] %v957
    %s960 = scalar_lea.vmem [#allocation1], 184
    %v961 = vld [vmem:[%s960] sm:$0xf]
    %s962 = scalar_lea.vmem [#allocation0], 76
    %963 = vst [vmem:[%s962] sm:$0xf] %v961
    %s964 = scalar_lea.vmem [#allocation1], 192
    %v965 = vld [vmem:[%s964] sm:$0xf]
    %s966 = scalar_lea.vmem [#allocation0], 84
    %967 = vst [vmem:[%s966] sm:$0xf] %v965
    %s968 = scalar_lea.vmem [#allocation1], 200
    %v969 = vld [vmem:[%s968] sm:$0xf]
    %s970 = scalar_lea.vmem [#allocation0], 92
    %971 = vst [vmem:[%s970] sm:$0xf] %v969
    %s972 = scalar_lea.vmem [#allocation1], 208
    %v973 = vld [vmem:[%s972] sm:$0xf]
    %s974 = scalar_lea.vmem [#allocation0], 100
    %975 = vst [vmem:[%s974] sm:$0xf] %v973
    %s976 = scalar_lea.vmem [#allocation1], 224
    %v977 = vld [vmem:[%s976] sm:$0xf]
    %s978 = scalar_lea.vmem [#allocation0], 112
    %979 = vst [vmem:[%s978] sm:$0xf] %v977
    %s980 = scalar_lea.vmem [#allocation1], 232
    %v981 = vld [vmem:[%s980] sm:$0xf]
    %s982 = scalar_lea.vmem [#allocation0], 120
    %983 = vst [vmem:[%s982] sm:$0xf] %v981
    %s984 = scalar_lea.vmem [#allocation1], 240
    %v985 = vld [vmem:[%s984] sm:$0xf]
    %s986 = scalar_lea.vmem [#allocation0], 128
    %987 = vst [vmem:[%s986] sm:$0xf] %v985
    %s988 = scalar_lea.vmem [#allocation1], 248
    %v989 = vld [vmem:[%s988] sm:$0xf]
    %s990 = scalar_lea.vmem [#allocation0], 136
    %991 = vst [vmem:[%s990] sm:$0xf] %v989
    %s992 = scalar_lea.vmem [#allocation1], 256
    %v993 = vld [vmem:[%s992] sm:$0xf]
    %s994 = scalar_lea.vmem [#allocation0], 144
    %995 = vst [vmem:[%s994] sm:$0xf] %v993
    %s996 = scalar_lea.vmem [#allocation1], 264
    %v997 = vld [vmem:[%s996] sm:$0xf]
    %s998 = scalar_lea.vmem [#allocation0], 152
    %999 = vst [vmem:[%s998] sm:$0xf] %v997
    %s1000 = scalar_lea.vmem [#allocation1], 280
    %v1001 = vld [vmem:[%s1000] sm:$0xf]
    %s1002 = scalar_lea.vmem [#allocation0], 116
    %1003 = vst [vmem:[%s1002] sm:$0xf] %v1001
    %s1004 = scalar_lea.vmem [#allocation1], 288
    %v1005 = vld [vmem:[%s1004] sm:$0xf]
    %s1006 = scalar_lea.vmem [#allocation0], 124
    %1007 = vst [vmem:[%s1006] sm:$0xf] %v1005
    %s1008 = scalar_lea.vmem [#allocation1], 296
    %v1009 = vld [vmem:[%s1008] sm:$0xf]
    %s1010 = scalar_lea.vmem [#allocation0], 132
    %1011 = vst [vmem:[%s1010] sm:$0xf] %v1009
    %s1012 = scalar_lea.vmem [#allocation1], 304
    %v1013 = vld [vmem:[%s1012] sm:$0xf]
    %s1014 = scalar_lea.vmem [#allocation0], 140
    %1015 = vst [vmem:[%s1014] sm:$0xf] %v1013
    %s1016 = scalar_lea.vmem [#allocation1], 312
    %v1017 = vld [vmem:[%s1016] sm:$0xf]
    %s1018 = scalar_lea.vmem [#allocation0], 148
    %1019 = vst [vmem:[%s1018] sm:$0xf] %v1017
    %s1020 = scalar_lea.vmem [#allocation1], 320
    %v1021 = vld [vmem:[%s1020] sm:$0xf]
    %s1022 = scalar_lea.vmem [#allocation0], 156
    %1023 = vst [vmem:[%s1022] sm:$0xf] %v1021
    %s1024 = scalar_lea.vmem [#allocation1], 336
    %v1025 = vld [vmem:[%s1024] sm:$0xf]
    %s1026 = scalar_lea.vmem [#allocation0], 168
    %1027 = vst [vmem:[%s1026] sm:$0xf] %v1025
    %s1028 = scalar_lea.vmem [#allocation1], 344
    %v1029 = vld [vmem:[%s1028] sm:$0xf]
    %s1030 = scalar_lea.vmem [#allocation0], 176
    %1031 = vst [vmem:[%s1030] sm:$0xf] %v1029
    %s1032 = scalar_lea.vmem [#allocation1], 352
    %v1033 = vld [vmem:[%s1032] sm:$0xf]
    %s1034 = scalar_lea.vmem [#allocation0], 184
    %1035 = vst [vmem:[%s1034] sm:$0xf] %v1033
    %s1036 = scalar_lea.vmem [#allocation1], 360
    %v1037 = vld [vmem:[%s1036] sm:$0xf]
    %s1038 = scalar_lea.vmem [#allocation0], 192
    %1039 = vst [vmem:[%s1038] sm:$0xf] %v1037
    %s1040 = scalar_lea.vmem [#allocation1], 368
    %v1041 = vld [vmem:[%s1040] sm:$0xf]
    %s1042 = scalar_lea.vmem [#allocation0], 200
    %1043 = vst [vmem:[%s1042] sm:$0xf] %v1041
    %s1044 = scalar_lea.vmem [#allocation1], 376
    %v1045 = vld [vmem:[%s1044] sm:$0xf]
    %s1046 = scalar_lea.vmem [#allocation0], 208
    %1047 = vst [vmem:[%s1046] sm:$0xf] %v1045
    %s1048 = scalar_lea.vmem [#allocation1], 392
    %v1049 = vld [vmem:[%s1048] sm:$0xf]
    %s1050 = scalar_lea.vmem [#allocation0], 172
    %1051 = vst [vmem:[%s1050] sm:$0xf] %v1049
    %s1052 = scalar_lea.vmem [#allocation1], 400
    %v1053 = vld [vmem:[%s1052] sm:$0xf]
    %s1054 = scalar_lea.vmem [#allocation0], 180
    %1055 = vst [vmem:[%s1054] sm:$0xf] %v1053
    %s1056 = scalar_lea.vmem [#allocation1], 408
    %v1057 = vld [vmem:[%s1056] sm:$0xf]
    %s1058 = scalar_lea.vmem [#allocation0], 188
    %1059 = vst [vmem:[%s1058] sm:$0xf] %v1057
    %s1060 = scalar_lea.vmem [#allocation1], 416
    %v1061 = vld [vmem:[%s1060] sm:$0xf]
    %s1062 = scalar_lea.vmem [#allocation0], 196
    %1063 = vst [vmem:[%s1062] sm:$0xf] %v1061
    %s1064 = scalar_lea.vmem [#allocation1], 424
    %v1065 = vld [vmem:[%s1064] sm:$0xf]
    %s1066 = scalar_lea.vmem [#allocation0], 204
    %1067 = vst [vmem:[%s1066] sm:$0xf] %v1065
    %s1068 = scalar_lea.vmem [#allocation1], 432
    %v1069 = vld [vmem:[%s1068] sm:$0xf]
    %s1070 = scalar_lea.vmem [#allocation0], 212
    %1071 = vst [vmem:[%s1070] sm:$0xf] %v1069
    %s1073 = ssub.s32 256, 1
    %v1074 = vld [vmem:[#allocation0] sm:%s1073]
    %v1075 = vpack.c.bf16 0.0, %v1074
    %s1077 = ssub.s32 16, 1
    %1078 = vst [vmem:[%s1] sm:%s1077] %v1075
    %s1079 = scalar_lea.vmem [#allocation0], 8
    %v1080 = vld [vmem:[%s1079] sm:%s1073]
    %v1081 = vpack.c.bf16 0.0, %v1080
    %s1083 = ssub.s32 16, 1
    %s1084 = scalar_lea.vmem %s1, 4
    %1085 = vst [vmem:[%s1084] sm:%s1083] %v1081
    %s1086 = scalar_lea.vmem [#allocation0], 16
    %v1087 = vld [vmem:[%s1086] sm:%s1073]
    %v1088 = vpack.c.bf16 0.0, %v1087
    %s1090 = ssub.s32 16, 1
    %s1091 = scalar_lea.vmem %s1, 8
    %1092 = vst [vmem:[%s1091] sm:%s1090] %v1088
    %s1093 = scalar_lea.vmem [#allocation0], 24
    %v1094 = vld [vmem:[%s1093] sm:%s1073]
    %v1095 = vpack.c.bf16 0.0, %v1094
    %s1097 = ssub.s32 16, 1
    %s1098 = scalar_lea.vmem %s1, 12
    %1099 = vst [vmem:[%s1098] sm:%s1097] %v1095
    %s1100 = scalar_lea.vmem [#allocation0], 32
    %v1101 = vld [vmem:[%s1100] sm:%s1073]
    %v1102 = vpack.c.bf16 0.0, %v1101
    %s1104 = ssub.s32 16, 1
    %s1105 = scalar_lea.vmem %s1, 16
    %1106 = vst [vmem:[%s1105] sm:%s1104] %v1102
    %s1107 = scalar_lea.vmem [#allocation0], 40
    %v1108 = vld [vmem:[%s1107] sm:%s1073]
    %v1109 = vpack.c.bf16 0.0, %v1108
    %s1111 = ssub.s32 16, 1
    %s1112 = scalar_lea.vmem %s1, 20
    %1113 = vst [vmem:[%s1112] sm:%s1111] %v1109
    %s1114 = scalar_lea.vmem [#allocation0], 48
    %v1115 = vld [vmem:[%s1114] sm:%s1073]
    %v1116 = vpack.c.bf16 0.0, %v1115
    %s1118 = ssub.s32 16, 1
    %s1119 = scalar_lea.vmem %s1, 24
    %1120 = vst [vmem:[%s1119] sm:%s1118] %v1116
    %s1121 = scalar_lea.vmem [#allocation0], 56
    %v1122 = vld [vmem:[%s1121] sm:%s1073]
    %v1123 = vpack.c.bf16 0.0, %v1122
    %s1125 = ssub.s32 16, 1
    %s1126 = scalar_lea.vmem %s1, 28
    %1127 = vst [vmem:[%s1126] sm:%s1125] %v1123
    %s1128 = scalar_lea.vmem [#allocation0], 64
    %v1129 = vld [vmem:[%s1128] sm:%s1073]
    %v1130 = vpack.c.bf16 0.0, %v1129
    %s1132 = ssub.s32 16, 1
    %s1133 = scalar_lea.vmem %s1, 32
    %1134 = vst [vmem:[%s1133] sm:%s1132] %v1130
    %s1135 = scalar_lea.vmem [#allocation0], 72
    %v1136 = vld [vmem:[%s1135] sm:%s1073]
    %v1137 = vpack.c.bf16 0.0, %v1136
    %s1139 = ssub.s32 16, 1
    %s1140 = scalar_lea.vmem %s1, 36
    %1141 = vst [vmem:[%s1140] sm:%s1139] %v1137
    %s1142 = scalar_lea.vmem [#allocation0], 80
    %v1143 = vld [vmem:[%s1142] sm:%s1073]
    %v1144 = vpack.c.bf16 0.0, %v1143
    %s1146 = ssub.s32 16, 1
    %s1147 = scalar_lea.vmem %s1, 40
    %1148 = vst [vmem:[%s1147] sm:%s1146] %v1144
    %s1149 = scalar_lea.vmem [#allocation0], 88
    %v1150 = vld [vmem:[%s1149] sm:%s1073]
    %v1151 = vpack.c.bf16 0.0, %v1150
    %s1153 = ssub.s32 16, 1
    %s1154 = scalar_lea.vmem %s1, 44
    %1155 = vst [vmem:[%s1154] sm:%s1153] %v1151
    %s1156 = scalar_lea.vmem [#allocation0], 96
    %v1157 = vld [vmem:[%s1156] sm:%s1073]
    %v1158 = vpack.c.bf16 0.0, %v1157
    %s1160 = ssub.s32 16, 1
    %s1161 = scalar_lea.vmem %s1, 48
    %1162 = vst [vmem:[%s1161] sm:%s1160] %v1158
    %s1163 = scalar_lea.vmem [#allocation0], 104
    %v1164 = vld [vmem:[%s1163] sm:%s1073]
    %v1165 = vpack.c.bf16 0.0, %v1164
    %s1167 = ssub.s32 16, 1
    %s1168 = scalar_lea.vmem %s1, 52
    %1169 = vst [vmem:[%s1168] sm:%s1167] %v1165
    %s1170 = scalar_lea.vmem [#allocation0], 112
    %v1171 = vld [vmem:[%s1170] sm:%s1073]
    %v1172 = vpack.c.bf16 0.0, %v1171
    %s1174 = ssub.s32 16, 1
    %s1175 = scalar_lea.vmem %s1, 56
    %1176 = vst [vmem:[%s1175] sm:%s1174] %v1172
    %s1177 = scalar_lea.vmem [#allocation0], 120
    %v1178 = vld [vmem:[%s1177] sm:%s1073]
    %v1179 = vpack.c.bf16 0.0, %v1178
    %s1181 = ssub.s32 16, 1
    %s1182 = scalar_lea.vmem %s1, 60
    %1183 = vst [vmem:[%s1182] sm:%s1181] %v1179
    %s1184 = scalar_lea.vmem [#allocation0], 128
    %v1185 = vld [vmem:[%s1184] sm:%s1073]
    %v1186 = vpack.c.bf16 0.0, %v1185
    %s1188 = ssub.s32 16, 1
    %s1189 = scalar_lea.vmem %s1, 64
    %1190 = vst [vmem:[%s1189] sm:%s1188] %v1186
    %s1191 = scalar_lea.vmem [#allocation0], 136
    %v1192 = vld [vmem:[%s1191] sm:%s1073]
    %v1193 = vpack.c.bf16 0.0, %v1192
    %s1195 = ssub.s32 16, 1
    %s1196 = scalar_lea.vmem %s1, 68
    %1197 = vst [vmem:[%s1196] sm:%s1195] %v1193
    %s1198 = scalar_lea.vmem [#allocation0], 144
    %v1199 = vld [vmem:[%s1198] sm:%s1073]
    %v1200 = vpack.c.bf16 0.0, %v1199
    %s1202 = ssub.s32 16, 1
    %s1203 = scalar_lea.vmem %s1, 72
    %1204 = vst [vmem:[%s1203] sm:%s1202] %v1200
    %s1205 = scalar_lea.vmem [#allocation0], 152
    %v1206 = vld [vmem:[%s1205] sm:%s1073]
    %v1207 = vpack.c.bf16 0.0, %v1206
    %s1209 = ssub.s32 16, 1
    %s1210 = scalar_lea.vmem %s1, 76
    %1211 = vst [vmem:[%s1210] sm:%s1209] %v1207
    %s1212 = scalar_lea.vmem [#allocation0], 160
    %v1213 = vld [vmem:[%s1212] sm:%s1073]
    %v1214 = vpack.c.bf16 0.0, %v1213
    %s1216 = ssub.s32 16, 1
    %s1217 = scalar_lea.vmem %s1, 80
    %1218 = vst [vmem:[%s1217] sm:%s1216] %v1214
    %s1219 = scalar_lea.vmem [#allocation0], 168
    %v1220 = vld [vmem:[%s1219] sm:%s1073]
    %v1221 = vpack.c.bf16 0.0, %v1220
    %s1223 = ssub.s32 16, 1
    %s1224 = scalar_lea.vmem %s1, 84
    %1225 = vst [vmem:[%s1224] sm:%s1223] %v1221
    %s1226 = scalar_lea.vmem [#allocation0], 176
    %v1227 = vld [vmem:[%s1226] sm:%s1073]
    %v1228 = vpack.c.bf16 0.0, %v1227
    %s1230 = ssub.s32 16, 1
    %s1231 = scalar_lea.vmem %s1, 88
    %1232 = vst [vmem:[%s1231] sm:%s1230] %v1228
    %s1233 = scalar_lea.vmem [#allocation0], 184
    %v1234 = vld [vmem:[%s1233] sm:%s1073]
    %v1235 = vpack.c.bf16 0.0, %v1234
    %s1237 = ssub.s32 16, 1
    %s1238 = scalar_lea.vmem %s1, 92
    %1239 = vst [vmem:[%s1238] sm:%s1237] %v1235
    %s1240 = scalar_lea.vmem [#allocation0], 192
    %v1241 = vld [vmem:[%s1240] sm:%s1073]
    %v1242 = vpack.c.bf16 0.0, %v1241
    %s1244 = ssub.s32 16, 1
    %s1245 = scalar_lea.vmem %s1, 96
    %1246 = vst [vmem:[%s1245] sm:%s1244] %v1242
    %s1247 = scalar_lea.vmem [#allocation0], 200
    %v1248 = vld [vmem:[%s1247] sm:%s1073]
    %v1249 = vpack.c.bf16 0.0, %v1248
    %s1251 = ssub.s32 16, 1
    %s1252 = scalar_lea.vmem %s1, 100
    %1253 = vst [vmem:[%s1252] sm:%s1251] %v1249
    %s1254 = scalar_lea.vmem [#allocation0], 208
    %v1255 = vld [vmem:[%s1254] sm:%s1073]
    %v1256 = vpack.c.bf16 0.0, %v1255
    %s1258 = ssub.s32 16, 1
    %s1259 = scalar_lea.vmem %s1, 104
    %1260 = vst [vmem:[%s1259] sm:%s1258] %v1256
    %s1261 = scalar_lea.vmem [#allocation0], 216
    %v1262 = vld [vmem:[%s1261] sm:%s1073]
    %v1263 = vpack.c.bf16 0.0, %v1262
    %s1265 = ssub.s32 16, 1
    %s1266 = scalar_lea.vmem %s1, 108
    %1267 = vst [vmem:[%s1266] sm:%s1265] %v1263

// kernel: discriminator_forward.4
$region0: #{discriminator_forward.4}
  #allocation0 [shape = 'u32[]', space=smem, size = 0x4, offset = 0x4, fixed_abs, tag = 'smem constant byte address 0x4 - core index']
  #allocation1 [shape = 'u32[72,128]{1,0:T(1,128)}', space=vmem, size = 0x9000, scoped, tag = 'internal scratch']
  %s0 = inlined_call_operand.vmem [shape: bf16[32,896], index: 0, kind: input, shape index: {}]
  %s1 = inlined_call_operand.vmem [shape: bf16[32,896], index: 1, kind: input, shape index: {}]
  %s2 = inlined_call_operand.vmem [shape: bf16[32,896], index: 2, kind: input, shape index: {}]
  %s3 = inlined_call_operand.vmem [shape: bf16[32,896], index: 3, kind: input, shape index: {}]
  %s4 = inlined_call_operand.vmem [shape: bf16[896,64], index: 4, kind: input, shape index: {}]
  %s5 = inlined_call_operand.vmem [shape: f32[1,64], index: 5, kind: input, shape index: {}]
  %s6 = inlined_call_operand.vmem [shape: f32[32,64], index: 6, kind: output, shape index: {}]
  %s7 = sld [smem:[#allocation0]]
  $region34: #{discriminator_forward.4} parent=0
    _
  %s9 = ssub.s32 1, %s7
  %s10 = scalar_select 0, %s9, %s7
  // Predicated region
  $region2: #{discriminator_forward.4} parent=0 // pred_check
    _
  $region3: #{discriminator_forward.4} parent=0 // pred_check_branch
    %12 = sbr.rel (0) target = $region5
  $region4: #{discriminator_forward.4} parent=0 // pred_region
    _
  $region5: #{discriminator_forward.4} parent=0 // pred_fallthru
    _
  // Predicated region
  $region6: #{discriminator_forward.4} parent=0 // pred_check
    _
  $region7: #{discriminator_forward.4} parent=0 // pred_check_branch
    %14 = sbr.rel (0) target = $region9
  $region8: #{discriminator_forward.4} parent=0 // pred_region
    _
  $region9: #{discriminator_forward.4} parent=0 // pred_fallthru
    _
  // Predicated region
  $region10: #{discriminator_forward.4} parent=0 // pred_check
    _
  $region11: #{discriminator_forward.4} parent=0 // pred_check_branch
    %16 = sbr.rel (0) target = $region13
  $region12: #{discriminator_forward.4} parent=0 // pred_region
    _
  $region13: #{discriminator_forward.4} parent=0 // pred_fallthru
    _
  // Predicated region
  $region14: #{discriminator_forward.4} parent=0 // pred_check
    _
  $region15: #{discriminator_forward.4} parent=0 // pred_check_branch
    %18 = sbr.rel (0) target = $region17
  $region16: #{discriminator_forward.4} parent=0 // pred_region
    _
  $region17: #{discriminator_forward.4} parent=0 // pred_fallthru
    _
  // Predicated region
  $region18: #{discriminator_forward.4} parent=0 // pred_check
    _
  $region19: #{discriminator_forward.4} parent=0 // pred_check_branch
    %20 = sbr.rel (0) target = $region21
  $region20: #{discriminator_forward.4} parent=0 // pred_region
    _
  $region21: #{discriminator_forward.4} parent=0 // pred_fallthru
    _
  // Predicated region
  $region22: #{discriminator_forward.4} parent=0 // pred_check
    _
  $region23: #{discriminator_forward.4} parent=0 // pred_check_branch
    %22 = sbr.rel (0) target = $region25
  $region24: #{discriminator_forward.4} parent=0 // pred_region
    _
  $region25: #{discriminator_forward.4} parent=0 // pred_fallthru
    _
  %v23 = vld [vmem:[%s4] sm:$0xf]
  %v24 = vld [vmem:[%s4 + $0x4] sm:$0xf]
  %v25 = vld [vmem:[%s4 + $0x8] sm:$0xf]
  %v26 = vld [vmem:[%s4 + $0xc] sm:$0xf]
  %v27 = vld [vmem:[%s4 + $0x10] sm:$0xf]
  %v28 = vld [vmem:[%s4 + $0x14] sm:$0xf]
  %v29 = vld [vmem:[%s4 + $0x18] sm:$0xf]
  %v30 = vld [vmem:[%s4 + $0x1c] sm:$0xf]
  %v31 = vld [vmem:[%s4 + $0x20] sm:$0xf]
  %v32 = vld [vmem:[%s4 + $0x24] sm:$0xf]
  %v33 = vld [vmem:[%s4 + $0x28] sm:$0xf]
  %v34 = vld [vmem:[%s4 + $0x2c] sm:$0xf]
  %v35 = vld [vmem:[%s4 + $0x30] sm:$0xf]
  %v36 = vld [vmem:[%s4 + $0x34] sm:$0xf]
  %v37 = vld [vmem:[%s4 + $0x38] sm:$0xf]
  %v38 = vld [vmem:[%s4 + $0x3c] sm:$0xf]
  %v39 = vld [vmem:[%s4 + $0x40] sm:$0xf]
  %v40 = vld [vmem:[%s4 + $0x44] sm:$0xf]
  %v41 = vld [vmem:[%s4 + $0x48] sm:$0xf]
  %v42 = vld [vmem:[%s4 + $0x4c] sm:$0xf]
  %v43 = vld [vmem:[%s4 + $0x50] sm:$0xf]
  %v44 = vld [vmem:[%s4 + $0x54] sm:$0xf]
  %v45 = vld [vmem:[%s4 + $0x58] sm:$0xf]
  %v46 = vld [vmem:[%s4 + $0x5c] sm:$0xf]
  %v47 = vld [vmem:[%s4 + $0x60] sm:$0xf]
  %v48 = vld [vmem:[%s4 + $0x64] sm:$0xf]
  %v49 = vld [vmem:[%s4 + $0x68] sm:$0xf]
  %v50 = vld [vmem:[%s4 + $0x6c] sm:$0xf]
  %v51 = vld [vmem:[%s4 + $0x70] sm:$0xf]
  %v52 = vld [vmem:[%s4 + $0x74] sm:$0xf]
  %v53 = vld [vmem:[%s4 + $0x78] sm:$0xf]
  %v54 = vld [vmem:[%s4 + $0x7c] sm:$0xf]
  %v55 = vld [vmem:[%s4 + $0x80] sm:$0xf]
  %v56 = vld [vmem:[%s4 + $0x84] sm:$0xf]
  %v57 = vld [vmem:[%s4 + $0x88] sm:$0xf]
  %v58 = vld [vmem:[%s4 + $0x8c] sm:$0xf]
  %v59 = vld [vmem:[%s4 + $0x90] sm:$0xf]
  %v60 = vld [vmem:[%s4 + $0x94] sm:$0xf]
  %v61 = vld [vmem:[%s4 + $0x98] sm:$0xf]
  %v62 = vld [vmem:[%s4 + $0x9c] sm:$0xf]
  %v63 = vld [vmem:[%s4 + $0xa0] sm:$0xf]
  %v64 = vld [vmem:[%s4 + $0xa4] sm:$0xf]
  %v65 = vld [vmem:[%s4 + $0xa8] sm:$0xf]
  %v66 = vld [vmem:[%s4 + $0xac] sm:$0xf]
  %v67 = vld [vmem:[%s4 + $0xb0] sm:$0xf]
  %v68 = vld [vmem:[%s4 + $0xb4] sm:$0xf]
  %v69 = vld [vmem:[%s4 + $0xb8] sm:$0xf]
  %v70 = vld [vmem:[%s4 + $0xbc] sm:$0xf]
  %v71 = vld [vmem:[%s4 + $0xc0] sm:$0xf]
  %v72 = vld [vmem:[%s4 + $0xc4] sm:$0xf]
  %v73 = vld [vmem:[%s4 + $0xc8] sm:$0xf]
  %v74 = vld [vmem:[%s4 + $0xcc] sm:$0xf]
  %v75 = vld [vmem:[%s4 + $0xd0] sm:$0xf]
  %v76 = vld [vmem:[%s4 + $0xd4] sm:$0xf]
  %v77 = vld [vmem:[%s4 + $0xd8] sm:$0xf]
  %v78 = vld [vmem:[%s4 + $0xdc] sm:$0xf]
  %v79 = vld [vmem:[%s4 + $0xe0] sm:$0xf]
  %v80 = vld [vmem:[%s4 + $0xe4] sm:$0xf]
  %v81 = vld [vmem:[%s4 + $0xe8] sm:$0xf]
  %v82 = vld [vmem:[%s4 + $0xec] sm:$0xf]
  %v83 = vld [vmem:[%s4 + $0xf0] sm:$0xf]
  %v84 = vld [vmem:[%s4 + $0xf4] sm:$0xf]
  %v85 = vld [vmem:[%s4 + $0xf8] sm:$0xf]
  %v86 = vld [vmem:[%s4 + $0xfc] sm:$0xf]
  %v87 = vld [vmem:[%s4 + $0x100] sm:$0xf]
  %v88 = vld [vmem:[%s4 + $0x104] sm:$0xf]
  %v89 = vld [vmem:[%s4 + $0x108] sm:$0xf]
  %v90 = vld [vmem:[%s4 + $0x10c] sm:$0xf]
  %v91 = vld [vmem:[%s4 + $0x110] sm:$0xf]
  %v92 = vld [vmem:[%s4 + $0x114] sm:$0xf]
  %v93 = vld [vmem:[%s4 + $0x118] sm:$0xf]
  %v94 = vld [vmem:[%s4 + $0x11c] sm:$0xf]
  %v95 = vld [vmem:[%s4 + $0x120] sm:$0xf]
  %v96 = vld [vmem:[%s4 + $0x124] sm:$0xf]
  %v97 = vld [vmem:[%s4 + $0x128] sm:$0xf]
  %v98 = vld [vmem:[%s4 + $0x12c] sm:$0xf]
  %v99 = vld [vmem:[%s4 + $0x130] sm:$0xf]
  %v100 = vld [vmem:[%s4 + $0x134] sm:$0xf]
  %v101 = vld [vmem:[%s4 + $0x138] sm:$0xf]
  %v102 = vld [vmem:[%s4 + $0x13c] sm:$0xf]
  %v103 = vld [vmem:[%s4 + $0x140] sm:$0xf]
  %v104 = vld [vmem:[%s4 + $0x144] sm:$0xf]
  %v105 = vld [vmem:[%s4 + $0x148] sm:$0xf]
  %v106 = vld [vmem:[%s4 + $0x14c] sm:$0xf]
  %v107 = vld [vmem:[%s4 + $0x150] sm:$0xf]
  %v108 = vld [vmem:[%s4 + $0x154] sm:$0xf]
  %v109 = vld [vmem:[%s4 + $0x158] sm:$0xf]
  %v110 = vld [vmem:[%s4 + $0x15c] sm:$0xf]
  %v111 = vld [vmem:[%s4 + $0x160] sm:$0xf]
  %v112 = vld [vmem:[%s4 + $0x164] sm:$0xf]
  %v113 = vld [vmem:[%s4 + $0x168] sm:$0xf]
  %v114 = vld [vmem:[%s4 + $0x16c] sm:$0xf]
  %v115 = vld [vmem:[%s4 + $0x170] sm:$0xf]
  %v116 = vld [vmem:[%s4 + $0x174] sm:$0xf]
  %v117 = vld [vmem:[%s4 + $0x178] sm:$0xf]
  %v118 = vld [vmem:[%s4 + $0x17c] sm:$0xf]
  %v119 = vld [vmem:[%s4 + $0x180] sm:$0xf]
  %v120 = vld [vmem:[%s4 + $0x184] sm:$0xf]
  %v121 = vld [vmem:[%s4 + $0x188] sm:$0xf]
  %v122 = vld [vmem:[%s4 + $0x18c] sm:$0xf]
  %v123 = vld [vmem:[%s4 + $0x190] sm:$0xf]
  %v124 = vld [vmem:[%s4 + $0x194] sm:$0xf]
  %v125 = vld [vmem:[%s4 + $0x198] sm:$0xf]
  %v126 = vld [vmem:[%s4 + $0x19c] sm:$0xf]
  %v127 = vld [vmem:[%s4 + $0x1a0] sm:$0xf]
  %v128 = vld [vmem:[%s4 + $0x1a4] sm:$0xf]
  %v129 = vld [vmem:[%s4 + $0x1a8] sm:$0xf]
  %v130 = vld [vmem:[%s4 + $0x1ac] sm:$0xf]
  %v131 = vld [vmem:[%s4 + $0x1b0] sm:$0xf]
  %v132 = vld [vmem:[%s4 + $0x1b4] sm:$0xf]
  %v133 = vld [vmem:[%s4 + $0x1b8] sm:$0xf]
  %v134 = vld [vmem:[%s4 + $0x1bc] sm:$0xf]
  %v135 = vld [vmem:[%s0] sm:$0xff]
  %v136 = vld [vmem:[%s0 + $0x8] sm:$0xff]
  %v137 = vld [vmem:[%s0 + $0x10] sm:$0xff]
  %v138 = vld [vmem:[%s0 + $0x18] sm:$0xf]
  %v139 = vld [vmem:[%s0 + $0x1c] sm:$0xff]
  %v140 = vld [vmem:[%s0 + $0x24] sm:$0xff]
  %v141 = vld [vmem:[%s0 + $0x2c] sm:$0xff]
  %v142 = vld [vmem:[%s0 + $0x34] sm:$0xf]
  %v143 = vld [vmem:[%s0 + $0x38] sm:$0xff]
  %v144 = vld [vmem:[%s0 + $0x40] sm:$0xff]
  %v145 = vld [vmem:[%s0 + $0x48] sm:$0xff]
  %v146 = vld [vmem:[%s0 + $0x50] sm:$0xf]
  %v147 = vld [vmem:[%s0 + $0x54] sm:$0xff]
  %v148 = vld [vmem:[%s0 + $0x5c] sm:$0xff]
  %v149 = vld [vmem:[%s0 + $0x64] sm:$0xff]
  %v150 = vld [vmem:[%s0 + $0x6c] sm:$0xf]
  %v167 = vunpack.c.l.b16 %v135
  %v168 = vunpack.c.h.b16 %v135
  %v169 = vunpack.c.l.b16 %v136
  %v170 = vunpack.c.h.b16 %v136
  %v171 = vunpack.c.l.b16 %v137
  %v172 = vunpack.c.h.b16 %v137
  %v173 = vunpack.c.l.b16 %v138
  %v174 = vunpack.c.l.b16 %v139
  %v175 = vunpack.c.h.b16 %v139
  %v176 = vunpack.c.l.b16 %v140
  %v177 = vunpack.c.h.b16 %v140
  %v178 = vunpack.c.l.b16 %v141
  %v179 = vunpack.c.h.b16 %v141
  %v180 = vunpack.c.l.b16 %v142
  %v181 = vunpack.c.l.b16 %v143
  %v182 = vunpack.c.h.b16 %v143
  %v183 = vunpack.c.l.b16 %v144
  %v184 = vunpack.c.h.b16 %v144
  %v185 = vunpack.c.l.b16 %v145
  %v186 = vunpack.c.h.b16 %v145
  %v187 = vunpack.c.l.b16 %v146
  %v188 = vunpack.c.l.b16 %v147
  %v189 = vunpack.c.h.b16 %v147
  %v190 = vunpack.c.l.b16 %v148
  %v191 = vunpack.c.h.b16 %v148
  %v192 = vunpack.c.l.b16 %v149
  %v193 = vunpack.c.h.b16 %v149
  %v194 = vunpack.c.l.b16 %v150
  %v195 = vpack.c.b16 %v174, %v167
  %v196 = vpack.c.b16 %v175, %v168
  %v197 = vpack.c.b16 %v176, %v169
  %v198 = vpack.c.b16 %v177, %v170
  %v199 = vpack.c.b16 %v178, %v171
  %v200 = vpack.c.b16 %v179, %v172
  %v201 = vpack.c.b16 %v180, %v173
  %v202 = vpack.c.b16 %v188, %v181
  %v203 = vpack.c.b16 %v189, %v182
  %v204 = vpack.c.b16 %v190, %v183
  %v205 = vpack.c.b16 %v191, %v184
  %v206 = vpack.c.b16 %v192, %v185
  %v207 = vpack.c.b16 %v193, %v186
  %v208 = vpack.c.b16 %v194, %v187
  %v335 = vunpack.c.l.b16 %v23
  %v336 = vunpack.c.l.b16 %v24
  %v337 = vunpack.c.l.b16 %v25
  %v338 = vunpack.c.l.b16 %v26
  %v339 = vunpack.c.l.b16 %v27
  %v340 = vunpack.c.l.b16 %v28
  %v341 = vunpack.c.l.b16 %v29
  %v342 = vunpack.c.l.b16 %v30
  %v343 = vunpack.c.l.b16 %v31
  %v344 = vunpack.c.l.b16 %v32
  %v345 = vunpack.c.l.b16 %v33
  %v346 = vunpack.c.l.b16 %v34
  %v347 = vunpack.c.l.b16 %v35
  %v348 = vunpack.c.l.b16 %v36
  %v349 = vunpack.c.l.b16 %v37
  %v350 = vunpack.c.l.b16 %v38
  %v351 = vunpack.c.l.b16 %v39
  %v352 = vunpack.c.l.b16 %v40
  %v353 = vunpack.c.l.b16 %v41
  %v354 = vunpack.c.l.b16 %v42
  %v355 = vunpack.c.l.b16 %v43
  %v356 = vunpack.c.l.b16 %v44
  %v357 = vunpack.c.l.b16 %v45
  %v358 = vunpack.c.l.b16 %v46
  %v359 = vunpack.c.l.b16 %v47
  %v360 = vunpack.c.l.b16 %v48
  %v361 = vunpack.c.l.b16 %v49
  %v362 = vunpack.c.l.b16 %v50
  %v363 = vunpack.c.l.b16 %v51
  %v364 = vunpack.c.l.b16 %v52
  %v365 = vunpack.c.l.b16 %v53
  %v366 = vunpack.c.l.b16 %v54
  %v367 = vunpack.c.l.b16 %v55
  %v368 = vunpack.c.l.b16 %v56
  %v369 = vunpack.c.l.b16 %v57
  %v370 = vunpack.c.l.b16 %v58
  %v371 = vunpack.c.l.b16 %v59
  %v372 = vunpack.c.l.b16 %v60
  %v373 = vunpack.c.l.b16 %v61
  %v374 = vunpack.c.l.b16 %v62
  %v375 = vunpack.c.l.b16 %v63
  %v376 = vunpack.c.l.b16 %v64
  %v377 = vunpack.c.l.b16 %v65
  %v378 = vunpack.c.l.b16 %v66
  %v379 = vunpack.c.l.b16 %v67
  %v380 = vunpack.c.l.b16 %v68
  %v381 = vunpack.c.l.b16 %v69
  %v382 = vunpack.c.l.b16 %v70
  %v383 = vunpack.c.l.b16 %v71
  %v384 = vunpack.c.l.b16 %v72
  %v385 = vunpack.c.l.b16 %v73
  %v386 = vunpack.c.l.b16 %v74
  %v387 = vunpack.c.l.b16 %v75
  %v388 = vunpack.c.l.b16 %v76
  %v389 = vunpack.c.l.b16 %v77
  %v390 = vunpack.c.l.b16 %v78
  %v391 = vunpack.c.l.b16 %v79
  %v392 = vunpack.c.l.b16 %v80
  %v393 = vunpack.c.l.b16 %v81
  %v394 = vunpack.c.l.b16 %v82
  %v395 = vunpack.c.l.b16 %v83
  %v396 = vunpack.c.l.b16 %v84
  %v397 = vunpack.c.l.b16 %v85
  %v398 = vunpack.c.l.b16 %v86
  %v399 = vunpack.c.l.b16 %v87
  %v400 = vunpack.c.l.b16 %v88
  %v401 = vunpack.c.l.b16 %v89
  %v402 = vunpack.c.l.b16 %v90
  %v403 = vunpack.c.l.b16 %v91
  %v404 = vunpack.c.l.b16 %v92
  %v405 = vunpack.c.l.b16 %v93
  %v406 = vunpack.c.l.b16 %v94
  %v407 = vunpack.c.l.b16 %v95
  %v408 = vunpack.c.l.b16 %v96
  %v409 = vunpack.c.l.b16 %v97
  %v410 = vunpack.c.l.b16 %v98
  %v411 = vunpack.c.l.b16 %v99
  %v412 = vunpack.c.l.b16 %v100
  %v413 = vunpack.c.l.b16 %v101
  %v414 = vunpack.c.l.b16 %v102
  %v415 = vunpack.c.l.b16 %v103
  %v416 = vunpack.c.l.b16 %v104
  %v417 = vunpack.c.l.b16 %v105
  %v418 = vunpack.c.l.b16 %v106
  %v419 = vunpack.c.l.b16 %v107
  %v420 = vunpack.c.l.b16 %v108
  %v421 = vunpack.c.l.b16 %v109
  %v422 = vunpack.c.l.b16 %v110
  %v423 = vunpack.c.l.b16 %v111
  %v424 = vunpack.c.l.b16 %v112
  %v425 = vunpack.c.l.b16 %v113
  %v426 = vunpack.c.l.b16 %v114
  %v427 = vunpack.c.l.b16 %v115
  %v428 = vunpack.c.l.b16 %v116
  %v429 = vunpack.c.l.b16 %v117
  %v430 = vunpack.c.l.b16 %v118
  %v431 = vunpack.c.l.b16 %v119
  %v432 = vunpack.c.l.b16 %v120
  %v433 = vunpack.c.l.b16 %v121
  %v434 = vunpack.c.l.b16 %v122
  %v435 = vunpack.c.l.b16 %v123
  %v436 = vunpack.c.l.b16 %v124
  %v437 = vunpack.c.l.b16 %v125
  %v438 = vunpack.c.l.b16 %v126
  %v439 = vunpack.c.l.b16 %v127
  %v440 = vunpack.c.l.b16 %v128
  %v441 = vunpack.c.l.b16 %v129
  %v442 = vunpack.c.l.b16 %v130
  %v443 = vunpack.c.l.b16 %v131
  %v444 = vunpack.c.l.b16 %v132
  %v445 = vunpack.c.l.b16 %v133
  %v446 = vunpack.c.l.b16 %v134
  %v447 = vpack.c.b16 %v336, %v335
  %v448 = vpack.c.b16 %v338, %v337
  %v449 = vpack.c.b16 %v340, %v339
  %v450 = vpack.c.b16 %v342, %v341
  %v451 = vpack.c.b16 %v344, %v343
  %v452 = vpack.c.b16 %v346, %v345
  %v453 = vpack.c.b16 %v348, %v347
  %v454 = vpack.c.b16 %v350, %v349
  %v455 = vpack.c.b16 %v352, %v351
  %v456 = vpack.c.b16 %v354, %v353
  %v457 = vpack.c.b16 %v356, %v355
  %v458 = vpack.c.b16 %v358, %v357
  %v459 = vpack.c.b16 %v360, %v359
  %v460 = vpack.c.b16 %v362, %v361
  %v461 = vpack.c.b16 %v364, %v363
  %v462 = vpack.c.b16 %v366, %v365
  %v463 = vpack.c.b16 %v368, %v367
  %v464 = vpack.c.b16 %v370, %v369
  %v465 = vpack.c.b16 %v372, %v371
  %v466 = vpack.c.b16 %v374, %v373
  %v467 = vpack.c.b16 %v376, %v375
  %v468 = vpack.c.b16 %v378, %v377
  %v469 = vpack.c.b16 %v380, %v379
  %v470 = vpack.c.b16 %v382, %v381
  %v471 = vpack.c.b16 %v384, %v383
  %v472 = vpack.c.b16 %v386, %v385
  %v473 = vpack.c.b16 %v388, %v387
  %v474 = vpack.c.b16 %v390, %v389
  %v475 = vpack.c.b16 %v392, %v391
  %v476 = vpack.c.b16 %v394, %v393
  %v477 = vpack.c.b16 %v396, %v395
  %v478 = vpack.c.b16 %v398, %v397
  %v479 = vpack.c.b16 %v400, %v399
  %v480 = vpack.c.b16 %v402, %v401
  %v481 = vpack.c.b16 %v404, %v403
  %v482 = vpack.c.b16 %v406, %v405
  %v483 = vpack.c.b16 %v408, %v407
  %v484 = vpack.c.b16 %v410, %v409
  %v485 = vpack.c.b16 %v412, %v411
  %v486 = vpack.c.b16 %v414, %v413
  %v487 = vpack.c.b16 %v416, %v415
  %v488 = vpack.c.b16 %v418, %v417
  %v489 = vpack.c.b16 %v420, %v419
  %v490 = vpack.c.b16 %v422, %v421
  %v491 = vpack.c.b16 %v424, %v423
  %v492 = vpack.c.b16 %v426, %v425
  %v493 = vpack.c.b16 %v428, %v427
  %v494 = vpack.c.b16 %v430, %v429
  %v495 = vpack.c.b16 %v432, %v431
  %v496 = vpack.c.b16 %v434, %v433
  %v497 = vpack.c.b16 %v436, %v435
  %v498 = vpack.c.b16 %v438, %v437
  %v499 = vpack.c.b16 %v440, %v439
  %v500 = vpack.c.b16 %v442, %v441
  %v501 = vpack.c.b16 %v444, %v443
  %v502 = vpack.c.b16 %v446, %v445
  %559 = vmatpush.bf16.msra.mxu0 %v454
  %560 = vmatpush.bf16.msra.mxu0 %v453
  %561 = vmatpush.bf16.msra.mxu0 %v452
  %562 = vmatpush.bf16.msra.mxu0 %v451
  %563 = vmatpush.bf16.msra.mxu0 %v450
  %564 = vmatpush.bf16.msra.mxu0 %v449
  %565 = vmatpush.bf16.msra.mxu0 %v448
  %566 = vmatpush.bf16.msra.mxu0 %v447
  %567 = vmatmul.bf16.gmra.mxu0 %v195
  %v568 = vpop.f32.mrf.mxu0
  %v569 = vadd.f32 0.0, %v568
  %v570 = vpop.f32.mrf.mxu0
  %v571 = vadd.f32 0.0, %v570
  %572 = vmatmul.bf16.gmra.mxu0 %v202
  %v573 = vpop.f32.mrf.mxu0
  %v574 = vadd.f32 0.0, %v573
  %v575 = vpop.f32.mrf.mxu0
  %v576 = vadd.f32 0.0, %v575
  %577 = vdwg.mxu0
  %578 = vmatpush.bf16.msra.mxu0 %v462
  %579 = vmatpush.bf16.msra.mxu0 %v461
  %580 = vmatpush.bf16.msra.mxu0 %v460
  %581 = vmatpush.bf16.msra.mxu0 %v459
  %582 = vmatpush.bf16.msra.mxu0 %v458
  %583 = vmatpush.bf16.msra.mxu0 %v457
  %584 = vmatpush.bf16.msra.mxu0 %v456
  %585 = vmatpush.bf16.msra.mxu0 %v455
  %586 = vmatmul.bf16.gmra.mxu0 %v196
  %v587 = vpop.f32.mrf.mxu0
  %v588 = vadd.f32 %v569, %v587
  %v589 = vpop.f32.mrf.mxu0
  %v590 = vadd.f32 %v571, %v589
  %591 = vmatmul.bf16.gmra.mxu0 %v203
  %v592 = vpop.f32.mrf.mxu0
  %v593 = vadd.f32 %v574, %v592
  %v594 = vpop.f32.mrf.mxu0
  %v595 = vadd.f32 %v576, %v594
  %596 = vdwg.mxu0
  %597 = vmatpush.bf16.msra.mxu0 %v470
  %598 = vmatpush.bf16.msra.mxu0 %v469
  %599 = vmatpush.bf16.msra.mxu0 %v468
  %600 = vmatpush.bf16.msra.mxu0 %v467
  %601 = vmatpush.bf16.msra.mxu0 %v466
  %602 = vmatpush.bf16.msra.mxu0 %v465
  %603 = vmatpush.bf16.msra.mxu0 %v464
  %604 = vmatpush.bf16.msra.mxu0 %v463
  %605 = vmatmul.bf16.gmra.mxu0 %v197
  %v606 = vpop.f32.mrf.mxu0
  %v607 = vadd.f32 %v588, %v606
  %v608 = vpop.f32.mrf.mxu0
  %v609 = vadd.f32 %v590, %v608
  %610 = vmatmul.bf16.gmra.mxu0 %v204
  %v611 = vpop.f32.mrf.mxu0
  %v612 = vadd.f32 %v593, %v611
  %v613 = vpop.f32.mrf.mxu0
  %v614 = vadd.f32 %v595, %v613
  %615 = vdwg.mxu0
  %616 = vmatpush.bf16.msra.mxu0 %v478
  %617 = vmatpush.bf16.msra.mxu0 %v477
  %618 = vmatpush.bf16.msra.mxu0 %v476
  %619 = vmatpush.bf16.msra.mxu0 %v475
  %620 = vmatpush.bf16.msra.mxu0 %v474
  %621 = vmatpush.bf16.msra.mxu0 %v473
  %622 = vmatpush.bf16.msra.mxu0 %v472
  %623 = vmatpush.bf16.msra.mxu0 %v471
  %624 = vmatmul.bf16.gmra.mxu0 %v198
  %v625 = vpop.f32.mrf.mxu0
  %v626 = vadd.f32 %v607, %v625
  %v627 = vpop.f32.mrf.mxu0
  %v628 = vadd.f32 %v609, %v627
  %629 = vmatmul.bf16.gmra.mxu0 %v205
  %v630 = vpop.f32.mrf.mxu0
  %v631 = vadd.f32 %v612, %v630
  %v632 = vpop.f32.mrf.mxu0
  %v633 = vadd.f32 %v614, %v632
  %634 = vdwg.mxu0
  %635 = vmatpush.bf16.msra.mxu0 %v486
  %636 = vmatpush.bf16.msra.mxu0 %v485
  %637 = vmatpush.bf16.msra.mxu0 %v484
  %638 = vmatpush.bf16.msra.mxu0 %v483
  %639 = vmatpush.bf16.msra.mxu0 %v482
  %640 = vmatpush.bf16.msra.mxu0 %v481
  %641 = vmatpush.bf16.msra.mxu0 %v480
  %642 = vmatpush.bf16.msra.mxu0 %v479
  %643 = vmatmul.bf16.gmra.mxu0 %v199
  %v644 = vpop.f32.mrf.mxu0
  %v645 = vadd.f32 %v626, %v644
  %v646 = vpop.f32.mrf.mxu0
  %v647 = vadd.f32 %v628, %v646
  %648 = vmatmul.bf16.gmra.mxu0 %v206
  %v649 = vpop.f32.mrf.mxu0
  %v650 = vadd.f32 %v631, %v649
  %v651 = vpop.f32.mrf.mxu0
  %v652 = vadd.f32 %v633, %v651
  %653 = vdwg.mxu0
  %654 = vmatpush.bf16.msra.mxu0 %v494
  %655 = vmatpush.bf16.msra.mxu0 %v493
  %656 = vmatpush.bf16.msra.mxu0 %v492
  %657 = vmatpush.bf16.msra.mxu0 %v491
  %658 = vmatpush.bf16.msra.mxu0 %v490
  %659 = vmatpush.bf16.msra.mxu0 %v489
  %660 = vmatpush.bf16.msra.mxu0 %v488
  %661 = vmatpush.bf16.msra.mxu0 %v487
  %662 = vmatmul.bf16.gmra.mxu0 %v200
  %v663 = vpop.f32.mrf.mxu0
  %v664 = vadd.f32 %v645, %v663
  %v665 = vpop.f32.mrf.mxu0
  %v666 = vadd.f32 %v647, %v665
  %667 = vmatmul.bf16.gmra.mxu0 %v207
  %v668 = vpop.f32.mrf.mxu0
  %v669 = vadd.f32 %v650, %v668
  %v670 = vpop.f32.mrf.mxu0
  %v671 = vadd.f32 %v652, %v670
  %672 = vdwg.mxu0
  %673 = vmatpush.bf16.msra.mxu0 %v502
  %674 = vmatpush.bf16.msra.mxu0 %v501
  %675 = vmatpush.bf16.msra.mxu0 %v500
  %676 = vmatpush.bf16.msra.mxu0 %v499
  %677 = vmatpush.bf16.msra.mxu0 %v498
  %678 = vmatpush.bf16.msra.mxu0 %v497
  %679 = vmatpush.bf16.msra.mxu0 %v496
  %680 = vmatpush.bf16.msra.mxu0 %v495
  %681 = vmatmul.bf16.gmra.mxu0 %v201
  %v682 = vpop.f32.mrf.mxu0
  %v683 = vadd.f32 %v664, %v682
  %v684 = vpop.f32.mrf.mxu0
  %v685 = vadd.f32 %v666, %v684
  %686 = vmatmul.bf16.gmra.mxu0 %v208
  %v687 = vpop.f32.mrf.mxu0
  %v688 = vadd.f32 %v669, %v687
  %v689 = vpop.f32.mrf.mxu0
  %v690 = vadd.f32 %v671, %v689
  %691 = vdwg.mxu0
  %v692 = vld [vmem:[%s1] sm:$0xff]
  %v693 = vld [vmem:[%s1 + $0x8] sm:$0xff]
  %v694 = vld [vmem:[%s1 + $0x10] sm:$0xff]
  %v695 = vld [vmem:[%s1 + $0x18] sm:$0xf]
  %v696 = vld [vmem:[%s1 + $0x1c] sm:$0xff]
  %v697 = vld [vmem:[%s1 + $0x24] sm:$0xff]
  %v698 = vld [vmem:[%s1 + $0x2c] sm:$0xff]
  %v699 = vld [vmem:[%s1 + $0x34] sm:$0xf]
  %v700 = vld [vmem:[%s1 + $0x38] sm:$0xff]
  %v701 = vld [vmem:[%s1 + $0x40] sm:$0xff]
  %v702 = vld [vmem:[%s1 + $0x48] sm:$0xff]
  %v703 = vld [vmem:[%s1 + $0x50] sm:$0xf]
  %v704 = vld [vmem:[%s1 + $0x54] sm:$0xff]
  %v705 = vld [vmem:[%s1 + $0x5c] sm:$0xff]
  %v706 = vld [vmem:[%s1 + $0x64] sm:$0xff]
  %v707 = vld [vmem:[%s1 + $0x6c] sm:$0xf]
  %v724 = vunpack.c.l.b16 %v692
  %v725 = vunpack.c.h.b16 %v692
  %v726 = vunpack.c.l.b16 %v693
  %v727 = vunpack.c.h.b16 %v693
  %v728 = vunpack.c.l.b16 %v694
  %v729 = vunpack.c.h.b16 %v694
  %v730 = vunpack.c.l.b16 %v695
  %v731 = vunpack.c.l.b16 %v696
  %v732 = vunpack.c.h.b16 %v696
  %v733 = vunpack.c.l.b16 %v697
  %v734 = vunpack.c.h.b16 %v697
  %v735 = vunpack.c.l.b16 %v698
  %v736 = vunpack.c.h.b16 %v698
  %v737 = vunpack.c.l.b16 %v699
  %v738 = vunpack.c.l.b16 %v700
  %v739 = vunpack.c.h.b16 %v700
  %v740 = vunpack.c.l.b16 %v701
  %v741 = vunpack.c.h.b16 %v701
  %v742 = vunpack.c.l.b16 %v702
  %v743 = vunpack.c.h.b16 %v702
  %v744 = vunpack.c.l.b16 %v703
  %v745 = vunpack.c.l.b16 %v704
  %v746 = vunpack.c.h.b16 %v704
  %v747 = vunpack.c.l.b16 %v705
  %v748 = vunpack.c.h.b16 %v705
  %v749 = vunpack.c.l.b16 %v706
  %v750 = vunpack.c.h.b16 %v706
  %v751 = vunpack.c.l.b16 %v707
  %v752 = vpack.c.b16 %v731, %v724
  %v753 = vpack.c.b16 %v732, %v725
  %v754 = vpack.c.b16 %v733, %v726
  %v755 = vpack.c.b16 %v734, %v727
  %v756 = vpack.c.b16 %v735, %v728
  %v757 = vpack.c.b16 %v736, %v729
  %v758 = vpack.c.b16 %v737, %v730
  %v759 = vpack.c.b16 %v745, %v738
  %v760 = vpack.c.b16 %v746, %v739
  %v761 = vpack.c.b16 %v747, %v740
  %v762 = vpack.c.b16 %v748, %v741
  %v763 = vpack.c.b16 %v749, %v742
  %v764 = vpack.c.b16 %v750, %v743
  %v765 = vpack.c.b16 %v751, %v744
  %780 = vmatpush.bf16.msra.mxu0 %v454
  %781 = vmatpush.bf16.msra.mxu0 %v453
  %782 = vmatpush.bf16.msra.mxu0 %v452
  %783 = vmatpush.bf16.msra.mxu0 %v451
  %784 = vmatpush.bf16.msra.mxu0 %v450
  %785 = vmatpush.bf16.msra.mxu0 %v449
  %786 = vmatpush.bf16.msra.mxu0 %v448
  %787 = vmatpush.bf16.msra.mxu0 %v447
  %788 = vmatmul.bf16.gmra.mxu0 %v752
  %v789 = vpop.f32.mrf.mxu0
  %v790 = vadd.f32 0.0, %v789
  %v791 = vpop.f32.mrf.mxu0
  %v792 = vadd.f32 0.0, %v791
  %793 = vmatmul.bf16.gmra.mxu0 %v759
  %v794 = vpop.f32.mrf.mxu0
  %v795 = vadd.f32 0.0, %v794
  %v796 = vpop.f32.mrf.mxu0
  %v797 = vadd.f32 0.0, %v796
  %798 = vdwg.mxu0
  %799 = vmatpush.bf16.msra.mxu0 %v462
  %800 = vmatpush.bf16.msra.mxu0 %v461
  %801 = vmatpush.bf16.msra.mxu0 %v460
  %802 = vmatpush.bf16.msra.mxu0 %v459
  %803 = vmatpush.bf16.msra.mxu0 %v458
  %804 = vmatpush.bf16.msra.mxu0 %v457
  %805 = vmatpush.bf16.msra.mxu0 %v456
  %806 = vmatpush.bf16.msra.mxu0 %v455
  %807 = vmatmul.bf16.gmra.mxu0 %v753
  %v808 = vpop.f32.mrf.mxu0
  %v809 = vadd.f32 %v790, %v808
  %v810 = vpop.f32.mrf.mxu0
  %v811 = vadd.f32 %v792, %v810
  %812 = vmatmul.bf16.gmra.mxu0 %v760
  %v813 = vpop.f32.mrf.mxu0
  %v814 = vadd.f32 %v795, %v813
  %v815 = vpop.f32.mrf.mxu0
  %v816 = vadd.f32 %v797, %v815
  %817 = vdwg.mxu0
  %818 = vmatpush.bf16.msra.mxu0 %v470
  %819 = vmatpush.bf16.msra.mxu0 %v469
  %820 = vmatpush.bf16.msra.mxu0 %v468
  %821 = vmatpush.bf16.msra.mxu0 %v467
  %822 = vmatpush.bf16.msra.mxu0 %v466
  %823 = vmatpush.bf16.msra.mxu0 %v465
  %824 = vmatpush.bf16.msra.mxu0 %v464
  %825 = vmatpush.bf16.msra.mxu0 %v463
  %826 = vmatmul.bf16.gmra.mxu0 %v754
  %v827 = vpop.f32.mrf.mxu0
  %v828 = vadd.f32 %v809, %v827
  %v829 = vpop.f32.mrf.mxu0
  %v830 = vadd.f32 %v811, %v829
  %831 = vmatmul.bf16.gmra.mxu0 %v761
  %v832 = vpop.f32.mrf.mxu0
  %v833 = vadd.f32 %v814, %v832
  %v834 = vpop.f32.mrf.mxu0
  %v835 = vadd.f32 %v816, %v834
  %836 = vdwg.mxu0
  %837 = vmatpush.bf16.msra.mxu0 %v478
  %838 = vmatpush.bf16.msra.mxu0 %v477
  %839 = vmatpush.bf16.msra.mxu0 %v476
  %840 = vmatpush.bf16.msra.mxu0 %v475
  %841 = vmatpush.bf16.msra.mxu0 %v474
  %842 = vmatpush.bf16.msra.mxu0 %v473
  %843 = vmatpush.bf16.msra.mxu0 %v472
  %844 = vmatpush.bf16.msra.mxu0 %v471
  %845 = vmatmul.bf16.gmra.mxu0 %v755
  %v846 = vpop.f32.mrf.mxu0
  %v847 = vadd.f32 %v828, %v846
  %v848 = vpop.f32.mrf.mxu0
  %v849 = vadd.f32 %v830, %v848
  %850 = vmatmul.bf16.gmra.mxu0 %v762
  %v851 = vpop.f32.mrf.mxu0
  %v852 = vadd.f32 %v833, %v851
  %v853 = vpop.f32.mrf.mxu0
  %v854 = vadd.f32 %v835, %v853
  %855 = vdwg.mxu0
  %856 = vmatpush.bf16.msra.mxu0 %v486
  %857 = vmatpush.bf16.msra.mxu0 %v485
  %858 = vmatpush.bf16.msra.mxu0 %v484
  %859 = vmatpush.bf16.msra.mxu0 %v483
  %860 = vmatpush.bf16.msra.mxu0 %v482
  %861 = vmatpush.bf16.msra.mxu0 %v481
  %862 = vmatpush.bf16.msra.mxu0 %v480
  %863 = vmatpush.bf16.msra.mxu0 %v479
  %864 = vmatmul.bf16.gmra.mxu0 %v756
  %v865 = vpop.f32.mrf.mxu0
  %v866 = vadd.f32 %v847, %v865
  %v867 = vpop.f32.mrf.mxu0
  %v868 = vadd.f32 %v849, %v867
  %869 = vmatmul.bf16.gmra.mxu0 %v763
  %v870 = vpop.f32.mrf.mxu0
  %v871 = vadd.f32 %v852, %v870
  %v872 = vpop.f32.mrf.mxu0
  %v873 = vadd.f32 %v854, %v872
  %874 = vdwg.mxu0
  %875 = vmatpush.bf16.msra.mxu0 %v494
  %876 = vmatpush.bf16.msra.mxu0 %v493
  %877 = vmatpush.bf16.msra.mxu0 %v492
  %878 = vmatpush.bf16.msra.mxu0 %v491
  %879 = vmatpush.bf16.msra.mxu0 %v490
  %880 = vmatpush.bf16.msra.mxu0 %v489
  %881 = vmatpush.bf16.msra.mxu0 %v488
  %882 = vmatpush.bf16.msra.mxu0 %v487
  %883 = vmatmul.bf16.gmra.mxu0 %v757
  %v884 = vpop.f32.mrf.mxu0
  %v885 = vadd.f32 %v866, %v884
  %v886 = vpop.f32.mrf.mxu0
  %v887 = vadd.f32 %v868, %v886
  %888 = vmatmul.bf16.gmra.mxu0 %v764
  %v889 = vpop.f32.mrf.mxu0
  %v890 = vadd.f32 %v871, %v889
  %v891 = vpop.f32.mrf.mxu0
  %v892 = vadd.f32 %v873, %v891
  %893 = vdwg.mxu0
  %894 = vmatpush.bf16.msra.mxu0 %v502
  %895 = vmatpush.bf16.msra.mxu0 %v501
  %896 = vmatpush.bf16.msra.mxu0 %v500
  %897 = vmatpush.bf16.msra.mxu0 %v499
  %898 = vmatpush.bf16.msra.mxu0 %v498
  %899 = vmatpush.bf16.msra.mxu0 %v497
  %900 = vmatpush.bf16.msra.mxu0 %v496
  %901 = vmatpush.bf16.msra.mxu0 %v495
  %902 = vmatmul.bf16.gmra.mxu0 %v758
  %v903 = vpop.f32.mrf.mxu0
  %v904 = vadd.f32 %v885, %v903
  %v905 = vpop.f32.mrf.mxu0
  %v906 = vadd.f32 %v887, %v905
  %907 = vmatmul.bf16.gmra.mxu0 %v765
  %v908 = vpop.f32.mrf.mxu0
  %v909 = vadd.f32 %v890, %v908
  %v910 = vpop.f32.mrf.mxu0
  %v911 = vadd.f32 %v892, %v910
  %912 = vdwg.mxu0
  %v913 = vmax.f32 %v683, %v904
  %v914 = vmax.f32 %v685, %v906
  %v915 = vmax.f32 %v688, %v909
  %v916 = vmax.f32 %v690, %v911
  %v917 = vld [vmem:[%s2] sm:$0xff]
  %v918 = vld [vmem:[%s2 + $0x8] sm:$0xff]
  %v919 = vld [vmem:[%s2 + $0x10] sm:$0xff]
  %v920 = vld [vmem:[%s2 + $0x18] sm:$0xf]
  %v921 = vld [vmem:[%s2 + $0x1c] sm:$0xff]
  %v922 = vld [vmem:[%s2 + $0x24] sm:$0xff]
  %v923 = vld [vmem:[%s2 + $0x2c] sm:$0xff]
  %v924 = vld [vmem:[%s2 + $0x34] sm:$0xf]
  %v925 = vld [vmem:[%s2 + $0x38] sm:$0xff]
  %v926 = vld [vmem:[%s2 + $0x40] sm:$0xff]
  %v927 = vld [vmem:[%s2 + $0x48] sm:$0xff]
  %v928 = vld [vmem:[%s2 + $0x50] sm:$0xf]
  %v929 = vld [vmem:[%s2 + $0x54] sm:$0xff]
  %v930 = vld [vmem:[%s2 + $0x5c] sm:$0xff]
  %v931 = vld [vmem:[%s2 + $0x64] sm:$0xff]
  %v932 = vld [vmem:[%s2 + $0x6c] sm:$0xf]
  %v949 = vunpack.c.l.b16 %v917
  %v950 = vunpack.c.h.b16 %v917
  %v951 = vunpack.c.l.b16 %v918
  %v952 = vunpack.c.h.b16 %v918
  %v953 = vunpack.c.l.b16 %v919
  %v954 = vunpack.c.h.b16 %v919
  %v955 = vunpack.c.l.b16 %v920
  %v956 = vunpack.c.l.b16 %v921
  %v957 = vunpack.c.h.b16 %v921
  %v958 = vunpack.c.l.b16 %v922
  %v959 = vunpack.c.h.b16 %v922
  %v960 = vunpack.c.l.b16 %v923
  %v961 = vunpack.c.h.b16 %v923
  %v962 = vunpack.c.l.b16 %v924
  %v963 = vunpack.c.l.b16 %v925
  %v964 = vunpack.c.h.b16 %v925
  %v965 = vunpack.c.l.b16 %v926
  %v966 = vunpack.c.h.b16 %v926
  %v967 = vunpack.c.l.b16 %v927
  %v968 = vunpack.c.h.b16 %v927
  %v969 = vunpack.c.l.b16 %v928
  %v970 = vunpack.c.l.b16 %v929
  %v971 = vunpack.c.h.b16 %v929
  %v972 = vunpack.c.l.b16 %v930
  %v973 = vunpack.c.h.b16 %v930
  %v974 = vunpack.c.l.b16 %v931
  %v975 = vunpack.c.h.b16 %v931
  %v976 = vunpack.c.l.b16 %v932
  %v977 = vpack.c.b16 %v956, %v949
  %v978 = vpack.c.b16 %v957, %v950
  %v979 = vpack.c.b16 %v958, %v951
  %v980 = vpack.c.b16 %v959, %v952
  %v981 = vpack.c.b16 %v960, %v953
  %v982 = vpack.c.b16 %v961, %v954
  %v983 = vpack.c.b16 %v962, %v955
  %v984 = vpack.c.b16 %v970, %v963
  %v985 = vpack.c.b16 %v971, %v964
  %v986 = vpack.c.b16 %v972, %v965
  %v987 = vpack.c.b16 %v973, %v966
  %v988 = vpack.c.b16 %v974, %v967
  %v989 = vpack.c.b16 %v975, %v968
  %v990 = vpack.c.b16 %v976, %v969
  %1005 = vmatpush.bf16.msra.mxu0 %v454
  %1006 = vmatpush.bf16.msra.mxu0 %v453
  %1007 = vmatpush.bf16.msra.mxu0 %v452
  %1008 = vmatpush.bf16.msra.mxu0 %v451
  %1009 = vmatpush.bf16.msra.mxu0 %v450
  %1010 = vmatpush.bf16.msra.mxu0 %v449
  %1011 = vmatpush.bf16.msra.mxu0 %v448
  %1012 = vmatpush.bf16.msra.mxu0 %v447
  %1013 = vmatmul.bf16.gmra.mxu0 %v977
  %v1014 = vpop.f32.mrf.mxu0
  %v1015 = vadd.f32 0.0, %v1014
  %v1016 = vpop.f32.mrf.mxu0
  %v1017 = vadd.f32 0.0, %v1016
  %1018 = vmatmul.bf16.gmra.mxu0 %v984
  %v1019 = vpop.f32.mrf.mxu0
  %v1020 = vadd.f32 0.0, %v1019
  %v1021 = vpop.f32.mrf.mxu0
  %v1022 = vadd.f32 0.0, %v1021
  %1023 = vdwg.mxu0
  %1024 = vmatpush.bf16.msra.mxu0 %v462
  %1025 = vmatpush.bf16.msra.mxu0 %v461
  %1026 = vmatpush.bf16.msra.mxu0 %v460
  %1027 = vmatpush.bf16.msra.mxu0 %v459
  %1028 = vmatpush.bf16.msra.mxu0 %v458
  %1029 = vmatpush.bf16.msra.mxu0 %v457
  %1030 = vmatpush.bf16.msra.mxu0 %v456
  %1031 = vmatpush.bf16.msra.mxu0 %v455
  %1032 = vmatmul.bf16.gmra.mxu0 %v978
  %v1033 = vpop.f32.mrf.mxu0
  %v1034 = vadd.f32 %v1015, %v1033
  %v1035 = vpop.f32.mrf.mxu0
  %v1036 = vadd.f32 %v1017, %v1035
  %1037 = vmatmul.bf16.gmra.mxu0 %v985
  %v1038 = vpop.f32.mrf.mxu0
  %v1039 = vadd.f32 %v1020, %v1038
  %v1040 = vpop.f32.mrf.mxu0
  %v1041 = vadd.f32 %v1022, %v1040
  %1042 = vdwg.mxu0
  %1043 = vmatpush.bf16.msra.mxu0 %v470
  %1044 = vmatpush.bf16.msra.mxu0 %v469
  %1045 = vmatpush.bf16.msra.mxu0 %v468
  %1046 = vmatpush.bf16.msra.mxu0 %v467
  %1047 = vmatpush.bf16.msra.mxu0 %v466
  %1048 = vmatpush.bf16.msra.mxu0 %v465
  %1049 = vmatpush.bf16.msra.mxu0 %v464
  %1050 = vmatpush.bf16.msra.mxu0 %v463
  %1051 = vmatmul.bf16.gmra.mxu0 %v979
  %v1052 = vpop.f32.mrf.mxu0
  %v1053 = vadd.f32 %v1034, %v1052
  %v1054 = vpop.f32.mrf.mxu0
  %v1055 = vadd.f32 %v1036, %v1054
  %1056 = vmatmul.bf16.gmra.mxu0 %v986
  %v1057 = vpop.f32.mrf.mxu0
  %v1058 = vadd.f32 %v1039, %v1057
  %v1059 = vpop.f32.mrf.mxu0
  %v1060 = vadd.f32 %v1041, %v1059
  %1061 = vdwg.mxu0
  %1062 = vmatpush.bf16.msra.mxu0 %v478
  %1063 = vmatpush.bf16.msra.mxu0 %v477
  %1064 = vmatpush.bf16.msra.mxu0 %v476
  %1065 = vmatpush.bf16.msra.mxu0 %v475
  %1066 = vmatpush.bf16.msra.mxu0 %v474
  %1067 = vmatpush.bf16.msra.mxu0 %v473
  %1068 = vmatpush.bf16.msra.mxu0 %v472
  %1069 = vmatpush.bf16.msra.mxu0 %v471
  %1070 = vmatmul.bf16.gmra.mxu0 %v980
  %v1071 = vpop.f32.mrf.mxu0
  %v1072 = vadd.f32 %v1053, %v1071
  %v1073 = vpop.f32.mrf.mxu0
  %v1074 = vadd.f32 %v1055, %v1073
  %1075 = vmatmul.bf16.gmra.mxu0 %v987
  %v1076 = vpop.f32.mrf.mxu0
  %v1077 = vadd.f32 %v1058, %v1076
  %v1078 = vpop.f32.mrf.mxu0
  %v1079 = vadd.f32 %v1060, %v1078
  %1080 = vdwg.mxu0
  %1081 = vmatpush.bf16.msra.mxu0 %v486
  %1082 = vmatpush.bf16.msra.mxu0 %v485
  %1083 = vmatpush.bf16.msra.mxu0 %v484
  %1084 = vmatpush.bf16.msra.mxu0 %v483
  %1085 = vmatpush.bf16.msra.mxu0 %v482
  %1086 = vmatpush.bf16.msra.mxu0 %v481
  %1087 = vmatpush.bf16.msra.mxu0 %v480
  %1088 = vmatpush.bf16.msra.mxu0 %v479
  %1089 = vmatmul.bf16.gmra.mxu0 %v981
  %v1090 = vpop.f32.mrf.mxu0
  %v1091 = vadd.f32 %v1072, %v1090
  %v1092 = vpop.f32.mrf.mxu0
  %v1093 = vadd.f32 %v1074, %v1092
  %1094 = vmatmul.bf16.gmra.mxu0 %v988
  %v1095 = vpop.f32.mrf.mxu0
  %v1096 = vadd.f32 %v1077, %v1095
  %v1097 = vpop.f32.mrf.mxu0
  %v1098 = vadd.f32 %v1079, %v1097
  %1099 = vdwg.mxu0
  %1100 = vmatpush.bf16.msra.mxu0 %v494
  %1101 = vmatpush.bf16.msra.mxu0 %v493
  %1102 = vmatpush.bf16.msra.mxu0 %v492
  %1103 = vmatpush.bf16.msra.mxu0 %v491
  %1104 = vmatpush.bf16.msra.mxu0 %v490
  %1105 = vmatpush.bf16.msra.mxu0 %v489
  %1106 = vmatpush.bf16.msra.mxu0 %v488
  %1107 = vmatpush.bf16.msra.mxu0 %v487
  %1108 = vmatmul.bf16.gmra.mxu0 %v982
  %v1109 = vpop.f32.mrf.mxu0
  %v1110 = vadd.f32 %v1091, %v1109
  %v1111 = vpop.f32.mrf.mxu0
  %v1112 = vadd.f32 %v1093, %v1111
  %1113 = vmatmul.bf16.gmra.mxu0 %v989
  %v1114 = vpop.f32.mrf.mxu0
  %v1115 = vadd.f32 %v1096, %v1114
  %v1116 = vpop.f32.mrf.mxu0
  %v1117 = vadd.f32 %v1098, %v1116
  %1118 = vdwg.mxu0
  %1119 = vmatpush.bf16.msra.mxu0 %v502
  %1120 = vmatpush.bf16.msra.mxu0 %v501
  %1121 = vmatpush.bf16.msra.mxu0 %v500
  %1122 = vmatpush.bf16.msra.mxu0 %v499
  %1123 = vmatpush.bf16.msra.mxu0 %v498
  %1124 = vmatpush.bf16.msra.mxu0 %v497
  %1125 = vmatpush.bf16.msra.mxu0 %v496
  %1126 = vmatpush.bf16.msra.mxu0 %v495
  %1127 = vmatmul.bf16.gmra.mxu0 %v983
  %v1128 = vpop.f32.mrf.mxu0
  %v1129 = vadd.f32 %v1110, %v1128
  %v1130 = vpop.f32.mrf.mxu0
  %v1131 = vadd.f32 %v1112, %v1130
  %1132 = vmatmul.bf16.gmra.mxu0 %v990
  %v1133 = vpop.f32.mrf.mxu0
  %v1134 = vadd.f32 %v1115, %v1133
  %v1135 = vpop.f32.mrf.mxu0
  %v1136 = vadd.f32 %v1117, %v1135
  %1137 = vdwg.mxu0
  %v1138 = vld [vmem:[%s3] sm:$0xff]
  %v1139 = vld [vmem:[%s3 + $0x8] sm:$0xff]
  %v1140 = vld [vmem:[%s3 + $0x10] sm:$0xff]
  %v1141 = vld [vmem:[%s3 + $0x18] sm:$0xf]
  %v1142 = vld [vmem:[%s3 + $0x1c] sm:$0xff]
  %v1143 = vld [vmem:[%s3 + $0x24] sm:$0xff]
  %v1144 = vld [vmem:[%s3 + $0x2c] sm:$0xff]
  %v1145 = vld [vmem:[%s3 + $0x34] sm:$0xf]
  %v1146 = vld [vmem:[%s3 + $0x38] sm:$0xff]
  %v1147 = vld [vmem:[%s3 + $0x40] sm:$0xff]
  %v1148 = vld [vmem:[%s3 + $0x48] sm:$0xff]
  %v1149 = vld [vmem:[%s3 + $0x50] sm:$0xf]
  %v1150 = vld [vmem:[%s3 + $0x54] sm:$0xff]
  %v1151 = vld [vmem:[%s3 + $0x5c] sm:$0xff]
  %v1152 = vld [vmem:[%s3 + $0x64] sm:$0xff]
  %v1153 = vld [vmem:[%s3 + $0x6c] sm:$0xf]
  %v1170 = vunpack.c.l.b16 %v1138
  %v1171 = vunpack.c.h.b16 %v1138
  %v1172 = vunpack.c.l.b16 %v1139
  %v1173 = vunpack.c.h.b16 %v1139
  %v1174 = vunpack.c.l.b16 %v1140
  %v1175 = vunpack.c.h.b16 %v1140
  %v1176 = vunpack.c.l.b16 %v1141
  %v1177 = vunpack.c.l.b16 %v1142
  %v1178 = vunpack.c.h.b16 %v1142
  %v1179 = vunpack.c.l.b16 %v1143
  %v1180 = vunpack.c.h.b16 %v1143
  %v1181 = vunpack.c.l.b16 %v1144
  %v1182 = vunpack.c.h.b16 %v1144
  %v1183 = vunpack.c.l.b16 %v1145
  %v1184 = vunpack.c.l.b16 %v1146
  %v1185 = vunpack.c.h.b16 %v1146
  %v1186 = vunpack.c.l.b16 %v1147
  %v1187 = vunpack.c.h.b16 %v1147
  %v1188 = vunpack.c.l.b16 %v1148
  %v1189 = vunpack.c.h.b16 %v1148
  %v1190 = vunpack.c.l.b16 %v1149
  %v1191 = vunpack.c.l.b16 %v1150
  %v1192 = vunpack.c.h.b16 %v1150
  %v1193 = vunpack.c.l.b16 %v1151
  %v1194 = vunpack.c.h.b16 %v1151
  %v1195 = vunpack.c.l.b16 %v1152
  %v1196 = vunpack.c.h.b16 %v1152
  %v1197 = vunpack.c.l.b16 %v1153
  %v1198 = vpack.c.b16 %v1177, %v1170
  %v1199 = vpack.c.b16 %v1178, %v1171
  %v1200 = vpack.c.b16 %v1179, %v1172
  %v1201 = vpack.c.b16 %v1180, %v1173
  %v1202 = vpack.c.b16 %v1181, %v1174
  %v1203 = vpack.c.b16 %v1182, %v1175
  %v1204 = vpack.c.b16 %v1183, %v1176
  %v1205 = vpack.c.b16 %v1191, %v1184
  %v1206 = vpack.c.b16 %v1192, %v1185
  %v1207 = vpack.c.b16 %v1193, %v1186
  %v1208 = vpack.c.b16 %v1194, %v1187
  %v1209 = vpack.c.b16 %v1195, %v1188
  %v1210 = vpack.c.b16 %v1196, %v1189
  %v1211 = vpack.c.b16 %v1197, %v1190
  %1226 = vmatpush.bf16.msra.mxu0 %v454
  %1227 = vmatpush.bf16.msra.mxu0 %v453
  %1228 = vmatpush.bf16.msra.mxu0 %v452
  %1229 = vmatpush.bf16.msra.mxu0 %v451
  %1230 = vmatpush.bf16.msra.mxu0 %v450
  %1231 = vmatpush.bf16.msra.mxu0 %v449
  %1232 = vmatpush.bf16.msra.mxu0 %v448
  %1233 = vmatpush.bf16.msra.mxu0 %v447
  %1234 = vmatmul.bf16.gmra.mxu0 %v1198
  %v1235 = vpop.f32.mrf.mxu0
  %v1236 = vadd.f32 0.0, %v1235
  %v1237 = vpop.f32.mrf.mxu0
  %v1238 = vadd.f32 0.0, %v1237
  %1239 = vmatmul.bf16.gmra.mxu0 %v1205
  %v1240 = vpop.f32.mrf.mxu0
  %v1241 = vadd.f32 0.0, %v1240
  %v1242 = vpop.f32.mrf.mxu0
  %v1243 = vadd.f32 0.0, %v1242
  %1244 = vdwg.mxu0
  %1245 = vmatpush.bf16.msra.mxu0 %v462
  %1246 = vmatpush.bf16.msra.mxu0 %v461
  %1247 = vmatpush.bf16.msra.mxu0 %v460
  %1248 = vmatpush.bf16.msra.mxu0 %v459
  %1249 = vmatpush.bf16.msra.mxu0 %v458
  %1250 = vmatpush.bf16.msra.mxu0 %v457
  %1251 = vmatpush.bf16.msra.mxu0 %v456
  %1252 = vmatpush.bf16.msra.mxu0 %v455
  %1253 = vmatmul.bf16.gmra.mxu0 %v1199
  %v1254 = vpop.f32.mrf.mxu0
  %v1255 = vadd.f32 %v1236, %v1254
  %v1256 = vpop.f32.mrf.mxu0
  %v1257 = vadd.f32 %v1238, %v1256
  %1258 = vmatmul.bf16.gmra.mxu0 %v1206
  %v1259 = vpop.f32.mrf.mxu0
  %v1260 = vadd.f32 %v1241, %v1259
  %v1261 = vpop.f32.mrf.mxu0
  %v1262 = vadd.f32 %v1243, %v1261
  %1263 = vdwg.mxu0
  %1264 = vmatpush.bf16.msra.mxu0 %v470
  %1265 = vmatpush.bf16.msra.mxu0 %v469
  %1266 = vmatpush.bf16.msra.mxu0 %v468
  %1267 = vmatpush.bf16.msra.mxu0 %v467
  %1268 = vmatpush.bf16.msra.mxu0 %v466
  %1269 = vmatpush.bf16.msra.mxu0 %v465
  %1270 = vmatpush.bf16.msra.mxu0 %v464
  %1271 = vmatpush.bf16.msra.mxu0 %v463
  %1272 = vmatmul.bf16.gmra.mxu0 %v1200
  %v1273 = vpop.f32.mrf.mxu0
  %v1274 = vadd.f32 %v1255, %v1273
  %v1275 = vpop.f32.mrf.mxu0
  %v1276 = vadd.f32 %v1257, %v1275
  %1277 = vmatmul.bf16.gmra.mxu0 %v1207
  %v1278 = vpop.f32.mrf.mxu0
  %v1279 = vadd.f32 %v1260, %v1278
  %v1280 = vpop.f32.mrf.mxu0
  %v1281 = vadd.f32 %v1262, %v1280
  %1282 = vdwg.mxu0
  %1283 = vmatpush.bf16.msra.mxu0 %v478
  %1284 = vmatpush.bf16.msra.mxu0 %v477
  %1285 = vmatpush.bf16.msra.mxu0 %v476
  %1286 = vmatpush.bf16.msra.mxu0 %v475
  %1287 = vmatpush.bf16.msra.mxu0 %v474
  %1288 = vmatpush.bf16.msra.mxu0 %v473
  %1289 = vmatpush.bf16.msra.mxu0 %v472
  %1290 = vmatpush.bf16.msra.mxu0 %v471
  %1291 = vmatmul.bf16.gmra.mxu0 %v1201
  %v1292 = vpop.f32.mrf.mxu0
  %v1293 = vadd.f32 %v1274, %v1292
  %v1294 = vpop.f32.mrf.mxu0
  %v1295 = vadd.f32 %v1276, %v1294
  %1296 = vmatmul.bf16.gmra.mxu0 %v1208
  %v1297 = vpop.f32.mrf.mxu0
  %v1298 = vadd.f32 %v1279, %v1297
  %v1299 = vpop.f32.mrf.mxu0
  %v1300 = vadd.f32 %v1281, %v1299
  %1301 = vdwg.mxu0
  %1302 = vmatpush.bf16.msra.mxu0 %v486
  %1303 = vmatpush.bf16.msra.mxu0 %v485
  %1304 = vmatpush.bf16.msra.mxu0 %v484
  %1305 = vmatpush.bf16.msra.mxu0 %v483
  %1306 = vmatpush.bf16.msra.mxu0 %v482
  %1307 = vmatpush.bf16.msra.mxu0 %v481
  %1308 = vmatpush.bf16.msra.mxu0 %v480
  %1309 = vmatpush.bf16.msra.mxu0 %v479
  %1310 = vmatmul.bf16.gmra.mxu0 %v1202
  %v1311 = vpop.f32.mrf.mxu0
  %v1312 = vadd.f32 %v1293, %v1311
  %v1313 = vpop.f32.mrf.mxu0
  %v1314 = vadd.f32 %v1295, %v1313
  %1315 = vmatmul.bf16.gmra.mxu0 %v1209
  %v1316 = vpop.f32.mrf.mxu0
  %v1317 = vadd.f32 %v1298, %v1316
  %v1318 = vpop.f32.mrf.mxu0
  %v1319 = vadd.f32 %v1300, %v1318
  %1320 = vdwg.mxu0
  %1321 = vmatpush.bf16.msra.mxu0 %v494
  %1322 = vmatpush.bf16.msra.mxu0 %v493
  %1323 = vmatpush.bf16.msra.mxu0 %v492
  %1324 = vmatpush.bf16.msra.mxu0 %v491
  %1325 = vmatpush.bf16.msra.mxu0 %v490
  %1326 = vmatpush.bf16.msra.mxu0 %v489
  %1327 = vmatpush.bf16.msra.mxu0 %v488
  %1328 = vmatpush.bf16.msra.mxu0 %v487
  %1329 = vmatmul.bf16.gmra.mxu0 %v1203
  %v1330 = vpop.f32.mrf.mxu0
  %v1331 = vadd.f32 %v1312, %v1330
  %v1332 = vpop.f32.mrf.mxu0
  %v1333 = vadd.f32 %v1314, %v1332
  %1334 = vmatmul.bf16.gmra.mxu0 %v1210
  %v1335 = vpop.f32.mrf.mxu0
  %v1336 = vadd.f32 %v1317, %v1335
  %v1337 = vpop.f32.mrf.mxu0
  %v1338 = vadd.f32 %v1319, %v1337
  %1339 = vdwg.mxu0
  %1340 = vmatpush.bf16.msra.mxu0 %v502
  %1341 = vmatpush.bf16.msra.mxu0 %v501
  %1342 = vmatpush.bf16.msra.mxu0 %v500
  %1343 = vmatpush.bf16.msra.mxu0 %v499
  %1344 = vmatpush.bf16.msra.mxu0 %v498
  %1345 = vmatpush.bf16.msra.mxu0 %v497
  %1346 = vmatpush.bf16.msra.mxu0 %v496
  %1347 = vmatpush.bf16.msra.mxu0 %v495
  %1348 = vmatmul.bf16.gmra.mxu0 %v1204
  %v1349 = vpop.f32.mrf.mxu0
  %v1350 = vadd.f32 %v1331, %v1349
  %v1351 = vpop.f32.mrf.mxu0
  %v1352 = vadd.f32 %v1333, %v1351
  %1353 = vmatmul.bf16.gmra.mxu0 %v1211
  %v1354 = vpop.f32.mrf.mxu0
  %v1355 = vadd.f32 %v1336, %v1354
  %v1356 = vpop.f32.mrf.mxu0
  %v1357 = vadd.f32 %v1338, %v1356
  %1358 = vdwg.mxu0
  %v1359 = vmax.f32 %v1129, %v1350
  %v1360 = vmax.f32 %v1131, %v1352
  %v1361 = vmax.f32 %v1134, %v1355
  %v1362 = vmax.f32 %v1136, %v1357
  %v1363 = vmax.f32 %v913, %v1359
  %v1364 = vmax.f32 %v914, %v1360
  %v1365 = vmax.f32 %v915, %v1361
  %v1366 = vmax.f32 %v916, %v1362
  %v1367 = vld [vmem:[%s5] sm:$0x1]
  %v1369 = vperm.slane %v1367, 0
  %v1371 = vadd.f32 %v1363, %v1369
  %v1372 = vadd.f32 %v1364, %v1369
  %v1373 = vadd.f32 %v1365, %v1369
  %v1374 = vadd.f32 %v1366, %v1369
  %vm1375 = vcmp.ge.f32.partialorder %v1371, 0.0
  %vm1376 = vcmp.ge.f32.partialorder %v1372, 0.0
  %vm1377 = vcmp.ge.f32.partialorder %v1373, 0.0
  %vm1378 = vcmp.ge.f32.partialorder %v1374, 0.0
  %v1379 = vmul.f32 %v1371, 0.01
  %v1380 = vmul.f32 %v1372, 0.01
  %v1381 = vmul.f32 %v1373, 0.01
  %v1382 = vmul.f32 %v1374, 0.01
  %v1383 = vsel %vm1375, %v1371, %v1379
  %v1384 = vsel %vm1376, %v1372, %v1380
  %v1385 = vsel %vm1377, %v1373, %v1381
  %v1386 = vsel %vm1378, %v1374, %v1382
  %vm1387 = vcmask 523264
  %1388 = vst.msk [vmem:[%s6] sm:$0xff] %vm1387, %v1383
  %1389 = vst.msk [vmem:[%s6 + $0x8] sm:$0xff] %vm1387, %v1384
  %1390 = vst.msk [vmem:[%s6 + $0x10] sm:$0xff] %vm1387, %v1385
  %1391 = vst.msk [vmem:[%s6 + $0x18] sm:$0xff] %vm1387, %v1386
  // Predicated region
  $region26: #{discriminator_forward.4} parent=0 // pred_check
    _
  $region27: #{discriminator_forward.4} parent=0 // pred_check_branch
    %1393 = sbr.rel (0) target = $region29
  $region28: #{discriminator_forward.4} parent=0 // pred_region
    _
  $region29: #{discriminator_forward.4} parent=0 // pred_fallthru
    _
  // Predicated region
  $region30: #{discriminator_forward.4} parent=0 // pred_check
    _
  $region31: #{discriminator_forward.4} parent=0 // pred_check_branch
    %1395 = sbr.rel (0) target = $region33
  $region32: #{discriminator_forward.4} parent=0 // pred_region
    _
  $region33: #{discriminator_forward.4} parent=0 // pred_fallthru
    _

// kernel: discriminator_forward.5
$region0: #{discriminator_forward.5}
  #allocation0 [shape = 'u32[]', space=smem, size = 0x4, offset = 0x4, fixed_abs, tag = 'smem constant byte address 0x4 - core index']
  #allocation1 [shape = 'u32[72,128]{1,0:T(1,128)}', space=vmem, size = 0x9000, scoped, tag = 'internal scratch']
  #allocation2 [shape = 'f32[1,1]{1,0:T(1,128)S(1)}', space=vmem, size = 0x200, scoped, tag = 'scoped memory for discriminator_forward.5']
  %s0 = inlined_call_operand.vmem [shape: f32[2,1024], index: 0, kind: input, shape index: {}]
  %s1 = inlined_call_operand.vmem [shape: f32[2,10], index: 1, kind: input, shape index: {}]
  %s2 = inlined_call_operand.vmem [shape: bf16[10,1024], index: 2, kind: input, shape index: {}]
  %s3 = inlined_call_operand.vmem [shape: f32[1,1024], index: 3, kind: input, shape index: {}]
  %s4 = inlined_call_operand.vmem [shape: bf16[1024,1024], index: 4, kind: input, shape index: {}]
  %s5 = inlined_call_operand.vmem [shape: f32[1,1024], index: 5, kind: input, shape index: {}]
  %s6 = inlined_call_operand.vmem [shape: bf16[1024,1024], index: 6, kind: input, shape index: {}]
  %s7 = inlined_call_operand.vmem [shape: f32[1,1024], index: 7, kind: input, shape index: {}]
  %s8 = inlined_call_operand.vmem [shape: bf16[1024,1], index: 8, kind: input, shape index: {}]
  %s9 = inlined_call_operand.<no memory space> [shape: f32[1,1], index: 9, kind: input, shape index: {}]
  %s10 = inlined_call_operand.vmem [shape: f32[2,1], index: 10, kind: output, shape index: {}]
  %s11 = sld [smem:[#allocation0]]
  $region50: #{discriminator_forward.5} parent=0
    _
  %s13 = ssub.s32 1, %s11
  %s14 = scalar_select 0, %s13, %s11
  %v15 = vstv %s9
  %16 = vst [vmem:[#allocation2] sm:$0x1] %v15
  // Predicated region
  $region2: #{discriminator_forward.5} parent=0 // pred_check
    _
  $region3: #{discriminator_forward.5} parent=0 // pred_check_branch
    %18 = sbr.rel (0) target = $region5
  $region4: #{discriminator_forward.5} parent=0 // pred_region
    _
  $region5: #{discriminator_forward.5} parent=0 // pred_fallthru
    _
  // Predicated region
  $region6: #{discriminator_forward.5} parent=0 // pred_check
    _
  $region7: #{discriminator_forward.5} parent=0 // pred_check_branch
    %20 = sbr.rel (0) target = $region9
  $region8: #{discriminator_forward.5} parent=0 // pred_region
    _
  $region9: #{discriminator_forward.5} parent=0 // pred_fallthru
    _
  // Predicated region
  $region10: #{discriminator_forward.5} parent=0 // pred_check
    _
  $region11: #{discriminator_forward.5} parent=0 // pred_check_branch
    %22 = sbr.rel (0) target = $region13
  $region12: #{discriminator_forward.5} parent=0 // pred_region
    _
  $region13: #{discriminator_forward.5} parent=0 // pred_fallthru
    _
  // Predicated region
  $region14: #{discriminator_forward.5} parent=0 // pred_check
    _
  $region15: #{discriminator_forward.5} parent=0 // pred_check_branch
    %24 = sbr.rel (0) target = $region17
  $region16: #{discriminator_forward.5} parent=0 // pred_region
    _
  $region17: #{discriminator_forward.5} parent=0 // pred_fallthru
    _
  // Predicated region
  $region18: #{discriminator_forward.5} parent=0 // pred_check
    _
  $region19: #{discriminator_forward.5} parent=0 // pred_check_branch
    %26 = sbr.rel (0) target = $region21
  $region20: #{discriminator_forward.5} parent=0 // pred_region
    _
  $region21: #{discriminator_forward.5} parent=0 // pred_fallthru
    _
  // Predicated region
  $region22: #{discriminator_forward.5} parent=0 // pred_check
    _
  $region23: #{discriminator_forward.5} parent=0 // pred_check_branch
    %28 = sbr.rel (0) target = $region25
  $region24: #{discriminator_forward.5} parent=0 // pred_region
    _
  $region25: #{discriminator_forward.5} parent=0 // pred_fallthru
    _
  // Predicated region
  $region26: #{discriminator_forward.5} parent=0 // pred_check
    _
  $region27: #{discriminator_forward.5} parent=0 // pred_check_branch
    %30 = sbr.rel (0) target = $region29
  $region28: #{discriminator_forward.5} parent=0 // pred_region
    _
  $region29: #{discriminator_forward.5} parent=0 // pred_fallthru
    _
  // Predicated region
  $region30: #{discriminator_forward.5} parent=0 // pred_check
    _
  $region31: #{discriminator_forward.5} parent=0 // pred_check_branch
    %32 = sbr.rel (0) target = $region33
  $region32: #{discriminator_forward.5} parent=0 // pred_region
    _
  $region33: #{discriminator_forward.5} parent=0 // pred_fallthru
    _
  // Predicated region
  $region34: #{discriminator_forward.5} parent=0 // pred_check
    _
  $region35: #{discriminator_forward.5} parent=0 // pred_check_branch
    %34 = sbr.rel (0) target = $region37
  $region36: #{discriminator_forward.5} parent=0 // pred_region
    _
  $region37: #{discriminator_forward.5} parent=0 // pred_fallthru
    _
  // Predicated region
  $region38: #{discriminator_forward.5} parent=0 // pred_check
    _
  $region39: #{discriminator_forward.5} parent=0 // pred_check_branch
    %36 = sbr.rel (0) target = $region41
  $region40: #{discriminator_forward.5} parent=0 // pred_region
    _
  $region41: #{discriminator_forward.5} parent=0 // pred_fallthru
    _
  %v38 = vld [vmem:[%s1] sm:$0x3]
  %v39 = vpack.c.bf16 %v38, %v38
  %v40 = vld [vmem:[%s2] sm:$0xff]
  %v41 = vld [vmem:[%s2 + $0x8] sm:$0xff]
  %v42 = vld [vmem:[%s2 + $0x10] sm:$0xff]
  %v43 = vld [vmem:[%s2 + $0x18] sm:$0xff]
  %v44 = vld [vmem:[%s2 + $0x20] sm:$0x11]
  %v45 = vld [vmem:[%s2 + $0x28] sm:$0x11]
  %v46 = vld [vmem:[%s2 + $0x30] sm:$0x11]
  %v47 = vld [vmem:[%s2 + $0x38] sm:$0x11]
  %v48 = vld [vmem:[%s3] sm:$0xff]
  %v50 = vperm.slane %v48, 0
  %v51 = vperm.slane %v48, 1
  %v52 = vperm.slane %v48, 2
  %v53 = vperm.slane %v48, 3
  %v54 = vperm.slane %v48, 4
  %v55 = vperm.slane %v48, 5
  %v56 = vperm.slane %v48, 6
  %v57 = vperm.slane %v48, 7
  %v74 = vunpack.c.l.b16 %v40
  %v75 = vunpack.c.h.b16 %v40
  %v76 = vunpack.c.l.b16 %v41
  %v77 = vunpack.c.h.b16 %v41
  %v78 = vunpack.c.l.b16 %v42
  %v79 = vunpack.c.h.b16 %v42
  %v80 = vunpack.c.l.b16 %v43
  %v81 = vunpack.c.h.b16 %v43
  %v82 = vunpack.c.l.b16 %v44
  %v83 = vunpack.c.h.b16 %v44
  %v84 = vunpack.c.l.b16 %v45
  %v85 = vunpack.c.h.b16 %v45
  %v86 = vunpack.c.l.b16 %v46
  %v87 = vunpack.c.h.b16 %v46
  %v88 = vunpack.c.l.b16 %v47
  %v89 = vunpack.c.h.b16 %v47
  %v90 = vpack.c.b16 %v82, %v74
  %v91 = vpack.c.b16 %v83, %v75
  %v92 = vpack.c.b16 %v84, %v76
  %v93 = vpack.c.b16 %v85, %v77
  %v94 = vpack.c.b16 %v86, %v78
  %v95 = vpack.c.b16 %v87, %v79
  %v96 = vpack.c.b16 %v88, %v80
  %v97 = vpack.c.b16 %v89, %v81
  %vm98 = vcmask 80896
  %v100 = vsel %vm98, %v39, 0
  %vm102 = vcmask 1044480
  %v104 = vsel %vm102, %v90, 0
  %v107 = vsel %vm102, %v91, 0
  %v110 = vsel %vm102, %v92, 0
  %v113 = vsel %vm102, %v93, 0
  %v116 = vsel %vm102, %v94, 0
  %v119 = vsel %vm102, %v95, 0
  %v122 = vsel %vm102, %v96, 0
  %v125 = vsel %vm102, %v97, 0
  %127 = vmatpush.bf16.msra.mxu0 0
  %128 = vmatpush.bf16.msra.mxu0 0
  %129 = vmatpush.bf16.msra.mxu0 0
  %130 = vmatpush.bf16.msra.mxu0 0
  %131 = vmatpush.bf16.msra.mxu0 0
  %132 = vmatpush.bf16.msra.mxu0 0
  %133 = vmatpush.bf16.msra.mxu0 0
  %134 = vmatpush.bf16.msra.mxu0 %v104
  %135 = vmatmul.bf16.gmra.mxu0 %v100
  %v136 = vpop.f32.mrf.mxu0
  %v137 = vadd.f32 %v50, %v136
  %v138 = vpop.f32.mrf.mxu0
  %139 = vdwg.mxu0
  %140 = vmatpush.bf16.msra.mxu0 0
  %141 = vmatpush.bf16.msra.mxu0 0
  %142 = vmatpush.bf16.msra.mxu0 0
  %143 = vmatpush.bf16.msra.mxu0 0
  %144 = vmatpush.bf16.msra.mxu0 0
  %145 = vmatpush.bf16.msra.mxu0 0
  %146 = vmatpush.bf16.msra.mxu0 0
  %147 = vmatpush.bf16.msra.mxu0 %v107
  %148 = vmatmul.bf16.gmra.mxu0 %v100
  %v149 = vpop.f32.mrf.mxu0
  %v150 = vadd.f32 %v51, %v149
  %v151 = vpop.f32.mrf.mxu0
  %152 = vdwg.mxu0
  %153 = vmatpush.bf16.msra.mxu0 0
  %154 = vmatpush.bf16.msra.mxu0 0
  %155 = vmatpush.bf16.msra.mxu0 0
  %156 = vmatpush.bf16.msra.mxu0 0
  %157 = vmatpush.bf16.msra.mxu0 0
  %158 = vmatpush.bf16.msra.mxu0 0
  %159 = vmatpush.bf16.msra.mxu0 0
  %160 = vmatpush.bf16.msra.mxu0 %v110
  %161 = vmatmul.bf16.gmra.mxu0 %v100
  %v162 = vpop.f32.mrf.mxu0
  %v163 = vadd.f32 %v52, %v162
  %v164 = vpop.f32.mrf.mxu0
  %165 = vdwg.mxu0
  %166 = vmatpush.bf16.msra.mxu0 0
  %167 = vmatpush.bf16.msra.mxu0 0
  %168 = vmatpush.bf16.msra.mxu0 0
  %169 = vmatpush.bf16.msra.mxu0 0
  %170 = vmatpush.bf16.msra.mxu0 0
  %171 = vmatpush.bf16.msra.mxu0 0
  %172 = vmatpush.bf16.msra.mxu0 0
  %173 = vmatpush.bf16.msra.mxu0 %v113
  %174 = vmatmul.bf16.gmra.mxu0 %v100
  %v175 = vpop.f32.mrf.mxu0
  %v176 = vadd.f32 %v53, %v175
  %v177 = vpop.f32.mrf.mxu0
  %178 = vdwg.mxu0
  %179 = vmatpush.bf16.msra.mxu0 0
  %180 = vmatpush.bf16.msra.mxu0 0
  %181 = vmatpush.bf16.msra.mxu0 0
  %182 = vmatpush.bf16.msra.mxu0 0
  %183 = vmatpush.bf16.msra.mxu0 0
  %184 = vmatpush.bf16.msra.mxu0 0
  %185 = vmatpush.bf16.msra.mxu0 0
  %186 = vmatpush.bf16.msra.mxu0 %v116
  %187 = vmatmul.bf16.gmra.mxu0 %v100
  %v188 = vpop.f32.mrf.mxu0
  %v189 = vadd.f32 %v54, %v188
  %v190 = vpop.f32.mrf.mxu0
  %191 = vdwg.mxu0
  %192 = vmatpush.bf16.msra.mxu0 0
  %193 = vmatpush.bf16.msra.mxu0 0
  %194 = vmatpush.bf16.msra.mxu0 0
  %195 = vmatpush.bf16.msra.mxu0 0
  %196 = vmatpush.bf16.msra.mxu0 0
  %197 = vmatpush.bf16.msra.mxu0 0
  %198 = vmatpush.bf16.msra.mxu0 0
  %199 = vmatpush.bf16.msra.mxu0 %v119
  %200 = vmatmul.bf16.gmra.mxu0 %v100
  %v201 = vpop.f32.mrf.mxu0
  %v202 = vadd.f32 %v55, %v201
  %v203 = vpop.f32.mrf.mxu0
  %204 = vdwg.mxu0
  %205 = vmatpush.bf16.msra.mxu0 0
  %206 = vmatpush.bf16.msra.mxu0 0
  %207 = vmatpush.bf16.msra.mxu0 0
  %208 = vmatpush.bf16.msra.mxu0 0
  %209 = vmatpush.bf16.msra.mxu0 0
  %210 = vmatpush.bf16.msra.mxu0 0
  %211 = vmatpush.bf16.msra.mxu0 0
  %212 = vmatpush.bf16.msra.mxu0 %v122
  %213 = vmatmul.bf16.gmra.mxu0 %v100
  %v214 = vpop.f32.mrf.mxu0
  %v215 = vadd.f32 %v56, %v214
  %v216 = vpop.f32.mrf.mxu0
  %217 = vdwg.mxu0
  %218 = vmatpush.bf16.msra.mxu0 0
  %219 = vmatpush.bf16.msra.mxu0 0
  %220 = vmatpush.bf16.msra.mxu0 0
  %221 = vmatpush.bf16.msra.mxu0 0
  %222 = vmatpush.bf16.msra.mxu0 0
  %223 = vmatpush.bf16.msra.mxu0 0
  %224 = vmatpush.bf16.msra.mxu0 0
  %225 = vmatpush.bf16.msra.mxu0 %v125
  %226 = vmatmul.bf16.gmra.mxu0 %v100
  %v227 = vpop.f32.mrf.mxu0
  %v228 = vadd.f32 %v57, %v227
  %v229 = vpop.f32.mrf.mxu0
  %230 = vdwg.mxu0
  %v231 = vtanh.pop %v137
  %v232 = vtanh.pop %v150
  %v233 = vtanh.pop %v163
  %v234 = vtanh.pop %v176
  %v235 = vtanh.pop %v189
  %v236 = vtanh.pop %v202
  %v237 = vtanh.pop %v215
  %v238 = vtanh.pop %v228
  %v239 = vpack.c.bf16 %v231, %v231
  %v240 = vpack.c.bf16 %v232, %v232
  %v241 = vpack.c.bf16 %v233, %v233
  %v242 = vpack.c.bf16 %v234, %v234
  %v243 = vpack.c.bf16 %v235, %v235
  %v244 = vpack.c.bf16 %v236, %v236
  %v245 = vpack.c.bf16 %v237, %v237
  %v246 = vpack.c.bf16 %v238, %v238
  %v247 = vld [vmem:[%s4] sm:$0xff]
  %v248 = vld [vmem:[%s4 + $0x8] sm:$0xff]
  %v249 = vld [vmem:[%s4 + $0x10] sm:$0xff]
  %v250 = vld [vmem:[%s4 + $0x18] sm:$0xff]
  %v251 = vld [vmem:[%s4 + $0x20] sm:$0xff]
  %v252 = vld [vmem:[%s4 + $0x28] sm:$0xff]
  %v253 = vld [vmem:[%s4 + $0x30] sm:$0xff]
  %v254 = vld [vmem:[%s4 + $0x38] sm:$0xff]
  %v255 = vld [vmem:[%s4 + $0x40] sm:$0xff]
  %v256 = vld [vmem:[%s4 + $0x48] sm:$0xff]
  %v257 = vld [vmem:[%s4 + $0x50] sm:$0xff]
  %v258 = vld [vmem:[%s4 + $0x58] sm:$0xff]
  %v259 = vld [vmem:[%s4 + $0x60] sm:$0xff]
  %v260 = vld [vmem:[%s4 + $0x68] sm:$0xff]
  %v261 = vld [vmem:[%s4 + $0x70] sm:$0xff]
  %v262 = vld [vmem:[%s4 + $0x78] sm:$0xff]
  %v263 = vld [vmem:[%s4 + $0x80] sm:$0xff]
  %v264 = vld [vmem:[%s4 + $0x88] sm:$0xff]
  %v265 = vld [vmem:[%s4 + $0x90] sm:$0xff]
  %v266 = vld [vmem:[%s4 + $0x98] sm:$0xff]
  %v267 = vld [vmem:[%s4 + $0xa0] sm:$0xff]
  %v268 = vld [vmem:[%s4 + $0xa8] sm:$0xff]
  %v269 = vld [vmem:[%s4 + $0xb0] sm:$0xff]
  %v270 = vld [vmem:[%s4 + $0xb8] sm:$0xff]
  %v271 = vld [vmem:[%s4 + $0xc0] sm:$0xff]
  %v272 = vld [vmem:[%s4 + $0xc8] sm:$0xff]
  %v273 = vld [vmem:[%s4 + $0xd0] sm:$0xff]
  %v274 = vld [vmem:[%s4 + $0xd8] sm:$0xff]
  %v275 = vld [vmem:[%s4 + $0xe0] sm:$0xff]
  %v276 = vld [vmem:[%s4 + $0xe8] sm:$0xff]
  %v277 = vld [vmem:[%s4 + $0xf0] sm:$0xff]
  %v278 = vld [vmem:[%s4 + $0xf8] sm:$0xff]
  %v279 = vld [vmem:[%s4 + $0x100] sm:$0xff]
  %v280 = vld [vmem:[%s4 + $0x108] sm:$0xff]
  %v281 = vld [vmem:[%s4 + $0x110] sm:$0xff]
  %v282 = vld [vmem:[%s4 + $0x118] sm:$0xff]
  %v283 = vld [vmem:[%s4 + $0x120] sm:$0xff]
  %v284 = vld [vmem:[%s4 + $0x128] sm:$0xff]
  %v285 = vld [vmem:[%s4 + $0x130] sm:$0xff]
  %v286 = vld [vmem:[%s4 + $0x138] sm:$0xff]
  %v287 = vld [vmem:[%s4 + $0x140] sm:$0xff]
  %v288 = vld [vmem:[%s4 + $0x148] sm:$0xff]
  %v289 = vld [vmem:[%s4 + $0x150] sm:$0xff]
  %v290 = vld [vmem:[%s4 + $0x158] sm:$0xff]
  %v291 = vld [vmem:[%s4 + $0x160] sm:$0xff]
  %v292 = vld [vmem:[%s4 + $0x168] sm:$0xff]
  %v293 = vld [vmem:[%s4 + $0x170] sm:$0xff]
  %v294 = vld [vmem:[%s4 + $0x178] sm:$0xff]
  %v295 = vld [vmem:[%s4 + $0x180] sm:$0xff]
  %v296 = vld [vmem:[%s4 + $0x188] sm:$0xff]
  %v297 = vld [vmem:[%s4 + $0x190] sm:$0xff]
  %v298 = vld [vmem:[%s4 + $0x198] sm:$0xff]
  %v299 = vld [vmem:[%s4 + $0x1a0] sm:$0xff]
  %v300 = vld [vmem:[%s4 + $0x1a8] sm:$0xff]
  %v301 = vld [vmem:[%s4 + $0x1b0] sm:$0xff]
  %v302 = vld [vmem:[%s4 + $0x1b8] sm:$0xff]
  %v303 = vld [vmem:[%s4 + $0x1c0] sm:$0xff]
  %v304 = vld [vmem:[%s4 + $0x1c8] sm:$0xff]
  %v305 = vld [vmem:[%s4 + $0x1d0] sm:$0xff]
  %v306 = vld [vmem:[%s4 + $0x1d8] sm:$0xff]
  %v307 = vld [vmem:[%s4 + $0x1e0] sm:$0xff]
  %v308 = vld [vmem:[%s4 + $0x1e8] sm:$0xff]
  %v309 = vld [vmem:[%s4 + $0x1f0] sm:$0xff]
  %v310 = vld [vmem:[%s4 + $0x1f8] sm:$0xff]
  %v311 = vld [vmem:[%s4 + $0x200] sm:$0xff]
  %v312 = vld [vmem:[%s4 + $0x208] sm:$0xff]
  %v313 = vld [vmem:[%s4 + $0x210] sm:$0xff]
  %v314 = vld [vmem:[%s4 + $0x218] sm:$0xff]
  %v315 = vld [vmem:[%s4 + $0x220] sm:$0xff]
  %v316 = vld [vmem:[%s4 + $0x228] sm:$0xff]
  %v317 = vld [vmem:[%s4 + $0x230] sm:$0xff]
  %v318 = vld [vmem:[%s4 + $0x238] sm:$0xff]
  %v319 = vld [vmem:[%s4 + $0x240] sm:$0xff]
  %v320 = vld [vmem:[%s4 + $0x248] sm:$0xff]
  %v321 = vld [vmem:[%s4 + $0x250] sm:$0xff]
  %v322 = vld [vmem:[%s4 + $0x258] sm:$0xff]
  %v323 = vld [vmem:[%s4 + $0x260] sm:$0xff]
  %v324 = vld [vmem:[%s4 + $0x268] sm:$0xff]
  %v325 = vld [vmem:[%s4 + $0x270] sm:$0xff]
  %v326 = vld [vmem:[%s4 + $0x278] sm:$0xff]
  %v327 = vld [vmem:[%s4 + $0x280] sm:$0xff]
  %v328 = vld [vmem:[%s4 + $0x288] sm:$0xff]
  %v329 = vld [vmem:[%s4 + $0x290] sm:$0xff]
  %v330 = vld [vmem:[%s4 + $0x298] sm:$0xff]
  %v331 = vld [vmem:[%s4 + $0x2a0] sm:$0xff]
  %v332 = vld [vmem:[%s4 + $0x2a8] sm:$0xff]
  %v333 = vld [vmem:[%s4 + $0x2b0] sm:$0xff]
  %v334 = vld [vmem:[%s4 + $0x2b8] sm:$0xff]
  %v335 = vld [vmem:[%s4 + $0x2c0] sm:$0xff]
  %v336 = vld [vmem:[%s4 + $0x2c8] sm:$0xff]
  %v337 = vld [vmem:[%s4 + $0x2d0] sm:$0xff]
  %v338 = vld [vmem:[%s4 + $0x2d8] sm:$0xff]
  %v339 = vld [vmem:[%s4 + $0x2e0] sm:$0xff]
  %v340 = vld [vmem:[%s4 + $0x2e8] sm:$0xff]
  %v341 = vld [vmem:[%s4 + $0x2f0] sm:$0xff]
  %v342 = vld [vmem:[%s4 + $0x2f8] sm:$0xff]
  %v343 = vld [vmem:[%s4 + $0x300] sm:$0xff]
  %v344 = vld [vmem:[%s4 + $0x308] sm:$0xff]
  %v345 = vld [vmem:[%s4 + $0x310] sm:$0xff]
  %v346 = vld [vmem:[%s4 + $0x318] sm:$0xff]
  %v347 = vld [vmem:[%s4 + $0x320] sm:$0xff]
  %v348 = vld [vmem:[%s4 + $0x328] sm:$0xff]
  %v349 = vld [vmem:[%s4 + $0x330] sm:$0xff]
  %v350 = vld [vmem:[%s4 + $0x338] sm:$0xff]
  %v351 = vld [vmem:[%s4 + $0x340] sm:$0xff]
  %v352 = vld [vmem:[%s4 + $0x348] sm:$0xff]
  %v353 = vld [vmem:[%s4 + $0x350] sm:$0xff]
  %v354 = vld [vmem:[%s4 + $0x358] sm:$0xff]
  %v355 = vld [vmem:[%s4 + $0x360] sm:$0xff]
  %v356 = vld [vmem:[%s4 + $0x368] sm:$0xff]
  %v357 = vld [vmem:[%s4 + $0x370] sm:$0xff]
  %v358 = vld [vmem:[%s4 + $0x378] sm:$0xff]
  %v359 = vld [vmem:[%s4 + $0x380] sm:$0xff]
  %v360 = vld [vmem:[%s4 + $0x388] sm:$0xff]
  %v361 = vld [vmem:[%s4 + $0x390] sm:$0xff]
  %v362 = vld [vmem:[%s4 + $0x398] sm:$0xff]
  %v363 = vld [vmem:[%s4 + $0x3a0] sm:$0xff]
  %v364 = vld [vmem:[%s4 + $0x3a8] sm:$0xff]
  %v365 = vld [vmem:[%s4 + $0x3b0] sm:$0xff]
  %v366 = vld [vmem:[%s4 + $0x3b8] sm:$0xff]
  %v367 = vld [vmem:[%s4 + $0x3c0] sm:$0xff]
  %v368 = vld [vmem:[%s4 + $0x3c8] sm:$0xff]
  %v369 = vld [vmem:[%s4 + $0x3d0] sm:$0xff]
  %v370 = vld [vmem:[%s4 + $0x3d8] sm:$0xff]
  %v371 = vld [vmem:[%s4 + $0x3e0] sm:$0xff]
  %v372 = vld [vmem:[%s4 + $0x3e8] sm:$0xff]
  %v373 = vld [vmem:[%s4 + $0x3f0] sm:$0xff]
  %v374 = vld [vmem:[%s4 + $0x3f8] sm:$0xff]
  %v375 = vld [vmem:[%s4 + $0x400] sm:$0xff]
  %v376 = vld [vmem:[%s4 + $0x408] sm:$0xff]
  %v377 = vld [vmem:[%s4 + $0x410] sm:$0xff]
  %v378 = vld [vmem:[%s4 + $0x418] sm:$0xff]
  %v379 = vld [vmem:[%s4 + $0x420] sm:$0xff]
  %v380 = vld [vmem:[%s4 + $0x428] sm:$0xff]
  %v381 = vld [vmem:[%s4 + $0x430] sm:$0xff]
  %v382 = vld [vmem:[%s4 + $0x438] sm:$0xff]
  %v383 = vld [vmem:[%s4 + $0x440] sm:$0xff]
  %v384 = vld [vmem:[%s4 + $0x448] sm:$0xff]
  %v385 = vld [vmem:[%s4 + $0x450] sm:$0xff]
  %v386 = vld [vmem:[%s4 + $0x458] sm:$0xff]
  %v387 = vld [vmem:[%s4 + $0x460] sm:$0xff]
  %v388 = vld [vmem:[%s4 + $0x468] sm:$0xff]
  %v389 = vld [vmem:[%s4 + $0x470] sm:$0xff]
  %v390 = vld [vmem:[%s4 + $0x478] sm:$0xff]
  %v391 = vld [vmem:[%s4 + $0x480] sm:$0xff]
  %v392 = vld [vmem:[%s4 + $0x488] sm:$0xff]
  %v393 = vld [vmem:[%s4 + $0x490] sm:$0xff]
  %v394 = vld [vmem:[%s4 + $0x498] sm:$0xff]
  %v395 = vld [vmem:[%s4 + $0x4a0] sm:$0xff]
  %v396 = vld [vmem:[%s4 + $0x4a8] sm:$0xff]
  %v397 = vld [vmem:[%s4 + $0x4b0] sm:$0xff]
  %v398 = vld [vmem:[%s4 + $0x4b8] sm:$0xff]
  %v399 = vld [vmem:[%s4 + $0x4c0] sm:$0xff]
  %v400 = vld [vmem:[%s4 + $0x4c8] sm:$0xff]
  %v401 = vld [vmem:[%s4 + $0x4d0] sm:$0xff]
  %v402 = vld [vmem:[%s4 + $0x4d8] sm:$0xff]
  %v403 = vld [vmem:[%s4 + $0x4e0] sm:$0xff]
  %v404 = vld [vmem:[%s4 + $0x4e8] sm:$0xff]
  %v405 = vld [vmem:[%s4 + $0x4f0] sm:$0xff]
  %v406 = vld [vmem:[%s4 + $0x4f8] sm:$0xff]
  %v407 = vld [vmem:[%s4 + $0x500] sm:$0xff]
  %v408 = vld [vmem:[%s4 + $0x508] sm:$0xff]
  %v409 = vld [vmem:[%s4 + $0x510] sm:$0xff]
  %v410 = vld [vmem:[%s4 + $0x518] sm:$0xff]
  %v411 = vld [vmem:[%s4 + $0x520] sm:$0xff]
  %v412 = vld [vmem:[%s4 + $0x528] sm:$0xff]
  %v413 = vld [vmem:[%s4 + $0x530] sm:$0xff]
  %v414 = vld [vmem:[%s4 + $0x538] sm:$0xff]
  %v415 = vld [vmem:[%s4 + $0x540] sm:$0xff]
  %v416 = vld [vmem:[%s4 + $0x548] sm:$0xff]
  %v417 = vld [vmem:[%s4 + $0x550] sm:$0xff]
  %v418 = vld [vmem:[%s4 + $0x558] sm:$0xff]
  %v419 = vld [vmem:[%s4 + $0x560] sm:$0xff]
  %v420 = vld [vmem:[%s4 + $0x568] sm:$0xff]
  %v421 = vld [vmem:[%s4 + $0x570] sm:$0xff]
  %v422 = vld [vmem:[%s4 + $0x578] sm:$0xff]
  %v423 = vld [vmem:[%s4 + $0x580] sm:$0xff]
  %v424 = vld [vmem:[%s4 + $0x588] sm:$0xff]
  %v425 = vld [vmem:[%s4 + $0x590] sm:$0xff]
  %v426 = vld [vmem:[%s4 + $0x598] sm:$0xff]
  %v427 = vld [vmem:[%s4 + $0x5a0] sm:$0xff]
  %v428 = vld [vmem:[%s4 + $0x5a8] sm:$0xff]
  %v429 = vld [vmem:[%s4 + $0x5b0] sm:$0xff]
  %v430 = vld [vmem:[%s4 + $0x5b8] sm:$0xff]
  %v431 = vld [vmem:[%s4 + $0x5c0] sm:$0xff]
  %v432 = vld [vmem:[%s4 + $0x5c8] sm:$0xff]
  %v433 = vld [vmem:[%s4 + $0x5d0] sm:$0xff]
  %v434 = vld [vmem:[%s4 + $0x5d8] sm:$0xff]
  %v435 = vld [vmem:[%s4 + $0x5e0] sm:$0xff]
  %v436 = vld [vmem:[%s4 + $0x5e8] sm:$0xff]
  %v437 = vld [vmem:[%s4 + $0x5f0] sm:$0xff]
  %v438 = vld [vmem:[%s4 + $0x5f8] sm:$0xff]
  %v439 = vld [vmem:[%s4 + $0x600] sm:$0xff]
  %v440 = vld [vmem:[%s4 + $0x608] sm:$0xff]
  %v441 = vld [vmem:[%s4 + $0x610] sm:$0xff]
  %v442 = vld [vmem:[%s4 + $0x618] sm:$0xff]
  %v443 = vld [vmem:[%s4 + $0x620] sm:$0xff]
  %v444 = vld [vmem:[%s4 + $0x628] sm:$0xff]
  %v445 = vld [vmem:[%s4 + $0x630] sm:$0xff]
  %v446 = vld [vmem:[%s4 + $0x638] sm:$0xff]
  %v447 = vld [vmem:[%s4 + $0x640] sm:$0xff]
  %v448 = vld [vmem:[%s4 + $0x648] sm:$0xff]
  %v449 = vld [vmem:[%s4 + $0x650] sm:$0xff]
  %v450 = vld [vmem:[%s4 + $0x658] sm:$0xff]
  %v451 = vld [vmem:[%s4 + $0x660] sm:$0xff]
  %v452 = vld [vmem:[%s4 + $0x668] sm:$0xff]
  %v453 = vld [vmem:[%s4 + $0x670] sm:$0xff]
  %v454 = vld [vmem:[%s4 + $0x678] sm:$0xff]
  %v455 = vld [vmem:[%s4 + $0x680] sm:$0xff]
  %v456 = vld [vmem:[%s4 + $0x688] sm:$0xff]
  %v457 = vld [vmem:[%s4 + $0x690] sm:$0xff]
  %v458 = vld [vmem:[%s4 + $0x698] sm:$0xff]
  %v459 = vld [vmem:[%s4 + $0x6a0] sm:$0xff]
  %v460 = vld [vmem:[%s4 + $0x6a8] sm:$0xff]
  %v461 = vld [vmem:[%s4 + $0x6b0] sm:$0xff]
  %v462 = vld [vmem:[%s4 + $0x6b8] sm:$0xff]
  %v463 = vld [vmem:[%s4 + $0x6c0] sm:$0xff]
  %v464 = vld [vmem:[%s4 + $0x6c8] sm:$0xff]
  %v465 = vld [vmem:[%s4 + $0x6d0] sm:$0xff]
  %v466 = vld [vmem:[%s4 + $0x6d8] sm:$0xff]
  %v467 = vld [vmem:[%s4 + $0x6e0] sm:$0xff]
  %v468 = vld [vmem:[%s4 + $0x6e8] sm:$0xff]
  %v469 = vld [vmem:[%s4 + $0x6f0] sm:$0xff]
  %v470 = vld [vmem:[%s4 + $0x6f8] sm:$0xff]
  %v471 = vld [vmem:[%s4 + $0x700] sm:$0xff]
  %v472 = vld [vmem:[%s4 + $0x708] sm:$0xff]
  %v473 = vld [vmem:[%s4 + $0x710] sm:$0xff]
  %v474 = vld [vmem:[%s4 + $0x718] sm:$0xff]
  %v475 = vld [vmem:[%s4 + $0x720] sm:$0xff]
  %v476 = vld [vmem:[%s4 + $0x728] sm:$0xff]
  %v477 = vld [vmem:[%s4 + $0x730] sm:$0xff]
  %v478 = vld [vmem:[%s4 + $0x738] sm:$0xff]
  %v479 = vld [vmem:[%s4 + $0x740] sm:$0xff]
  %v480 = vld [vmem:[%s4 + $0x748] sm:$0xff]
  %v481 = vld [vmem:[%s4 + $0x750] sm:$0xff]
  %v482 = vld [vmem:[%s4 + $0x758] sm:$0xff]
  %v483 = vld [vmem:[%s4 + $0x760] sm:$0xff]
  %v484 = vld [vmem:[%s4 + $0x768] sm:$0xff]
  %v485 = vld [vmem:[%s4 + $0x770] sm:$0xff]
  %v486 = vld [vmem:[%s4 + $0x778] sm:$0xff]
  %v487 = vld [vmem:[%s4 + $0x780] sm:$0xff]
  %v488 = vld [vmem:[%s4 + $0x788] sm:$0xff]
  %v489 = vld [vmem:[%s4 + $0x790] sm:$0xff]
  %v490 = vld [vmem:[%s4 + $0x798] sm:$0xff]
  %v491 = vld [vmem:[%s4 + $0x7a0] sm:$0xff]
  %v492 = vld [vmem:[%s4 + $0x7a8] sm:$0xff]
  %v493 = vld [vmem:[%s4 + $0x7b0] sm:$0xff]
  %v494 = vld [vmem:[%s4 + $0x7b8] sm:$0xff]
  %v495 = vld [vmem:[%s4 + $0x7c0] sm:$0xff]
  %v496 = vld [vmem:[%s4 + $0x7c8] sm:$0xff]
  %v497 = vld [vmem:[%s4 + $0x7d0] sm:$0xff]
  %v498 = vld [vmem:[%s4 + $0x7d8] sm:$0xff]
  %v499 = vld [vmem:[%s4 + $0x7e0] sm:$0xff]
  %v500 = vld [vmem:[%s4 + $0x7e8] sm:$0xff]
  %v501 = vld [vmem:[%s4 + $0x7f0] sm:$0xff]
  %v502 = vld [vmem:[%s4 + $0x7f8] sm:$0xff]
  %v503 = vld [vmem:[%s4 + $0x800] sm:$0xff]
  %v504 = vld [vmem:[%s4 + $0x808] sm:$0xff]
  %v505 = vld [vmem:[%s4 + $0x810] sm:$0xff]
  %v506 = vld [vmem:[%s4 + $0x818] sm:$0xff]
  %v507 = vld [vmem:[%s4 + $0x820] sm:$0xff]
  %v508 = vld [vmem:[%s4 + $0x828] sm:$0xff]
  %v509 = vld [vmem:[%s4 + $0x830] sm:$0xff]
  %v510 = vld [vmem:[%s4 + $0x838] sm:$0xff]
  %v511 = vld [vmem:[%s4 + $0x840] sm:$0xff]
  %v512 = vld [vmem:[%s4 + $0x848] sm:$0xff]
  %v513 = vld [vmem:[%s4 + $0x850] sm:$0xff]
  %v514 = vld [vmem:[%s4 + $0x858] sm:$0xff]
  %v515 = vld [vmem:[%s4 + $0x860] sm:$0xff]
  %v516 = vld [vmem:[%s4 + $0x868] sm:$0xff]
  %v517 = vld [vmem:[%s4 + $0x870] sm:$0xff]
  %v518 = vld [vmem:[%s4 + $0x878] sm:$0xff]
  %v519 = vld [vmem:[%s4 + $0x880] sm:$0xff]
  %v520 = vld [vmem:[%s4 + $0x888] sm:$0xff]
  %v521 = vld [vmem:[%s4 + $0x890] sm:$0xff]
  %v522 = vld [vmem:[%s4 + $0x898] sm:$0xff]
  %v523 = vld [vmem:[%s4 + $0x8a0] sm:$0xff]
  %v524 = vld [vmem:[%s4 + $0x8a8] sm:$0xff]
  %v525 = vld [vmem:[%s4 + $0x8b0] sm:$0xff]
  %v526 = vld [vmem:[%s4 + $0x8b8] sm:$0xff]
  %v527 = vld [vmem:[%s4 + $0x8c0] sm:$0xff]
  %v528 = vld [vmem:[%s4 + $0x8c8] sm:$0xff]
  %v529 = vld [vmem:[%s4 + $0x8d0] sm:$0xff]
  %v530 = vld [vmem:[%s4 + $0x8d8] sm:$0xff]
  %v531 = vld [vmem:[%s4 + $0x8e0] sm:$0xff]
  %v532 = vld [vmem:[%s4 + $0x8e8] sm:$0xff]
  %v533 = vld [vmem:[%s4 + $0x8f0] sm:$0xff]
  %v534 = vld [vmem:[%s4 + $0x8f8] sm:$0xff]
  %v535 = vld [vmem:[%s4 + $0x900] sm:$0xff]
  %v536 = vld [vmem:[%s4 + $0x908] sm:$0xff]
  %v537 = vld [vmem:[%s4 + $0x910] sm:$0xff]
  %v538 = vld [vmem:[%s4 + $0x918] sm:$0xff]
  %v539 = vld [vmem:[%s4 + $0x920] sm:$0xff]
  %v540 = vld [vmem:[%s4 + $0x928] sm:$0xff]
  %v541 = vld [vmem:[%s4 + $0x930] sm:$0xff]
  %v542 = vld [vmem:[%s4 + $0x938] sm:$0xff]
  %v543 = vld [vmem:[%s4 + $0x940] sm:$0xff]
  %v544 = vld [vmem:[%s4 + $0x948] sm:$0xff]
  %v545 = vld [vmem:[%s4 + $0x950] sm:$0xff]
  %v546 = vld [vmem:[%s4 + $0x958] sm:$0xff]
  %v547 = vld [vmem:[%s4 + $0x960] sm:$0xff]
  %v548 = vld [vmem:[%s4 + $0x968] sm:$0xff]
  %v549 = vld [vmem:[%s4 + $0x970] sm:$0xff]
  %v550 = vld [vmem:[%s4 + $0x978] sm:$0xff]
  %v551 = vld [vmem:[%s4 + $0x980] sm:$0xff]
  %v552 = vld [vmem:[%s4 + $0x988] sm:$0xff]
  %v553 = vld [vmem:[%s4 + $0x990] sm:$0xff]
  %v554 = vld [vmem:[%s4 + $0x998] sm:$0xff]
  %v555 = vld [vmem:[%s4 + $0x9a0] sm:$0xff]
  %v556 = vld [vmem:[%s4 + $0x9a8] sm:$0xff]
  %v557 = vld [vmem:[%s4 + $0x9b0] sm:$0xff]
  %v558 = vld [vmem:[%s4 + $0x9b8] sm:$0xff]
  %v559 = vld [vmem:[%s4 + $0x9c0] sm:$0xff]
  %v560 = vld [vmem:[%s4 + $0x9c8] sm:$0xff]
  %v561 = vld [vmem:[%s4 + $0x9d0] sm:$0xff]
  %v562 = vld [vmem:[%s4 + $0x9d8] sm:$0xff]
  %v563 = vld [vmem:[%s4 + $0x9e0] sm:$0xff]
  %v564 = vld [vmem:[%s4 + $0x9e8] sm:$0xff]
  %v565 = vld [vmem:[%s4 + $0x9f0] sm:$0xff]
  %v566 = vld [vmem:[%s4 + $0x9f8] sm:$0xff]
  %v567 = vld [vmem:[%s4 + $0xa00] sm:$0xff]
  %v568 = vld [vmem:[%s4 + $0xa08] sm:$0xff]
  %v569 = vld [vmem:[%s4 + $0xa10] sm:$0xff]
  %v570 = vld [vmem:[%s4 + $0xa18] sm:$0xff]
  %v571 = vld [vmem:[%s4 + $0xa20] sm:$0xff]
  %v572 = vld [vmem:[%s4 + $0xa28] sm:$0xff]
  %v573 = vld [vmem:[%s4 + $0xa30] sm:$0xff]
  %v574 = vld [vmem:[%s4 + $0xa38] sm:$0xff]
  %v575 = vld [vmem:[%s4 + $0xa40] sm:$0xff]
  %v576 = vld [vmem:[%s4 + $0xa48] sm:$0xff]
  %v577 = vld [vmem:[%s4 + $0xa50] sm:$0xff]
  %v578 = vld [vmem:[%s4 + $0xa58] sm:$0xff]
  %v579 = vld [vmem:[%s4 + $0xa60] sm:$0xff]
  %v580 = vld [vmem:[%s4 + $0xa68] sm:$0xff]
  %v581 = vld [vmem:[%s4 + $0xa70] sm:$0xff]
  %v582 = vld [vmem:[%s4 + $0xa78] sm:$0xff]
  %v583 = vld [vmem:[%s4 + $0xa80] sm:$0xff]
  %v584 = vld [vmem:[%s4 + $0xa88] sm:$0xff]
  %v585 = vld [vmem:[%s4 + $0xa90] sm:$0xff]
  %v586 = vld [vmem:[%s4 + $0xa98] sm:$0xff]
  %v587 = vld [vmem:[%s4 + $0xaa0] sm:$0xff]
  %v588 = vld [vmem:[%s4 + $0xaa8] sm:$0xff]
  %v589 = vld [vmem:[%s4 + $0xab0] sm:$0xff]
  %v590 = vld [vmem:[%s4 + $0xab8] sm:$0xff]
  %v591 = vld [vmem:[%s4 + $0xac0] sm:$0xff]
  %v592 = vld [vmem:[%s4 + $0xac8] sm:$0xff]
  %v593 = vld [vmem:[%s4 + $0xad0] sm:$0xff]
  %v594 = vld [vmem:[%s4 + $0xad8] sm:$0xff]
  %v595 = vld [vmem:[%s4 + $0xae0] sm:$0xff]
  %v596 = vld [vmem:[%s4 + $0xae8] sm:$0xff]
  %v597 = vld [vmem:[%s4 + $0xaf0] sm:$0xff]
  %v598 = vld [vmem:[%s4 + $0xaf8] sm:$0xff]
  %v599 = vld [vmem:[%s4 + $0xb00] sm:$0xff]
  %v600 = vld [vmem:[%s4 + $0xb08] sm:$0xff]
  %v601 = vld [vmem:[%s4 + $0xb10] sm:$0xff]
  %v602 = vld [vmem:[%s4 + $0xb18] sm:$0xff]
  %v603 = vld [vmem:[%s4 + $0xb20] sm:$0xff]
  %v604 = vld [vmem:[%s4 + $0xb28] sm:$0xff]
  %v605 = vld [vmem:[%s4 + $0xb30] sm:$0xff]
  %v606 = vld [vmem:[%s4 + $0xb38] sm:$0xff]
  %v607 = vld [vmem:[%s4 + $0xb40] sm:$0xff]
  %v608 = vld [vmem:[%s4 + $0xb48] sm:$0xff]
  %v609 = vld [vmem:[%s4 + $0xb50] sm:$0xff]
  %v610 = vld [vmem:[%s4 + $0xb58] sm:$0xff]
  %v611 = vld [vmem:[%s4 + $0xb60] sm:$0xff]
  %v612 = vld [vmem:[%s4 + $0xb68] sm:$0xff]
  %v613 = vld [vmem:[%s4 + $0xb70] sm:$0xff]
  %v614 = vld [vmem:[%s4 + $0xb78] sm:$0xff]
  %v615 = vld [vmem:[%s4 + $0xb80] sm:$0xff]
  %v616 = vld [vmem:[%s4 + $0xb88] sm:$0xff]
  %v617 = vld [vmem:[%s4 + $0xb90] sm:$0xff]
  %v618 = vld [vmem:[%s4 + $0xb98] sm:$0xff]
  %v619 = vld [vmem:[%s4 + $0xba0] sm:$0xff]
  %v620 = vld [vmem:[%s4 + $0xba8] sm:$0xff]
  %v621 = vld [vmem:[%s4 + $0xbb0] sm:$0xff]
  %v622 = vld [vmem:[%s4 + $0xbb8] sm:$0xff]
  %v623 = vld [vmem:[%s4 + $0xbc0] sm:$0xff]
  %v624 = vld [vmem:[%s4 + $0xbc8] sm:$0xff]
  %v625 = vld [vmem:[%s4 + $0xbd0] sm:$0xff]
  %v626 = vld [vmem:[%s4 + $0xbd8] sm:$0xff]
  %v627 = vld [vmem:[%s4 + $0xbe0] sm:$0xff]
  %v628 = vld [vmem:[%s4 + $0xbe8] sm:$0xff]
  %v629 = vld [vmem:[%s4 + $0xbf0] sm:$0xff]
  %v630 = vld [vmem:[%s4 + $0xbf8] sm:$0xff]
  %v631 = vld [vmem:[%s4 + $0xc00] sm:$0xff]
  %v632 = vld [vmem:[%s4 + $0xc08] sm:$0xff]
  %v633 = vld [vmem:[%s4 + $0xc10] sm:$0xff]
  %v634 = vld [vmem:[%s4 + $0xc18] sm:$0xff]
  %v635 = vld [vmem:[%s4 + $0xc20] sm:$0xff]
  %v636 = vld [vmem:[%s4 + $0xc28] sm:$0xff]
  %v637 = vld [vmem:[%s4 + $0xc30] sm:$0xff]
  %v638 = vld [vmem:[%s4 + $0xc38] sm:$0xff]
  %v639 = vld [vmem:[%s4 + $0xc40] sm:$0xff]
  %v640 = vld [vmem:[%s4 + $0xc48] sm:$0xff]
  %v641 = vld [vmem:[%s4 + $0xc50] sm:$0xff]
  %v642 = vld [vmem:[%s4 + $0xc58] sm:$0xff]
  %v643 = vld [vmem:[%s4 + $0xc60] sm:$0xff]
  %v644 = vld [vmem:[%s4 + $0xc68] sm:$0xff]
  %v645 = vld [vmem:[%s4 + $0xc70] sm:$0xff]
  %v646 = vld [vmem:[%s4 + $0xc78] sm:$0xff]
  %v647 = vld [vmem:[%s4 + $0xc80] sm:$0xff]
  %v648 = vld [vmem:[%s4 + $0xc88] sm:$0xff]
  %v649 = vld [vmem:[%s4 + $0xc90] sm:$0xff]
  %v650 = vld [vmem:[%s4 + $0xc98] sm:$0xff]
  %v651 = vld [vmem:[%s4 + $0xca0] sm:$0xff]
  %v652 = vld [vmem:[%s4 + $0xca8] sm:$0xff]
  %v653 = vld [vmem:[%s4 + $0xcb0] sm:$0xff]
  %v654 = vld [vmem:[%s4 + $0xcb8] sm:$0xff]
  %v655 = vld [vmem:[%s4 + $0xcc0] sm:$0xff]
  %v656 = vld [vmem:[%s4 + $0xcc8] sm:$0xff]
  %v657 = vld [vmem:[%s4 + $0xcd0] sm:$0xff]
  %v658 = vld [vmem:[%s4 + $0xcd8] sm:$0xff]
  %v659 = vld [vmem:[%s4 + $0xce0] sm:$0xff]
  %v660 = vld [vmem:[%s4 + $0xce8] sm:$0xff]
  %v661 = vld [vmem:[%s4 + $0xcf0] sm:$0xff]
  %v662 = vld [vmem:[%s4 + $0xcf8] sm:$0xff]
  %v663 = vld [vmem:[%s4 + $0xd00] sm:$0xff]
  %v664 = vld [vmem:[%s4 + $0xd08] sm:$0xff]
  %v665 = vld [vmem:[%s4 + $0xd10] sm:$0xff]
  %v666 = vld [vmem:[%s4 + $0xd18] sm:$0xff]
  %v667 = vld [vmem:[%s4 + $0xd20] sm:$0xff]
  %v668 = vld [vmem:[%s4 + $0xd28] sm:$0xff]
  %v669 = vld [vmem:[%s4 + $0xd30] sm:$0xff]
  %v670 = vld [vmem:[%s4 + $0xd38] sm:$0xff]
  %v671 = vld [vmem:[%s4 + $0xd40] sm:$0xff]
  %v672 = vld [vmem:[%s4 + $0xd48] sm:$0xff]
  %v673 = vld [vmem:[%s4 + $0xd50] sm:$0xff]
  %v674 = vld [vmem:[%s4 + $0xd58] sm:$0xff]
  %v675 = vld [vmem:[%s4 + $0xd60] sm:$0xff]
  %v676 = vld [vmem:[%s4 + $0xd68] sm:$0xff]
  %v677 = vld [vmem:[%s4 + $0xd70] sm:$0xff]
  %v678 = vld [vmem:[%s4 + $0xd78] sm:$0xff]
  %v679 = vld [vmem:[%s4 + $0xd80] sm:$0xff]
  %v680 = vld [vmem:[%s4 + $0xd88] sm:$0xff]
  %v681 = vld [vmem:[%s4 + $0xd90] sm:$0xff]
  %v682 = vld [vmem:[%s4 + $0xd98] sm:$0xff]
  %v683 = vld [vmem:[%s4 + $0xda0] sm:$0xff]
  %v684 = vld [vmem:[%s4 + $0xda8] sm:$0xff]
  %v685 = vld [vmem:[%s4 + $0xdb0] sm:$0xff]
  %v686 = vld [vmem:[%s4 + $0xdb8] sm:$0xff]
  %v687 = vld [vmem:[%s4 + $0xdc0] sm:$0xff]
  %v688 = vld [vmem:[%s4 + $0xdc8] sm:$0xff]
  %v689 = vld [vmem:[%s4 + $0xdd0] sm:$0xff]
  %v690 = vld [vmem:[%s4 + $0xdd8] sm:$0xff]
  %v691 = vld [vmem:[%s4 + $0xde0] sm:$0xff]
  %v692 = vld [vmem:[%s4 + $0xde8] sm:$0xff]
  %v693 = vld [vmem:[%s4 + $0xdf0] sm:$0xff]
  %v694 = vld [vmem:[%s4 + $0xdf8] sm:$0xff]
  %v695 = vld [vmem:[%s4 + $0xe00] sm:$0xff]
  %v696 = vld [vmem:[%s4 + $0xe08] sm:$0xff]
  %v697 = vld [vmem:[%s4 + $0xe10] sm:$0xff]
  %v698 = vld [vmem:[%s4 + $0xe18] sm:$0xff]
  %v699 = vld [vmem:[%s4 + $0xe20] sm:$0xff]
  %v700 = vld [vmem:[%s4 + $0xe28] sm:$0xff]
  %v701 = vld [vmem:[%s4 + $0xe30] sm:$0xff]
  %v702 = vld [vmem:[%s4 + $0xe38] sm:$0xff]
  %v703 = vld [vmem:[%s4 + $0xe40] sm:$0xff]
  %v704 = vld [vmem:[%s4 + $0xe48] sm:$0xff]
  %v705 = vld [vmem:[%s4 + $0xe50] sm:$0xff]
  %v706 = vld [vmem:[%s4 + $0xe58] sm:$0xff]
  %v707 = vld [vmem:[%s4 + $0xe60] sm:$0xff]
  %v708 = vld [vmem:[%s4 + $0xe68] sm:$0xff]
  %v709 = vld [vmem:[%s4 + $0xe70] sm:$0xff]
  %v710 = vld [vmem:[%s4 + $0xe78] sm:$0xff]
  %v711 = vld [vmem:[%s4 + $0xe80] sm:$0xff]
  %v712 = vld [vmem:[%s4 + $0xe88] sm:$0xff]
  %v713 = vld [vmem:[%s4 + $0xe90] sm:$0xff]
  %v714 = vld [vmem:[%s4 + $0xe98] sm:$0xff]
  %v715 = vld [vmem:[%s4 + $0xea0] sm:$0xff]
  %v716 = vld [vmem:[%s4 + $0xea8] sm:$0xff]
  %v717 = vld [vmem:[%s4 + $0xeb0] sm:$0xff]
  %v718 = vld [vmem:[%s4 + $0xeb8] sm:$0xff]
  %v719 = vld [vmem:[%s4 + $0xec0] sm:$0xff]
  %v720 = vld [vmem:[%s4 + $0xec8] sm:$0xff]
  %v721 = vld [vmem:[%s4 + $0xed0] sm:$0xff]
  %v722 = vld [vmem:[%s4 + $0xed8] sm:$0xff]
  %v723 = vld [vmem:[%s4 + $0xee0] sm:$0xff]
  %v724 = vld [vmem:[%s4 + $0xee8] sm:$0xff]
  %v725 = vld [vmem:[%s4 + $0xef0] sm:$0xff]
  %v726 = vld [vmem:[%s4 + $0xef8] sm:$0xff]
  %v727 = vld [vmem:[%s4 + $0xf00] sm:$0xff]
  %v728 = vld [vmem:[%s4 + $0xf08] sm:$0xff]
  %v729 = vld [vmem:[%s4 + $0xf10] sm:$0xff]
  %v730 = vld [vmem:[%s4 + $0xf18] sm:$0xff]
  %v731 = vld [vmem:[%s4 + $0xf20] sm:$0xff]
  %v732 = vld [vmem:[%s4 + $0xf28] sm:$0xff]
  %v733 = vld [vmem:[%s4 + $0xf30] sm:$0xff]
  %v734 = vld [vmem:[%s4 + $0xf38] sm:$0xff]
  %v735 = vld [vmem:[%s4 + $0xf40] sm:$0xff]
  %v736 = vld [vmem:[%s4 + $0xf48] sm:$0xff]
  %v737 = vld [vmem:[%s4 + $0xf50] sm:$0xff]
  %v738 = vld [vmem:[%s4 + $0xf58] sm:$0xff]
  %v739 = vld [vmem:[%s4 + $0xf60] sm:$0xff]
  %v740 = vld [vmem:[%s4 + $0xf68] sm:$0xff]
  %v741 = vld [vmem:[%s4 + $0xf70] sm:$0xff]
  %v742 = vld [vmem:[%s4 + $0xf78] sm:$0xff]
  %v743 = vld [vmem:[%s4 + $0xf80] sm:$0xff]
  %v744 = vld [vmem:[%s4 + $0xf88] sm:$0xff]
  %v745 = vld [vmem:[%s4 + $0xf90] sm:$0xff]
  %v746 = vld [vmem:[%s4 + $0xf98] sm:$0xff]
  %v747 = vld [vmem:[%s4 + $0xfa0] sm:$0xff]
  %v748 = vld [vmem:[%s4 + $0xfa8] sm:$0xff]
  %v749 = vld [vmem:[%s4 + $0xfb0] sm:$0xff]
  %v750 = vld [vmem:[%s4 + $0xfb8] sm:$0xff]
  %v751 = vld [vmem:[%s4 + $0xfc0] sm:$0xff]
  %v752 = vld [vmem:[%s4 + $0xfc8] sm:$0xff]
  %v753 = vld [vmem:[%s4 + $0xfd0] sm:$0xff]
  %v754 = vld [vmem:[%s4 + $0xfd8] sm:$0xff]
  %v755 = vld [vmem:[%s4 + $0xfe0] sm:$0xff]
  %v756 = vld [vmem:[%s4 + $0xfe8] sm:$0xff]
  %v757 = vld [vmem:[%s4 + $0xff0] sm:$0xff]
  %v758 = vld [vmem:[%s4 + $0xff8] sm:$0xff]
  %v759 = vld [vmem:[%s5] sm:$0xff]
  %v761 = vperm.slane %v759, 0
  %v762 = vperm.slane %v759, 1
  %v763 = vperm.slane %v759, 2
  %v764 = vperm.slane %v759, 3
  %v765 = vperm.slane %v759, 4
  %v766 = vperm.slane %v759, 5
  %v767 = vperm.slane %v759, 6
  %v768 = vperm.slane %v759, 7
  %v1289 = vunpack.c.l.b16 %v247
  %v1290 = vunpack.c.h.b16 %v247
  %v1291 = vunpack.c.l.b16 %v248
  %v1292 = vunpack.c.h.b16 %v248
  %v1293 = vunpack.c.l.b16 %v249
  %v1294 = vunpack.c.h.b16 %v249
  %v1295 = vunpack.c.l.b16 %v250
  %v1296 = vunpack.c.h.b16 %v250
  %v1297 = vunpack.c.l.b16 %v251
  %v1298 = vunpack.c.h.b16 %v251
  %v1299 = vunpack.c.l.b16 %v252
  %v1300 = vunpack.c.h.b16 %v252
  %v1301 = vunpack.c.l.b16 %v253
  %v1302 = vunpack.c.h.b16 %v253
  %v1303 = vunpack.c.l.b16 %v254
  %v1304 = vunpack.c.h.b16 %v254
  %v1305 = vunpack.c.l.b16 %v255
  %v1306 = vunpack.c.h.b16 %v255
  %v1307 = vunpack.c.l.b16 %v256
  %v1308 = vunpack.c.h.b16 %v256
  %v1309 = vunpack.c.l.b16 %v257
  %v1310 = vunpack.c.h.b16 %v257
  %v1311 = vunpack.c.l.b16 %v258
  %v1312 = vunpack.c.h.b16 %v258
  %v1313 = vunpack.c.l.b16 %v259
  %v1314 = vunpack.c.h.b16 %v259
  %v1315 = vunpack.c.l.b16 %v260
  %v1316 = vunpack.c.h.b16 %v260
  %v1317 = vunpack.c.l.b16 %v261
  %v1318 = vunpack.c.h.b16 %v261
  %v1319 = vunpack.c.l.b16 %v262
  %v1320 = vunpack.c.h.b16 %v262
  %v1321 = vunpack.c.l.b16 %v263
  %v1322 = vunpack.c.h.b16 %v263
  %v1323 = vunpack.c.l.b16 %v264
  %v1324 = vunpack.c.h.b16 %v264
  %v1325 = vunpack.c.l.b16 %v265
  %v1326 = vunpack.c.h.b16 %v265
  %v1327 = vunpack.c.l.b16 %v266
  %v1328 = vunpack.c.h.b16 %v266
  %v1329 = vunpack.c.l.b16 %v267
  %v1330 = vunpack.c.h.b16 %v267
  %v1331 = vunpack.c.l.b16 %v268
  %v1332 = vunpack.c.h.b16 %v268
  %v1333 = vunpack.c.l.b16 %v269
  %v1334 = vunpack.c.h.b16 %v269
  %v1335 = vunpack.c.l.b16 %v270
  %v1336 = vunpack.c.h.b16 %v270
  %v1337 = vunpack.c.l.b16 %v271
  %v1338 = vunpack.c.h.b16 %v271
  %v1339 = vunpack.c.l.b16 %v272
  %v1340 = vunpack.c.h.b16 %v272
  %v1341 = vunpack.c.l.b16 %v273
  %v1342 = vunpack.c.h.b16 %v273
  %v1343 = vunpack.c.l.b16 %v274
  %v1344 = vunpack.c.h.b16 %v274
  %v1345 = vunpack.c.l.b16 %v275
  %v1346 = vunpack.c.h.b16 %v275
  %v1347 = vunpack.c.l.b16 %v276
  %v1348 = vunpack.c.h.b16 %v276
  %v1349 = vunpack.c.l.b16 %v277
  %v1350 = vunpack.c.h.b16 %v277
  %v1351 = vunpack.c.l.b16 %v278
  %v1352 = vunpack.c.h.b16 %v278
  %v1353 = vunpack.c.l.b16 %v279
  %v1354 = vunpack.c.h.b16 %v279
  %v1355 = vunpack.c.l.b16 %v280
  %v1356 = vunpack.c.h.b16 %v280
  %v1357 = vunpack.c.l.b16 %v281
  %v1358 = vunpack.c.h.b16 %v281
  %v1359 = vunpack.c.l.b16 %v282
  %v1360 = vunpack.c.h.b16 %v282
  %v1361 = vunpack.c.l.b16 %v283
  %v1362 = vunpack.c.h.b16 %v283
  %v1363 = vunpack.c.l.b16 %v284
  %v1364 = vunpack.c.h.b16 %v284
  %v1365 = vunpack.c.l.b16 %v285
  %v1366 = vunpack.c.h.b16 %v285
  %v1367 = vunpack.c.l.b16 %v286
  %v1368 = vunpack.c.h.b16 %v286
  %v1369 = vunpack.c.l.b16 %v287
  %v1370 = vunpack.c.h.b16 %v287
  %v1371 = vunpack.c.l.b16 %v288
  %v1372 = vunpack.c.h.b16 %v288
  %v1373 = vunpack.c.l.b16 %v289
  %v1374 = vunpack.c.h.b16 %v289
  %v1375 = vunpack.c.l.b16 %v290
  %v1376 = vunpack.c.h.b16 %v290
  %v1377 = vunpack.c.l.b16 %v291
  %v1378 = vunpack.c.h.b16 %v291
  %v1379 = vunpack.c.l.b16 %v292
  %v1380 = vunpack.c.h.b16 %v292
  %v1381 = vunpack.c.l.b16 %v293
  %v1382 = vunpack.c.h.b16 %v293
  %v1383 = vunpack.c.l.b16 %v294
  %v1384 = vunpack.c.h.b16 %v294
  %v1385 = vunpack.c.l.b16 %v295
  %v1386 = vunpack.c.h.b16 %v295
  %v1387 = vunpack.c.l.b16 %v296
  %v1388 = vunpack.c.h.b16 %v296
  %v1389 = vunpack.c.l.b16 %v297
  %v1390 = vunpack.c.h.b16 %v297
  %v1391 = vunpack.c.l.b16 %v298
  %v1392 = vunpack.c.h.b16 %v298
  %v1393 = vunpack.c.l.b16 %v299
  %v1394 = vunpack.c.h.b16 %v299
  %v1395 = vunpack.c.l.b16 %v300
  %v1396 = vunpack.c.h.b16 %v300
  %v1397 = vunpack.c.l.b16 %v301
  %v1398 = vunpack.c.h.b16 %v301
  %v1399 = vunpack.c.l.b16 %v302
  %v1400 = vunpack.c.h.b16 %v302
  %v1401 = vunpack.c.l.b16 %v303
  %v1402 = vunpack.c.h.b16 %v303
  %v1403 = vunpack.c.l.b16 %v304
  %v1404 = vunpack.c.h.b16 %v304
  %v1405 = vunpack.c.l.b16 %v305
  %v1406 = vunpack.c.h.b16 %v305
  %v1407 = vunpack.c.l.b16 %v306
  %v1408 = vunpack.c.h.b16 %v306
  %v1409 = vunpack.c.l.b16 %v307
  %v1410 = vunpack.c.h.b16 %v307
  %v1411 = vunpack.c.l.b16 %v308
  %v1412 = vunpack.c.h.b16 %v308
  %v1413 = vunpack.c.l.b16 %v309
  %v1414 = vunpack.c.h.b16 %v309
  %v1415 = vunpack.c.l.b16 %v310
  %v1416 = vunpack.c.h.b16 %v310
  %v1417 = vunpack.c.l.b16 %v311
  %v1418 = vunpack.c.h.b16 %v311
  %v1419 = vunpack.c.l.b16 %v312
  %v1420 = vunpack.c.h.b16 %v312
  %v1421 = vunpack.c.l.b16 %v313
  %v1422 = vunpack.c.h.b16 %v313
  %v1423 = vunpack.c.l.b16 %v314
  %v1424 = vunpack.c.h.b16 %v314
  %v1425 = vunpack.c.l.b16 %v315
  %v1426 = vunpack.c.h.b16 %v315
  %v1427 = vunpack.c.l.b16 %v316
  %v1428 = vunpack.c.h.b16 %v316
  %v1429 = vunpack.c.l.b16 %v317
  %v1430 = vunpack.c.h.b16 %v317
  %v1431 = vunpack.c.l.b16 %v318
  %v1432 = vunpack.c.h.b16 %v318
  %v1433 = vunpack.c.l.b16 %v319
  %v1434 = vunpack.c.h.b16 %v319
  %v1435 = vunpack.c.l.b16 %v320
  %v1436 = vunpack.c.h.b16 %v320
  %v1437 = vunpack.c.l.b16 %v321
  %v1438 = vunpack.c.h.b16 %v321
  %v1439 = vunpack.c.l.b16 %v322
  %v1440 = vunpack.c.h.b16 %v322
  %v1441 = vunpack.c.l.b16 %v323
  %v1442 = vunpack.c.h.b16 %v323
  %v1443 = vunpack.c.l.b16 %v324
  %v1444 = vunpack.c.h.b16 %v324
  %v1445 = vunpack.c.l.b16 %v325
  %v1446 = vunpack.c.h.b16 %v325
  %v1447 = vunpack.c.l.b16 %v326
  %v1448 = vunpack.c.h.b16 %v326
  %v1449 = vunpack.c.l.b16 %v327
  %v1450 = vunpack.c.h.b16 %v327
  %v1451 = vunpack.c.l.b16 %v328
  %v1452 = vunpack.c.h.b16 %v328
  %v1453 = vunpack.c.l.b16 %v329
  %v1454 = vunpack.c.h.b16 %v329
  %v1455 = vunpack.c.l.b16 %v330
  %v1456 = vunpack.c.h.b16 %v330
  %v1457 = vunpack.c.l.b16 %v331
  %v1458 = vunpack.c.h.b16 %v331
  %v1459 = vunpack.c.l.b16 %v332
  %v1460 = vunpack.c.h.b16 %v332
  %v1461 = vunpack.c.l.b16 %v333
  %v1462 = vunpack.c.h.b16 %v333
  %v1463 = vunpack.c.l.b16 %v334
  %v1464 = vunpack.c.h.b16 %v334
  %v1465 = vunpack.c.l.b16 %v335
  %v1466 = vunpack.c.h.b16 %v335
  %v1467 = vunpack.c.l.b16 %v336
  %v1468 = vunpack.c.h.b16 %v336
  %v1469 = vunpack.c.l.b16 %v337
  %v1470 = vunpack.c.h.b16 %v337
  %v1471 = vunpack.c.l.b16 %v338
  %v1472 = vunpack.c.h.b16 %v338
  %v1473 = vunpack.c.l.b16 %v339
  %v1474 = vunpack.c.h.b16 %v339
  %v1475 = vunpack.c.l.b16 %v340
  %v1476 = vunpack.c.h.b16 %v340
  %v1477 = vunpack.c.l.b16 %v341
  %v1478 = vunpack.c.h.b16 %v341
  %v1479 = vunpack.c.l.b16 %v342
  %v1480 = vunpack.c.h.b16 %v342
  %v1481 = vunpack.c.l.b16 %v343
  %v1482 = vunpack.c.h.b16 %v343
  %v1483 = vunpack.c.l.b16 %v344
  %v1484 = vunpack.c.h.b16 %v344
  %v1485 = vunpack.c.l.b16 %v345
  %v1486 = vunpack.c.h.b16 %v345
  %v1487 = vunpack.c.l.b16 %v346
  %v1488 = vunpack.c.h.b16 %v346
  %v1489 = vunpack.c.l.b16 %v347
  %v1490 = vunpack.c.h.b16 %v347
  %v1491 = vunpack.c.l.b16 %v348
  %v1492 = vunpack.c.h.b16 %v348
  %v1493 = vunpack.c.l.b16 %v349
  %v1494 = vunpack.c.h.b16 %v349
  %v1495 = vunpack.c.l.b16 %v350
  %v1496 = vunpack.c.h.b16 %v350
  %v1497 = vunpack.c.l.b16 %v351
  %v1498 = vunpack.c.h.b16 %v351
  %v1499 = vunpack.c.l.b16 %v352
  %v1500 = vunpack.c.h.b16 %v352
  %v1501 = vunpack.c.l.b16 %v353
  %v1502 = vunpack.c.h.b16 %v353
  %v1503 = vunpack.c.l.b16 %v354
  %v1504 = vunpack.c.h.b16 %v354
  %v1505 = vunpack.c.l.b16 %v355
  %v1506 = vunpack.c.h.b16 %v355
  %v1507 = vunpack.c.l.b16 %v356
  %v1508 = vunpack.c.h.b16 %v356
  %v1509 = vunpack.c.l.b16 %v357
  %v1510 = vunpack.c.h.b16 %v357
  %v1511 = vunpack.c.l.b16 %v358
  %v1512 = vunpack.c.h.b16 %v358
  %v1513 = vunpack.c.l.b16 %v359
  %v1514 = vunpack.c.h.b16 %v359
  %v1515 = vunpack.c.l.b16 %v360
  %v1516 = vunpack.c.h.b16 %v360
  %v1517 = vunpack.c.l.b16 %v361
  %v1518 = vunpack.c.h.b16 %v361
  %v1519 = vunpack.c.l.b16 %v362
  %v1520 = vunpack.c.h.b16 %v362
  %v1521 = vunpack.c.l.b16 %v363
  %v1522 = vunpack.c.h.b16 %v363
  %v1523 = vunpack.c.l.b16 %v364
  %v1524 = vunpack.c.h.b16 %v364
  %v1525 = vunpack.c.l.b16 %v365
  %v1526 = vunpack.c.h.b16 %v365
  %v1527 = vunpack.c.l.b16 %v366
  %v1528 = vunpack.c.h.b16 %v366
  %v1529 = vunpack.c.l.b16 %v367
  %v1530 = vunpack.c.h.b16 %v367
  %v1531 = vunpack.c.l.b16 %v368
  %v1532 = vunpack.c.h.b16 %v368
  %v1533 = vunpack.c.l.b16 %v369
  %v1534 = vunpack.c.h.b16 %v369
  %v1535 = vunpack.c.l.b16 %v370
  %v1536 = vunpack.c.h.b16 %v370
  %v1537 = vunpack.c.l.b16 %v371
  %v1538 = vunpack.c.h.b16 %v371
  %v1539 = vunpack.c.l.b16 %v372
  %v1540 = vunpack.c.h.b16 %v372
  %v1541 = vunpack.c.l.b16 %v373
  %v1542 = vunpack.c.h.b16 %v373
  %v1543 = vunpack.c.l.b16 %v374
  %v1544 = vunpack.c.h.b16 %v374
  %v1545 = vunpack.c.l.b16 %v375
  %v1546 = vunpack.c.h.b16 %v375
  %v1547 = vunpack.c.l.b16 %v376
  %v1548 = vunpack.c.h.b16 %v376
  %v1549 = vunpack.c.l.b16 %v377
  %v1550 = vunpack.c.h.b16 %v377
  %v1551 = vunpack.c.l.b16 %v378
  %v1552 = vunpack.c.h.b16 %v378
  %v1553 = vunpack.c.l.b16 %v379
  %v1554 = vunpack.c.h.b16 %v379
  %v1555 = vunpack.c.l.b16 %v380
  %v1556 = vunpack.c.h.b16 %v380
  %v1557 = vunpack.c.l.b16 %v381
  %v1558 = vunpack.c.h.b16 %v381
  %v1559 = vunpack.c.l.b16 %v382
  %v1560 = vunpack.c.h.b16 %v382
  %v1561 = vunpack.c.l.b16 %v383
  %v1562 = vunpack.c.h.b16 %v383
  %v1563 = vunpack.c.l.b16 %v384
  %v1564 = vunpack.c.h.b16 %v384
  %v1565 = vunpack.c.l.b16 %v385
  %v1566 = vunpack.c.h.b16 %v385
  %v1567 = vunpack.c.l.b16 %v386
  %v1568 = vunpack.c.h.b16 %v386
  %v1569 = vunpack.c.l.b16 %v387
  %v1570 = vunpack.c.h.b16 %v387
  %v1571 = vunpack.c.l.b16 %v388
  %v1572 = vunpack.c.h.b16 %v388
  %v1573 = vunpack.c.l.b16 %v389
  %v1574 = vunpack.c.h.b16 %v389
  %v1575 = vunpack.c.l.b16 %v390
  %v1576 = vunpack.c.h.b16 %v390
  %v1577 = vunpack.c.l.b16 %v391
  %v1578 = vunpack.c.h.b16 %v391
  %v1579 = vunpack.c.l.b16 %v392
  %v1580 = vunpack.c.h.b16 %v392
  %v1581 = vunpack.c.l.b16 %v393
  %v1582 = vunpack.c.h.b16 %v393
  %v1583 = vunpack.c.l.b16 %v394
  %v1584 = vunpack.c.h.b16 %v394
  %v1585 = vunpack.c.l.b16 %v395
  %v1586 = vunpack.c.h.b16 %v395
  %v1587 = vunpack.c.l.b16 %v396
  %v1588 = vunpack.c.h.b16 %v396
  %v1589 = vunpack.c.l.b16 %v397
  %v1590 = vunpack.c.h.b16 %v397
  %v1591 = vunpack.c.l.b16 %v398
  %v1592 = vunpack.c.h.b16 %v398
  %v1593 = vunpack.c.l.b16 %v399
  %v1594 = vunpack.c.h.b16 %v399
  %v1595 = vunpack.c.l.b16 %v400
  %v1596 = vunpack.c.h.b16 %v400
  %v1597 = vunpack.c.l.b16 %v401
  %v1598 = vunpack.c.h.b16 %v401
  %v1599 = vunpack.c.l.b16 %v402
  %v1600 = vunpack.c.h.b16 %v402
  %v1601 = vunpack.c.l.b16 %v403
  %v1602 = vunpack.c.h.b16 %v403
  %v1603 = vunpack.c.l.b16 %v404
  %v1604 = vunpack.c.h.b16 %v404
  %v1605 = vunpack.c.l.b16 %v405
  %v1606 = vunpack.c.h.b16 %v405
  %v1607 = vunpack.c.l.b16 %v406
  %v1608 = vunpack.c.h.b16 %v406
  %v1609 = vunpack.c.l.b16 %v407
  %v1610 = vunpack.c.h.b16 %v407
  %v1611 = vunpack.c.l.b16 %v408
  %v1612 = vunpack.c.h.b16 %v408
  %v1613 = vunpack.c.l.b16 %v409
  %v1614 = vunpack.c.h.b16 %v409
  %v1615 = vunpack.c.l.b16 %v410
  %v1616 = vunpack.c.h.b16 %v410
  %v1617 = vunpack.c.l.b16 %v411
  %v1618 = vunpack.c.h.b16 %v411
  %v1619 = vunpack.c.l.b16 %v412
  %v1620 = vunpack.c.h.b16 %v412
  %v1621 = vunpack.c.l.b16 %v413
  %v1622 = vunpack.c.h.b16 %v413
  %v1623 = vunpack.c.l.b16 %v414
  %v1624 = vunpack.c.h.b16 %v414
  %v1625 = vunpack.c.l.b16 %v415
  %v1626 = vunpack.c.h.b16 %v415
  %v1627 = vunpack.c.l.b16 %v416
  %v1628 = vunpack.c.h.b16 %v416
  %v1629 = vunpack.c.l.b16 %v417
  %v1630 = vunpack.c.h.b16 %v417
  %v1631 = vunpack.c.l.b16 %v418
  %v1632 = vunpack.c.h.b16 %v418
  %v1633 = vunpack.c.l.b16 %v419
  %v1634 = vunpack.c.h.b16 %v419
  %v1635 = vunpack.c.l.b16 %v420
  %v1636 = vunpack.c.h.b16 %v420
  %v1637 = vunpack.c.l.b16 %v421
  %v1638 = vunpack.c.h.b16 %v421
  %v1639 = vunpack.c.l.b16 %v422
  %v1640 = vunpack.c.h.b16 %v422
  %v1641 = vunpack.c.l.b16 %v423
  %v1642 = vunpack.c.h.b16 %v423
  %v1643 = vunpack.c.l.b16 %v424
  %v1644 = vunpack.c.h.b16 %v424
  %v1645 = vunpack.c.l.b16 %v425
  %v1646 = vunpack.c.h.b16 %v425
  %v1647 = vunpack.c.l.b16 %v426
  %v1648 = vunpack.c.h.b16 %v426
  %v1649 = vunpack.c.l.b16 %v427
  %v1650 = vunpack.c.h.b16 %v427
  %v1651 = vunpack.c.l.b16 %v428
  %v1652 = vunpack.c.h.b16 %v428
  %v1653 = vunpack.c.l.b16 %v429
  %v1654 = vunpack.c.h.b16 %v429
  %v1655 = vunpack.c.l.b16 %v430
  %v1656 = vunpack.c.h.b16 %v430
  %v1657 = vunpack.c.l.b16 %v431
  %v1658 = vunpack.c.h.b16 %v431
  %v1659 = vunpack.c.l.b16 %v432
  %v1660 = vunpack.c.h.b16 %v432
  %v1661 = vunpack.c.l.b16 %v433
  %v1662 = vunpack.c.h.b16 %v433
  %v1663 = vunpack.c.l.b16 %v434
  %v1664 = vunpack.c.h.b16 %v434
  %v1665 = vunpack.c.l.b16 %v435
  %v1666 = vunpack.c.h.b16 %v435
  %v1667 = vunpack.c.l.b16 %v436
  %v1668 = vunpack.c.h.b16 %v436
  %v1669 = vunpack.c.l.b16 %v437
  %v1670 = vunpack.c.h.b16 %v437
  %v1671 = vunpack.c.l.b16 %v438
  %v1672 = vunpack.c.h.b16 %v438
  %v1673 = vunpack.c.l.b16 %v439
  %v1674 = vunpack.c.h.b16 %v439
  %v1675 = vunpack.c.l.b16 %v440
  %v1676 = vunpack.c.h.b16 %v440
  %v1677 = vunpack.c.l.b16 %v441
  %v1678 = vunpack.c.h.b16 %v441
  %v1679 = vunpack.c.l.b16 %v442
  %v1680 = vunpack.c.h.b16 %v442
  %v1681 = vunpack.c.l.b16 %v443
  %v1682 = vunpack.c.h.b16 %v443
  %v1683 = vunpack.c.l.b16 %v444
  %v1684 = vunpack.c.h.b16 %v444
  %v1685 = vunpack.c.l.b16 %v445
  %v1686 = vunpack.c.h.b16 %v445
  %v1687 = vunpack.c.l.b16 %v446
  %v1688 = vunpack.c.h.b16 %v446
  %v1689 = vunpack.c.l.b16 %v447
  %v1690 = vunpack.c.h.b16 %v447
  %v1691 = vunpack.c.l.b16 %v448
  %v1692 = vunpack.c.h.b16 %v448
  %v1693 = vunpack.c.l.b16 %v449
  %v1694 = vunpack.c.h.b16 %v449
  %v1695 = vunpack.c.l.b16 %v450
  %v1696 = vunpack.c.h.b16 %v450
  %v1697 = vunpack.c.l.b16 %v451
  %v1698 = vunpack.c.h.b16 %v451
  %v1699 = vunpack.c.l.b16 %v452
  %v1700 = vunpack.c.h.b16 %v452
  %v1701 = vunpack.c.l.b16 %v453
  %v1702 = vunpack.c.h.b16 %v453
  %v1703 = vunpack.c.l.b16 %v454
  %v1704 = vunpack.c.h.b16 %v454
  %v1705 = vunpack.c.l.b16 %v455
  %v1706 = vunpack.c.h.b16 %v455
  %v1707 = vunpack.c.l.b16 %v456
  %v1708 = vunpack.c.h.b16 %v456
  %v1709 = vunpack.c.l.b16 %v457
  %v1710 = vunpack.c.h.b16 %v457
  %v1711 = vunpack.c.l.b16 %v458
  %v1712 = vunpack.c.h.b16 %v458
  %v1713 = vunpack.c.l.b16 %v459
  %v1714 = vunpack.c.h.b16 %v459
  %v1715 = vunpack.c.l.b16 %v460
  %v1716 = vunpack.c.h.b16 %v460
  %v1717 = vunpack.c.l.b16 %v461
  %v1718 = vunpack.c.h.b16 %v461
  %v1719 = vunpack.c.l.b16 %v462
  %v1720 = vunpack.c.h.b16 %v462
  %v1721 = vunpack.c.l.b16 %v463
  %v1722 = vunpack.c.h.b16 %v463
  %v1723 = vunpack.c.l.b16 %v464
  %v1724 = vunpack.c.h.b16 %v464
  %v1725 = vunpack.c.l.b16 %v465
  %v1726 = vunpack.c.h.b16 %v465
  %v1727 = vunpack.c.l.b16 %v466
  %v1728 = vunpack.c.h.b16 %v466
  %v1729 = vunpack.c.l.b16 %v467
  %v1730 = vunpack.c.h.b16 %v467
  %v1731 = vunpack.c.l.b16 %v468
  %v1732 = vunpack.c.h.b16 %v468
  %v1733 = vunpack.c.l.b16 %v469
  %v1734 = vunpack.c.h.b16 %v469
  %v1735 = vunpack.c.l.b16 %v470
  %v1736 = vunpack.c.h.b16 %v470
  %v1737 = vunpack.c.l.b16 %v471
  %v1738 = vunpack.c.h.b16 %v471
  %v1739 = vunpack.c.l.b16 %v472
  %v1740 = vunpack.c.h.b16 %v472
  %v1741 = vunpack.c.l.b16 %v473
  %v1742 = vunpack.c.h.b16 %v473
  %v1743 = vunpack.c.l.b16 %v474
  %v1744 = vunpack.c.h.b16 %v474
  %v1745 = vunpack.c.l.b16 %v475
  %v1746 = vunpack.c.h.b16 %v475
  %v1747 = vunpack.c.l.b16 %v476
  %v1748 = vunpack.c.h.b16 %v476
  %v1749 = vunpack.c.l.b16 %v477
  %v1750 = vunpack.c.h.b16 %v477
  %v1751 = vunpack.c.l.b16 %v478
  %v1752 = vunpack.c.h.b16 %v478
  %v1753 = vunpack.c.l.b16 %v479
  %v1754 = vunpack.c.h.b16 %v479
  %v1755 = vunpack.c.l.b16 %v480
  %v1756 = vunpack.c.h.b16 %v480
  %v1757 = vunpack.c.l.b16 %v481
  %v1758 = vunpack.c.h.b16 %v481
  %v1759 = vunpack.c.l.b16 %v482
  %v1760 = vunpack.c.h.b16 %v482
  %v1761 = vunpack.c.l.b16 %v483
  %v1762 = vunpack.c.h.b16 %v483
  %v1763 = vunpack.c.l.b16 %v484
  %v1764 = vunpack.c.h.b16 %v484
  %v1765 = vunpack.c.l.b16 %v485
  %v1766 = vunpack.c.h.b16 %v485
  %v1767 = vunpack.c.l.b16 %v486
  %v1768 = vunpack.c.h.b16 %v486
  %v1769 = vunpack.c.l.b16 %v487
  %v1770 = vunpack.c.h.b16 %v487
  %v1771 = vunpack.c.l.b16 %v488
  %v1772 = vunpack.c.h.b16 %v488
  %v1773 = vunpack.c.l.b16 %v489
  %v1774 = vunpack.c.h.b16 %v489
  %v1775 = vunpack.c.l.b16 %v490
  %v1776 = vunpack.c.h.b16 %v490
  %v1777 = vunpack.c.l.b16 %v491
  %v1778 = vunpack.c.h.b16 %v491
  %v1779 = vunpack.c.l.b16 %v492
  %v1780 = vunpack.c.h.b16 %v492
  %v1781 = vunpack.c.l.b16 %v493
  %v1782 = vunpack.c.h.b16 %v493
  %v1783 = vunpack.c.l.b16 %v494
  %v1784 = vunpack.c.h.b16 %v494
  %v1785 = vunpack.c.l.b16 %v495
  %v1786 = vunpack.c.h.b16 %v495
  %v1787 = vunpack.c.l.b16 %v496
  %v1788 = vunpack.c.h.b16 %v496
  %v1789 = vunpack.c.l.b16 %v497
  %v1790 = vunpack.c.h.b16 %v497
  %v1791 = vunpack.c.l.b16 %v498
  %v1792 = vunpack.c.h.b16 %v498
  %v1793 = vunpack.c.l.b16 %v499
  %v1794 = vunpack.c.h.b16 %v499
  %v1795 = vunpack.c.l.b16 %v500
  %v1796 = vunpack.c.h.b16 %v500
  %v1797 = vunpack.c.l.b16 %v501
  %v1798 = vunpack.c.h.b16 %v501
  %v1799 = vunpack.c.l.b16 %v502
  %v1800 = vunpack.c.h.b16 %v502
  %v1801 = vunpack.c.l.b16 %v503
  %v1802 = vunpack.c.h.b16 %v503
  %v1803 = vunpack.c.l.b16 %v504
  %v1804 = vunpack.c.h.b16 %v504
  %v1805 = vunpack.c.l.b16 %v505
  %v1806 = vunpack.c.h.b16 %v505
  %v1807 = vunpack.c.l.b16 %v506
  %v1808 = vunpack.c.h.b16 %v506
  %v1809 = vunpack.c.l.b16 %v507
  %v1810 = vunpack.c.h.b16 %v507
  %v1811 = vunpack.c.l.b16 %v508
  %v1812 = vunpack.c.h.b16 %v508
  %v1813 = vunpack.c.l.b16 %v509
  %v1814 = vunpack.c.h.b16 %v509
  %v1815 = vunpack.c.l.b16 %v510
  %v1816 = vunpack.c.h.b16 %v510
  %v1817 = vunpack.c.l.b16 %v511
  %v1818 = vunpack.c.h.b16 %v511
  %v1819 = vunpack.c.l.b16 %v512
  %v1820 = vunpack.c.h.b16 %v512
  %v1821 = vunpack.c.l.b16 %v513
  %v1822 = vunpack.c.h.b16 %v513
  %v1823 = vunpack.c.l.b16 %v514
  %v1824 = vunpack.c.h.b16 %v514
  %v1825 = vunpack.c.l.b16 %v515
  %v1826 = vunpack.c.h.b16 %v515
  %v1827 = vunpack.c.l.b16 %v516
  %v1828 = vunpack.c.h.b16 %v516
  %v1829 = vunpack.c.l.b16 %v517
  %v1830 = vunpack.c.h.b16 %v517
  %v1831 = vunpack.c.l.b16 %v518
  %v1832 = vunpack.c.h.b16 %v518
  %v1833 = vunpack.c.l.b16 %v519
  %v1834 = vunpack.c.h.b16 %v519
  %v1835 = vunpack.c.l.b16 %v520
  %v1836 = vunpack.c.h.b16 %v520
  %v1837 = vunpack.c.l.b16 %v521
  %v1838 = vunpack.c.h.b16 %v521
  %v1839 = vunpack.c.l.b16 %v522
  %v1840 = vunpack.c.h.b16 %v522
  %v1841 = vunpack.c.l.b16 %v523
  %v1842 = vunpack.c.h.b16 %v523
  %v1843 = vunpack.c.l.b16 %v524
  %v1844 = vunpack.c.h.b16 %v524
  %v1845 = vunpack.c.l.b16 %v525
  %v1846 = vunpack.c.h.b16 %v525
  %v1847 = vunpack.c.l.b16 %v526
  %v1848 = vunpack.c.h.b16 %v526
  %v1849 = vunpack.c.l.b16 %v527
  %v1850 = vunpack.c.h.b16 %v527
  %v1851 = vunpack.c.l.b16 %v528
  %v1852 = vunpack.c.h.b16 %v528
  %v1853 = vunpack.c.l.b16 %v529
  %v1854 = vunpack.c.h.b16 %v529
  %v1855 = vunpack.c.l.b16 %v530
  %v1856 = vunpack.c.h.b16 %v530
  %v1857 = vunpack.c.l.b16 %v531
  %v1858 = vunpack.c.h.b16 %v531
  %v1859 = vunpack.c.l.b16 %v532
  %v1860 = vunpack.c.h.b16 %v532
  %v1861 = vunpack.c.l.b16 %v533
  %v1862 = vunpack.c.h.b16 %v533
  %v1863 = vunpack.c.l.b16 %v534
  %v1864 = vunpack.c.h.b16 %v534
  %v1865 = vunpack.c.l.b16 %v535
  %v1866 = vunpack.c.h.b16 %v535
  %v1867 = vunpack.c.l.b16 %v536
  %v1868 = vunpack.c.h.b16 %v536
  %v1869 = vunpack.c.l.b16 %v537
  %v1870 = vunpack.c.h.b16 %v537
  %v1871 = vunpack.c.l.b16 %v538
  %v1872 = vunpack.c.h.b16 %v538
  %v1873 = vunpack.c.l.b16 %v539
  %v1874 = vunpack.c.h.b16 %v539
  %v1875 = vunpack.c.l.b16 %v540
  %v1876 = vunpack.c.h.b16 %v540
  %v1877 = vunpack.c.l.b16 %v541
  %v1878 = vunpack.c.h.b16 %v541
  %v1879 = vunpack.c.l.b16 %v542
  %v1880 = vunpack.c.h.b16 %v542
  %v1881 = vunpack.c.l.b16 %v543
  %v1882 = vunpack.c.h.b16 %v543
  %v1883 = vunpack.c.l.b16 %v544
  %v1884 = vunpack.c.h.b16 %v544
  %v1885 = vunpack.c.l.b16 %v545
  %v1886 = vunpack.c.h.b16 %v545
  %v1887 = vunpack.c.l.b16 %v546
  %v1888 = vunpack.c.h.b16 %v546
  %v1889 = vunpack.c.l.b16 %v547
  %v1890 = vunpack.c.h.b16 %v547
  %v1891 = vunpack.c.l.b16 %v548
  %v1892 = vunpack.c.h.b16 %v548
  %v1893 = vunpack.c.l.b16 %v549
  %v1894 = vunpack.c.h.b16 %v549
  %v1895 = vunpack.c.l.b16 %v550
  %v1896 = vunpack.c.h.b16 %v550
  %v1897 = vunpack.c.l.b16 %v551
  %v1898 = vunpack.c.h.b16 %v551
  %v1899 = vunpack.c.l.b16 %v552
  %v1900 = vunpack.c.h.b16 %v552
  %v1901 = vunpack.c.l.b16 %v553
  %v1902 = vunpack.c.h.b16 %v553
  %v1903 = vunpack.c.l.b16 %v554
  %v1904 = vunpack.c.h.b16 %v554
  %v1905 = vunpack.c.l.b16 %v555
  %v1906 = vunpack.c.h.b16 %v555
  %v1907 = vunpack.c.l.b16 %v556
  %v1908 = vunpack.c.h.b16 %v556
  %v1909 = vunpack.c.l.b16 %v557
  %v1910 = vunpack.c.h.b16 %v557
  %v1911 = vunpack.c.l.b16 %v558
  %v1912 = vunpack.c.h.b16 %v558
  %v1913 = vunpack.c.l.b16 %v559
  %v1914 = vunpack.c.h.b16 %v559
  %v1915 = vunpack.c.l.b16 %v560
  %v1916 = vunpack.c.h.b16 %v560
  %v1917 = vunpack.c.l.b16 %v561
  %v1918 = vunpack.c.h.b16 %v561
  %v1919 = vunpack.c.l.b16 %v562
  %v1920 = vunpack.c.h.b16 %v562
  %v1921 = vunpack.c.l.b16 %v563
  %v1922 = vunpack.c.h.b16 %v563
  %v1923 = vunpack.c.l.b16 %v564
  %v1924 = vunpack.c.h.b16 %v564
  %v1925 = vunpack.c.l.b16 %v565
  %v1926 = vunpack.c.h.b16 %v565
  %v1927 = vunpack.c.l.b16 %v566
  %v1928 = vunpack.c.h.b16 %v566
  %v1929 = vunpack.c.l.b16 %v567
  %v1930 = vunpack.c.h.b16 %v567
  %v1931 = vunpack.c.l.b16 %v568
  %v1932 = vunpack.c.h.b16 %v568
  %v1933 = vunpack.c.l.b16 %v569
  %v1934 = vunpack.c.h.b16 %v569
  %v1935 = vunpack.c.l.b16 %v570
  %v1936 = vunpack.c.h.b16 %v570
  %v1937 = vunpack.c.l.b16 %v571
  %v1938 = vunpack.c.h.b16 %v571
  %v1939 = vunpack.c.l.b16 %v572
  %v1940 = vunpack.c.h.b16 %v572
  %v1941 = vunpack.c.l.b16 %v573
  %v1942 = vunpack.c.h.b16 %v573
  %v1943 = vunpack.c.l.b16 %v574
  %v1944 = vunpack.c.h.b16 %v574
  %v1945 = vunpack.c.l.b16 %v575
  %v1946 = vunpack.c.h.b16 %v575
  %v1947 = vunpack.c.l.b16 %v576
  %v1948 = vunpack.c.h.b16 %v576
  %v1949 = vunpack.c.l.b16 %v577
  %v1950 = vunpack.c.h.b16 %v577
  %v1951 = vunpack.c.l.b16 %v578
  %v1952 = vunpack.c.h.b16 %v578
  %v1953 = vunpack.c.l.b16 %v579
  %v1954 = vunpack.c.h.b16 %v579
  %v1955 = vunpack.c.l.b16 %v580
  %v1956 = vunpack.c.h.b16 %v580
  %v1957 = vunpack.c.l.b16 %v581
  %v1958 = vunpack.c.h.b16 %v581
  %v1959 = vunpack.c.l.b16 %v582
  %v1960 = vunpack.c.h.b16 %v582
  %v1961 = vunpack.c.l.b16 %v583
  %v1962 = vunpack.c.h.b16 %v583
  %v1963 = vunpack.c.l.b16 %v584
  %v1964 = vunpack.c.h.b16 %v584
  %v1965 = vunpack.c.l.b16 %v585
  %v1966 = vunpack.c.h.b16 %v585
  %v1967 = vunpack.c.l.b16 %v586
  %v1968 = vunpack.c.h.b16 %v586
  %v1969 = vunpack.c.l.b16 %v587
  %v1970 = vunpack.c.h.b16 %v587
  %v1971 = vunpack.c.l.b16 %v588
  %v1972 = vunpack.c.h.b16 %v588
  %v1973 = vunpack.c.l.b16 %v589
  %v1974 = vunpack.c.h.b16 %v589
  %v1975 = vunpack.c.l.b16 %v590
  %v1976 = vunpack.c.h.b16 %v590
  %v1977 = vunpack.c.l.b16 %v591
  %v1978 = vunpack.c.h.b16 %v591
  %v1979 = vunpack.c.l.b16 %v592
  %v1980 = vunpack.c.h.b16 %v592
  %v1981 = vunpack.c.l.b16 %v593
  %v1982 = vunpack.c.h.b16 %v593
  %v1983 = vunpack.c.l.b16 %v594
  %v1984 = vunpack.c.h.b16 %v594
  %v1985 = vunpack.c.l.b16 %v595
  %v1986 = vunpack.c.h.b16 %v595
  %v1987 = vunpack.c.l.b16 %v596
  %v1988 = vunpack.c.h.b16 %v596
  %v1989 = vunpack.c.l.b16 %v597
  %v1990 = vunpack.c.h.b16 %v597
  %v1991 = vunpack.c.l.b16 %v598
  %v1992 = vunpack.c.h.b16 %v598
  %v1993 = vunpack.c.l.b16 %v599
  %v1994 = vunpack.c.h.b16 %v599
  %v1995 = vunpack.c.l.b16 %v600
  %v1996 = vunpack.c.h.b16 %v600
  %v1997 = vunpack.c.l.b16 %v601
  %v1998 = vunpack.c.h.b16 %v601
  %v1999 = vunpack.c.l.b16 %v602
  %v2000 = vunpack.c.h.b16 %v602
  %v2001 = vunpack.c.l.b16 %v603
  %v2002 = vunpack.c.h.b16 %v603
  %v2003 = vunpack.c.l.b16 %v604
  %v2004 = vunpack.c.h.b16 %v604
  %v2005 = vunpack.c.l.b16 %v605
  %v2006 = vunpack.c.h.b16 %v605
  %v2007 = vunpack.c.l.b16 %v606
  %v2008 = vunpack.c.h.b16 %v606
  %v2009 = vunpack.c.l.b16 %v607
  %v2010 = vunpack.c.h.b16 %v607
  %v2011 = vunpack.c.l.b16 %v608
  %v2012 = vunpack.c.h.b16 %v608
  %v2013 = vunpack.c.l.b16 %v609
  %v2014 = vunpack.c.h.b16 %v609
  %v2015 = vunpack.c.l.b16 %v610
  %v2016 = vunpack.c.h.b16 %v610
  %v2017 = vunpack.c.l.b16 %v611
  %v2018 = vunpack.c.h.b16 %v611
  %v2019 = vunpack.c.l.b16 %v612
  %v2020 = vunpack.c.h.b16 %v612
  %v2021 = vunpack.c.l.b16 %v613
  %v2022 = vunpack.c.h.b16 %v613
  %v2023 = vunpack.c.l.b16 %v614
  %v2024 = vunpack.c.h.b16 %v614
  %v2025 = vunpack.c.l.b16 %v615
  %v2026 = vunpack.c.h.b16 %v615
  %v2027 = vunpack.c.l.b16 %v616
  %v2028 = vunpack.c.h.b16 %v616
  %v2029 = vunpack.c.l.b16 %v617
  %v2030 = vunpack.c.h.b16 %v617
  %v2031 = vunpack.c.l.b16 %v618
  %v2032 = vunpack.c.h.b16 %v618
  %v2033 = vunpack.c.l.b16 %v619
  %v2034 = vunpack.c.h.b16 %v619
  %v2035 = vunpack.c.l.b16 %v620
  %v2036 = vunpack.c.h.b16 %v620
  %v2037 = vunpack.c.l.b16 %v621
  %v2038 = vunpack.c.h.b16 %v621
  %v2039 = vunpack.c.l.b16 %v622
  %v2040 = vunpack.c.h.b16 %v622
  %v2041 = vunpack.c.l.b16 %v623
  %v2042 = vunpack.c.h.b16 %v623
  %v2043 = vunpack.c.l.b16 %v624
  %v2044 = vunpack.c.h.b16 %v624
  %v2045 = vunpack.c.l.b16 %v625
  %v2046 = vunpack.c.h.b16 %v625
  %v2047 = vunpack.c.l.b16 %v626
  %v2048 = vunpack.c.h.b16 %v626
  %v2049 = vunpack.c.l.b16 %v627
  %v2050 = vunpack.c.h.b16 %v627
  %v2051 = vunpack.c.l.b16 %v628
  %v2052 = vunpack.c.h.b16 %v628
  %v2053 = vunpack.c.l.b16 %v629
  %v2054 = vunpack.c.h.b16 %v629
  %v2055 = vunpack.c.l.b16 %v630
  %v2056 = vunpack.c.h.b16 %v630
  %v2057 = vunpack.c.l.b16 %v631
  %v2058 = vunpack.c.h.b16 %v631
  %v2059 = vunpack.c.l.b16 %v632
  %v2060 = vunpack.c.h.b16 %v632
  %v2061 = vunpack.c.l.b16 %v633
  %v2062 = vunpack.c.h.b16 %v633
  %v2063 = vunpack.c.l.b16 %v634
  %v2064 = vunpack.c.h.b16 %v634
  %v2065 = vunpack.c.l.b16 %v635
  %v2066 = vunpack.c.h.b16 %v635
  %v2067 = vunpack.c.l.b16 %v636
  %v2068 = vunpack.c.h.b16 %v636
  %v2069 = vunpack.c.l.b16 %v637
  %v2070 = vunpack.c.h.b16 %v637
  %v2071 = vunpack.c.l.b16 %v638
  %v2072 = vunpack.c.h.b16 %v638
  %v2073 = vunpack.c.l.b16 %v639
  %v2074 = vunpack.c.h.b16 %v639
  %v2075 = vunpack.c.l.b16 %v640
  %v2076 = vunpack.c.h.b16 %v640
  %v2077 = vunpack.c.l.b16 %v641
  %v2078 = vunpack.c.h.b16 %v641
  %v2079 = vunpack.c.l.b16 %v642
  %v2080 = vunpack.c.h.b16 %v642
  %v2081 = vunpack.c.l.b16 %v643
  %v2082 = vunpack.c.h.b16 %v643
  %v2083 = vunpack.c.l.b16 %v644
  %v2084 = vunpack.c.h.b16 %v644
  %v2085 = vunpack.c.l.b16 %v645
  %v2086 = vunpack.c.h.b16 %v645
  %v2087 = vunpack.c.l.b16 %v646
  %v2088 = vunpack.c.h.b16 %v646
  %v2089 = vunpack.c.l.b16 %v647
  %v2090 = vunpack.c.h.b16 %v647
  %v2091 = vunpack.c.l.b16 %v648
  %v2092 = vunpack.c.h.b16 %v648
  %v2093 = vunpack.c.l.b16 %v649
  %v2094 = vunpack.c.h.b16 %v649
  %v2095 = vunpack.c.l.b16 %v650
  %v2096 = vunpack.c.h.b16 %v650
  %v2097 = vunpack.c.l.b16 %v651
  %v2098 = vunpack.c.h.b16 %v651
  %v2099 = vunpack.c.l.b16 %v652
  %v2100 = vunpack.c.h.b16 %v652
  %v2101 = vunpack.c.l.b16 %v653
  %v2102 = vunpack.c.h.b16 %v653
  %v2103 = vunpack.c.l.b16 %v654
  %v2104 = vunpack.c.h.b16 %v654
  %v2105 = vunpack.c.l.b16 %v655
  %v2106 = vunpack.c.h.b16 %v655
  %v2107 = vunpack.c.l.b16 %v656
  %v2108 = vunpack.c.h.b16 %v656
  %v2109 = vunpack.c.l.b16 %v657
  %v2110 = vunpack.c.h.b16 %v657
  %v2111 = vunpack.c.l.b16 %v658
  %v2112 = vunpack.c.h.b16 %v658
  %v2113 = vunpack.c.l.b16 %v659
  %v2114 = vunpack.c.h.b16 %v659
  %v2115 = vunpack.c.l.b16 %v660
  %v2116 = vunpack.c.h.b16 %v660
  %v2117 = vunpack.c.l.b16 %v661
  %v2118 = vunpack.c.h.b16 %v661
  %v2119 = vunpack.c.l.b16 %v662
  %v2120 = vunpack.c.h.b16 %v662
  %v2121 = vunpack.c.l.b16 %v663
  %v2122 = vunpack.c.h.b16 %v663
  %v2123 = vunpack.c.l.b16 %v664
  %v2124 = vunpack.c.h.b16 %v664
  %v2125 = vunpack.c.l.b16 %v665
  %v2126 = vunpack.c.h.b16 %v665
  %v2127 = vunpack.c.l.b16 %v666
  %v2128 = vunpack.c.h.b16 %v666
  %v2129 = vunpack.c.l.b16 %v667
  %v2130 = vunpack.c.h.b16 %v667
  %v2131 = vunpack.c.l.b16 %v668
  %v2132 = vunpack.c.h.b16 %v668
  %v2133 = vunpack.c.l.b16 %v669
  %v2134 = vunpack.c.h.b16 %v669
  %v2135 = vunpack.c.l.b16 %v670
  %v2136 = vunpack.c.h.b16 %v670
  %v2137 = vunpack.c.l.b16 %v671
  %v2138 = vunpack.c.h.b16 %v671
  %v2139 = vunpack.c.l.b16 %v672
  %v2140 = vunpack.c.h.b16 %v672
  %v2141 = vunpack.c.l.b16 %v673
  %v2142 = vunpack.c.h.b16 %v673
  %v2143 = vunpack.c.l.b16 %v674
  %v2144 = vunpack.c.h.b16 %v674
  %v2145 = vunpack.c.l.b16 %v675
  %v2146 = vunpack.c.h.b16 %v675
  %v2147 = vunpack.c.l.b16 %v676
  %v2148 = vunpack.c.h.b16 %v676
  %v2149 = vunpack.c.l.b16 %v677
  %v2150 = vunpack.c.h.b16 %v677
  %v2151 = vunpack.c.l.b16 %v678
  %v2152 = vunpack.c.h.b16 %v678
  %v2153 = vunpack.c.l.b16 %v679
  %v2154 = vunpack.c.h.b16 %v679
  %v2155 = vunpack.c.l.b16 %v680
  %v2156 = vunpack.c.h.b16 %v680
  %v2157 = vunpack.c.l.b16 %v681
  %v2158 = vunpack.c.h.b16 %v681
  %v2159 = vunpack.c.l.b16 %v682
  %v2160 = vunpack.c.h.b16 %v682
  %v2161 = vunpack.c.l.b16 %v683
  %v2162 = vunpack.c.h.b16 %v683
  %v2163 = vunpack.c.l.b16 %v684
  %v2164 = vunpack.c.h.b16 %v684
  %v2165 = vunpack.c.l.b16 %v685
  %v2166 = vunpack.c.h.b16 %v685
  %v2167 = vunpack.c.l.b16 %v686
  %v2168 = vunpack.c.h.b16 %v686
  %v2169 = vunpack.c.l.b16 %v687
  %v2170 = vunpack.c.h.b16 %v687
  %v2171 = vunpack.c.l.b16 %v688
  %v2172 = vunpack.c.h.b16 %v688
  %v2173 = vunpack.c.l.b16 %v689
  %v2174 = vunpack.c.h.b16 %v689
  %v2175 = vunpack.c.l.b16 %v690
  %v2176 = vunpack.c.h.b16 %v690
  %v2177 = vunpack.c.l.b16 %v691
  %v2178 = vunpack.c.h.b16 %v691
  %v2179 = vunpack.c.l.b16 %v692
  %v2180 = vunpack.c.h.b16 %v692
  %v2181 = vunpack.c.l.b16 %v693
  %v2182 = vunpack.c.h.b16 %v693
  %v2183 = vunpack.c.l.b16 %v694
  %v2184 = vunpack.c.h.b16 %v694
  %v2185 = vunpack.c.l.b16 %v695
  %v2186 = vunpack.c.h.b16 %v695
  %v2187 = vunpack.c.l.b16 %v696
  %v2188 = vunpack.c.h.b16 %v696
  %v2189 = vunpack.c.l.b16 %v697
  %v2190 = vunpack.c.h.b16 %v697
  %v2191 = vunpack.c.l.b16 %v698
  %v2192 = vunpack.c.h.b16 %v698
  %v2193 = vunpack.c.l.b16 %v699
  %v2194 = vunpack.c.h.b16 %v699
  %v2195 = vunpack.c.l.b16 %v700
  %v2196 = vunpack.c.h.b16 %v700
  %v2197 = vunpack.c.l.b16 %v701
  %v2198 = vunpack.c.h.b16 %v701
  %v2199 = vunpack.c.l.b16 %v702
  %v2200 = vunpack.c.h.b16 %v702
  %v2201 = vunpack.c.l.b16 %v703
  %v2202 = vunpack.c.h.b16 %v703
  %v2203 = vunpack.c.l.b16 %v704
  %v2204 = vunpack.c.h.b16 %v704
  %v2205 = vunpack.c.l.b16 %v705
  %v2206 = vunpack.c.h.b16 %v705
  %v2207 = vunpack.c.l.b16 %v706
  %v2208 = vunpack.c.h.b16 %v706
  %v2209 = vunpack.c.l.b16 %v707
  %v2210 = vunpack.c.h.b16 %v707
  %v2211 = vunpack.c.l.b16 %v708
  %v2212 = vunpack.c.h.b16 %v708
  %v2213 = vunpack.c.l.b16 %v709
  %v2214 = vunpack.c.h.b16 %v709
  %v2215 = vunpack.c.l.b16 %v710
  %v2216 = vunpack.c.h.b16 %v710
  %v2217 = vunpack.c.l.b16 %v711
  %v2218 = vunpack.c.h.b16 %v711
  %v2219 = vunpack.c.l.b16 %v712
  %v2220 = vunpack.c.h.b16 %v712
  %v2221 = vunpack.c.l.b16 %v713
  %v2222 = vunpack.c.h.b16 %v713
  %v2223 = vunpack.c.l.b16 %v714
  %v2224 = vunpack.c.h.b16 %v714
  %v2225 = vunpack.c.l.b16 %v715
  %v2226 = vunpack.c.h.b16 %v715
  %v2227 = vunpack.c.l.b16 %v716
  %v2228 = vunpack.c.h.b16 %v716
  %v2229 = vunpack.c.l.b16 %v717
  %v2230 = vunpack.c.h.b16 %v717
  %v2231 = vunpack.c.l.b16 %v718
  %v2232 = vunpack.c.h.b16 %v718
  %v2233 = vunpack.c.l.b16 %v719
  %v2234 = vunpack.c.h.b16 %v719
  %v2235 = vunpack.c.l.b16 %v720
  %v2236 = vunpack.c.h.b16 %v720
  %v2237 = vunpack.c.l.b16 %v721
  %v2238 = vunpack.c.h.b16 %v721
  %v2239 = vunpack.c.l.b16 %v722
  %v2240 = vunpack.c.h.b16 %v722
  %v2241 = vunpack.c.l.b16 %v723
  %v2242 = vunpack.c.h.b16 %v723
  %v2243 = vunpack.c.l.b16 %v724
  %v2244 = vunpack.c.h.b16 %v724
  %v2245 = vunpack.c.l.b16 %v725
  %v2246 = vunpack.c.h.b16 %v725
  %v2247 = vunpack.c.l.b16 %v726
  %v2248 = vunpack.c.h.b16 %v726
  %v2249 = vunpack.c.l.b16 %v727
  %v2250 = vunpack.c.h.b16 %v727
  %v2251 = vunpack.c.l.b16 %v728
  %v2252 = vunpack.c.h.b16 %v728
  %v2253 = vunpack.c.l.b16 %v729
  %v2254 = vunpack.c.h.b16 %v729
  %v2255 = vunpack.c.l.b16 %v730
  %v2256 = vunpack.c.h.b16 %v730
  %v2257 = vunpack.c.l.b16 %v731
  %v2258 = vunpack.c.h.b16 %v731
  %v2259 = vunpack.c.l.b16 %v732
  %v2260 = vunpack.c.h.b16 %v732
  %v2261 = vunpack.c.l.b16 %v733
  %v2262 = vunpack.c.h.b16 %v733
  %v2263 = vunpack.c.l.b16 %v734
  %v2264 = vunpack.c.h.b16 %v734
  %v2265 = vunpack.c.l.b16 %v735
  %v2266 = vunpack.c.h.b16 %v735
  %v2267 = vunpack.c.l.b16 %v736
  %v2268 = vunpack.c.h.b16 %v736
  %v2269 = vunpack.c.l.b16 %v737
  %v2270 = vunpack.c.h.b16 %v737
  %v2271 = vunpack.c.l.b16 %v738
  %v2272 = vunpack.c.h.b16 %v738
  %v2273 = vunpack.c.l.b16 %v739
  %v2274 = vunpack.c.h.b16 %v739
  %v2275 = vunpack.c.l.b16 %v740
  %v2276 = vunpack.c.h.b16 %v740
  %v2277 = vunpack.c.l.b16 %v741
  %v2278 = vunpack.c.h.b16 %v741
  %v2279 = vunpack.c.l.b16 %v742
  %v2280 = vunpack.c.h.b16 %v742
  %v2281 = vunpack.c.l.b16 %v743
  %v2282 = vunpack.c.h.b16 %v743
  %v2283 = vunpack.c.l.b16 %v744
  %v2284 = vunpack.c.h.b16 %v744
  %v2285 = vunpack.c.l.b16 %v745
  %v2286 = vunpack.c.h.b16 %v745
  %v2287 = vunpack.c.l.b16 %v746
  %v2288 = vunpack.c.h.b16 %v746
  %v2289 = vunpack.c.l.b16 %v747
  %v2290 = vunpack.c.h.b16 %v747
  %v2291 = vunpack.c.l.b16 %v748
  %v2292 = vunpack.c.h.b16 %v748
  %v2293 = vunpack.c.l.b16 %v749
  %v2294 = vunpack.c.h.b16 %v749
  %v2295 = vunpack.c.l.b16 %v750
  %v2296 = vunpack.c.h.b16 %v750
  %v2297 = vunpack.c.l.b16 %v751
  %v2298 = vunpack.c.h.b16 %v751
  %v2299 = vunpack.c.l.b16 %v752
  %v2300 = vunpack.c.h.b16 %v752
  %v2301 = vunpack.c.l.b16 %v753
  %v2302 = vunpack.c.h.b16 %v753
  %v2303 = vunpack.c.l.b16 %v754
  %v2304 = vunpack.c.h.b16 %v754
  %v2305 = vunpack.c.l.b16 %v755
  %v2306 = vunpack.c.h.b16 %v755
  %v2307 = vunpack.c.l.b16 %v756
  %v2308 = vunpack.c.h.b16 %v756
  %v2309 = vunpack.c.l.b16 %v757
  %v2310 = vunpack.c.h.b16 %v757
  %v2311 = vunpack.c.l.b16 %v758
  %v2312 = vunpack.c.h.b16 %v758
  %v2313 = vpack.c.b16 %v1297, %v1289
  %v2314 = vpack.c.b16 %v1298, %v1290
  %v2315 = vpack.c.b16 %v1299, %v1291
  %v2316 = vpack.c.b16 %v1300, %v1292
  %v2317 = vpack.c.b16 %v1301, %v1293
  %v2318 = vpack.c.b16 %v1302, %v1294
  %v2319 = vpack.c.b16 %v1303, %v1295
  %v2320 = vpack.c.b16 %v1304, %v1296
  %v2321 = vpack.c.b16 %v1313, %v1305
  %v2322 = vpack.c.b16 %v1314, %v1306
  %v2323 = vpack.c.b16 %v1315, %v1307
  %v2324 = vpack.c.b16 %v1316, %v1308
  %v2325 = vpack.c.b16 %v1317, %v1309
  %v2326 = vpack.c.b16 %v1318, %v1310
  %v2327 = vpack.c.b16 %v1319, %v1311
  %v2328 = vpack.c.b16 %v1320, %v1312
  %v2329 = vpack.c.b16 %v1329, %v1321
  %v2330 = vpack.c.b16 %v1330, %v1322
  %v2331 = vpack.c.b16 %v1331, %v1323
  %v2332 = vpack.c.b16 %v1332, %v1324
  %v2333 = vpack.c.b16 %v1333, %v1325
  %v2334 = vpack.c.b16 %v1334, %v1326
  %v2335 = vpack.c.b16 %v1335, %v1327
  %v2336 = vpack.c.b16 %v1336, %v1328
  %v2337 = vpack.c.b16 %v1345, %v1337
  %v2338 = vpack.c.b16 %v1346, %v1338
  %v2339 = vpack.c.b16 %v1347, %v1339
  %v2340 = vpack.c.b16 %v1348, %v1340
  %v2341 = vpack.c.b16 %v1349, %v1341
  %v2342 = vpack.c.b16 %v1350, %v1342
  %v2343 = vpack.c.b16 %v1351, %v1343
  %v2344 = vpack.c.b16 %v1352, %v1344
  %v2345 = vpack.c.b16 %v1361, %v1353
  %v2346 = vpack.c.b16 %v1362, %v1354
  %v2347 = vpack.c.b16 %v1363, %v1355
  %v2348 = vpack.c.b16 %v1364, %v1356
  %v2349 = vpack.c.b16 %v1365, %v1357
  %v2350 = vpack.c.b16 %v1366, %v1358
  %v2351 = vpack.c.b16 %v1367, %v1359
  %v2352 = vpack.c.b16 %v1368, %v1360
  %v2353 = vpack.c.b16 %v1377, %v1369
  %v2354 = vpack.c.b16 %v1378, %v1370
  %v2355 = vpack.c.b16 %v1379, %v1371
  %v2356 = vpack.c.b16 %v1380, %v1372
  %v2357 = vpack.c.b16 %v1381, %v1373
  %v2358 = vpack.c.b16 %v1382, %v1374
  %v2359 = vpack.c.b16 %v1383, %v1375
  %v2360 = vpack.c.b16 %v1384, %v1376
  %v2361 = vpack.c.b16 %v1393, %v1385
  %v2362 = vpack.c.b16 %v1394, %v1386
  %v2363 = vpack.c.b16 %v1395, %v1387
  %v2364 = vpack.c.b16 %v1396, %v1388
  %v2365 = vpack.c.b16 %v1397, %v1389
  %v2366 = vpack.c.b16 %v1398, %v1390
  %v2367 = vpack.c.b16 %v1399, %v1391
  %v2368 = vpack.c.b16 %v1400, %v1392
  %v2369 = vpack.c.b16 %v1409, %v1401
  %v2370 = vpack.c.b16 %v1410, %v1402
  %v2371 = vpack.c.b16 %v1411, %v1403
  %v2372 = vpack.c.b16 %v1412, %v1404
  %v2373 = vpack.c.b16 %v1413, %v1405
  %v2374 = vpack.c.b16 %v1414, %v1406
  %v2375 = vpack.c.b16 %v1415, %v1407
  %v2376 = vpack.c.b16 %v1416, %v1408
  %v2377 = vpack.c.b16 %v1425, %v1417
  %v2378 = vpack.c.b16 %v1426, %v1418
  %v2379 = vpack.c.b16 %v1427, %v1419
  %v2380 = vpack.c.b16 %v1428, %v1420
  %v2381 = vpack.c.b16 %v1429, %v1421
  %v2382 = vpack.c.b16 %v1430, %v1422
  %v2383 = vpack.c.b16 %v1431, %v1423
  %v2384 = vpack.c.b16 %v1432, %v1424
  %v2385 = vpack.c.b16 %v1441, %v1433
  %v2386 = vpack.c.b16 %v1442, %v1434
  %v2387 = vpack.c.b16 %v1443, %v1435
  %v2388 = vpack.c.b16 %v1444, %v1436
  %v2389 = vpack.c.b16 %v1445, %v1437
  %v2390 = vpack.c.b16 %v1446, %v1438
  %v2391 = vpack.c.b16 %v1447, %v1439
  %v2392 = vpack.c.b16 %v1448, %v1440
  %v2393 = vpack.c.b16 %v1457, %v1449
  %v2394 = vpack.c.b16 %v1458, %v1450
  %v2395 = vpack.c.b16 %v1459, %v1451
  %v2396 = vpack.c.b16 %v1460, %v1452
  %v2397 = vpack.c.b16 %v1461, %v1453
  %v2398 = vpack.c.b16 %v1462, %v1454
  %v2399 = vpack.c.b16 %v1463, %v1455
  %v2400 = vpack.c.b16 %v1464, %v1456
  %v2401 = vpack.c.b16 %v1473, %v1465
  %v2402 = vpack.c.b16 %v1474, %v1466
  %v2403 = vpack.c.b16 %v1475, %v1467
  %v2404 = vpack.c.b16 %v1476, %v1468
  %v2405 = vpack.c.b16 %v1477, %v1469
  %v2406 = vpack.c.b16 %v1478, %v1470
  %v2407 = vpack.c.b16 %v1479, %v1471
  %v2408 = vpack.c.b16 %v1480, %v1472
  %v2409 = vpack.c.b16 %v1489, %v1481
  %v2410 = vpack.c.b16 %v1490, %v1482
  %v2411 = vpack.c.b16 %v1491, %v1483
  %v2412 = vpack.c.b16 %v1492, %v1484
  %v2413 = vpack.c.b16 %v1493, %v1485
  %v2414 = vpack.c.b16 %v1494, %v1486
  %v2415 = vpack.c.b16 %v1495, %v1487
  %v2416 = vpack.c.b16 %v1496, %v1488
  %v2417 = vpack.c.b16 %v1505, %v1497
  %v2418 = vpack.c.b16 %v1506, %v1498
  %v2419 = vpack.c.b16 %v1507, %v1499
  %v2420 = vpack.c.b16 %v1508, %v1500
  %v2421 = vpack.c.b16 %v1509, %v1501
  %v2422 = vpack.c.b16 %v1510, %v1502
  %v2423 = vpack.c.b16 %v1511, %v1503
  %v2424 = vpack.c.b16 %v1512, %v1504
  %v2425 = vpack.c.b16 %v1521, %v1513
  %v2426 = vpack.c.b16 %v1522, %v1514
  %v2427 = vpack.c.b16 %v1523, %v1515
  %v2428 = vpack.c.b16 %v1524, %v1516
  %v2429 = vpack.c.b16 %v1525, %v1517
  %v2430 = vpack.c.b16 %v1526, %v1518
  %v2431 = vpack.c.b16 %v1527, %v1519
  %v2432 = vpack.c.b16 %v1528, %v1520
  %v2433 = vpack.c.b16 %v1537, %v1529
  %v2434 = vpack.c.b16 %v1538, %v1530
  %v2435 = vpack.c.b16 %v1539, %v1531
  %v2436 = vpack.c.b16 %v1540, %v1532
  %v2437 = vpack.c.b16 %v1541, %v1533
  %v2438 = vpack.c.b16 %v1542, %v1534
  %v2439 = vpack.c.b16 %v1543, %v1535
  %v2440 = vpack.c.b16 %v1544, %v1536
  %v2441 = vpack.c.b16 %v1553, %v1545
  %v2442 = vpack.c.b16 %v1554, %v1546
  %v2443 = vpack.c.b16 %v1555, %v1547
  %v2444 = vpack.c.b16 %v1556, %v1548
  %v2445 = vpack.c.b16 %v1557, %v1549
  %v2446 = vpack.c.b16 %v1558, %v1550
  %v2447 = vpack.c.b16 %v1559, %v1551
  %v2448 = vpack.c.b16 %v1560, %v1552
  %v2449 = vpack.c.b16 %v1569, %v1561
  %v2450 = vpack.c.b16 %v1570, %v1562
  %v2451 = vpack.c.b16 %v1571, %v1563
  %v2452 = vpack.c.b16 %v1572, %v1564
  %v2453 = vpack.c.b16 %v1573, %v1565
  %v2454 = vpack.c.b16 %v1574, %v1566
  %v2455 = vpack.c.b16 %v1575, %v1567
  %v2456 = vpack.c.b16 %v1576, %v1568
  %v2457 = vpack.c.b16 %v1585, %v1577
  %v2458 = vpack.c.b16 %v1586, %v1578
  %v2459 = vpack.c.b16 %v1587, %v1579
  %v2460 = vpack.c.b16 %v1588, %v1580
  %v2461 = vpack.c.b16 %v1589, %v1581
  %v2462 = vpack.c.b16 %v1590, %v1582
  %v2463 = vpack.c.b16 %v1591, %v1583
  %v2464 = vpack.c.b16 %v1592, %v1584
  %v2465 = vpack.c.b16 %v1601, %v1593
  %v2466 = vpack.c.b16 %v1602, %v1594
  %v2467 = vpack.c.b16 %v1603, %v1595
  %v2468 = vpack.c.b16 %v1604, %v1596
  %v2469 = vpack.c.b16 %v1605, %v1597
  %v2470 = vpack.c.b16 %v1606, %v1598
  %v2471 = vpack.c.b16 %v1607, %v1599
  %v2472 = vpack.c.b16 %v1608, %v1600
  %v2473 = vpack.c.b16 %v1617, %v1609
  %v2474 = vpack.c.b16 %v1618, %v1610
  %v2475 = vpack.c.b16 %v1619, %v1611
  %v2476 = vpack.c.b16 %v1620, %v1612
  %v2477 = vpack.c.b16 %v1621, %v1613
  %v2478 = vpack.c.b16 %v1622, %v1614
  %v2479 = vpack.c.b16 %v1623, %v1615
  %v2480 = vpack.c.b16 %v1624, %v1616
  %v2481 = vpack.c.b16 %v1633, %v1625
  %v2482 = vpack.c.b16 %v1634, %v1626
  %v2483 = vpack.c.b16 %v1635, %v1627
  %v2484 = vpack.c.b16 %v1636, %v1628
  %v2485 = vpack.c.b16 %v1637, %v1629
  %v2486 = vpack.c.b16 %v1638, %v1630
  %v2487 = vpack.c.b16 %v1639, %v1631
  %v2488 = vpack.c.b16 %v1640, %v1632
  %v2489 = vpack.c.b16 %v1649, %v1641
  %v2490 = vpack.c.b16 %v1650, %v1642
  %v2491 = vpack.c.b16 %v1651, %v1643
  %v2492 = vpack.c.b16 %v1652, %v1644
  %v2493 = vpack.c.b16 %v1653, %v1645
  %v2494 = vpack.c.b16 %v1654, %v1646
  %v2495 = vpack.c.b16 %v1655, %v1647
  %v2496 = vpack.c.b16 %v1656, %v1648
  %v2497 = vpack.c.b16 %v1665, %v1657
  %v2498 = vpack.c.b16 %v1666, %v1658
  %v2499 = vpack.c.b16 %v1667, %v1659
  %v2500 = vpack.c.b16 %v1668, %v1660
  %v2501 = vpack.c.b16 %v1669, %v1661
  %v2502 = vpack.c.b16 %v1670, %v1662
  %v2503 = vpack.c.b16 %v1671, %v1663
  %v2504 = vpack.c.b16 %v1672, %v1664
  %v2505 = vpack.c.b16 %v1681, %v1673
  %v2506 = vpack.c.b16 %v1682, %v1674
  %v2507 = vpack.c.b16 %v1683, %v1675
  %v2508 = vpack.c.b16 %v1684, %v1676
  %v2509 = vpack.c.b16 %v1685, %v1677
  %v2510 = vpack.c.b16 %v1686, %v1678
  %v2511 = vpack.c.b16 %v1687, %v1679
  %v2512 = vpack.c.b16 %v1688, %v1680
  %v2513 = vpack.c.b16 %v1697, %v1689
  %v2514 = vpack.c.b16 %v1698, %v1690
  %v2515 = vpack.c.b16 %v1699, %v1691
  %v2516 = vpack.c.b16 %v1700, %v1692
  %v2517 = vpack.c.b16 %v1701, %v1693
  %v2518 = vpack.c.b16 %v1702, %v1694
  %v2519 = vpack.c.b16 %v1703, %v1695
  %v2520 = vpack.c.b16 %v1704, %v1696
  %v2521 = vpack.c.b16 %v1713, %v1705
  %v2522 = vpack.c.b16 %v1714, %v1706
  %v2523 = vpack.c.b16 %v1715, %v1707
  %v2524 = vpack.c.b16 %v1716, %v1708
  %v2525 = vpack.c.b16 %v1717, %v1709
  %v2526 = vpack.c.b16 %v1718, %v1710
  %v2527 = vpack.c.b16 %v1719, %v1711
  %v2528 = vpack.c.b16 %v1720, %v1712
  %v2529 = vpack.c.b16 %v1729, %v1721
  %v2530 = vpack.c.b16 %v1730, %v1722
  %v2531 = vpack.c.b16 %v1731, %v1723
  %v2532 = vpack.c.b16 %v1732, %v1724
  %v2533 = vpack.c.b16 %v1733, %v1725
  %v2534 = vpack.c.b16 %v1734, %v1726
  %v2535 = vpack.c.b16 %v1735, %v1727
  %v2536 = vpack.c.b16 %v1736, %v1728
  %v2537 = vpack.c.b16 %v1745, %v1737
  %v2538 = vpack.c.b16 %v1746, %v1738
  %v2539 = vpack.c.b16 %v1747, %v1739
  %v2540 = vpack.c.b16 %v1748, %v1740
  %v2541 = vpack.c.b16 %v1749, %v1741
  %v2542 = vpack.c.b16 %v1750, %v1742
  %v2543 = vpack.c.b16 %v1751, %v1743
  %v2544 = vpack.c.b16 %v1752, %v1744
  %v2545 = vpack.c.b16 %v1761, %v1753
  %v2546 = vpack.c.b16 %v1762, %v1754
  %v2547 = vpack.c.b16 %v1763, %v1755
  %v2548 = vpack.c.b16 %v1764, %v1756
  %v2549 = vpack.c.b16 %v1765, %v1757
  %v2550 = vpack.c.b16 %v1766, %v1758
  %v2551 = vpack.c.b16 %v1767, %v1759
  %v2552 = vpack.c.b16 %v1768, %v1760
  %v2553 = vpack.c.b16 %v1777, %v1769
  %v2554 = vpack.c.b16 %v1778, %v1770
  %v2555 = vpack.c.b16 %v1779, %v1771
  %v2556 = vpack.c.b16 %v1780, %v1772
  %v2557 = vpack.c.b16 %v1781, %v1773
  %v2558 = vpack.c.b16 %v1782, %v1774
  %v2559 = vpack.c.b16 %v1783, %v1775
  %v2560 = vpack.c.b16 %v1784, %v1776
  %v2561 = vpack.c.b16 %v1793, %v1785
  %v2562 = vpack.c.b16 %v1794, %v1786
  %v2563 = vpack.c.b16 %v1795, %v1787
  %v2564 = vpack.c.b16 %v1796, %v1788
  %v2565 = vpack.c.b16 %v1797, %v1789
  %v2566 = vpack.c.b16 %v1798, %v1790
  %v2567 = vpack.c.b16 %v1799, %v1791
  %v2568 = vpack.c.b16 %v1800, %v1792
  %v2569 = vpack.c.b16 %v1809, %v1801
  %v2570 = vpack.c.b16 %v1810, %v1802
  %v2571 = vpack.c.b16 %v1811, %v1803
  %v2572 = vpack.c.b16 %v1812, %v1804
  %v2573 = vpack.c.b16 %v1813, %v1805
  %v2574 = vpack.c.b16 %v1814, %v1806
  %v2575 = vpack.c.b16 %v1815, %v1807
  %v2576 = vpack.c.b16 %v1816, %v1808
  %v2577 = vpack.c.b16 %v1825, %v1817
  %v2578 = vpack.c.b16 %v1826, %v1818
  %v2579 = vpack.c.b16 %v1827, %v1819
  %v2580 = vpack.c.b16 %v1828, %v1820
  %v2581 = vpack.c.b16 %v1829, %v1821
  %v2582 = vpack.c.b16 %v1830, %v1822
  %v2583 = vpack.c.b16 %v1831, %v1823
  %v2584 = vpack.c.b16 %v1832, %v1824
  %v2585 = vpack.c.b16 %v1841, %v1833
  %v2586 = vpack.c.b16 %v1842, %v1834
  %v2587 = vpack.c.b16 %v1843, %v1835
  %v2588 = vpack.c.b16 %v1844, %v1836
  %v2589 = vpack.c.b16 %v1845, %v1837
  %v2590 = vpack.c.b16 %v1846, %v1838
  %v2591 = vpack.c.b16 %v1847, %v1839
  %v2592 = vpack.c.b16 %v1848, %v1840
  %v2593 = vpack.c.b16 %v1857, %v1849
  %v2594 = vpack.c.b16 %v1858, %v1850
  %v2595 = vpack.c.b16 %v1859, %v1851
  %v2596 = vpack.c.b16 %v1860, %v1852
  %v2597 = vpack.c.b16 %v1861, %v1853
  %v2598 = vpack.c.b16 %v1862, %v1854
  %v2599 = vpack.c.b16 %v1863, %v1855
  %v2600 = vpack.c.b16 %v1864, %v1856
  %v2601 = vpack.c.b16 %v1873, %v1865
  %v2602 = vpack.c.b16 %v1874, %v1866
  %v2603 = vpack.c.b16 %v1875, %v1867
  %v2604 = vpack.c.b16 %v1876, %v1868
  %v2605 = vpack.c.b16 %v1877, %v1869
  %v2606 = vpack.c.b16 %v1878, %v1870
  %v2607 = vpack.c.b16 %v1879, %v1871
  %v2608 = vpack.c.b16 %v1880, %v1872
  %v2609 = vpack.c.b16 %v1889, %v1881
  %v2610 = vpack.c.b16 %v1890, %v1882
  %v2611 = vpack.c.b16 %v1891, %v1883
  %v2612 = vpack.c.b16 %v1892, %v1884
  %v2613 = vpack.c.b16 %v1893, %v1885
  %v2614 = vpack.c.b16 %v1894, %v1886
  %v2615 = vpack.c.b16 %v1895, %v1887
  %v2616 = vpack.c.b16 %v1896, %v1888
  %v2617 = vpack.c.b16 %v1905, %v1897
  %v2618 = vpack.c.b16 %v1906, %v1898
  %v2619 = vpack.c.b16 %v1907, %v1899
  %v2620 = vpack.c.b16 %v1908, %v1900
  %v2621 = vpack.c.b16 %v1909, %v1901
  %v2622 = vpack.c.b16 %v1910, %v1902
  %v2623 = vpack.c.b16 %v1911, %v1903
  %v2624 = vpack.c.b16 %v1912, %v1904
  %v2625 = vpack.c.b16 %v1921, %v1913
  %v2626 = vpack.c.b16 %v1922, %v1914
  %v2627 = vpack.c.b16 %v1923, %v1915
  %v2628 = vpack.c.b16 %v1924, %v1916
  %v2629 = vpack.c.b16 %v1925, %v1917
  %v2630 = vpack.c.b16 %v1926, %v1918
  %v2631 = vpack.c.b16 %v1927, %v1919
  %v2632 = vpack.c.b16 %v1928, %v1920
  %v2633 = vpack.c.b16 %v1937, %v1929
  %v2634 = vpack.c.b16 %v1938, %v1930
  %v2635 = vpack.c.b16 %v1939, %v1931
  %v2636 = vpack.c.b16 %v1940, %v1932
  %v2637 = vpack.c.b16 %v1941, %v1933
  %v2638 = vpack.c.b16 %v1942, %v1934
  %v2639 = vpack.c.b16 %v1943, %v1935
  %v2640 = vpack.c.b16 %v1944, %v1936
  %v2641 = vpack.c.b16 %v1953, %v1945
  %v2642 = vpack.c.b16 %v1954, %v1946
  %v2643 = vpack.c.b16 %v1955, %v1947
  %v2644 = vpack.c.b16 %v1956, %v1948
  %v2645 = vpack.c.b16 %v1957, %v1949
  %v2646 = vpack.c.b16 %v1958, %v1950
  %v2647 = vpack.c.b16 %v1959, %v1951
  %v2648 = vpack.c.b16 %v1960, %v1952
  %v2649 = vpack.c.b16 %v1969, %v1961
  %v2650 = vpack.c.b16 %v1970, %v1962
  %v2651 = vpack.c.b16 %v1971, %v1963
  %v2652 = vpack.c.b16 %v1972, %v1964
  %v2653 = vpack.c.b16 %v1973, %v1965
  %v2654 = vpack.c.b16 %v1974, %v1966
  %v2655 = vpack.c.b16 %v1975, %v1967
  %v2656 = vpack.c.b16 %v1976, %v1968
  %v2657 = vpack.c.b16 %v1985, %v1977
  %v2658 = vpack.c.b16 %v1986, %v1978
  %v2659 = vpack.c.b16 %v1987, %v1979
  %v2660 = vpack.c.b16 %v1988, %v1980
  %v2661 = vpack.c.b16 %v1989, %v1981
  %v2662 = vpack.c.b16 %v1990, %v1982
  %v2663 = vpack.c.b16 %v1991, %v1983
  %v2664 = vpack.c.b16 %v1992, %v1984
  %v2665 = vpack.c.b16 %v2001, %v1993
  %v2666 = vpack.c.b16 %v2002, %v1994
  %v2667 = vpack.c.b16 %v2003, %v1995
  %v2668 = vpack.c.b16 %v2004, %v1996
  %v2669 = vpack.c.b16 %v2005, %v1997
  %v2670 = vpack.c.b16 %v2006, %v1998
  %v2671 = vpack.c.b16 %v2007, %v1999
  %v2672 = vpack.c.b16 %v2008, %v2000
  %v2673 = vpack.c.b16 %v2017, %v2009
  %v2674 = vpack.c.b16 %v2018, %v2010
  %v2675 = vpack.c.b16 %v2019, %v2011
  %v2676 = vpack.c.b16 %v2020, %v2012
  %v2677 = vpack.c.b16 %v2021, %v2013
  %v2678 = vpack.c.b16 %v2022, %v2014
  %v2679 = vpack.c.b16 %v2023, %v2015
  %v2680 = vpack.c.b16 %v2024, %v2016
  %v2681 = vpack.c.b16 %v2033, %v2025
  %v2682 = vpack.c.b16 %v2034, %v2026
  %v2683 = vpack.c.b16 %v2035, %v2027
  %v2684 = vpack.c.b16 %v2036, %v2028
  %v2685 = vpack.c.b16 %v2037, %v2029
  %v2686 = vpack.c.b16 %v2038, %v2030
  %v2687 = vpack.c.b16 %v2039, %v2031
  %v2688 = vpack.c.b16 %v2040, %v2032
  %v2689 = vpack.c.b16 %v2049, %v2041
  %v2690 = vpack.c.b16 %v2050, %v2042
  %v2691 = vpack.c.b16 %v2051, %v2043
  %v2692 = vpack.c.b16 %v2052, %v2044
  %v2693 = vpack.c.b16 %v2053, %v2045
  %v2694 = vpack.c.b16 %v2054, %v2046
  %v2695 = vpack.c.b16 %v2055, %v2047
  %v2696 = vpack.c.b16 %v2056, %v2048
  %v2697 = vpack.c.b16 %v2065, %v2057
  %v2698 = vpack.c.b16 %v2066, %v2058
  %v2699 = vpack.c.b16 %v2067, %v2059
  %v2700 = vpack.c.b16 %v2068, %v2060
  %v2701 = vpack.c.b16 %v2069, %v2061
  %v2702 = vpack.c.b16 %v2070, %v2062
  %v2703 = vpack.c.b16 %v2071, %v2063
  %v2704 = vpack.c.b16 %v2072, %v2064
  %v2705 = vpack.c.b16 %v2081, %v2073
  %v2706 = vpack.c.b16 %v2082, %v2074
  %v2707 = vpack.c.b16 %v2083, %v2075
  %v2708 = vpack.c.b16 %v2084, %v2076
  %v2709 = vpack.c.b16 %v2085, %v2077
  %v2710 = vpack.c.b16 %v2086, %v2078
  %v2711 = vpack.c.b16 %v2087, %v2079
  %v2712 = vpack.c.b16 %v2088, %v2080
  %v2713 = vpack.c.b16 %v2097, %v2089
  %v2714 = vpack.c.b16 %v2098, %v2090
  %v2715 = vpack.c.b16 %v2099, %v2091
  %v2716 = vpack.c.b16 %v2100, %v2092
  %v2717 = vpack.c.b16 %v2101, %v2093
  %v2718 = vpack.c.b16 %v2102, %v2094
  %v2719 = vpack.c.b16 %v2103, %v2095
  %v2720 = vpack.c.b16 %v2104, %v2096
  %v2721 = vpack.c.b16 %v2113, %v2105
  %v2722 = vpack.c.b16 %v2114, %v2106
  %v2723 = vpack.c.b16 %v2115, %v2107
  %v2724 = vpack.c.b16 %v2116, %v2108
  %v2725 = vpack.c.b16 %v2117, %v2109
  %v2726 = vpack.c.b16 %v2118, %v2110
  %v2727 = vpack.c.b16 %v2119, %v2111
  %v2728 = vpack.c.b16 %v2120, %v2112
  %v2729 = vpack.c.b16 %v2129, %v2121
  %v2730 = vpack.c.b16 %v2130, %v2122
  %v2731 = vpack.c.b16 %v2131, %v2123
  %v2732 = vpack.c.b16 %v2132, %v2124
  %v2733 = vpack.c.b16 %v2133, %v2125
  %v2734 = vpack.c.b16 %v2134, %v2126
  %v2735 = vpack.c.b16 %v2135, %v2127
  %v2736 = vpack.c.b16 %v2136, %v2128
  %v2737 = vpack.c.b16 %v2145, %v2137
  %v2738 = vpack.c.b16 %v2146, %v2138
  %v2739 = vpack.c.b16 %v2147, %v2139
  %v2740 = vpack.c.b16 %v2148, %v2140
  %v2741 = vpack.c.b16 %v2149, %v2141
  %v2742 = vpack.c.b16 %v2150, %v2142
  %v2743 = vpack.c.b16 %v2151, %v2143
  %v2744 = vpack.c.b16 %v2152, %v2144
  %v2745 = vpack.c.b16 %v2161, %v2153
  %v2746 = vpack.c.b16 %v2162, %v2154
  %v2747 = vpack.c.b16 %v2163, %v2155
  %v2748 = vpack.c.b16 %v2164, %v2156
  %v2749 = vpack.c.b16 %v2165, %v2157
  %v2750 = vpack.c.b16 %v2166, %v2158
  %v2751 = vpack.c.b16 %v2167, %v2159
  %v2752 = vpack.c.b16 %v2168, %v2160
  %v2753 = vpack.c.b16 %v2177, %v2169
  %v2754 = vpack.c.b16 %v2178, %v2170
  %v2755 = vpack.c.b16 %v2179, %v2171
  %v2756 = vpack.c.b16 %v2180, %v2172
  %v2757 = vpack.c.b16 %v2181, %v2173
  %v2758 = vpack.c.b16 %v2182, %v2174
  %v2759 = vpack.c.b16 %v2183, %v2175
  %v2760 = vpack.c.b16 %v2184, %v2176
  %v2761 = vpack.c.b16 %v2193, %v2185
  %v2762 = vpack.c.b16 %v2194, %v2186
  %v2763 = vpack.c.b16 %v2195, %v2187
  %v2764 = vpack.c.b16 %v2196, %v2188
  %v2765 = vpack.c.b16 %v2197, %v2189
  %v2766 = vpack.c.b16 %v2198, %v2190
  %v2767 = vpack.c.b16 %v2199, %v2191
  %v2768 = vpack.c.b16 %v2200, %v2192
  %v2769 = vpack.c.b16 %v2209, %v2201
  %v2770 = vpack.c.b16 %v2210, %v2202
  %v2771 = vpack.c.b16 %v2211, %v2203
  %v2772 = vpack.c.b16 %v2212, %v2204
  %v2773 = vpack.c.b16 %v2213, %v2205
  %v2774 = vpack.c.b16 %v2214, %v2206
  %v2775 = vpack.c.b16 %v2215, %v2207
  %v2776 = vpack.c.b16 %v2216, %v2208
  %v2777 = vpack.c.b16 %v2225, %v2217
  %v2778 = vpack.c.b16 %v2226, %v2218
  %v2779 = vpack.c.b16 %v2227, %v2219
  %v2780 = vpack.c.b16 %v2228, %v2220
  %v2781 = vpack.c.b16 %v2229, %v2221
  %v2782 = vpack.c.b16 %v2230, %v2222
  %v2783 = vpack.c.b16 %v2231, %v2223
  %v2784 = vpack.c.b16 %v2232, %v2224
  %v2785 = vpack.c.b16 %v2241, %v2233
  %v2786 = vpack.c.b16 %v2242, %v2234
  %v2787 = vpack.c.b16 %v2243, %v2235
  %v2788 = vpack.c.b16 %v2244, %v2236
  %v2789 = vpack.c.b16 %v2245, %v2237
  %v2790 = vpack.c.b16 %v2246, %v2238
  %v2791 = vpack.c.b16 %v2247, %v2239
  %v2792 = vpack.c.b16 %v2248, %v2240
  %v2793 = vpack.c.b16 %v2257, %v2249
  %v2794 = vpack.c.b16 %v2258, %v2250
  %v2795 = vpack.c.b16 %v2259, %v2251
  %v2796 = vpack.c.b16 %v2260, %v2252
  %v2797 = vpack.c.b16 %v2261, %v2253
  %v2798 = vpack.c.b16 %v2262, %v2254
  %v2799 = vpack.c.b16 %v2263, %v2255
  %v2800 = vpack.c.b16 %v2264, %v2256
  %v2801 = vpack.c.b16 %v2273, %v2265
  %v2802 = vpack.c.b16 %v2274, %v2266
  %v2803 = vpack.c.b16 %v2275, %v2267
  %v2804 = vpack.c.b16 %v2276, %v2268
  %v2805 = vpack.c.b16 %v2277, %v2269
  %v2806 = vpack.c.b16 %v2278, %v2270
  %v2807 = vpack.c.b16 %v2279, %v2271
  %v2808 = vpack.c.b16 %v2280, %v2272
  %v2809 = vpack.c.b16 %v2289, %v2281
  %v2810 = vpack.c.b16 %v2290, %v2282
  %v2811 = vpack.c.b16 %v2291, %v2283
  %v2812 = vpack.c.b16 %v2292, %v2284
  %v2813 = vpack.c.b16 %v2293, %v2285
  %v2814 = vpack.c.b16 %v2294, %v2286
  %v2815 = vpack.c.b16 %v2295, %v2287
  %v2816 = vpack.c.b16 %v2296, %v2288
  %v2817 = vpack.c.b16 %v2305, %v2297
  %v2818 = vpack.c.b16 %v2306, %v2298
  %v2819 = vpack.c.b16 %v2307, %v2299
  %v2820 = vpack.c.b16 %v2308, %v2300
  %v2821 = vpack.c.b16 %v2309, %v2301
  %v2822 = vpack.c.b16 %v2310, %v2302
  %v2823 = vpack.c.b16 %v2311, %v2303
  %v2824 = vpack.c.b16 %v2312, %v2304
  %3337 = vmatpush.bf16.msra.mxu0 %v2369
  %3338 = vmatpush.bf16.msra.mxu0 %v2361
  %3339 = vmatpush.bf16.msra.mxu0 %v2353
  %3340 = vmatpush.bf16.msra.mxu0 %v2345
  %3341 = vmatpush.bf16.msra.mxu0 %v2337
  %3342 = vmatpush.bf16.msra.mxu0 %v2329
  %3343 = vmatpush.bf16.msra.mxu0 %v2321
  %3344 = vmatpush.bf16.msra.mxu0 %v2313
  %3345 = vmatmul.bf16.gmra.mxu0 %v239
  %v3346 = vpop.f32.mrf.mxu0
  %v3347 = vadd.f32 %v761, %v3346
  %v3348 = vpop.f32.mrf.mxu0
  %3349 = vdwg.mxu0
  %3350 = vmatpush.bf16.msra.mxu0 %v2433
  %3351 = vmatpush.bf16.msra.mxu0 %v2425
  %3352 = vmatpush.bf16.msra.mxu0 %v2417
  %3353 = vmatpush.bf16.msra.mxu0 %v2409
  %3354 = vmatpush.bf16.msra.mxu0 %v2401
  %3355 = vmatpush.bf16.msra.mxu0 %v2393
  %3356 = vmatpush.bf16.msra.mxu0 %v2385
  %3357 = vmatpush.bf16.msra.mxu0 %v2377
  %3358 = vmatmul.bf16.gmra.mxu0 %v240
  %v3359 = vpop.f32.mrf.mxu0
  %v3360 = vadd.f32 %v3347, %v3359
  %v3361 = vpop.f32.mrf.mxu0
  %3362 = vdwg.mxu0
  %3363 = vmatpush.bf16.msra.mxu0 %v2497
  %3364 = vmatpush.bf16.msra.mxu0 %v2489
  %3365 = vmatpush.bf16.msra.mxu0 %v2481
  %3366 = vmatpush.bf16.msra.mxu0 %v2473
  %3367 = vmatpush.bf16.msra.mxu0 %v2465
  %3368 = vmatpush.bf16.msra.mxu0 %v2457
  %3369 = vmatpush.bf16.msra.mxu0 %v2449
  %3370 = vmatpush.bf16.msra.mxu0 %v2441
  %3371 = vmatmul.bf16.gmra.mxu0 %v241
  %v3372 = vpop.f32.mrf.mxu0
  %v3373 = vadd.f32 %v3360, %v3372
  %v3374 = vpop.f32.mrf.mxu0
  %3375 = vdwg.mxu0
  %3376 = vmatpush.bf16.msra.mxu0 %v2561
  %3377 = vmatpush.bf16.msra.mxu0 %v2553
  %3378 = vmatpush.bf16.msra.mxu0 %v2545
  %3379 = vmatpush.bf16.msra.mxu0 %v2537
  %3380 = vmatpush.bf16.msra.mxu0 %v2529
  %3381 = vmatpush.bf16.msra.mxu0 %v2521
  %3382 = vmatpush.bf16.msra.mxu0 %v2513
  %3383 = vmatpush.bf16.msra.mxu0 %v2505
  %3384 = vmatmul.bf16.gmra.mxu0 %v242
  %v3385 = vpop.f32.mrf.mxu0
  %v3386 = vadd.f32 %v3373, %v3385
  %v3387 = vpop.f32.mrf.mxu0
  %3388 = vdwg.mxu0
  %3389 = vmatpush.bf16.msra.mxu0 %v2625
  %3390 = vmatpush.bf16.msra.mxu0 %v2617
  %3391 = vmatpush.bf16.msra.mxu0 %v2609
  %3392 = vmatpush.bf16.msra.mxu0 %v2601
  %3393 = vmatpush.bf16.msra.mxu0 %v2593
  %3394 = vmatpush.bf16.msra.mxu0 %v2585
  %3395 = vmatpush.bf16.msra.mxu0 %v2577
  %3396 = vmatpush.bf16.msra.mxu0 %v2569
  %3397 = vmatmul.bf16.gmra.mxu0 %v243
  %v3398 = vpop.f32.mrf.mxu0
  %v3399 = vadd.f32 %v3386, %v3398
  %v3400 = vpop.f32.mrf.mxu0
  %3401 = vdwg.mxu0
  %3402 = vmatpush.bf16.msra.mxu0 %v2689
  %3403 = vmatpush.bf16.msra.mxu0 %v2681
  %3404 = vmatpush.bf16.msra.mxu0 %v2673
  %3405 = vmatpush.bf16.msra.mxu0 %v2665
  %3406 = vmatpush.bf16.msra.mxu0 %v2657
  %3407 = vmatpush.bf16.msra.mxu0 %v2649
  %3408 = vmatpush.bf16.msra.mxu0 %v2641
  %3409 = vmatpush.bf16.msra.mxu0 %v2633
  %3410 = vmatmul.bf16.gmra.mxu0 %v244
  %v3411 = vpop.f32.mrf.mxu0
  %v3412 = vadd.f32 %v3399, %v3411
  %v3413 = vpop.f32.mrf.mxu0
  %3414 = vdwg.mxu0
  %3415 = vmatpush.bf16.msra.mxu0 %v2753
  %3416 = vmatpush.bf16.msra.mxu0 %v2745
  %3417 = vmatpush.bf16.msra.mxu0 %v2737
  %3418 = vmatpush.bf16.msra.mxu0 %v2729
  %3419 = vmatpush.bf16.msra.mxu0 %v2721
  %3420 = vmatpush.bf16.msra.mxu0 %v2713
  %3421 = vmatpush.bf16.msra.mxu0 %v2705
  %3422 = vmatpush.bf16.msra.mxu0 %v2697
  %3423 = vmatmul.bf16.gmra.mxu0 %v245
  %v3424 = vpop.f32.mrf.mxu0
  %v3425 = vadd.f32 %v3412, %v3424
  %v3426 = vpop.f32.mrf.mxu0
  %3427 = vdwg.mxu0
  %3428 = vmatpush.bf16.msra.mxu0 %v2817
  %3429 = vmatpush.bf16.msra.mxu0 %v2809
  %3430 = vmatpush.bf16.msra.mxu0 %v2801
  %3431 = vmatpush.bf16.msra.mxu0 %v2793
  %3432 = vmatpush.bf16.msra.mxu0 %v2785
  %3433 = vmatpush.bf16.msra.mxu0 %v2777
  %3434 = vmatpush.bf16.msra.mxu0 %v2769
  %3435 = vmatpush.bf16.msra.mxu0 %v2761
  %3436 = vmatmul.bf16.gmra.mxu0 %v246
  %v3437 = vpop.f32.mrf.mxu0
  %v3438 = vadd.f32 %v3425, %v3437
  %v3439 = vpop.f32.mrf.mxu0
  %3440 = vdwg.mxu0
  %3441 = vmatpush.bf16.msra.mxu0 %v2370
  %3442 = vmatpush.bf16.msra.mxu0 %v2362
  %3443 = vmatpush.bf16.msra.mxu0 %v2354
  %3444 = vmatpush.bf16.msra.mxu0 %v2346
  %3445 = vmatpush.bf16.msra.mxu0 %v2338
  %3446 = vmatpush.bf16.msra.mxu0 %v2330
  %3447 = vmatpush.bf16.msra.mxu0 %v2322
  %3448 = vmatpush.bf16.msra.mxu0 %v2314
  %3449 = vmatmul.bf16.gmra.mxu0 %v239
  %v3450 = vpop.f32.mrf.mxu0
  %v3451 = vadd.f32 %v762, %v3450
  %v3452 = vpop.f32.mrf.mxu0
  %3453 = vdwg.mxu0
  %3454 = vmatpush.bf16.msra.mxu0 %v2434
  %3455 = vmatpush.bf16.msra.mxu0 %v2426
  %3456 = vmatpush.bf16.msra.mxu0 %v2418
  %3457 = vmatpush.bf16.msra.mxu0 %v2410
  %3458 = vmatpush.bf16.msra.mxu0 %v2402
  %3459 = vmatpush.bf16.msra.mxu0 %v2394
  %3460 = vmatpush.bf16.msra.mxu0 %v2386
  %3461 = vmatpush.bf16.msra.mxu0 %v2378
  %3462 = vmatmul.bf16.gmra.mxu0 %v240
  %v3463 = vpop.f32.mrf.mxu0
  %v3464 = vadd.f32 %v3451, %v3463
  %v3465 = vpop.f32.mrf.mxu0
  %3466 = vdwg.mxu0
  %3467 = vmatpush.bf16.msra.mxu0 %v2498
  %3468 = vmatpush.bf16.msra.mxu0 %v2490
  %3469 = vmatpush.bf16.msra.mxu0 %v2482
  %3470 = vmatpush.bf16.msra.mxu0 %v2474
  %3471 = vmatpush.bf16.msra.mxu0 %v2466
  %3472 = vmatpush.bf16.msra.mxu0 %v2458
  %3473 = vmatpush.bf16.msra.mxu0 %v2450
  %3474 = vmatpush.bf16.msra.mxu0 %v2442
  %3475 = vmatmul.bf16.gmra.mxu0 %v241
  %v3476 = vpop.f32.mrf.mxu0
  %v3477 = vadd.f32 %v3464, %v3476
  %v3478 = vpop.f32.mrf.mxu0
  %3479 = vdwg.mxu0
  %3480 = vmatpush.bf16.msra.mxu0 %v2562
  %3481 = vmatpush.bf16.msra.mxu0 %v2554
  %3482 = vmatpush.bf16.msra.mxu0 %v2546
  %3483 = vmatpush.bf16.msra.mxu0 %v2538
  %3484 = vmatpush.bf16.msra.mxu0 %v2530
  %3485 = vmatpush.bf16.msra.mxu0 %v2522
  %3486 = vmatpush.bf16.msra.mxu0 %v2514
  %3487 = vmatpush.bf16.msra.mxu0 %v2506
  %3488 = vmatmul.bf16.gmra.mxu0 %v242
  %v3489 = vpop.f32.mrf.mxu0
  %v3490 = vadd.f32 %v3477, %v3489
  %v3491 = vpop.f32.mrf.mxu0
  %3492 = vdwg.mxu0
  %3493 = vmatpush.bf16.msra.mxu0 %v2626
  %3494 = vmatpush.bf16.msra.mxu0 %v2618
  %3495 = vmatpush.bf16.msra.mxu0 %v2610
  %3496 = vmatpush.bf16.msra.mxu0 %v2602
  %3497 = vmatpush.bf16.msra.mxu0 %v2594
  %3498 = vmatpush.bf16.msra.mxu0 %v2586
  %3499 = vmatpush.bf16.msra.mxu0 %v2578
  %3500 = vmatpush.bf16.msra.mxu0 %v2570
  %3501 = vmatmul.bf16.gmra.mxu0 %v243
  %v3502 = vpop.f32.mrf.mxu0
  %v3503 = vadd.f32 %v3490, %v3502
  %v3504 = vpop.f32.mrf.mxu0
  %3505 = vdwg.mxu0
  %3506 = vmatpush.bf16.msra.mxu0 %v2690
  %3507 = vmatpush.bf16.msra.mxu0 %v2682
  %3508 = vmatpush.bf16.msra.mxu0 %v2674
  %3509 = vmatpush.bf16.msra.mxu0 %v2666
  %3510 = vmatpush.bf16.msra.mxu0 %v2658
  %3511 = vmatpush.bf16.msra.mxu0 %v2650
  %3512 = vmatpush.bf16.msra.mxu0 %v2642
  %3513 = vmatpush.bf16.msra.mxu0 %v2634
  %3514 = vmatmul.bf16.gmra.mxu0 %v244
  %v3515 = vpop.f32.mrf.mxu0
  %v3516 = vadd.f32 %v3503, %v3515
  %v3517 = vpop.f32.mrf.mxu0
  %3518 = vdwg.mxu0
  %3519 = vmatpush.bf16.msra.mxu0 %v2754
  %3520 = vmatpush.bf16.msra.mxu0 %v2746
  %3521 = vmatpush.bf16.msra.mxu0 %v2738
  %3522 = vmatpush.bf16.msra.mxu0 %v2730
  %3523 = vmatpush.bf16.msra.mxu0 %v2722
  %3524 = vmatpush.bf16.msra.mxu0 %v2714
  %3525 = vmatpush.bf16.msra.mxu0 %v2706
  %3526 = vmatpush.bf16.msra.mxu0 %v2698
  %3527 = vmatmul.bf16.gmra.mxu0 %v245
  %v3528 = vpop.f32.mrf.mxu0
  %v3529 = vadd.f32 %v3516, %v3528
  %v3530 = vpop.f32.mrf.mxu0
  %3531 = vdwg.mxu0
  %3532 = vmatpush.bf16.msra.mxu0 %v2818
  %3533 = vmatpush.bf16.msra.mxu0 %v2810
  %3534 = vmatpush.bf16.msra.mxu0 %v2802
  %3535 = vmatpush.bf16.msra.mxu0 %v2794
  %3536 = vmatpush.bf16.msra.mxu0 %v2786
  %3537 = vmatpush.bf16.msra.mxu0 %v2778
  %3538 = vmatpush.bf16.msra.mxu0 %v2770
  %3539 = vmatpush.bf16.msra.mxu0 %v2762
  %3540 = vmatmul.bf16.gmra.mxu0 %v246
  %v3541 = vpop.f32.mrf.mxu0
  %v3542 = vadd.f32 %v3529, %v3541
  %v3543 = vpop.f32.mrf.mxu0
  %3544 = vdwg.mxu0
  %3545 = vmatpush.bf16.msra.mxu0 %v2371
  %3546 = vmatpush.bf16.msra.mxu0 %v2363
  %3547 = vmatpush.bf16.msra.mxu0 %v2355
  %3548 = vmatpush.bf16.msra.mxu0 %v2347
  %3549 = vmatpush.bf16.msra.mxu0 %v2339
  %3550 = vmatpush.bf16.msra.mxu0 %v2331
  %3551 = vmatpush.bf16.msra.mxu0 %v2323
  %3552 = vmatpush.bf16.msra.mxu0 %v2315
  %3553 = vmatmul.bf16.gmra.mxu0 %v239
  %v3554 = vpop.f32.mrf.mxu0
  %v3555 = vadd.f32 %v763, %v3554
  %v3556 = vpop.f32.mrf.mxu0
  %3557 = vdwg.mxu0
  %3558 = vmatpush.bf16.msra.mxu0 %v2435
  %3559 = vmatpush.bf16.msra.mxu0 %v2427
  %3560 = vmatpush.bf16.msra.mxu0 %v2419
  %3561 = vmatpush.bf16.msra.mxu0 %v2411
  %3562 = vmatpush.bf16.msra.mxu0 %v2403
  %3563 = vmatpush.bf16.msra.mxu0 %v2395
  %3564 = vmatpush.bf16.msra.mxu0 %v2387
  %3565 = vmatpush.bf16.msra.mxu0 %v2379
  %3566 = vmatmul.bf16.gmra.mxu0 %v240
  %v3567 = vpop.f32.mrf.mxu0
  %v3568 = vadd.f32 %v3555, %v3567
  %v3569 = vpop.f32.mrf.mxu0
  %3570 = vdwg.mxu0
  %3571 = vmatpush.bf16.msra.mxu0 %v2499
  %3572 = vmatpush.bf16.msra.mxu0 %v2491
  %3573 = vmatpush.bf16.msra.mxu0 %v2483
  %3574 = vmatpush.bf16.msra.mxu0 %v2475
  %3575 = vmatpush.bf16.msra.mxu0 %v2467
  %3576 = vmatpush.bf16.msra.mxu0 %v2459
  %3577 = vmatpush.bf16.msra.mxu0 %v2451
  %3578 = vmatpush.bf16.msra.mxu0 %v2443
  %3579 = vmatmul.bf16.gmra.mxu0 %v241
  %v3580 = vpop.f32.mrf.mxu0
  %v3581 = vadd.f32 %v3568, %v3580
  %v3582 = vpop.f32.mrf.mxu0
  %3583 = vdwg.mxu0
  %3584 = vmatpush.bf16.msra.mxu0 %v2563
  %3585 = vmatpush.bf16.msra.mxu0 %v2555
  %3586 = vmatpush.bf16.msra.mxu0 %v2547
  %3587 = vmatpush.bf16.msra.mxu0 %v2539
  %3588 = vmatpush.bf16.msra.mxu0 %v2531
  %3589 = vmatpush.bf16.msra.mxu0 %v2523
  %3590 = vmatpush.bf16.msra.mxu0 %v2515
  %3591 = vmatpush.bf16.msra.mxu0 %v2507
  %3592 = vmatmul.bf16.gmra.mxu0 %v242
  %v3593 = vpop.f32.mrf.mxu0
  %v3594 = vadd.f32 %v3581, %v3593
  %v3595 = vpop.f32.mrf.mxu0
  %3596 = vdwg.mxu0
  %3597 = vmatpush.bf16.msra.mxu0 %v2627
  %3598 = vmatpush.bf16.msra.mxu0 %v2619
  %3599 = vmatpush.bf16.msra.mxu0 %v2611
  %3600 = vmatpush.bf16.msra.mxu0 %v2603
  %3601 = vmatpush.bf16.msra.mxu0 %v2595
  %3602 = vmatpush.bf16.msra.mxu0 %v2587
  %3603 = vmatpush.bf16.msra.mxu0 %v2579
  %3604 = vmatpush.bf16.msra.mxu0 %v2571
  %3605 = vmatmul.bf16.gmra.mxu0 %v243
  %v3606 = vpop.f32.mrf.mxu0
  %v3607 = vadd.f32 %v3594, %v3606
  %v3608 = vpop.f32.mrf.mxu0
  %3609 = vdwg.mxu0
  %3610 = vmatpush.bf16.msra.mxu0 %v2691
  %3611 = vmatpush.bf16.msra.mxu0 %v2683
  %3612 = vmatpush.bf16.msra.mxu0 %v2675
  %3613 = vmatpush.bf16.msra.mxu0 %v2667
  %3614 = vmatpush.bf16.msra.mxu0 %v2659
  %3615 = vmatpush.bf16.msra.mxu0 %v2651
  %3616 = vmatpush.bf16.msra.mxu0 %v2643
  %3617 = vmatpush.bf16.msra.mxu0 %v2635
  %3618 = vmatmul.bf16.gmra.mxu0 %v244
  %v3619 = vpop.f32.mrf.mxu0
  %v3620 = vadd.f32 %v3607, %v3619
  %v3621 = vpop.f32.mrf.mxu0
  %3622 = vdwg.mxu0
  %3623 = vmatpush.bf16.msra.mxu0 %v2755
  %3624 = vmatpush.bf16.msra.mxu0 %v2747
  %3625 = vmatpush.bf16.msra.mxu0 %v2739
  %3626 = vmatpush.bf16.msra.mxu0 %v2731
  %3627 = vmatpush.bf16.msra.mxu0 %v2723
  %3628 = vmatpush.bf16.msra.mxu0 %v2715
  %3629 = vmatpush.bf16.msra.mxu0 %v2707
  %3630 = vmatpush.bf16.msra.mxu0 %v2699
  %3631 = vmatmul.bf16.gmra.mxu0 %v245
  %v3632 = vpop.f32.mrf.mxu0
  %v3633 = vadd.f32 %v3620, %v3632
  %v3634 = vpop.f32.mrf.mxu0
  %3635 = vdwg.mxu0
  %3636 = vmatpush.bf16.msra.mxu0 %v2819
  %3637 = vmatpush.bf16.msra.mxu0 %v2811
  %3638 = vmatpush.bf16.msra.mxu0 %v2803
  %3639 = vmatpush.bf16.msra.mxu0 %v2795
  %3640 = vmatpush.bf16.msra.mxu0 %v2787
  %3641 = vmatpush.bf16.msra.mxu0 %v2779
  %3642 = vmatpush.bf16.msra.mxu0 %v2771
  %3643 = vmatpush.bf16.msra.mxu0 %v2763
  %3644 = vmatmul.bf16.gmra.mxu0 %v246
  %v3645 = vpop.f32.mrf.mxu0
  %v3646 = vadd.f32 %v3633, %v3645
  %v3647 = vpop.f32.mrf.mxu0
  %3648 = vdwg.mxu0
  %3649 = vmatpush.bf16.msra.mxu0 %v2372
  %3650 = vmatpush.bf16.msra.mxu0 %v2364
  %3651 = vmatpush.bf16.msra.mxu0 %v2356
  %3652 = vmatpush.bf16.msra.mxu0 %v2348
  %3653 = vmatpush.bf16.msra.mxu0 %v2340
  %3654 = vmatpush.bf16.msra.mxu0 %v2332
  %3655 = vmatpush.bf16.msra.mxu0 %v2324
  %3656 = vmatpush.bf16.msra.mxu0 %v2316
  %3657 = vmatmul.bf16.gmra.mxu0 %v239
  %v3658 = vpop.f32.mrf.mxu0
  %v3659 = vadd.f32 %v764, %v3658
  %v3660 = vpop.f32.mrf.mxu0
  %3661 = vdwg.mxu0
  %3662 = vmatpush.bf16.msra.mxu0 %v2436
  %3663 = vmatpush.bf16.msra.mxu0 %v2428
  %3664 = vmatpush.bf16.msra.mxu0 %v2420
  %3665 = vmatpush.bf16.msra.mxu0 %v2412
  %3666 = vmatpush.bf16.msra.mxu0 %v2404
  %3667 = vmatpush.bf16.msra.mxu0 %v2396
  %3668 = vmatpush.bf16.msra.mxu0 %v2388
  %3669 = vmatpush.bf16.msra.mxu0 %v2380
  %3670 = vmatmul.bf16.gmra.mxu0 %v240
  %v3671 = vpop.f32.mrf.mxu0
  %v3672 = vadd.f32 %v3659, %v3671
  %v3673 = vpop.f32.mrf.mxu0
  %3674 = vdwg.mxu0
  %3675 = vmatpush.bf16.msra.mxu0 %v2500
  %3676 = vmatpush.bf16.msra.mxu0 %v2492
  %3677 = vmatpush.bf16.msra.mxu0 %v2484
  %3678 = vmatpush.bf16.msra.mxu0 %v2476
  %3679 = vmatpush.bf16.msra.mxu0 %v2468
  %3680 = vmatpush.bf16.msra.mxu0 %v2460
  %3681 = vmatpush.bf16.msra.mxu0 %v2452
  %3682 = vmatpush.bf16.msra.mxu0 %v2444
  %3683 = vmatmul.bf16.gmra.mxu0 %v241
  %v3684 = vpop.f32.mrf.mxu0
  %v3685 = vadd.f32 %v3672, %v3684
  %v3686 = vpop.f32.mrf.mxu0
  %3687 = vdwg.mxu0
  %3688 = vmatpush.bf16.msra.mxu0 %v2564
  %3689 = vmatpush.bf16.msra.mxu0 %v2556
  %3690 = vmatpush.bf16.msra.mxu0 %v2548
  %3691 = vmatpush.bf16.msra.mxu0 %v2540
  %3692 = vmatpush.bf16.msra.mxu0 %v2532
  %3693 = vmatpush.bf16.msra.mxu0 %v2524
  %3694 = vmatpush.bf16.msra.mxu0 %v2516
  %3695 = vmatpush.bf16.msra.mxu0 %v2508
  %3696 = vmatmul.bf16.gmra.mxu0 %v242
  %v3697 = vpop.f32.mrf.mxu0
  %v3698 = vadd.f32 %v3685, %v3697
  %v3699 = vpop.f32.mrf.mxu0
  %3700 = vdwg.mxu0
  %3701 = vmatpush.bf16.msra.mxu0 %v2628
  %3702 = vmatpush.bf16.msra.mxu0 %v2620
  %3703 = vmatpush.bf16.msra.mxu0 %v2612
  %3704 = vmatpush.bf16.msra.mxu0 %v2604
  %3705 = vmatpush.bf16.msra.mxu0 %v2596
  %3706 = vmatpush.bf16.msra.mxu0 %v2588
  %3707 = vmatpush.bf16.msra.mxu0 %v2580
  %3708 = vmatpush.bf16.msra.mxu0 %v2572
  %3709 = vmatmul.bf16.gmra.mxu0 %v243
  %v3710 = vpop.f32.mrf.mxu0
  %v3711 = vadd.f32 %v3698, %v3710
  %v3712 = vpop.f32.mrf.mxu0
  %3713 = vdwg.mxu0
  %3714 = vmatpush.bf16.msra.mxu0 %v2692
  %3715 = vmatpush.bf16.msra.mxu0 %v2684
  %3716 = vmatpush.bf16.msra.mxu0 %v2676
  %3717 = vmatpush.bf16.msra.mxu0 %v2668
  %3718 = vmatpush.bf16.msra.mxu0 %v2660
  %3719 = vmatpush.bf16.msra.mxu0 %v2652
  %3720 = vmatpush.bf16.msra.mxu0 %v2644
  %3721 = vmatpush.bf16.msra.mxu0 %v2636
  %3722 = vmatmul.bf16.gmra.mxu0 %v244
  %v3723 = vpop.f32.mrf.mxu0
  %v3724 = vadd.f32 %v3711, %v3723
  %v3725 = vpop.f32.mrf.mxu0
  %3726 = vdwg.mxu0
  %3727 = vmatpush.bf16.msra.mxu0 %v2756
  %3728 = vmatpush.bf16.msra.mxu0 %v2748
  %3729 = vmatpush.bf16.msra.mxu0 %v2740
  %3730 = vmatpush.bf16.msra.mxu0 %v2732
  %3731 = vmatpush.bf16.msra.mxu0 %v2724
  %3732 = vmatpush.bf16.msra.mxu0 %v2716
  %3733 = vmatpush.bf16.msra.mxu0 %v2708
  %3734 = vmatpush.bf16.msra.mxu0 %v2700
  %3735 = vmatmul.bf16.gmra.mxu0 %v245
  %v3736 = vpop.f32.mrf.mxu0
  %v3737 = vadd.f32 %v3724, %v3736
  %v3738 = vpop.f32.mrf.mxu0
  %3739 = vdwg.mxu0
  %3740 = vmatpush.bf16.msra.mxu0 %v2820
  %3741 = vmatpush.bf16.msra.mxu0 %v2812
  %3742 = vmatpush.bf16.msra.mxu0 %v2804
  %3743 = vmatpush.bf16.msra.mxu0 %v2796
  %3744 = vmatpush.bf16.msra.mxu0 %v2788
  %3745 = vmatpush.bf16.msra.mxu0 %v2780
  %3746 = vmatpush.bf16.msra.mxu0 %v2772
  %3747 = vmatpush.bf16.msra.mxu0 %v2764
  %3748 = vmatmul.bf16.gmra.mxu0 %v246
  %v3749 = vpop.f32.mrf.mxu0
  %v3750 = vadd.f32 %v3737, %v3749
  %v3751 = vpop.f32.mrf.mxu0
  %3752 = vdwg.mxu0
  %3753 = vmatpush.bf16.msra.mxu0 %v2373
  %3754 = vmatpush.bf16.msra.mxu0 %v2365
  %3755 = vmatpush.bf16.msra.mxu0 %v2357
  %3756 = vmatpush.bf16.msra.mxu0 %v2349
  %3757 = vmatpush.bf16.msra.mxu0 %v2341
  %3758 = vmatpush.bf16.msra.mxu0 %v2333
  %3759 = vmatpush.bf16.msra.mxu0 %v2325
  %3760 = vmatpush.bf16.msra.mxu0 %v2317
  %3761 = vmatmul.bf16.gmra.mxu0 %v239
  %v3762 = vpop.f32.mrf.mxu0
  %v3763 = vadd.f32 %v765, %v3762
  %v3764 = vpop.f32.mrf.mxu0
  %3765 = vdwg.mxu0
  %3766 = vmatpush.bf16.msra.mxu0 %v2437
  %3767 = vmatpush.bf16.msra.mxu0 %v2429
  %3768 = vmatpush.bf16.msra.mxu0 %v2421
  %3769 = vmatpush.bf16.msra.mxu0 %v2413
  %3770 = vmatpush.bf16.msra.mxu0 %v2405
  %3771 = vmatpush.bf16.msra.mxu0 %v2397
  %3772 = vmatpush.bf16.msra.mxu0 %v2389
  %3773 = vmatpush.bf16.msra.mxu0 %v2381
  %3774 = vmatmul.bf16.gmra.mxu0 %v240
  %v3775 = vpop.f32.mrf.mxu0
  %v3776 = vadd.f32 %v3763, %v3775
  %v3777 = vpop.f32.mrf.mxu0
  %3778 = vdwg.mxu0
  %3779 = vmatpush.bf16.msra.mxu0 %v2501
  %3780 = vmatpush.bf16.msra.mxu0 %v2493
  %3781 = vmatpush.bf16.msra.mxu0 %v2485
  %3782 = vmatpush.bf16.msra.mxu0 %v2477
  %3783 = vmatpush.bf16.msra.mxu0 %v2469
  %3784 = vmatpush.bf16.msra.mxu0 %v2461
  %3785 = vmatpush.bf16.msra.mxu0 %v2453
  %3786 = vmatpush.bf16.msra.mxu0 %v2445
  %3787 = vmatmul.bf16.gmra.mxu0 %v241
  %v3788 = vpop.f32.mrf.mxu0
  %v3789 = vadd.f32 %v3776, %v3788
  %v3790 = vpop.f32.mrf.mxu0
  %3791 = vdwg.mxu0
  %3792 = vmatpush.bf16.msra.mxu0 %v2565
  %3793 = vmatpush.bf16.msra.mxu0 %v2557
  %3794 = vmatpush.bf16.msra.mxu0 %v2549
  %3795 = vmatpush.bf16.msra.mxu0 %v2541
  %3796 = vmatpush.bf16.msra.mxu0 %v2533
  %3797 = vmatpush.bf16.msra.mxu0 %v2525
  %3798 = vmatpush.bf16.msra.mxu0 %v2517
  %3799 = vmatpush.bf16.msra.mxu0 %v2509
  %3800 = vmatmul.bf16.gmra.mxu0 %v242
  %v3801 = vpop.f32.mrf.mxu0
  %v3802 = vadd.f32 %v3789, %v3801
  %v3803 = vpop.f32.mrf.mxu0
  %3804 = vdwg.mxu0
  %3805 = vmatpush.bf16.msra.mxu0 %v2629
  %3806 = vmatpush.bf16.msra.mxu0 %v2621
  %3807 = vmatpush.bf16.msra.mxu0 %v2613
  %3808 = vmatpush.bf16.msra.mxu0 %v2605
  %3809 = vmatpush.bf16.msra.mxu0 %v2597
  %3810 = vmatpush.bf16.msra.mxu0 %v2589
  %3811 = vmatpush.bf16.msra.mxu0 %v2581
  %3812 = vmatpush.bf16.msra.mxu0 %v2573
  %3813 = vmatmul.bf16.gmra.mxu0 %v243
  %v3814 = vpop.f32.mrf.mxu0
  %v3815 = vadd.f32 %v3802, %v3814
  %v3816 = vpop.f32.mrf.mxu0
  %3817 = vdwg.mxu0
  %3818 = vmatpush.bf16.msra.mxu0 %v2693
  %3819 = vmatpush.bf16.msra.mxu0 %v2685
  %3820 = vmatpush.bf16.msra.mxu0 %v2677
  %3821 = vmatpush.bf16.msra.mxu0 %v2669
  %3822 = vmatpush.bf16.msra.mxu0 %v2661
  %3823 = vmatpush.bf16.msra.mxu0 %v2653
  %3824 = vmatpush.bf16.msra.mxu0 %v2645
  %3825 = vmatpush.bf16.msra.mxu0 %v2637
  %3826 = vmatmul.bf16.gmra.mxu0 %v244
  %v3827 = vpop.f32.mrf.mxu0
  %v3828 = vadd.f32 %v3815, %v3827
  %v3829 = vpop.f32.mrf.mxu0
  %3830 = vdwg.mxu0
  %3831 = vmatpush.bf16.msra.mxu0 %v2757
  %3832 = vmatpush.bf16.msra.mxu0 %v2749
  %3833 = vmatpush.bf16.msra.mxu0 %v2741
  %3834 = vmatpush.bf16.msra.mxu0 %v2733
  %3835 = vmatpush.bf16.msra.mxu0 %v2725
  %3836 = vmatpush.bf16.msra.mxu0 %v2717
  %3837 = vmatpush.bf16.msra.mxu0 %v2709
  %3838 = vmatpush.bf16.msra.mxu0 %v2701
  %3839 = vmatmul.bf16.gmra.mxu0 %v245
  %v3840 = vpop.f32.mrf.mxu0
  %v3841 = vadd.f32 %v3828, %v3840
  %v3842 = vpop.f32.mrf.mxu0
  %3843 = vdwg.mxu0
  %3844 = vmatpush.bf16.msra.mxu0 %v2821
  %3845 = vmatpush.bf16.msra.mxu0 %v2813
  %3846 = vmatpush.bf16.msra.mxu0 %v2805
  %3847 = vmatpush.bf16.msra.mxu0 %v2797
  %3848 = vmatpush.bf16.msra.mxu0 %v2789
  %3849 = vmatpush.bf16.msra.mxu0 %v2781
  %3850 = vmatpush.bf16.msra.mxu0 %v2773
  %3851 = vmatpush.bf16.msra.mxu0 %v2765
  %3852 = vmatmul.bf16.gmra.mxu0 %v246
  %v3853 = vpop.f32.mrf.mxu0
  %v3854 = vadd.f32 %v3841, %v3853
  %v3855 = vpop.f32.mrf.mxu0
  %3856 = vdwg.mxu0
  %3857 = vmatpush.bf16.msra.mxu0 %v2374
  %3858 = vmatpush.bf16.msra.mxu0 %v2366
  %3859 = vmatpush.bf16.msra.mxu0 %v2358
  %3860 = vmatpush.bf16.msra.mxu0 %v2350
  %3861 = vmatpush.bf16.msra.mxu0 %v2342
  %3862 = vmatpush.bf16.msra.mxu0 %v2334
  %3863 = vmatpush.bf16.msra.mxu0 %v2326
  %3864 = vmatpush.bf16.msra.mxu0 %v2318
  %3865 = vmatmul.bf16.gmra.mxu0 %v239
  %v3866 = vpop.f32.mrf.mxu0
  %v3867 = vadd.f32 %v766, %v3866
  %v3868 = vpop.f32.mrf.mxu0
  %3869 = vdwg.mxu0
  %3870 = vmatpush.bf16.msra.mxu0 %v2438
  %3871 = vmatpush.bf16.msra.mxu0 %v2430
  %3872 = vmatpush.bf16.msra.mxu0 %v2422
  %3873 = vmatpush.bf16.msra.mxu0 %v2414
  %3874 = vmatpush.bf16.msra.mxu0 %v2406
  %3875 = vmatpush.bf16.msra.mxu0 %v2398
  %3876 = vmatpush.bf16.msra.mxu0 %v2390
  %3877 = vmatpush.bf16.msra.mxu0 %v2382
  %3878 = vmatmul.bf16.gmra.mxu0 %v240
  %v3879 = vpop.f32.mrf.mxu0
  %v3880 = vadd.f32 %v3867, %v3879
  %v3881 = vpop.f32.mrf.mxu0
  %3882 = vdwg.mxu0
  %3883 = vmatpush.bf16.msra.mxu0 %v2502
  %3884 = vmatpush.bf16.msra.mxu0 %v2494
  %3885 = vmatpush.bf16.msra.mxu0 %v2486
  %3886 = vmatpush.bf16.msra.mxu0 %v2478
  %3887 = vmatpush.bf16.msra.mxu0 %v2470
  %3888 = vmatpush.bf16.msra.mxu0 %v2462
  %3889 = vmatpush.bf16.msra.mxu0 %v2454
  %3890 = vmatpush.bf16.msra.mxu0 %v2446
  %3891 = vmatmul.bf16.gmra.mxu0 %v241
  %v3892 = vpop.f32.mrf.mxu0
  %v3893 = vadd.f32 %v3880, %v3892
  %v3894 = vpop.f32.mrf.mxu0
  %3895 = vdwg.mxu0
  %3896 = vmatpush.bf16.msra.mxu0 %v2566
  %3897 = vmatpush.bf16.msra.mxu0 %v2558
  %3898 = vmatpush.bf16.msra.mxu0 %v2550
  %3899 = vmatpush.bf16.msra.mxu0 %v2542
  %3900 = vmatpush.bf16.msra.mxu0 %v2534
  %3901 = vmatpush.bf16.msra.mxu0 %v2526
  %3902 = vmatpush.bf16.msra.mxu0 %v2518
  %3903 = vmatpush.bf16.msra.mxu0 %v2510
  %3904 = vmatmul.bf16.gmra.mxu0 %v242
  %v3905 = vpop.f32.mrf.mxu0
  %v3906 = vadd.f32 %v3893, %v3905
  %v3907 = vpop.f32.mrf.mxu0
  %3908 = vdwg.mxu0
  %3909 = vmatpush.bf16.msra.mxu0 %v2630
  %3910 = vmatpush.bf16.msra.mxu0 %v2622
  %3911 = vmatpush.bf16.msra.mxu0 %v2614
  %3912 = vmatpush.bf16.msra.mxu0 %v2606
  %3913 = vmatpush.bf16.msra.mxu0 %v2598
  %3914 = vmatpush.bf16.msra.mxu0 %v2590
  %3915 = vmatpush.bf16.msra.mxu0 %v2582
  %3916 = vmatpush.bf16.msra.mxu0 %v2574
  %3917 = vmatmul.bf16.gmra.mxu0 %v243
  %v3918 = vpop.f32.mrf.mxu0
  %v3919 = vadd.f32 %v3906, %v3918
  %v3920 = vpop.f32.mrf.mxu0
  %3921 = vdwg.mxu0
  %3922 = vmatpush.bf16.msra.mxu0 %v2694
  %3923 = vmatpush.bf16.msra.mxu0 %v2686
  %3924 = vmatpush.bf16.msra.mxu0 %v2678
  %3925 = vmatpush.bf16.msra.mxu0 %v2670
  %3926 = vmatpush.bf16.msra.mxu0 %v2662
  %3927 = vmatpush.bf16.msra.mxu0 %v2654
  %3928 = vmatpush.bf16.msra.mxu0 %v2646
  %3929 = vmatpush.bf16.msra.mxu0 %v2638
  %3930 = vmatmul.bf16.gmra.mxu0 %v244
  %v3931 = vpop.f32.mrf.mxu0
  %v3932 = vadd.f32 %v3919, %v3931
  %v3933 = vpop.f32.mrf.mxu0
  %3934 = vdwg.mxu0
  %3935 = vmatpush.bf16.msra.mxu0 %v2758
  %3936 = vmatpush.bf16.msra.mxu0 %v2750
  %3937 = vmatpush.bf16.msra.mxu0 %v2742
  %3938 = vmatpush.bf16.msra.mxu0 %v2734
  %3939 = vmatpush.bf16.msra.mxu0 %v2726
  %3940 = vmatpush.bf16.msra.mxu0 %v2718
  %3941 = vmatpush.bf16.msra.mxu0 %v2710
  %3942 = vmatpush.bf16.msra.mxu0 %v2702
  %3943 = vmatmul.bf16.gmra.mxu0 %v245
  %v3944 = vpop.f32.mrf.mxu0
  %v3945 = vadd.f32 %v3932, %v3944
  %v3946 = vpop.f32.mrf.mxu0
  %3947 = vdwg.mxu0
  %3948 = vmatpush.bf16.msra.mxu0 %v2822
  %3949 = vmatpush.bf16.msra.mxu0 %v2814
  %3950 = vmatpush.bf16.msra.mxu0 %v2806
  %3951 = vmatpush.bf16.msra.mxu0 %v2798
  %3952 = vmatpush.bf16.msra.mxu0 %v2790
  %3953 = vmatpush.bf16.msra.mxu0 %v2782
  %3954 = vmatpush.bf16.msra.mxu0 %v2774
  %3955 = vmatpush.bf16.msra.mxu0 %v2766
  %3956 = vmatmul.bf16.gmra.mxu0 %v246
  %v3957 = vpop.f32.mrf.mxu0
  %v3958 = vadd.f32 %v3945, %v3957
  %v3959 = vpop.f32.mrf.mxu0
  %3960 = vdwg.mxu0
  %3961 = vmatpush.bf16.msra.mxu0 %v2375
  %3962 = vmatpush.bf16.msra.mxu0 %v2367
  %3963 = vmatpush.bf16.msra.mxu0 %v2359
  %3964 = vmatpush.bf16.msra.mxu0 %v2351
  %3965 = vmatpush.bf16.msra.mxu0 %v2343
  %3966 = vmatpush.bf16.msra.mxu0 %v2335
  %3967 = vmatpush.bf16.msra.mxu0 %v2327
  %3968 = vmatpush.bf16.msra.mxu0 %v2319
  %3969 = vmatmul.bf16.gmra.mxu0 %v239
  %v3970 = vpop.f32.mrf.mxu0
  %v3971 = vadd.f32 %v767, %v3970
  %v3972 = vpop.f32.mrf.mxu0
  %3973 = vdwg.mxu0
  %3974 = vmatpush.bf16.msra.mxu0 %v2439
  %3975 = vmatpush.bf16.msra.mxu0 %v2431
  %3976 = vmatpush.bf16.msra.mxu0 %v2423
  %3977 = vmatpush.bf16.msra.mxu0 %v2415
  %3978 = vmatpush.bf16.msra.mxu0 %v2407
  %3979 = vmatpush.bf16.msra.mxu0 %v2399
  %3980 = vmatpush.bf16.msra.mxu0 %v2391
  %3981 = vmatpush.bf16.msra.mxu0 %v2383
  %3982 = vmatmul.bf16.gmra.mxu0 %v240
  %v3983 = vpop.f32.mrf.mxu0
  %v3984 = vadd.f32 %v3971, %v3983
  %v3985 = vpop.f32.mrf.mxu0
  %3986 = vdwg.mxu0
  %3987 = vmatpush.bf16.msra.mxu0 %v2503
  %3988 = vmatpush.bf16.msra.mxu0 %v2495
  %3989 = vmatpush.bf16.msra.mxu0 %v2487
  %3990 = vmatpush.bf16.msra.mxu0 %v2479
  %3991 = vmatpush.bf16.msra.mxu0 %v2471
  %3992 = vmatpush.bf16.msra.mxu0 %v2463
  %3993 = vmatpush.bf16.msra.mxu0 %v2455
  %3994 = vmatpush.bf16.msra.mxu0 %v2447
  %3995 = vmatmul.bf16.gmra.mxu0 %v241
  %v3996 = vpop.f32.mrf.mxu0
  %v3997 = vadd.f32 %v3984, %v3996
  %v3998 = vpop.f32.mrf.mxu0
  %3999 = vdwg.mxu0
  %4000 = vmatpush.bf16.msra.mxu0 %v2567
  %4001 = vmatpush.bf16.msra.mxu0 %v2559
  %4002 = vmatpush.bf16.msra.mxu0 %v2551
  %4003 = vmatpush.bf16.msra.mxu0 %v2543
  %4004 = vmatpush.bf16.msra.mxu0 %v2535
  %4005 = vmatpush.bf16.msra.mxu0 %v2527
  %4006 = vmatpush.bf16.msra.mxu0 %v2519
  %4007 = vmatpush.bf16.msra.mxu0 %v2511
  %4008 = vmatmul.bf16.gmra.mxu0 %v242
  %v4009 = vpop.f32.mrf.mxu0
  %v4010 = vadd.f32 %v3997, %v4009
  %v4011 = vpop.f32.mrf.mxu0
  %4012 = vdwg.mxu0
  %4013 = vmatpush.bf16.msra.mxu0 %v2631
  %4014 = vmatpush.bf16.msra.mxu0 %v2623
  %4015 = vmatpush.bf16.msra.mxu0 %v2615
  %4016 = vmatpush.bf16.msra.mxu0 %v2607
  %4017 = vmatpush.bf16.msra.mxu0 %v2599
  %4018 = vmatpush.bf16.msra.mxu0 %v2591
  %4019 = vmatpush.bf16.msra.mxu0 %v2583
  %4020 = vmatpush.bf16.msra.mxu0 %v2575
  %4021 = vmatmul.bf16.gmra.mxu0 %v243
  %v4022 = vpop.f32.mrf.mxu0
  %v4023 = vadd.f32 %v4010, %v4022
  %v4024 = vpop.f32.mrf.mxu0
  %4025 = vdwg.mxu0
  %4026 = vmatpush.bf16.msra.mxu0 %v2695
  %4027 = vmatpush.bf16.msra.mxu0 %v2687
  %4028 = vmatpush.bf16.msra.mxu0 %v2679
  %4029 = vmatpush.bf16.msra.mxu0 %v2671
  %4030 = vmatpush.bf16.msra.mxu0 %v2663
  %4031 = vmatpush.bf16.msra.mxu0 %v2655
  %4032 = vmatpush.bf16.msra.mxu0 %v2647
  %4033 = vmatpush.bf16.msra.mxu0 %v2639
  %4034 = vmatmul.bf16.gmra.mxu0 %v244
  %v4035 = vpop.f32.mrf.mxu0
  %v4036 = vadd.f32 %v4023, %v4035
  %v4037 = vpop.f32.mrf.mxu0
  %4038 = vdwg.mxu0
  %4039 = vmatpush.bf16.msra.mxu0 %v2759
  %4040 = vmatpush.bf16.msra.mxu0 %v2751
  %4041 = vmatpush.bf16.msra.mxu0 %v2743
  %4042 = vmatpush.bf16.msra.mxu0 %v2735
  %4043 = vmatpush.bf16.msra.mxu0 %v2727
  %4044 = vmatpush.bf16.msra.mxu0 %v2719
  %4045 = vmatpush.bf16.msra.mxu0 %v2711
  %4046 = vmatpush.bf16.msra.mxu0 %v2703
  %4047 = vmatmul.bf16.gmra.mxu0 %v245
  %v4048 = vpop.f32.mrf.mxu0
  %v4049 = vadd.f32 %v4036, %v4048
  %v4050 = vpop.f32.mrf.mxu0
  %4051 = vdwg.mxu0
  %4052 = vmatpush.bf16.msra.mxu0 %v2823
  %4053 = vmatpush.bf16.msra.mxu0 %v2815
  %4054 = vmatpush.bf16.msra.mxu0 %v2807
  %4055 = vmatpush.bf16.msra.mxu0 %v2799
  %4056 = vmatpush.bf16.msra.mxu0 %v2791
  %4057 = vmatpush.bf16.msra.mxu0 %v2783
  %4058 = vmatpush.bf16.msra.mxu0 %v2775
  %4059 = vmatpush.bf16.msra.mxu0 %v2767
  %4060 = vmatmul.bf16.gmra.mxu0 %v246
  %v4061 = vpop.f32.mrf.mxu0
  %v4062 = vadd.f32 %v4049, %v4061
  %v4063 = vpop.f32.mrf.mxu0
  %4064 = vdwg.mxu0
  %4065 = vmatpush.bf16.msra.mxu0 %v2376
  %4066 = vmatpush.bf16.msra.mxu0 %v2368
  %4067 = vmatpush.bf16.msra.mxu0 %v2360
  %4068 = vmatpush.bf16.msra.mxu0 %v2352
  %4069 = vmatpush.bf16.msra.mxu0 %v2344
  %4070 = vmatpush.bf16.msra.mxu0 %v2336
  %4071 = vmatpush.bf16.msra.mxu0 %v2328
  %4072 = vmatpush.bf16.msra.mxu0 %v2320
  %4073 = vmatmul.bf16.gmra.mxu0 %v239
  %v4074 = vpop.f32.mrf.mxu0
  %v4075 = vadd.f32 %v768, %v4074
  %v4076 = vpop.f32.mrf.mxu0
  %4077 = vdwg.mxu0
  %4078 = vmatpush.bf16.msra.mxu0 %v2440
  %4079 = vmatpush.bf16.msra.mxu0 %v2432
  %4080 = vmatpush.bf16.msra.mxu0 %v2424
  %4081 = vmatpush.bf16.msra.mxu0 %v2416
  %4082 = vmatpush.bf16.msra.mxu0 %v2408
  %4083 = vmatpush.bf16.msra.mxu0 %v2400
  %4084 = vmatpush.bf16.msra.mxu0 %v2392
  %4085 = vmatpush.bf16.msra.mxu0 %v2384
  %4086 = vmatmul.bf16.gmra.mxu0 %v240
  %v4087 = vpop.f32.mrf.mxu0
  %v4088 = vadd.f32 %v4075, %v4087
  %v4089 = vpop.f32.mrf.mxu0
  %4090 = vdwg.mxu0
  %4091 = vmatpush.bf16.msra.mxu0 %v2504
  %4092 = vmatpush.bf16.msra.mxu0 %v2496
  %4093 = vmatpush.bf16.msra.mxu0 %v2488
  %4094 = vmatpush.bf16.msra.mxu0 %v2480
  %4095 = vmatpush.bf16.msra.mxu0 %v2472
  %4096 = vmatpush.bf16.msra.mxu0 %v2464
  %4097 = vmatpush.bf16.msra.mxu0 %v2456
  %4098 = vmatpush.bf16.msra.mxu0 %v2448
  %4099 = vmatmul.bf16.gmra.mxu0 %v241
  %v4100 = vpop.f32.mrf.mxu0
  %v4101 = vadd.f32 %v4088, %v4100
  %v4102 = vpop.f32.mrf.mxu0
  %4103 = vdwg.mxu0
  %4104 = vmatpush.bf16.msra.mxu0 %v2568
  %4105 = vmatpush.bf16.msra.mxu0 %v2560
  %4106 = vmatpush.bf16.msra.mxu0 %v2552
  %4107 = vmatpush.bf16.msra.mxu0 %v2544
  %4108 = vmatpush.bf16.msra.mxu0 %v2536
  %4109 = vmatpush.bf16.msra.mxu0 %v2528
  %4110 = vmatpush.bf16.msra.mxu0 %v2520
  %4111 = vmatpush.bf16.msra.mxu0 %v2512
  %4112 = vmatmul.bf16.gmra.mxu0 %v242
  %v4113 = vpop.f32.mrf.mxu0
  %v4114 = vadd.f32 %v4101, %v4113
  %v4115 = vpop.f32.mrf.mxu0
  %4116 = vdwg.mxu0
  %4117 = vmatpush.bf16.msra.mxu0 %v2632
  %4118 = vmatpush.bf16.msra.mxu0 %v2624
  %4119 = vmatpush.bf16.msra.mxu0 %v2616
  %4120 = vmatpush.bf16.msra.mxu0 %v2608
  %4121 = vmatpush.bf16.msra.mxu0 %v2600
  %4122 = vmatpush.bf16.msra.mxu0 %v2592
  %4123 = vmatpush.bf16.msra.mxu0 %v2584
  %4124 = vmatpush.bf16.msra.mxu0 %v2576
  %4125 = vmatmul.bf16.gmra.mxu0 %v243
  %v4126 = vpop.f32.mrf.mxu0
  %v4127 = vadd.f32 %v4114, %v4126
  %v4128 = vpop.f32.mrf.mxu0
  %4129 = vdwg.mxu0
  %4130 = vmatpush.bf16.msra.mxu0 %v2696
  %4131 = vmatpush.bf16.msra.mxu0 %v2688
  %4132 = vmatpush.bf16.msra.mxu0 %v2680
  %4133 = vmatpush.bf16.msra.mxu0 %v2672
  %4134 = vmatpush.bf16.msra.mxu0 %v2664
  %4135 = vmatpush.bf16.msra.mxu0 %v2656
  %4136 = vmatpush.bf16.msra.mxu0 %v2648
  %4137 = vmatpush.bf16.msra.mxu0 %v2640
  %4138 = vmatmul.bf16.gmra.mxu0 %v244
  %v4139 = vpop.f32.mrf.mxu0
  %v4140 = vadd.f32 %v4127, %v4139
  %v4141 = vpop.f32.mrf.mxu0
  %4142 = vdwg.mxu0
  %4143 = vmatpush.bf16.msra.mxu0 %v2760
  %4144 = vmatpush.bf16.msra.mxu0 %v2752
  %4145 = vmatpush.bf16.msra.mxu0 %v2744
  %4146 = vmatpush.bf16.msra.mxu0 %v2736
  %4147 = vmatpush.bf16.msra.mxu0 %v2728
  %4148 = vmatpush.bf16.msra.mxu0 %v2720
  %4149 = vmatpush.bf16.msra.mxu0 %v2712
  %4150 = vmatpush.bf16.msra.mxu0 %v2704
  %4151 = vmatmul.bf16.gmra.mxu0 %v245
  %v4152 = vpop.f32.mrf.mxu0
  %v4153 = vadd.f32 %v4140, %v4152
  %v4154 = vpop.f32.mrf.mxu0
  %4155 = vdwg.mxu0
  %4156 = vmatpush.bf16.msra.mxu0 %v2824
  %4157 = vmatpush.bf16.msra.mxu0 %v2816
  %4158 = vmatpush.bf16.msra.mxu0 %v2808
  %4159 = vmatpush.bf16.msra.mxu0 %v2800
  %4160 = vmatpush.bf16.msra.mxu0 %v2792
  %4161 = vmatpush.bf16.msra.mxu0 %v2784
  %4162 = vmatpush.bf16.msra.mxu0 %v2776
  %4163 = vmatpush.bf16.msra.mxu0 %v2768
  %4164 = vmatmul.bf16.gmra.mxu0 %v246
  %v4165 = vpop.f32.mrf.mxu0
  %v4166 = vadd.f32 %v4153, %v4165
  %v4167 = vpop.f32.mrf.mxu0
  %4168 = vdwg.mxu0
  %v4169 = vtanh.pop %v3438
  %v4170 = vtanh.pop %v3542
  %v4171 = vtanh.pop %v3646
  %v4172 = vtanh.pop %v3750
  %v4173 = vtanh.pop %v3854
  %v4174 = vtanh.pop %v3958
  %v4175 = vtanh.pop %v4062
  %v4176 = vtanh.pop %v4166
  %v4177 = vld [vmem:[%s0] sm:$0xff]
  %v4178 = vld [vmem:[%s0 + $0x8] sm:$0xff]
  %v4187 = vrot.slane %v4170, 6
  %v4188 = vrot.slane %v4171, 4
  %v4189 = vrot.slane %v4172, 2
  %v4190 = vrot.slane %v4174, 6
  %v4191 = vrot.slane %v4175, 4
  %v4192 = vrot.slane %v4176, 2
  %vm4193 = vcmask 1041408
  %v4194 = vsel %vm4193, %v4169, %v4187
  %vm4195 = vcmask 1045508
  %v4196 = vsel %vm4195, %v4188, %v4189
  %vm4197 = vcmask 1043456
  %v4198 = vsel %vm4197, %v4194, %v4196
  %v4199 = vsel %vm4193, %v4173, %v4190
  %v4200 = vsel %vm4195, %v4191, %v4192
  %v4201 = vsel %vm4197, %v4199, %v4200
  %v4204 = vadd.f32 %v4177, %v4198
  %v4205 = vadd.f32 %v4178, %v4201
  %4208 = vst [vmem:[#allocation1] ss:$4 sm:$0xff] %v4204
  %s4209 = scalar_lea.vmem [#allocation1], 32
  %4210 = vst [vmem:[%s4209] ss:$4 sm:$0xff] %v4205
  %v4211 = vld.sshfl [vmem:[#allocation1] sm:$0xff pattern:$0x73625140]
  %v4212 = vld.sshfl [vmem:[#allocation1 + $0x8] sm:$0xff pattern:$0x73625140]
  %v4213 = vld.sshfl [vmem:[#allocation1 + $0x10] sm:$0xff pattern:$0x73625140]
  %v4214 = vld.sshfl [vmem:[#allocation1 + $0x18] sm:$0xff pattern:$0x73625140]
  %v4215 = vld.sshfl [vmem:[#allocation1 + $0x20] sm:$0xff pattern:$0x73625140]
  %v4216 = vld.sshfl [vmem:[#allocation1 + $0x28] sm:$0xff pattern:$0x73625140]
  %v4217 = vld.sshfl [vmem:[#allocation1 + $0x30] sm:$0xff pattern:$0x73625140]
  %v4218 = vld.sshfl [vmem:[#allocation1 + $0x38] sm:$0xff pattern:$0x73625140]
  %v4227 = vpack.c.bf16 %v4211, %v4211
  %v4228 = vpack.c.bf16 %v4212, %v4212
  %v4229 = vpack.c.bf16 %v4213, %v4213
  %v4230 = vpack.c.bf16 %v4214, %v4214
  %v4231 = vpack.c.bf16 %v4215, %v4215
  %v4232 = vpack.c.bf16 %v4216, %v4216
  %v4233 = vpack.c.bf16 %v4217, %v4217
  %v4234 = vpack.c.bf16 %v4218, %v4218
  %v4235 = vld [vmem:[%s6] sm:$0xff]
  %v4236 = vld [vmem:[%s6 + $0x8] sm:$0xff]
  %v4237 = vld [vmem:[%s6 + $0x10] sm:$0xff]
  %v4238 = vld [vmem:[%s6 + $0x18] sm:$0xff]
  %v4239 = vld [vmem:[%s6 + $0x20] sm:$0xff]
  %v4240 = vld [vmem:[%s6 + $0x28] sm:$0xff]
  %v4241 = vld [vmem:[%s6 + $0x30] sm:$0xff]
  %v4242 = vld [vmem:[%s6 + $0x38] sm:$0xff]
  %v4243 = vld [vmem:[%s6 + $0x40] sm:$0xff]
  %v4244 = vld [vmem:[%s6 + $0x48] sm:$0xff]
  %v4245 = vld [vmem:[%s6 + $0x50] sm:$0xff]
  %v4246 = vld [vmem:[%s6 + $0x58] sm:$0xff]
  %v4247 = vld [vmem:[%s6 + $0x60] sm:$0xff]
  %v4248 = vld [vmem:[%s6 + $0x68] sm:$0xff]
  %v4249 = vld [vmem:[%s6 + $0x70] sm:$0xff]
  %v4250 = vld [vmem:[%s6 + $0x78] sm:$0xff]
  %v4251 = vld [vmem:[%s6 + $0x80] sm:$0xff]
  %v4252 = vld [vmem:[%s6 + $0x88] sm:$0xff]
  %v4253 = vld [vmem:[%s6 + $0x90] sm:$0xff]
  %v4254 = vld [vmem:[%s6 + $0x98] sm:$0xff]
  %v4255 = vld [vmem:[%s6 + $0xa0] sm:$0xff]
  %v4256 = vld [vmem:[%s6 + $0xa8] sm:$0xff]
  %v4257 = vld [vmem:[%s6 + $0xb0] sm:$0xff]
  %v4258 = vld [vmem:[%s6 + $0xb8] sm:$0xff]
  %v4259 = vld [vmem:[%s6 + $0xc0] sm:$0xff]
  %v4260 = vld [vmem:[%s6 + $0xc8] sm:$0xff]
  %v4261 = vld [vmem:[%s6 + $0xd0] sm:$0xff]
  %v4262 = vld [vmem:[%s6 + $0xd8] sm:$0xff]
  %v4263 = vld [vmem:[%s6 + $0xe0] sm:$0xff]
  %v4264 = vld [vmem:[%s6 + $0xe8] sm:$0xff]
  %v4265 = vld [vmem:[%s6 + $0xf0] sm:$0xff]
  %v4266 = vld [vmem:[%s6 + $0xf8] sm:$0xff]
  %v4267 = vld [vmem:[%s6 + $0x100] sm:$0xff]
  %v4268 = vld [vmem:[%s6 + $0x108] sm:$0xff]
  %v4269 = vld [vmem:[%s6 + $0x110] sm:$0xff]
  %v4270 = vld [vmem:[%s6 + $0x118] sm:$0xff]
  %v4271 = vld [vmem:[%s6 + $0x120] sm:$0xff]
  %v4272 = vld [vmem:[%s6 + $0x128] sm:$0xff]
  %v4273 = vld [vmem:[%s6 + $0x130] sm:$0xff]
  %v4274 = vld [vmem:[%s6 + $0x138] sm:$0xff]
  %v4275 = vld [vmem:[%s6 + $0x140] sm:$0xff]
  %v4276 = vld [vmem:[%s6 + $0x148] sm:$0xff]
  %v4277 = vld [vmem:[%s6 + $0x150] sm:$0xff]
  %v4278 = vld [vmem:[%s6 + $0x158] sm:$0xff]
  %v4279 = vld [vmem:[%s6 + $0x160] sm:$0xff]
  %v4280 = vld [vmem:[%s6 + $0x168] sm:$0xff]
  %v4281 = vld [vmem:[%s6 + $0x170] sm:$0xff]
  %v4282 = vld [vmem:[%s6 + $0x178] sm:$0xff]
  %v4283 = vld [vmem:[%s6 + $0x180] sm:$0xff]
  %v4284 = vld [vmem:[%s6 + $0x188] sm:$0xff]
  %v4285 = vld [vmem:[%s6 + $0x190] sm:$0xff]
  %v4286 = vld [vmem:[%s6 + $0x198] sm:$0xff]
  %v4287 = vld [vmem:[%s6 + $0x1a0] sm:$0xff]
  %v4288 = vld [vmem:[%s6 + $0x1a8] sm:$0xff]
  %v4289 = vld [vmem:[%s6 + $0x1b0] sm:$0xff]
  %v4290 = vld [vmem:[%s6 + $0x1b8] sm:$0xff]
  %v4291 = vld [vmem:[%s6 + $0x1c0] sm:$0xff]
  %v4292 = vld [vmem:[%s6 + $0x1c8] sm:$0xff]
  %v4293 = vld [vmem:[%s6 + $0x1d0] sm:$0xff]
  %v4294 = vld [vmem:[%s6 + $0x1d8] sm:$0xff]
  %v4295 = vld [vmem:[%s6 + $0x1e0] sm:$0xff]
  %v4296 = vld [vmem:[%s6 + $0x1e8] sm:$0xff]
  %v4297 = vld [vmem:[%s6 + $0x1f0] sm:$0xff]
  %v4298 = vld [vmem:[%s6 + $0x1f8] sm:$0xff]
  %v4299 = vld [vmem:[%s6 + $0x200] sm:$0xff]
  %v4300 = vld [vmem:[%s6 + $0x208] sm:$0xff]
  %v4301 = vld [vmem:[%s6 + $0x210] sm:$0xff]
  %v4302 = vld [vmem:[%s6 + $0x218] sm:$0xff]
  %v4303 = vld [vmem:[%s6 + $0x220] sm:$0xff]
  %v4304 = vld [vmem:[%s6 + $0x228] sm:$0xff]
  %v4305 = vld [vmem:[%s6 + $0x230] sm:$0xff]
  %v4306 = vld [vmem:[%s6 + $0x238] sm:$0xff]
  %v4307 = vld [vmem:[%s6 + $0x240] sm:$0xff]
  %v4308 = vld [vmem:[%s6 + $0x248] sm:$0xff]
  %v4309 = vld [vmem:[%s6 + $0x250] sm:$0xff]
  %v4310 = vld [vmem:[%s6 + $0x258] sm:$0xff]
  %v4311 = vld [vmem:[%s6 + $0x260] sm:$0xff]
  %v4312 = vld [vmem:[%s6 + $0x268] sm:$0xff]
  %v4313 = vld [vmem:[%s6 + $0x270] sm:$0xff]
  %v4314 = vld [vmem:[%s6 + $0x278] sm:$0xff]
  %v4315 = vld [vmem:[%s6 + $0x280] sm:$0xff]
  %v4316 = vld [vmem:[%s6 + $0x288] sm:$0xff]
  %v4317 = vld [vmem:[%s6 + $0x290] sm:$0xff]
  %v4318 = vld [vmem:[%s6 + $0x298] sm:$0xff]
  %v4319 = vld [vmem:[%s6 + $0x2a0] sm:$0xff]
  %v4320 = vld [vmem:[%s6 + $0x2a8] sm:$0xff]
  %v4321 = vld [vmem:[%s6 + $0x2b0] sm:$0xff]
  %v4322 = vld [vmem:[%s6 + $0x2b8] sm:$0xff]
  %v4323 = vld [vmem:[%s6 + $0x2c0] sm:$0xff]
  %v4324 = vld [vmem:[%s6 + $0x2c8] sm:$0xff]
  %v4325 = vld [vmem:[%s6 + $0x2d0] sm:$0xff]
  %v4326 = vld [vmem:[%s6 + $0x2d8] sm:$0xff]
  %v4327 = vld [vmem:[%s6 + $0x2e0] sm:$0xff]
  %v4328 = vld [vmem:[%s6 + $0x2e8] sm:$0xff]
  %v4329 = vld [vmem:[%s6 + $0x2f0] sm:$0xff]
  %v4330 = vld [vmem:[%s6 + $0x2f8] sm:$0xff]
  %v4331 = vld [vmem:[%s6 + $0x300] sm:$0xff]
  %v4332 = vld [vmem:[%s6 + $0x308] sm:$0xff]
  %v4333 = vld [vmem:[%s6 + $0x310] sm:$0xff]
  %v4334 = vld [vmem:[%s6 + $0x318] sm:$0xff]
  %v4335 = vld [vmem:[%s6 + $0x320] sm:$0xff]
  %v4336 = vld [vmem:[%s6 + $0x328] sm:$0xff]
  %v4337 = vld [vmem:[%s6 + $0x330] sm:$0xff]
  %v4338 = vld [vmem:[%s6 + $0x338] sm:$0xff]
  %v4339 = vld [vmem:[%s6 + $0x340] sm:$0xff]
  %v4340 = vld [vmem:[%s6 + $0x348] sm:$0xff]
  %v4341 = vld [vmem:[%s6 + $0x350] sm:$0xff]
  %v4342 = vld [vmem:[%s6 + $0x358] sm:$0xff]
  %v4343 = vld [vmem:[%s6 + $0x360] sm:$0xff]
  %v4344 = vld [vmem:[%s6 + $0x368] sm:$0xff]
  %v4345 = vld [vmem:[%s6 + $0x370] sm:$0xff]
  %v4346 = vld [vmem:[%s6 + $0x378] sm:$0xff]
  %v4347 = vld [vmem:[%s6 + $0x380] sm:$0xff]
  %v4348 = vld [vmem:[%s6 + $0x388] sm:$0xff]
  %v4349 = vld [vmem:[%s6 + $0x390] sm:$0xff]
  %v4350 = vld [vmem:[%s6 + $0x398] sm:$0xff]
  %v4351 = vld [vmem:[%s6 + $0x3a0] sm:$0xff]
  %v4352 = vld [vmem:[%s6 + $0x3a8] sm:$0xff]
  %v4353 = vld [vmem:[%s6 + $0x3b0] sm:$0xff]
  %v4354 = vld [vmem:[%s6 + $0x3b8] sm:$0xff]
  %v4355 = vld [vmem:[%s6 + $0x3c0] sm:$0xff]
  %v4356 = vld [vmem:[%s6 + $0x3c8] sm:$0xff]
  %v4357 = vld [vmem:[%s6 + $0x3d0] sm:$0xff]
  %v4358 = vld [vmem:[%s6 + $0x3d8] sm:$0xff]
  %v4359 = vld [vmem:[%s6 + $0x3e0] sm:$0xff]
  %v4360 = vld [vmem:[%s6 + $0x3e8] sm:$0xff]
  %v4361 = vld [vmem:[%s6 + $0x3f0] sm:$0xff]
  %v4362 = vld [vmem:[%s6 + $0x3f8] sm:$0xff]
  %v4363 = vld [vmem:[%s6 + $0x400] sm:$0xff]
  %v4364 = vld [vmem:[%s6 + $0x408] sm:$0xff]
  %v4365 = vld [vmem:[%s6 + $0x410] sm:$0xff]
  %v4366 = vld [vmem:[%s6 + $0x418] sm:$0xff]
  %v4367 = vld [vmem:[%s6 + $0x420] sm:$0xff]
  %v4368 = vld [vmem:[%s6 + $0x428] sm:$0xff]
  %v4369 = vld [vmem:[%s6 + $0x430] sm:$0xff]
  %v4370 = vld [vmem:[%s6 + $0x438] sm:$0xff]
  %v4371 = vld [vmem:[%s6 + $0x440] sm:$0xff]
  %v4372 = vld [vmem:[%s6 + $0x448] sm:$0xff]
  %v4373 = vld [vmem:[%s6 + $0x450] sm:$0xff]
  %v4374 = vld [vmem:[%s6 + $0x458] sm:$0xff]
  %v4375 = vld [vmem:[%s6 + $0x460] sm:$0xff]
  %v4376 = vld [vmem:[%s6 + $0x468] sm:$0xff]
  %v4377 = vld [vmem:[%s6 + $0x470] sm:$0xff]
  %v4378 = vld [vmem:[%s6 + $0x478] sm:$0xff]
  %v4379 = vld [vmem:[%s6 + $0x480] sm:$0xff]
  %v4380 = vld [vmem:[%s6 + $0x488] sm:$0xff]
  %v4381 = vld [vmem:[%s6 + $0x490] sm:$0xff]
  %v4382 = vld [vmem:[%s6 + $0x498] sm:$0xff]
  %v4383 = vld [vmem:[%s6 + $0x4a0] sm:$0xff]
  %v4384 = vld [vmem:[%s6 + $0x4a8] sm:$0xff]
  %v4385 = vld [vmem:[%s6 + $0x4b0] sm:$0xff]
  %v4386 = vld [vmem:[%s6 + $0x4b8] sm:$0xff]
  %v4387 = vld [vmem:[%s6 + $0x4c0] sm:$0xff]
  %v4388 = vld [vmem:[%s6 + $0x4c8] sm:$0xff]
  %v4389 = vld [vmem:[%s6 + $0x4d0] sm:$0xff]
  %v4390 = vld [vmem:[%s6 + $0x4d8] sm:$0xff]
  %v4391 = vld [vmem:[%s6 + $0x4e0] sm:$0xff]
  %v4392 = vld [vmem:[%s6 + $0x4e8] sm:$0xff]
  %v4393 = vld [vmem:[%s6 + $0x4f0] sm:$0xff]
  %v4394 = vld [vmem:[%s6 + $0x4f8] sm:$0xff]
  %v4395 = vld [vmem:[%s6 + $0x500] sm:$0xff]
  %v4396 = vld [vmem:[%s6 + $0x508] sm:$0xff]
  %v4397 = vld [vmem:[%s6 + $0x510] sm:$0xff]
  %v4398 = vld [vmem:[%s6 + $0x518] sm:$0xff]
  %v4399 = vld [vmem:[%s6 + $0x520] sm:$0xff]
  %v4400 = vld [vmem:[%s6 + $0x528] sm:$0xff]
  %v4401 = vld [vmem:[%s6 + $0x530] sm:$0xff]
  %v4402 = vld [vmem:[%s6 + $0x538] sm:$0xff]
  %v4403 = vld [vmem:[%s6 + $0x540] sm:$0xff]
  %v4404 = vld [vmem:[%s6 + $0x548] sm:$0xff]
  %v4405 = vld [vmem:[%s6 + $0x550] sm:$0xff]
  %v4406 = vld [vmem:[%s6 + $0x558] sm:$0xff]
  %v4407 = vld [vmem:[%s6 + $0x560] sm:$0xff]
  %v4408 = vld [vmem:[%s6 + $0x568] sm:$0xff]
  %v4409 = vld [vmem:[%s6 + $0x570] sm:$0xff]
  %v4410 = vld [vmem:[%s6 + $0x578] sm:$0xff]
  %v4411 = vld [vmem:[%s6 + $0x580] sm:$0xff]
  %v4412 = vld [vmem:[%s6 + $0x588] sm:$0xff]
  %v4413 = vld [vmem:[%s6 + $0x590] sm:$0xff]
  %v4414 = vld [vmem:[%s6 + $0x598] sm:$0xff]
  %v4415 = vld [vmem:[%s6 + $0x5a0] sm:$0xff]
  %v4416 = vld [vmem:[%s6 + $0x5a8] sm:$0xff]
  %v4417 = vld [vmem:[%s6 + $0x5b0] sm:$0xff]
  %v4418 = vld [vmem:[%s6 + $0x5b8] sm:$0xff]
  %v4419 = vld [vmem:[%s6 + $0x5c0] sm:$0xff]
  %v4420 = vld [vmem:[%s6 + $0x5c8] sm:$0xff]
  %v4421 = vld [vmem:[%s6 + $0x5d0] sm:$0xff]
  %v4422 = vld [vmem:[%s6 + $0x5d8] sm:$0xff]
  %v4423 = vld [vmem:[%s6 + $0x5e0] sm:$0xff]
  %v4424 = vld [vmem:[%s6 + $0x5e8] sm:$0xff]
  %v4425 = vld [vmem:[%s6 + $0x5f0] sm:$0xff]
  %v4426 = vld [vmem:[%s6 + $0x5f8] sm:$0xff]
  %v4427 = vld [vmem:[%s6 + $0x600] sm:$0xff]
  %v4428 = vld [vmem:[%s6 + $0x608] sm:$0xff]
  %v4429 = vld [vmem:[%s6 + $0x610] sm:$0xff]
  %v4430 = vld [vmem:[%s6 + $0x618] sm:$0xff]
  %v4431 = vld [vmem:[%s6 + $0x620] sm:$0xff]
  %v4432 = vld [vmem:[%s6 + $0x628] sm:$0xff]
  %v4433 = vld [vmem:[%s6 + $0x630] sm:$0xff]
  %v4434 = vld [vmem:[%s6 + $0x638] sm:$0xff]
  %v4435 = vld [vmem:[%s6 + $0x640] sm:$0xff]
  %v4436 = vld [vmem:[%s6 + $0x648] sm:$0xff]
  %v4437 = vld [vmem:[%s6 + $0x650] sm:$0xff]
  %v4438 = vld [vmem:[%s6 + $0x658] sm:$0xff]
  %v4439 = vld [vmem:[%s6 + $0x660] sm:$0xff]
  %v4440 = vld [vmem:[%s6 + $0x668] sm:$0xff]
  %v4441 = vld [vmem:[%s6 + $0x670] sm:$0xff]
  %v4442 = vld [vmem:[%s6 + $0x678] sm:$0xff]
  %v4443 = vld [vmem:[%s6 + $0x680] sm:$0xff]
  %v4444 = vld [vmem:[%s6 + $0x688] sm:$0xff]
  %v4445 = vld [vmem:[%s6 + $0x690] sm:$0xff]
  %v4446 = vld [vmem:[%s6 + $0x698] sm:$0xff]
  %v4447 = vld [vmem:[%s6 + $0x6a0] sm:$0xff]
  %v4448 = vld [vmem:[%s6 + $0x6a8] sm:$0xff]
  %v4449 = vld [vmem:[%s6 + $0x6b0] sm:$0xff]
  %v4450 = vld [vmem:[%s6 + $0x6b8] sm:$0xff]
  %v4451 = vld [vmem:[%s6 + $0x6c0] sm:$0xff]
  %v4452 = vld [vmem:[%s6 + $0x6c8] sm:$0xff]
  %v4453 = vld [vmem:[%s6 + $0x6d0] sm:$0xff]
  %v4454 = vld [vmem:[%s6 + $0x6d8] sm:$0xff]
  %v4455 = vld [vmem:[%s6 + $0x6e0] sm:$0xff]
  %v4456 = vld [vmem:[%s6 + $0x6e8] sm:$0xff]
  %v4457 = vld [vmem:[%s6 + $0x6f0] sm:$0xff]
  %v4458 = vld [vmem:[%s6 + $0x6f8] sm:$0xff]
  %v4459 = vld [vmem:[%s6 + $0x700] sm:$0xff]
  %v4460 = vld [vmem:[%s6 + $0x708] sm:$0xff]
  %v4461 = vld [vmem:[%s6 + $0x710] sm:$0xff]
  %v4462 = vld [vmem:[%s6 + $0x718] sm:$0xff]
  %v4463 = vld [vmem:[%s6 + $0x720] sm:$0xff]
  %v4464 = vld [vmem:[%s6 + $0x728] sm:$0xff]
  %v4465 = vld [vmem:[%s6 + $0x730] sm:$0xff]
  %v4466 = vld [vmem:[%s6 + $0x738] sm:$0xff]
  %v4467 = vld [vmem:[%s6 + $0x740] sm:$0xff]
  %v4468 = vld [vmem:[%s6 + $0x748] sm:$0xff]
  %v4469 = vld [vmem:[%s6 + $0x750] sm:$0xff]
  %v4470 = vld [vmem:[%s6 + $0x758] sm:$0xff]
  %v4471 = vld [vmem:[%s6 + $0x760] sm:$0xff]
  %v4472 = vld [vmem:[%s6 + $0x768] sm:$0xff]
  %v4473 = vld [vmem:[%s6 + $0x770] sm:$0xff]
  %v4474 = vld [vmem:[%s6 + $0x778] sm:$0xff]
  %v4475 = vld [vmem:[%s6 + $0x780] sm:$0xff]
  %v4476 = vld [vmem:[%s6 + $0x788] sm:$0xff]
  %v4477 = vld [vmem:[%s6 + $0x790] sm:$0xff]
  %v4478 = vld [vmem:[%s6 + $0x798] sm:$0xff]
  %v4479 = vld [vmem:[%s6 + $0x7a0] sm:$0xff]
  %v4480 = vld [vmem:[%s6 + $0x7a8] sm:$0xff]
  %v4481 = vld [vmem:[%s6 + $0x7b0] sm:$0xff]
  %v4482 = vld [vmem:[%s6 + $0x7b8] sm:$0xff]
  %v4483 = vld [vmem:[%s6 + $0x7c0] sm:$0xff]
  %v4484 = vld [vmem:[%s6 + $0x7c8] sm:$0xff]
  %v4485 = vld [vmem:[%s6 + $0x7d0] sm:$0xff]
  %v4486 = vld [vmem:[%s6 + $0x7d8] sm:$0xff]
  %v4487 = vld [vmem:[%s6 + $0x7e0] sm:$0xff]
  %v4488 = vld [vmem:[%s6 + $0x7e8] sm:$0xff]
  %v4489 = vld [vmem:[%s6 + $0x7f0] sm:$0xff]
  %v4490 = vld [vmem:[%s6 + $0x7f8] sm:$0xff]
  %v4491 = vld [vmem:[%s6 + $0x800] sm:$0xff]
  %v4492 = vld [vmem:[%s6 + $0x808] sm:$0xff]
  %v4493 = vld [vmem:[%s6 + $0x810] sm:$0xff]
  %v4494 = vld [vmem:[%s6 + $0x818] sm:$0xff]
  %v4495 = vld [vmem:[%s6 + $0x820] sm:$0xff]
  %v4496 = vld [vmem:[%s6 + $0x828] sm:$0xff]
  %v4497 = vld [vmem:[%s6 + $0x830] sm:$0xff]
  %v4498 = vld [vmem:[%s6 + $0x838] sm:$0xff]
  %v4499 = vld [vmem:[%s6 + $0x840] sm:$0xff]
  %v4500 = vld [vmem:[%s6 + $0x848] sm:$0xff]
  %v4501 = vld [vmem:[%s6 + $0x850] sm:$0xff]
  %v4502 = vld [vmem:[%s6 + $0x858] sm:$0xff]
  %v4503 = vld [vmem:[%s6 + $0x860] sm:$0xff]
  %v4504 = vld [vmem:[%s6 + $0x868] sm:$0xff]
  %v4505 = vld [vmem:[%s6 + $0x870] sm:$0xff]
  %v4506 = vld [vmem:[%s6 + $0x878] sm:$0xff]
  %v4507 = vld [vmem:[%s6 + $0x880] sm:$0xff]
  %v4508 = vld [vmem:[%s6 + $0x888] sm:$0xff]
  %v4509 = vld [vmem:[%s6 + $0x890] sm:$0xff]
  %v4510 = vld [vmem:[%s6 + $0x898] sm:$0xff]
  %v4511 = vld [vmem:[%s6 + $0x8a0] sm:$0xff]
  %v4512 = vld [vmem:[%s6 + $0x8a8] sm:$0xff]
  %v4513 = vld [vmem:[%s6 + $0x8b0] sm:$0xff]
  %v4514 = vld [vmem:[%s6 + $0x8b8] sm:$0xff]
  %v4515 = vld [vmem:[%s6 + $0x8c0] sm:$0xff]
  %v4516 = vld [vmem:[%s6 + $0x8c8] sm:$0xff]
  %v4517 = vld [vmem:[%s6 + $0x8d0] sm:$0xff]
  %v4518 = vld [vmem:[%s6 + $0x8d8] sm:$0xff]
  %v4519 = vld [vmem:[%s6 + $0x8e0] sm:$0xff]
  %v4520 = vld [vmem:[%s6 + $0x8e8] sm:$0xff]
  %v4521 = vld [vmem:[%s6 + $0x8f0] sm:$0xff]
  %v4522 = vld [vmem:[%s6 + $0x8f8] sm:$0xff]
  %v4523 = vld [vmem:[%s6 + $0x900] sm:$0xff]
  %v4524 = vld [vmem:[%s6 + $0x908] sm:$0xff]
  %v4525 = vld [vmem:[%s6 + $0x910] sm:$0xff]
  %v4526 = vld [vmem:[%s6 + $0x918] sm:$0xff]
  %v4527 = vld [vmem:[%s6 + $0x920] sm:$0xff]
  %v4528 = vld [vmem:[%s6 + $0x928] sm:$0xff]
  %v4529 = vld [vmem:[%s6 + $0x930] sm:$0xff]
  %v4530 = vld [vmem:[%s6 + $0x938] sm:$0xff]
  %v4531 = vld [vmem:[%s6 + $0x940] sm:$0xff]
  %v4532 = vld [vmem:[%s6 + $0x948] sm:$0xff]
  %v4533 = vld [vmem:[%s6 + $0x950] sm:$0xff]
  %v4534 = vld [vmem:[%s6 + $0x958] sm:$0xff]
  %v4535 = vld [vmem:[%s6 + $0x960] sm:$0xff]
  %v4536 = vld [vmem:[%s6 + $0x968] sm:$0xff]
  %v4537 = vld [vmem:[%s6 + $0x970] sm:$0xff]
  %v4538 = vld [vmem:[%s6 + $0x978] sm:$0xff]
  %v4539 = vld [vmem:[%s6 + $0x980] sm:$0xff]
  %v4540 = vld [vmem:[%s6 + $0x988] sm:$0xff]
  %v4541 = vld [vmem:[%s6 + $0x990] sm:$0xff]
  %v4542 = vld [vmem:[%s6 + $0x998] sm:$0xff]
  %v4543 = vld [vmem:[%s6 + $0x9a0] sm:$0xff]
  %v4544 = vld [vmem:[%s6 + $0x9a8] sm:$0xff]
  %v4545 = vld [vmem:[%s6 + $0x9b0] sm:$0xff]
  %v4546 = vld [vmem:[%s6 + $0x9b8] sm:$0xff]
  %v4547 = vld [vmem:[%s6 + $0x9c0] sm:$0xff]
  %v4548 = vld [vmem:[%s6 + $0x9c8] sm:$0xff]
  %v4549 = vld [vmem:[%s6 + $0x9d0] sm:$0xff]
  %v4550 = vld [vmem:[%s6 + $0x9d8] sm:$0xff]
  %v4551 = vld [vmem:[%s6 + $0x9e0] sm:$0xff]
  %v4552 = vld [vmem:[%s6 + $0x9e8] sm:$0xff]
  %v4553 = vld [vmem:[%s6 + $0x9f0] sm:$0xff]
  %v4554 = vld [vmem:[%s6 + $0x9f8] sm:$0xff]
  %v4555 = vld [vmem:[%s6 + $0xa00] sm:$0xff]
  %v4556 = vld [vmem:[%s6 + $0xa08] sm:$0xff]
  %v4557 = vld [vmem:[%s6 + $0xa10] sm:$0xff]
  %v4558 = vld [vmem:[%s6 + $0xa18] sm:$0xff]
  %v4559 = vld [vmem:[%s6 + $0xa20] sm:$0xff]
  %v4560 = vld [vmem:[%s6 + $0xa28] sm:$0xff]
  %v4561 = vld [vmem:[%s6 + $0xa30] sm:$0xff]
  %v4562 = vld [vmem:[%s6 + $0xa38] sm:$0xff]
  %v4563 = vld [vmem:[%s6 + $0xa40] sm:$0xff]
  %v4564 = vld [vmem:[%s6 + $0xa48] sm:$0xff]
  %v4565 = vld [vmem:[%s6 + $0xa50] sm:$0xff]
  %v4566 = vld [vmem:[%s6 + $0xa58] sm:$0xff]
  %v4567 = vld [vmem:[%s6 + $0xa60] sm:$0xff]
  %v4568 = vld [vmem:[%s6 + $0xa68] sm:$0xff]
  %v4569 = vld [vmem:[%s6 + $0xa70] sm:$0xff]
  %v4570 = vld [vmem:[%s6 + $0xa78] sm:$0xff]
  %v4571 = vld [vmem:[%s6 + $0xa80] sm:$0xff]
  %v4572 = vld [vmem:[%s6 + $0xa88] sm:$0xff]
  %v4573 = vld [vmem:[%s6 + $0xa90] sm:$0xff]
  %v4574 = vld [vmem:[%s6 + $0xa98] sm:$0xff]
  %v4575 = vld [vmem:[%s6 + $0xaa0] sm:$0xff]
  %v4576 = vld [vmem:[%s6 + $0xaa8] sm:$0xff]
  %v4577 = vld [vmem:[%s6 + $0xab0] sm:$0xff]
  %v4578 = vld [vmem:[%s6 + $0xab8] sm:$0xff]
  %v4579 = vld [vmem:[%s6 + $0xac0] sm:$0xff]
  %v4580 = vld [vmem:[%s6 + $0xac8] sm:$0xff]
  %v4581 = vld [vmem:[%s6 + $0xad0] sm:$0xff]
  %v4582 = vld [vmem:[%s6 + $0xad8] sm:$0xff]
  %v4583 = vld [vmem:[%s6 + $0xae0] sm:$0xff]
  %v4584 = vld [vmem:[%s6 + $0xae8] sm:$0xff]
  %v4585 = vld [vmem:[%s6 + $0xaf0] sm:$0xff]
  %v4586 = vld [vmem:[%s6 + $0xaf8] sm:$0xff]
  %v4587 = vld [vmem:[%s6 + $0xb00] sm:$0xff]
  %v4588 = vld [vmem:[%s6 + $0xb08] sm:$0xff]
  %v4589 = vld [vmem:[%s6 + $0xb10] sm:$0xff]
  %v4590 = vld [vmem:[%s6 + $0xb18] sm:$0xff]
  %v4591 = vld [vmem:[%s6 + $0xb20] sm:$0xff]
  %v4592 = vld [vmem:[%s6 + $0xb28] sm:$0xff]
  %v4593 = vld [vmem:[%s6 + $0xb30] sm:$0xff]
  %v4594 = vld [vmem:[%s6 + $0xb38] sm:$0xff]
  %v4595 = vld [vmem:[%s6 + $0xb40] sm:$0xff]
  %v4596 = vld [vmem:[%s6 + $0xb48] sm:$0xff]
  %v4597 = vld [vmem:[%s6 + $0xb50] sm:$0xff]
  %v4598 = vld [vmem:[%s6 + $0xb58] sm:$0xff]
  %v4599 = vld [vmem:[%s6 + $0xb60] sm:$0xff]
  %v4600 = vld [vmem:[%s6 + $0xb68] sm:$0xff]
  %v4601 = vld [vmem:[%s6 + $0xb70] sm:$0xff]
  %v4602 = vld [vmem:[%s6 + $0xb78] sm:$0xff]
  %v4603 = vld [vmem:[%s6 + $0xb80] sm:$0xff]
  %v4604 = vld [vmem:[%s6 + $0xb88] sm:$0xff]
  %v4605 = vld [vmem:[%s6 + $0xb90] sm:$0xff]
  %v4606 = vld [vmem:[%s6 + $0xb98] sm:$0xff]
  %v4607 = vld [vmem:[%s6 + $0xba0] sm:$0xff]
  %v4608 = vld [vmem:[%s6 + $0xba8] sm:$0xff]
  %v4609 = vld [vmem:[%s6 + $0xbb0] sm:$0xff]
  %v4610 = vld [vmem:[%s6 + $0xbb8] sm:$0xff]
  %v4611 = vld [vmem:[%s6 + $0xbc0] sm:$0xff]
  %v4612 = vld [vmem:[%s6 + $0xbc8] sm:$0xff]
  %v4613 = vld [vmem:[%s6 + $0xbd0] sm:$0xff]
  %v4614 = vld [vmem:[%s6 + $0xbd8] sm:$0xff]
  %v4615 = vld [vmem:[%s6 + $0xbe0] sm:$0xff]
  %v4616 = vld [vmem:[%s6 + $0xbe8] sm:$0xff]
  %v4617 = vld [vmem:[%s6 + $0xbf0] sm:$0xff]
  %v4618 = vld [vmem:[%s6 + $0xbf8] sm:$0xff]
  %v4619 = vld [vmem:[%s6 + $0xc00] sm:$0xff]
  %v4620 = vld [vmem:[%s6 + $0xc08] sm:$0xff]
  %v4621 = vld [vmem:[%s6 + $0xc10] sm:$0xff]
  %v4622 = vld [vmem:[%s6 + $0xc18] sm:$0xff]
  %v4623 = vld [vmem:[%s6 + $0xc20] sm:$0xff]
  %v4624 = vld [vmem:[%s6 + $0xc28] sm:$0xff]
  %v4625 = vld [vmem:[%s6 + $0xc30] sm:$0xff]
  %v4626 = vld [vmem:[%s6 + $0xc38] sm:$0xff]
  %v4627 = vld [vmem:[%s6 + $0xc40] sm:$0xff]
  %v4628 = vld [vmem:[%s6 + $0xc48] sm:$0xff]
  %v4629 = vld [vmem:[%s6 + $0xc50] sm:$0xff]
  %v4630 = vld [vmem:[%s6 + $0xc58] sm:$0xff]
  %v4631 = vld [vmem:[%s6 + $0xc60] sm:$0xff]
  %v4632 = vld [vmem:[%s6 + $0xc68] sm:$0xff]
  %v4633 = vld [vmem:[%s6 + $0xc70] sm:$0xff]
  %v4634 = vld [vmem:[%s6 + $0xc78] sm:$0xff]
  %v4635 = vld [vmem:[%s6 + $0xc80] sm:$0xff]
  %v4636 = vld [vmem:[%s6 + $0xc88] sm:$0xff]
  %v4637 = vld [vmem:[%s6 + $0xc90] sm:$0xff]
  %v4638 = vld [vmem:[%s6 + $0xc98] sm:$0xff]
  %v4639 = vld [vmem:[%s6 + $0xca0] sm:$0xff]
  %v4640 = vld [vmem:[%s6 + $0xca8] sm:$0xff]
  %v4641 = vld [vmem:[%s6 + $0xcb0] sm:$0xff]
  %v4642 = vld [vmem:[%s6 + $0xcb8] sm:$0xff]
  %v4643 = vld [vmem:[%s6 + $0xcc0] sm:$0xff]
  %v4644 = vld [vmem:[%s6 + $0xcc8] sm:$0xff]
  %v4645 = vld [vmem:[%s6 + $0xcd0] sm:$0xff]
  %v4646 = vld [vmem:[%s6 + $0xcd8] sm:$0xff]
  %v4647 = vld [vmem:[%s6 + $0xce0] sm:$0xff]
  %v4648 = vld [vmem:[%s6 + $0xce8] sm:$0xff]
  %v4649 = vld [vmem:[%s6 + $0xcf0] sm:$0xff]
  %v4650 = vld [vmem:[%s6 + $0xcf8] sm:$0xff]
  %v4651 = vld [vmem:[%s6 + $0xd00] sm:$0xff]
  %v4652 = vld [vmem:[%s6 + $0xd08] sm:$0xff]
  %v4653 = vld [vmem:[%s6 + $0xd10] sm:$0xff]
  %v4654 = vld [vmem:[%s6 + $0xd18] sm:$0xff]
  %v4655 = vld [vmem:[%s6 + $0xd20] sm:$0xff]
  %v4656 = vld [vmem:[%s6 + $0xd28] sm:$0xff]
  %v4657 = vld [vmem:[%s6 + $0xd30] sm:$0xff]
  %v4658 = vld [vmem:[%s6 + $0xd38] sm:$0xff]
  %v4659 = vld [vmem:[%s6 + $0xd40] sm:$0xff]
  %v4660 = vld [vmem:[%s6 + $0xd48] sm:$0xff]
  %v4661 = vld [vmem:[%s6 + $0xd50] sm:$0xff]
  %v4662 = vld [vmem:[%s6 + $0xd58] sm:$0xff]
  %v4663 = vld [vmem:[%s6 + $0xd60] sm:$0xff]
  %v4664 = vld [vmem:[%s6 + $0xd68] sm:$0xff]
  %v4665 = vld [vmem:[%s6 + $0xd70] sm:$0xff]
  %v4666 = vld [vmem:[%s6 + $0xd78] sm:$0xff]
  %v4667 = vld [vmem:[%s6 + $0xd80] sm:$0xff]
  %v4668 = vld [vmem:[%s6 + $0xd88] sm:$0xff]
  %v4669 = vld [vmem:[%s6 + $0xd90] sm:$0xff]
  %v4670 = vld [vmem:[%s6 + $0xd98] sm:$0xff]
  %v4671 = vld [vmem:[%s6 + $0xda0] sm:$0xff]
  %v4672 = vld [vmem:[%s6 + $0xda8] sm:$0xff]
  %v4673 = vld [vmem:[%s6 + $0xdb0] sm:$0xff]
  %v4674 = vld [vmem:[%s6 + $0xdb8] sm:$0xff]
  %v4675 = vld [vmem:[%s6 + $0xdc0] sm:$0xff]
  %v4676 = vld [vmem:[%s6 + $0xdc8] sm:$0xff]
  %v4677 = vld [vmem:[%s6 + $0xdd0] sm:$0xff]
  %v4678 = vld [vmem:[%s6 + $0xdd8] sm:$0xff]
  %v4679 = vld [vmem:[%s6 + $0xde0] sm:$0xff]
  %v4680 = vld [vmem:[%s6 + $0xde8] sm:$0xff]
  %v4681 = vld [vmem:[%s6 + $0xdf0] sm:$0xff]
  %v4682 = vld [vmem:[%s6 + $0xdf8] sm:$0xff]
  %v4683 = vld [vmem:[%s6 + $0xe00] sm:$0xff]
  %v4684 = vld [vmem:[%s6 + $0xe08] sm:$0xff]
  %v4685 = vld [vmem:[%s6 + $0xe10] sm:$0xff]
  %v4686 = vld [vmem:[%s6 + $0xe18] sm:$0xff]
  %v4687 = vld [vmem:[%s6 + $0xe20] sm:$0xff]
  %v4688 = vld [vmem:[%s6 + $0xe28] sm:$0xff]
  %v4689 = vld [vmem:[%s6 + $0xe30] sm:$0xff]
  %v4690 = vld [vmem:[%s6 + $0xe38] sm:$0xff]
  %v4691 = vld [vmem:[%s6 + $0xe40] sm:$0xff]
  %v4692 = vld [vmem:[%s6 + $0xe48] sm:$0xff]
  %v4693 = vld [vmem:[%s6 + $0xe50] sm:$0xff]
  %v4694 = vld [vmem:[%s6 + $0xe58] sm:$0xff]
  %v4695 = vld [vmem:[%s6 + $0xe60] sm:$0xff]
  %v4696 = vld [vmem:[%s6 + $0xe68] sm:$0xff]
  %v4697 = vld [vmem:[%s6 + $0xe70] sm:$0xff]
  %v4698 = vld [vmem:[%s6 + $0xe78] sm:$0xff]
  %v4699 = vld [vmem:[%s6 + $0xe80] sm:$0xff]
  %v4700 = vld [vmem:[%s6 + $0xe88] sm:$0xff]
  %v4701 = vld [vmem:[%s6 + $0xe90] sm:$0xff]
  %v4702 = vld [vmem:[%s6 + $0xe98] sm:$0xff]
  %v4703 = vld [vmem:[%s6 + $0xea0] sm:$0xff]
  %v4704 = vld [vmem:[%s6 + $0xea8] sm:$0xff]
  %v4705 = vld [vmem:[%s6 + $0xeb0] sm:$0xff]
  %v4706 = vld [vmem:[%s6 + $0xeb8] sm:$0xff]
  %v4707 = vld [vmem:[%s6 + $0xec0] sm:$0xff]
  %v4708 = vld [vmem:[%s6 + $0xec8] sm:$0xff]
  %v4709 = vld [vmem:[%s6 + $0xed0] sm:$0xff]
  %v4710 = vld [vmem:[%s6 + $0xed8] sm:$0xff]
  %v4711 = vld [vmem:[%s6 + $0xee0] sm:$0xff]
  %v4712 = vld [vmem:[%s6 + $0xee8] sm:$0xff]
  %v4713 = vld [vmem:[%s6 + $0xef0] sm:$0xff]
  %v4714 = vld [vmem:[%s6 + $0xef8] sm:$0xff]
  %v4715 = vld [vmem:[%s6 + $0xf00] sm:$0xff]
  %v4716 = vld [vmem:[%s6 + $0xf08] sm:$0xff]
  %v4717 = vld [vmem:[%s6 + $0xf10] sm:$0xff]
  %v4718 = vld [vmem:[%s6 + $0xf18] sm:$0xff]
  %v4719 = vld [vmem:[%s6 + $0xf20] sm:$0xff]
  %v4720 = vld [vmem:[%s6 + $0xf28] sm:$0xff]
  %v4721 = vld [vmem:[%s6 + $0xf30] sm:$0xff]
  %v4722 = vld [vmem:[%s6 + $0xf38] sm:$0xff]
  %v4723 = vld [vmem:[%s6 + $0xf40] sm:$0xff]
  %v4724 = vld [vmem:[%s6 + $0xf48] sm:$0xff]
  %v4725 = vld [vmem:[%s6 + $0xf50] sm:$0xff]
  %v4726 = vld [vmem:[%s6 + $0xf58] sm:$0xff]
  %v4727 = vld [vmem:[%s6 + $0xf60] sm:$0xff]
  %v4728 = vld [vmem:[%s6 + $0xf68] sm:$0xff]
  %v4729 = vld [vmem:[%s6 + $0xf70] sm:$0xff]
  %v4730 = vld [vmem:[%s6 + $0xf78] sm:$0xff]
  %v4731 = vld [vmem:[%s6 + $0xf80] sm:$0xff]
  %v4732 = vld [vmem:[%s6 + $0xf88] sm:$0xff]
  %v4733 = vld [vmem:[%s6 + $0xf90] sm:$0xff]
  %v4734 = vld [vmem:[%s6 + $0xf98] sm:$0xff]
  %v4735 = vld [vmem:[%s6 + $0xfa0] sm:$0xff]
  %v4736 = vld [vmem:[%s6 + $0xfa8] sm:$0xff]
  %v4737 = vld [vmem:[%s6 + $0xfb0] sm:$0xff]
  %v4738 = vld [vmem:[%s6 + $0xfb8] sm:$0xff]
  %v4739 = vld [vmem:[%s6 + $0xfc0] sm:$0xff]
  %v4740 = vld [vmem:[%s6 + $0xfc8] sm:$0xff]
  %v4741 = vld [vmem:[%s6 + $0xfd0] sm:$0xff]
  %v4742 = vld [vmem:[%s6 + $0xfd8] sm:$0xff]
  %v4743 = vld [vmem:[%s6 + $0xfe0] sm:$0xff]
  %v4744 = vld [vmem:[%s6 + $0xfe8] sm:$0xff]
  %v4745 = vld [vmem:[%s6 + $0xff0] sm:$0xff]
  %v4746 = vld [vmem:[%s6 + $0xff8] sm:$0xff]
  %v4747 = vld [vmem:[%s7] sm:$0xff]
  %v4749 = vperm.slane %v4747, 0
  %v4750 = vperm.slane %v4747, 1
  %v4751 = vperm.slane %v4747, 2
  %v4752 = vperm.slane %v4747, 3
  %v4753 = vperm.slane %v4747, 4
  %v4754 = vperm.slane %v4747, 5
  %v4755 = vperm.slane %v4747, 6
  %v4756 = vperm.slane %v4747, 7
  %v5277 = vunpack.c.l.b16 %v4235
  %v5278 = vunpack.c.h.b16 %v4235
  %v5279 = vunpack.c.l.b16 %v4236
  %v5280 = vunpack.c.h.b16 %v4236
  %v5281 = vunpack.c.l.b16 %v4237
  %v5282 = vunpack.c.h.b16 %v4237
  %v5283 = vunpack.c.l.b16 %v4238
  %v5284 = vunpack.c.h.b16 %v4238
  %v5285 = vunpack.c.l.b16 %v4239
  %v5286 = vunpack.c.h.b16 %v4239
  %v5287 = vunpack.c.l.b16 %v4240
  %v5288 = vunpack.c.h.b16 %v4240
  %v5289 = vunpack.c.l.b16 %v4241
  %v5290 = vunpack.c.h.b16 %v4241
  %v5291 = vunpack.c.l.b16 %v4242
  %v5292 = vunpack.c.h.b16 %v4242
  %v5293 = vunpack.c.l.b16 %v4243
  %v5294 = vunpack.c.h.b16 %v4243
  %v5295 = vunpack.c.l.b16 %v4244
  %v5296 = vunpack.c.h.b16 %v4244
  %v5297 = vunpack.c.l.b16 %v4245
  %v5298 = vunpack.c.h.b16 %v4245
  %v5299 = vunpack.c.l.b16 %v4246
  %v5300 = vunpack.c.h.b16 %v4246
  %v5301 = vunpack.c.l.b16 %v4247
  %v5302 = vunpack.c.h.b16 %v4247
  %v5303 = vunpack.c.l.b16 %v4248
  %v5304 = vunpack.c.h.b16 %v4248
  %v5305 = vunpack.c.l.b16 %v4249
  %v5306 = vunpack.c.h.b16 %v4249
  %v5307 = vunpack.c.l.b16 %v4250
  %v5308 = vunpack.c.h.b16 %v4250
  %v5309 = vunpack.c.l.b16 %v4251
  %v5310 = vunpack.c.h.b16 %v4251
  %v5311 = vunpack.c.l.b16 %v4252
  %v5312 = vunpack.c.h.b16 %v4252
  %v5313 = vunpack.c.l.b16 %v4253
  %v5314 = vunpack.c.h.b16 %v4253
  %v5315 = vunpack.c.l.b16 %v4254
  %v5316 = vunpack.c.h.b16 %v4254
  %v5317 = vunpack.c.l.b16 %v4255
  %v5318 = vunpack.c.h.b16 %v4255
  %v5319 = vunpack.c.l.b16 %v4256
  %v5320 = vunpack.c.h.b16 %v4256
  %v5321 = vunpack.c.l.b16 %v4257
  %v5322 = vunpack.c.h.b16 %v4257
  %v5323 = vunpack.c.l.b16 %v4258
  %v5324 = vunpack.c.h.b16 %v4258
  %v5325 = vunpack.c.l.b16 %v4259
  %v5326 = vunpack.c.h.b16 %v4259
  %v5327 = vunpack.c.l.b16 %v4260
  %v5328 = vunpack.c.h.b16 %v4260
  %v5329 = vunpack.c.l.b16 %v4261
  %v5330 = vunpack.c.h.b16 %v4261
  %v5331 = vunpack.c.l.b16 %v4262
  %v5332 = vunpack.c.h.b16 %v4262
  %v5333 = vunpack.c.l.b16 %v4263
  %v5334 = vunpack.c.h.b16 %v4263
  %v5335 = vunpack.c.l.b16 %v4264
  %v5336 = vunpack.c.h.b16 %v4264
  %v5337 = vunpack.c.l.b16 %v4265
  %v5338 = vunpack.c.h.b16 %v4265
  %v5339 = vunpack.c.l.b16 %v4266
  %v5340 = vunpack.c.h.b16 %v4266
  %v5341 = vunpack.c.l.b16 %v4267
  %v5342 = vunpack.c.h.b16 %v4267
  %v5343 = vunpack.c.l.b16 %v4268
  %v5344 = vunpack.c.h.b16 %v4268
  %v5345 = vunpack.c.l.b16 %v4269
  %v5346 = vunpack.c.h.b16 %v4269
  %v5347 = vunpack.c.l.b16 %v4270
  %v5348 = vunpack.c.h.b16 %v4270
  %v5349 = vunpack.c.l.b16 %v4271
  %v5350 = vunpack.c.h.b16 %v4271
  %v5351 = vunpack.c.l.b16 %v4272
  %v5352 = vunpack.c.h.b16 %v4272
  %v5353 = vunpack.c.l.b16 %v4273
  %v5354 = vunpack.c.h.b16 %v4273
  %v5355 = vunpack.c.l.b16 %v4274
  %v5356 = vunpack.c.h.b16 %v4274
  %v5357 = vunpack.c.l.b16 %v4275
  %v5358 = vunpack.c.h.b16 %v4275
  %v5359 = vunpack.c.l.b16 %v4276
  %v5360 = vunpack.c.h.b16 %v4276
  %v5361 = vunpack.c.l.b16 %v4277
  %v5362 = vunpack.c.h.b16 %v4277
  %v5363 = vunpack.c.l.b16 %v4278
  %v5364 = vunpack.c.h.b16 %v4278
  %v5365 = vunpack.c.l.b16 %v4279
  %v5366 = vunpack.c.h.b16 %v4279
  %v5367 = vunpack.c.l.b16 %v4280
  %v5368 = vunpack.c.h.b16 %v4280
  %v5369 = vunpack.c.l.b16 %v4281
  %v5370 = vunpack.c.h.b16 %v4281
  %v5371 = vunpack.c.l.b16 %v4282
  %v5372 = vunpack.c.h.b16 %v4282
  %v5373 = vunpack.c.l.b16 %v4283
  %v5374 = vunpack.c.h.b16 %v4283
  %v5375 = vunpack.c.l.b16 %v4284
  %v5376 = vunpack.c.h.b16 %v4284
  %v5377 = vunpack.c.l.b16 %v4285
  %v5378 = vunpack.c.h.b16 %v4285
  %v5379 = vunpack.c.l.b16 %v4286
  %v5380 = vunpack.c.h.b16 %v4286
  %v5381 = vunpack.c.l.b16 %v4287
  %v5382 = vunpack.c.h.b16 %v4287
  %v5383 = vunpack.c.l.b16 %v4288
  %v5384 = vunpack.c.h.b16 %v4288
  %v5385 = vunpack.c.l.b16 %v4289
  %v5386 = vunpack.c.h.b16 %v4289
  %v5387 = vunpack.c.l.b16 %v4290
  %v5388 = vunpack.c.h.b16 %v4290
  %v5389 = vunpack.c.l.b16 %v4291
  %v5390 = vunpack.c.h.b16 %v4291
  %v5391 = vunpack.c.l.b16 %v4292
  %v5392 = vunpack.c.h.b16 %v4292
  %v5393 = vunpack.c.l.b16 %v4293
  %v5394 = vunpack.c.h.b16 %v4293
  %v5395 = vunpack.c.l.b16 %v4294
  %v5396 = vunpack.c.h.b16 %v4294
  %v5397 = vunpack.c.l.b16 %v4295
  %v5398 = vunpack.c.h.b16 %v4295
  %v5399 = vunpack.c.l.b16 %v4296
  %v5400 = vunpack.c.h.b16 %v4296
  %v5401 = vunpack.c.l.b16 %v4297
  %v5402 = vunpack.c.h.b16 %v4297
  %v5403 = vunpack.c.l.b16 %v4298
  %v5404 = vunpack.c.h.b16 %v4298
  %v5405 = vunpack.c.l.b16 %v4299
  %v5406 = vunpack.c.h.b16 %v4299
  %v5407 = vunpack.c.l.b16 %v4300
  %v5408 = vunpack.c.h.b16 %v4300
  %v5409 = vunpack.c.l.b16 %v4301
  %v5410 = vunpack.c.h.b16 %v4301
  %v5411 = vunpack.c.l.b16 %v4302
  %v5412 = vunpack.c.h.b16 %v4302
  %v5413 = vunpack.c.l.b16 %v4303
  %v5414 = vunpack.c.h.b16 %v4303
  %v5415 = vunpack.c.l.b16 %v4304
  %v5416 = vunpack.c.h.b16 %v4304
  %v5417 = vunpack.c.l.b16 %v4305
  %v5418 = vunpack.c.h.b16 %v4305
  %v5419 = vunpack.c.l.b16 %v4306
  %v5420 = vunpack.c.h.b16 %v4306
  %v5421 = vunpack.c.l.b16 %v4307
  %v5422 = vunpack.c.h.b16 %v4307
  %v5423 = vunpack.c.l.b16 %v4308
  %v5424 = vunpack.c.h.b16 %v4308
  %v5425 = vunpack.c.l.b16 %v4309
  %v5426 = vunpack.c.h.b16 %v4309
  %v5427 = vunpack.c.l.b16 %v4310
  %v5428 = vunpack.c.h.b16 %v4310
  %v5429 = vunpack.c.l.b16 %v4311
  %v5430 = vunpack.c.h.b16 %v4311
  %v5431 = vunpack.c.l.b16 %v4312
  %v5432 = vunpack.c.h.b16 %v4312
  %v5433 = vunpack.c.l.b16 %v4313
  %v5434 = vunpack.c.h.b16 %v4313
  %v5435 = vunpack.c.l.b16 %v4314
  %v5436 = vunpack.c.h.b16 %v4314
  %v5437 = vunpack.c.l.b16 %v4315
  %v5438 = vunpack.c.h.b16 %v4315
  %v5439 = vunpack.c.l.b16 %v4316
  %v5440 = vunpack.c.h.b16 %v4316
  %v5441 = vunpack.c.l.b16 %v4317
  %v5442 = vunpack.c.h.b16 %v4317
  %v5443 = vunpack.c.l.b16 %v4318
  %v5444 = vunpack.c.h.b16 %v4318
  %v5445 = vunpack.c.l.b16 %v4319
  %v5446 = vunpack.c.h.b16 %v4319
  %v5447 = vunpack.c.l.b16 %v4320
  %v5448 = vunpack.c.h.b16 %v4320
  %v5449 = vunpack.c.l.b16 %v4321
  %v5450 = vunpack.c.h.b16 %v4321
  %v5451 = vunpack.c.l.b16 %v4322
  %v5452 = vunpack.c.h.b16 %v4322
  %v5453 = vunpack.c.l.b16 %v4323
  %v5454 = vunpack.c.h.b16 %v4323
  %v5455 = vunpack.c.l.b16 %v4324
  %v5456 = vunpack.c.h.b16 %v4324
  %v5457 = vunpack.c.l.b16 %v4325
  %v5458 = vunpack.c.h.b16 %v4325
  %v5459 = vunpack.c.l.b16 %v4326
  %v5460 = vunpack.c.h.b16 %v4326
  %v5461 = vunpack.c.l.b16 %v4327
  %v5462 = vunpack.c.h.b16 %v4327
  %v5463 = vunpack.c.l.b16 %v4328
  %v5464 = vunpack.c.h.b16 %v4328
  %v5465 = vunpack.c.l.b16 %v4329
  %v5466 = vunpack.c.h.b16 %v4329
  %v5467 = vunpack.c.l.b16 %v4330
  %v5468 = vunpack.c.h.b16 %v4330
  %v5469 = vunpack.c.l.b16 %v4331
  %v5470 = vunpack.c.h.b16 %v4331
  %v5471 = vunpack.c.l.b16 %v4332
  %v5472 = vunpack.c.h.b16 %v4332
  %v5473 = vunpack.c.l.b16 %v4333
  %v5474 = vunpack.c.h.b16 %v4333
  %v5475 = vunpack.c.l.b16 %v4334
  %v5476 = vunpack.c.h.b16 %v4334
  %v5477 = vunpack.c.l.b16 %v4335
  %v5478 = vunpack.c.h.b16 %v4335
  %v5479 = vunpack.c.l.b16 %v4336
  %v5480 = vunpack.c.h.b16 %v4336
  %v5481 = vunpack.c.l.b16 %v4337
  %v5482 = vunpack.c.h.b16 %v4337
  %v5483 = vunpack.c.l.b16 %v4338
  %v5484 = vunpack.c.h.b16 %v4338
  %v5485 = vunpack.c.l.b16 %v4339
  %v5486 = vunpack.c.h.b16 %v4339
  %v5487 = vunpack.c.l.b16 %v4340
  %v5488 = vunpack.c.h.b16 %v4340
  %v5489 = vunpack.c.l.b16 %v4341
  %v5490 = vunpack.c.h.b16 %v4341
  %v5491 = vunpack.c.l.b16 %v4342
  %v5492 = vunpack.c.h.b16 %v4342
  %v5493 = vunpack.c.l.b16 %v4343
  %v5494 = vunpack.c.h.b16 %v4343
  %v5495 = vunpack.c.l.b16 %v4344
  %v5496 = vunpack.c.h.b16 %v4344
  %v5497 = vunpack.c.l.b16 %v4345
  %v5498 = vunpack.c.h.b16 %v4345
  %v5499 = vunpack.c.l.b16 %v4346
  %v5500 = vunpack.c.h.b16 %v4346
  %v5501 = vunpack.c.l.b16 %v4347
  %v5502 = vunpack.c.h.b16 %v4347
  %v5503 = vunpack.c.l.b16 %v4348
  %v5504 = vunpack.c.h.b16 %v4348
  %v5505 = vunpack.c.l.b16 %v4349
  %v5506 = vunpack.c.h.b16 %v4349
  %v5507 = vunpack.c.l.b16 %v4350
  %v5508 = vunpack.c.h.b16 %v4350
  %v5509 = vunpack.c.l.b16 %v4351
  %v5510 = vunpack.c.h.b16 %v4351
  %v5511 = vunpack.c.l.b16 %v4352
  %v5512 = vunpack.c.h.b16 %v4352
  %v5513 = vunpack.c.l.b16 %v4353
  %v5514 = vunpack.c.h.b16 %v4353
  %v5515 = vunpack.c.l.b16 %v4354
  %v5516 = vunpack.c.h.b16 %v4354
  %v5517 = vunpack.c.l.b16 %v4355
  %v5518 = vunpack.c.h.b16 %v4355
  %v5519 = vunpack.c.l.b16 %v4356
  %v5520 = vunpack.c.h.b16 %v4356
  %v5521 = vunpack.c.l.b16 %v4357
  %v5522 = vunpack.c.h.b16 %v4357
  %v5523 = vunpack.c.l.b16 %v4358
  %v5524 = vunpack.c.h.b16 %v4358
  %v5525 = vunpack.c.l.b16 %v4359
  %v5526 = vunpack.c.h.b16 %v4359
  %v5527 = vunpack.c.l.b16 %v4360
  %v5528 = vunpack.c.h.b16 %v4360
  %v5529 = vunpack.c.l.b16 %v4361
  %v5530 = vunpack.c.h.b16 %v4361
  %v5531 = vunpack.c.l.b16 %v4362
  %v5532 = vunpack.c.h.b16 %v4362
  %v5533 = vunpack.c.l.b16 %v4363
  %v5534 = vunpack.c.h.b16 %v4363
  %v5535 = vunpack.c.l.b16 %v4364
  %v5536 = vunpack.c.h.b16 %v4364
  %v5537 = vunpack.c.l.b16 %v4365
  %v5538 = vunpack.c.h.b16 %v4365
  %v5539 = vunpack.c.l.b16 %v4366
  %v5540 = vunpack.c.h.b16 %v4366
  %v5541 = vunpack.c.l.b16 %v4367
  %v5542 = vunpack.c.h.b16 %v4367
  %v5543 = vunpack.c.l.b16 %v4368
  %v5544 = vunpack.c.h.b16 %v4368
  %v5545 = vunpack.c.l.b16 %v4369
  %v5546 = vunpack.c.h.b16 %v4369
  %v5547 = vunpack.c.l.b16 %v4370
  %v5548 = vunpack.c.h.b16 %v4370
  %v5549 = vunpack.c.l.b16 %v4371
  %v5550 = vunpack.c.h.b16 %v4371
  %v5551 = vunpack.c.l.b16 %v4372
  %v5552 = vunpack.c.h.b16 %v4372
  %v5553 = vunpack.c.l.b16 %v4373
  %v5554 = vunpack.c.h.b16 %v4373
  %v5555 = vunpack.c.l.b16 %v4374
  %v5556 = vunpack.c.h.b16 %v4374
  %v5557 = vunpack.c.l.b16 %v4375
  %v5558 = vunpack.c.h.b16 %v4375
  %v5559 = vunpack.c.l.b16 %v4376
  %v5560 = vunpack.c.h.b16 %v4376
  %v5561 = vunpack.c.l.b16 %v4377
  %v5562 = vunpack.c.h.b16 %v4377
  %v5563 = vunpack.c.l.b16 %v4378
  %v5564 = vunpack.c.h.b16 %v4378
  %v5565 = vunpack.c.l.b16 %v4379
  %v5566 = vunpack.c.h.b16 %v4379
  %v5567 = vunpack.c.l.b16 %v4380
  %v5568 = vunpack.c.h.b16 %v4380
  %v5569 = vunpack.c.l.b16 %v4381
  %v5570 = vunpack.c.h.b16 %v4381
  %v5571 = vunpack.c.l.b16 %v4382
  %v5572 = vunpack.c.h.b16 %v4382
  %v5573 = vunpack.c.l.b16 %v4383
  %v5574 = vunpack.c.h.b16 %v4383
  %v5575 = vunpack.c.l.b16 %v4384
  %v5576 = vunpack.c.h.b16 %v4384
  %v5577 = vunpack.c.l.b16 %v4385
  %v5578 = vunpack.c.h.b16 %v4385
  %v5579 = vunpack.c.l.b16 %v4386
  %v5580 = vunpack.c.h.b16 %v4386
  %v5581 = vunpack.c.l.b16 %v4387
  %v5582 = vunpack.c.h.b16 %v4387
  %v5583 = vunpack.c.l.b16 %v4388
  %v5584 = vunpack.c.h.b16 %v4388
  %v5585 = vunpack.c.l.b16 %v4389
  %v5586 = vunpack.c.h.b16 %v4389
  %v5587 = vunpack.c.l.b16 %v4390
  %v5588 = vunpack.c.h.b16 %v4390
  %v5589 = vunpack.c.l.b16 %v4391
  %v5590 = vunpack.c.h.b16 %v4391
  %v5591 = vunpack.c.l.b16 %v4392
  %v5592 = vunpack.c.h.b16 %v4392
  %v5593 = vunpack.c.l.b16 %v4393
  %v5594 = vunpack.c.h.b16 %v4393
  %v5595 = vunpack.c.l.b16 %v4394
  %v5596 = vunpack.c.h.b16 %v4394
  %v5597 = vunpack.c.l.b16 %v4395
  %v5598 = vunpack.c.h.b16 %v4395
  %v5599 = vunpack.c.l.b16 %v4396
  %v5600 = vunpack.c.h.b16 %v4396
  %v5601 = vunpack.c.l.b16 %v4397
  %v5602 = vunpack.c.h.b16 %v4397
  %v5603 = vunpack.c.l.b16 %v4398
  %v5604 = vunpack.c.h.b16 %v4398
  %v5605 = vunpack.c.l.b16 %v4399
  %v5606 = vunpack.c.h.b16 %v4399
  %v5607 = vunpack.c.l.b16 %v4400
  %v5608 = vunpack.c.h.b16 %v4400
  %v5609 = vunpack.c.l.b16 %v4401
  %v5610 = vunpack.c.h.b16 %v4401
  %v5611 = vunpack.c.l.b16 %v4402
  %v5612 = vunpack.c.h.b16 %v4402
  %v5613 = vunpack.c.l.b16 %v4403
  %v5614 = vunpack.c.h.b16 %v4403
  %v5615 = vunpack.c.l.b16 %v4404
  %v5616 = vunpack.c.h.b16 %v4404
  %v5617 = vunpack.c.l.b16 %v4405
  %v5618 = vunpack.c.h.b16 %v4405
  %v5619 = vunpack.c.l.b16 %v4406
  %v5620 = vunpack.c.h.b16 %v4406
  %v5621 = vunpack.c.l.b16 %v4407
  %v5622 = vunpack.c.h.b16 %v4407
  %v5623 = vunpack.c.l.b16 %v4408
  %v5624 = vunpack.c.h.b16 %v4408
  %v5625 = vunpack.c.l.b16 %v4409
  %v5626 = vunpack.c.h.b16 %v4409
  %v5627 = vunpack.c.l.b16 %v4410
  %v5628 = vunpack.c.h.b16 %v4410
  %v5629 = vunpack.c.l.b16 %v4411
  %v5630 = vunpack.c.h.b16 %v4411
  %v5631 = vunpack.c.l.b16 %v4412
  %v5632 = vunpack.c.h.b16 %v4412
  %v5633 = vunpack.c.l.b16 %v4413
  %v5634 = vunpack.c.h.b16 %v4413
  %v5635 = vunpack.c.l.b16 %v4414
  %v5636 = vunpack.c.h.b16 %v4414
  %v5637 = vunpack.c.l.b16 %v4415
  %v5638 = vunpack.c.h.b16 %v4415
  %v5639 = vunpack.c.l.b16 %v4416
  %v5640 = vunpack.c.h.b16 %v4416
  %v5641 = vunpack.c.l.b16 %v4417
  %v5642 = vunpack.c.h.b16 %v4417
  %v5643 = vunpack.c.l.b16 %v4418
  %v5644 = vunpack.c.h.b16 %v4418
  %v5645 = vunpack.c.l.b16 %v4419
  %v5646 = vunpack.c.h.b16 %v4419
  %v5647 = vunpack.c.l.b16 %v4420
  %v5648 = vunpack.c.h.b16 %v4420
  %v5649 = vunpack.c.l.b16 %v4421
  %v5650 = vunpack.c.h.b16 %v4421
  %v5651 = vunpack.c.l.b16 %v4422
  %v5652 = vunpack.c.h.b16 %v4422
  %v5653 = vunpack.c.l.b16 %v4423
  %v5654 = vunpack.c.h.b16 %v4423
  %v5655 = vunpack.c.l.b16 %v4424
  %v5656 = vunpack.c.h.b16 %v4424
  %v5657 = vunpack.c.l.b16 %v4425
  %v5658 = vunpack.c.h.b16 %v4425
  %v5659 = vunpack.c.l.b16 %v4426
  %v5660 = vunpack.c.h.b16 %v4426
  %v5661 = vunpack.c.l.b16 %v4427
  %v5662 = vunpack.c.h.b16 %v4427
  %v5663 = vunpack.c.l.b16 %v4428
  %v5664 = vunpack.c.h.b16 %v4428
  %v5665 = vunpack.c.l.b16 %v4429
  %v5666 = vunpack.c.h.b16 %v4429
  %v5667 = vunpack.c.l.b16 %v4430
  %v5668 = vunpack.c.h.b16 %v4430
  %v5669 = vunpack.c.l.b16 %v4431
  %v5670 = vunpack.c.h.b16 %v4431
  %v5671 = vunpack.c.l.b16 %v4432
  %v5672 = vunpack.c.h.b16 %v4432
  %v5673 = vunpack.c.l.b16 %v4433
  %v5674 = vunpack.c.h.b16 %v4433
  %v5675 = vunpack.c.l.b16 %v4434
  %v5676 = vunpack.c.h.b16 %v4434
  %v5677 = vunpack.c.l.b16 %v4435
  %v5678 = vunpack.c.h.b16 %v4435
  %v5679 = vunpack.c.l.b16 %v4436
  %v5680 = vunpack.c.h.b16 %v4436
  %v5681 = vunpack.c.l.b16 %v4437
  %v5682 = vunpack.c.h.b16 %v4437
  %v5683 = vunpack.c.l.b16 %v4438
  %v5684 = vunpack.c.h.b16 %v4438
  %v5685 = vunpack.c.l.b16 %v4439
  %v5686 = vunpack.c.h.b16 %v4439
  %v5687 = vunpack.c.l.b16 %v4440
  %v5688 = vunpack.c.h.b16 %v4440
  %v5689 = vunpack.c.l.b16 %v4441
  %v5690 = vunpack.c.h.b16 %v4441
  %v5691 = vunpack.c.l.b16 %v4442
  %v5692 = vunpack.c.h.b16 %v4442
  %v5693 = vunpack.c.l.b16 %v4443
  %v5694 = vunpack.c.h.b16 %v4443
  %v5695 = vunpack.c.l.b16 %v4444
  %v5696 = vunpack.c.h.b16 %v4444
  %v5697 = vunpack.c.l.b16 %v4445
  %v5698 = vunpack.c.h.b16 %v4445
  %v5699 = vunpack.c.l.b16 %v4446
  %v5700 = vunpack.c.h.b16 %v4446
  %v5701 = vunpack.c.l.b16 %v4447
  %v5702 = vunpack.c.h.b16 %v4447
  %v5703 = vunpack.c.l.b16 %v4448
  %v5704 = vunpack.c.h.b16 %v4448
  %v5705 = vunpack.c.l.b16 %v4449
  %v5706 = vunpack.c.h.b16 %v4449
  %v5707 = vunpack.c.l.b16 %v4450
  %v5708 = vunpack.c.h.b16 %v4450
  %v5709 = vunpack.c.l.b16 %v4451
  %v5710 = vunpack.c.h.b16 %v4451
  %v5711 = vunpack.c.l.b16 %v4452
  %v5712 = vunpack.c.h.b16 %v4452
  %v5713 = vunpack.c.l.b16 %v4453
  %v5714 = vunpack.c.h.b16 %v4453
  %v5715 = vunpack.c.l.b16 %v4454
  %v5716 = vunpack.c.h.b16 %v4454
  %v5717 = vunpack.c.l.b16 %v4455
  %v5718 = vunpack.c.h.b16 %v4455
  %v5719 = vunpack.c.l.b16 %v4456
  %v5720 = vunpack.c.h.b16 %v4456
  %v5721 = vunpack.c.l.b16 %v4457
  %v5722 = vunpack.c.h.b16 %v4457
  %v5723 = vunpack.c.l.b16 %v4458
  %v5724 = vunpack.c.h.b16 %v4458
  %v5725 = vunpack.c.l.b16 %v4459
  %v5726 = vunpack.c.h.b16 %v4459
  %v5727 = vunpack.c.l.b16 %v4460
  %v5728 = vunpack.c.h.b16 %v4460
  %v5729 = vunpack.c.l.b16 %v4461
  %v5730 = vunpack.c.h.b16 %v4461
  %v5731 = vunpack.c.l.b16 %v4462
  %v5732 = vunpack.c.h.b16 %v4462
  %v5733 = vunpack.c.l.b16 %v4463
  %v5734 = vunpack.c.h.b16 %v4463
  %v5735 = vunpack.c.l.b16 %v4464
  %v5736 = vunpack.c.h.b16 %v4464
  %v5737 = vunpack.c.l.b16 %v4465
  %v5738 = vunpack.c.h.b16 %v4465
  %v5739 = vunpack.c.l.b16 %v4466
  %v5740 = vunpack.c.h.b16 %v4466
  %v5741 = vunpack.c.l.b16 %v4467
  %v5742 = vunpack.c.h.b16 %v4467
  %v5743 = vunpack.c.l.b16 %v4468
  %v5744 = vunpack.c.h.b16 %v4468
  %v5745 = vunpack.c.l.b16 %v4469
  %v5746 = vunpack.c.h.b16 %v4469
  %v5747 = vunpack.c.l.b16 %v4470
  %v5748 = vunpack.c.h.b16 %v4470
  %v5749 = vunpack.c.l.b16 %v4471
  %v5750 = vunpack.c.h.b16 %v4471
  %v5751 = vunpack.c.l.b16 %v4472
  %v5752 = vunpack.c.h.b16 %v4472
  %v5753 = vunpack.c.l.b16 %v4473
  %v5754 = vunpack.c.h.b16 %v4473
  %v5755 = vunpack.c.l.b16 %v4474
  %v5756 = vunpack.c.h.b16 %v4474
  %v5757 = vunpack.c.l.b16 %v4475
  %v5758 = vunpack.c.h.b16 %v4475
  %v5759 = vunpack.c.l.b16 %v4476
  %v5760 = vunpack.c.h.b16 %v4476
  %v5761 = vunpack.c.l.b16 %v4477
  %v5762 = vunpack.c.h.b16 %v4477
  %v5763 = vunpack.c.l.b16 %v4478
  %v5764 = vunpack.c.h.b16 %v4478
  %v5765 = vunpack.c.l.b16 %v4479
  %v5766 = vunpack.c.h.b16 %v4479
  %v5767 = vunpack.c.l.b16 %v4480
  %v5768 = vunpack.c.h.b16 %v4480
  %v5769 = vunpack.c.l.b16 %v4481
  %v5770 = vunpack.c.h.b16 %v4481
  %v5771 = vunpack.c.l.b16 %v4482
  %v5772 = vunpack.c.h.b16 %v4482
  %v5773 = vunpack.c.l.b16 %v4483
  %v5774 = vunpack.c.h.b16 %v4483
  %v5775 = vunpack.c.l.b16 %v4484
  %v5776 = vunpack.c.h.b16 %v4484
  %v5777 = vunpack.c.l.b16 %v4485
  %v5778 = vunpack.c.h.b16 %v4485
  %v5779 = vunpack.c.l.b16 %v4486
  %v5780 = vunpack.c.h.b16 %v4486
  %v5781 = vunpack.c.l.b16 %v4487
  %v5782 = vunpack.c.h.b16 %v4487
  %v5783 = vunpack.c.l.b16 %v4488
  %v5784 = vunpack.c.h.b16 %v4488
  %v5785 = vunpack.c.l.b16 %v4489
  %v5786 = vunpack.c.h.b16 %v4489
  %v5787 = vunpack.c.l.b16 %v4490
  %v5788 = vunpack.c.h.b16 %v4490
  %v5789 = vunpack.c.l.b16 %v4491
  %v5790 = vunpack.c.h.b16 %v4491
  %v5791 = vunpack.c.l.b16 %v4492
  %v5792 = vunpack.c.h.b16 %v4492
  %v5793 = vunpack.c.l.b16 %v4493
  %v5794 = vunpack.c.h.b16 %v4493
  %v5795 = vunpack.c.l.b16 %v4494
  %v5796 = vunpack.c.h.b16 %v4494
  %v5797 = vunpack.c.l.b16 %v4495
  %v5798 = vunpack.c.h.b16 %v4495
  %v5799 = vunpack.c.l.b16 %v4496
  %v5800 = vunpack.c.h.b16 %v4496
  %v5801 = vunpack.c.l.b16 %v4497
  %v5802 = vunpack.c.h.b16 %v4497
  %v5803 = vunpack.c.l.b16 %v4498
  %v5804 = vunpack.c.h.b16 %v4498
  %v5805 = vunpack.c.l.b16 %v4499
  %v5806 = vunpack.c.h.b16 %v4499
  %v5807 = vunpack.c.l.b16 %v4500
  %v5808 = vunpack.c.h.b16 %v4500
  %v5809 = vunpack.c.l.b16 %v4501
  %v5810 = vunpack.c.h.b16 %v4501
  %v5811 = vunpack.c.l.b16 %v4502
  %v5812 = vunpack.c.h.b16 %v4502
  %v5813 = vunpack.c.l.b16 %v4503
  %v5814 = vunpack.c.h.b16 %v4503
  %v5815 = vunpack.c.l.b16 %v4504
  %v5816 = vunpack.c.h.b16 %v4504
  %v5817 = vunpack.c.l.b16 %v4505
  %v5818 = vunpack.c.h.b16 %v4505
  %v5819 = vunpack.c.l.b16 %v4506
  %v5820 = vunpack.c.h.b16 %v4506
  %v5821 = vunpack.c.l.b16 %v4507
  %v5822 = vunpack.c.h.b16 %v4507
  %v5823 = vunpack.c.l.b16 %v4508
  %v5824 = vunpack.c.h.b16 %v4508
  %v5825 = vunpack.c.l.b16 %v4509
  %v5826 = vunpack.c.h.b16 %v4509
  %v5827 = vunpack.c.l.b16 %v4510
  %v5828 = vunpack.c.h.b16 %v4510
  %v5829 = vunpack.c.l.b16 %v4511
  %v5830 = vunpack.c.h.b16 %v4511
  %v5831 = vunpack.c.l.b16 %v4512
  %v5832 = vunpack.c.h.b16 %v4512
  %v5833 = vunpack.c.l.b16 %v4513
  %v5834 = vunpack.c.h.b16 %v4513
  %v5835 = vunpack.c.l.b16 %v4514
  %v5836 = vunpack.c.h.b16 %v4514
  %v5837 = vunpack.c.l.b16 %v4515
  %v5838 = vunpack.c.h.b16 %v4515
  %v5839 = vunpack.c.l.b16 %v4516
  %v5840 = vunpack.c.h.b16 %v4516
  %v5841 = vunpack.c.l.b16 %v4517
  %v5842 = vunpack.c.h.b16 %v4517
  %v5843 = vunpack.c.l.b16 %v4518
  %v5844 = vunpack.c.h.b16 %v4518
  %v5845 = vunpack.c.l.b16 %v4519
  %v5846 = vunpack.c.h.b16 %v4519
  %v5847 = vunpack.c.l.b16 %v4520
  %v5848 = vunpack.c.h.b16 %v4520
  %v5849 = vunpack.c.l.b16 %v4521
  %v5850 = vunpack.c.h.b16 %v4521
  %v5851 = vunpack.c.l.b16 %v4522
  %v5852 = vunpack.c.h.b16 %v4522
  %v5853 = vunpack.c.l.b16 %v4523
  %v5854 = vunpack.c.h.b16 %v4523
  %v5855 = vunpack.c.l.b16 %v4524
  %v5856 = vunpack.c.h.b16 %v4524
  %v5857 = vunpack.c.l.b16 %v4525
  %v5858 = vunpack.c.h.b16 %v4525
  %v5859 = vunpack.c.l.b16 %v4526
  %v5860 = vunpack.c.h.b16 %v4526
  %v5861 = vunpack.c.l.b16 %v4527
  %v5862 = vunpack.c.h.b16 %v4527
  %v5863 = vunpack.c.l.b16 %v4528
  %v5864 = vunpack.c.h.b16 %v4528
  %v5865 = vunpack.c.l.b16 %v4529
  %v5866 = vunpack.c.h.b16 %v4529
  %v5867 = vunpack.c.l.b16 %v4530
  %v5868 = vunpack.c.h.b16 %v4530
  %v5869 = vunpack.c.l.b16 %v4531
  %v5870 = vunpack.c.h.b16 %v4531
  %v5871 = vunpack.c.l.b16 %v4532
  %v5872 = vunpack.c.h.b16 %v4532
  %v5873 = vunpack.c.l.b16 %v4533
  %v5874 = vunpack.c.h.b16 %v4533
  %v5875 = vunpack.c.l.b16 %v4534
  %v5876 = vunpack.c.h.b16 %v4534
  %v5877 = vunpack.c.l.b16 %v4535
  %v5878 = vunpack.c.h.b16 %v4535
  %v5879 = vunpack.c.l.b16 %v4536
  %v5880 = vunpack.c.h.b16 %v4536
  %v5881 = vunpack.c.l.b16 %v4537
  %v5882 = vunpack.c.h.b16 %v4537
  %v5883 = vunpack.c.l.b16 %v4538
  %v5884 = vunpack.c.h.b16 %v4538
  %v5885 = vunpack.c.l.b16 %v4539
  %v5886 = vunpack.c.h.b16 %v4539
  %v5887 = vunpack.c.l.b16 %v4540
  %v5888 = vunpack.c.h.b16 %v4540
  %v5889 = vunpack.c.l.b16 %v4541
  %v5890 = vunpack.c.h.b16 %v4541
  %v5891 = vunpack.c.l.b16 %v4542
  %v5892 = vunpack.c.h.b16 %v4542
  %v5893 = vunpack.c.l.b16 %v4543
  %v5894 = vunpack.c.h.b16 %v4543
  %v5895 = vunpack.c.l.b16 %v4544
  %v5896 = vunpack.c.h.b16 %v4544
  %v5897 = vunpack.c.l.b16 %v4545
  %v5898 = vunpack.c.h.b16 %v4545
  %v5899 = vunpack.c.l.b16 %v4546
  %v5900 = vunpack.c.h.b16 %v4546
  %v5901 = vunpack.c.l.b16 %v4547
  %v5902 = vunpack.c.h.b16 %v4547
  %v5903 = vunpack.c.l.b16 %v4548
  %v5904 = vunpack.c.h.b16 %v4548
  %v5905 = vunpack.c.l.b16 %v4549
  %v5906 = vunpack.c.h.b16 %v4549
  %v5907 = vunpack.c.l.b16 %v4550
  %v5908 = vunpack.c.h.b16 %v4550
  %v5909 = vunpack.c.l.b16 %v4551
  %v5910 = vunpack.c.h.b16 %v4551
  %v5911 = vunpack.c.l.b16 %v4552
  %v5912 = vunpack.c.h.b16 %v4552
  %v5913 = vunpack.c.l.b16 %v4553
  %v5914 = vunpack.c.h.b16 %v4553
  %v5915 = vunpack.c.l.b16 %v4554
  %v5916 = vunpack.c.h.b16 %v4554
  %v5917 = vunpack.c.l.b16 %v4555
  %v5918 = vunpack.c.h.b16 %v4555
  %v5919 = vunpack.c.l.b16 %v4556
  %v5920 = vunpack.c.h.b16 %v4556
  %v5921 = vunpack.c.l.b16 %v4557
  %v5922 = vunpack.c.h.b16 %v4557
  %v5923 = vunpack.c.l.b16 %v4558
  %v5924 = vunpack.c.h.b16 %v4558
  %v5925 = vunpack.c.l.b16 %v4559
  %v5926 = vunpack.c.h.b16 %v4559
  %v5927 = vunpack.c.l.b16 %v4560
  %v5928 = vunpack.c.h.b16 %v4560
  %v5929 = vunpack.c.l.b16 %v4561
  %v5930 = vunpack.c.h.b16 %v4561
  %v5931 = vunpack.c.l.b16 %v4562
  %v5932 = vunpack.c.h.b16 %v4562
  %v5933 = vunpack.c.l.b16 %v4563
  %v5934 = vunpack.c.h.b16 %v4563
  %v5935 = vunpack.c.l.b16 %v4564
  %v5936 = vunpack.c.h.b16 %v4564
  %v5937 = vunpack.c.l.b16 %v4565
  %v5938 = vunpack.c.h.b16 %v4565
  %v5939 = vunpack.c.l.b16 %v4566
  %v5940 = vunpack.c.h.b16 %v4566
  %v5941 = vunpack.c.l.b16 %v4567
  %v5942 = vunpack.c.h.b16 %v4567
  %v5943 = vunpack.c.l.b16 %v4568
  %v5944 = vunpack.c.h.b16 %v4568
  %v5945 = vunpack.c.l.b16 %v4569
  %v5946 = vunpack.c.h.b16 %v4569
  %v5947 = vunpack.c.l.b16 %v4570
  %v5948 = vunpack.c.h.b16 %v4570
  %v5949 = vunpack.c.l.b16 %v4571
  %v5950 = vunpack.c.h.b16 %v4571
  %v5951 = vunpack.c.l.b16 %v4572
  %v5952 = vunpack.c.h.b16 %v4572
  %v5953 = vunpack.c.l.b16 %v4573
  %v5954 = vunpack.c.h.b16 %v4573
  %v5955 = vunpack.c.l.b16 %v4574
  %v5956 = vunpack.c.h.b16 %v4574
  %v5957 = vunpack.c.l.b16 %v4575
  %v5958 = vunpack.c.h.b16 %v4575
  %v5959 = vunpack.c.l.b16 %v4576
  %v5960 = vunpack.c.h.b16 %v4576
  %v5961 = vunpack.c.l.b16 %v4577
  %v5962 = vunpack.c.h.b16 %v4577
  %v5963 = vunpack.c.l.b16 %v4578
  %v5964 = vunpack.c.h.b16 %v4578
  %v5965 = vunpack.c.l.b16 %v4579
  %v5966 = vunpack.c.h.b16 %v4579
  %v5967 = vunpack.c.l.b16 %v4580
  %v5968 = vunpack.c.h.b16 %v4580
  %v5969 = vunpack.c.l.b16 %v4581
  %v5970 = vunpack.c.h.b16 %v4581
  %v5971 = vunpack.c.l.b16 %v4582
  %v5972 = vunpack.c.h.b16 %v4582
  %v5973 = vunpack.c.l.b16 %v4583
  %v5974 = vunpack.c.h.b16 %v4583
  %v5975 = vunpack.c.l.b16 %v4584
  %v5976 = vunpack.c.h.b16 %v4584
  %v5977 = vunpack.c.l.b16 %v4585
  %v5978 = vunpack.c.h.b16 %v4585
  %v5979 = vunpack.c.l.b16 %v4586
  %v5980 = vunpack.c.h.b16 %v4586
  %v5981 = vunpack.c.l.b16 %v4587
  %v5982 = vunpack.c.h.b16 %v4587
  %v5983 = vunpack.c.l.b16 %v4588
  %v5984 = vunpack.c.h.b16 %v4588
  %v5985 = vunpack.c.l.b16 %v4589
  %v5986 = vunpack.c.h.b16 %v4589
  %v5987 = vunpack.c.l.b16 %v4590
  %v5988 = vunpack.c.h.b16 %v4590
  %v5989 = vunpack.c.l.b16 %v4591
  %v5990 = vunpack.c.h.b16 %v4591
  %v5991 = vunpack.c.l.b16 %v4592
  %v5992 = vunpack.c.h.b16 %v4592
  %v5993 = vunpack.c.l.b16 %v4593
  %v5994 = vunpack.c.h.b16 %v4593
  %v5995 = vunpack.c.l.b16 %v4594
  %v5996 = vunpack.c.h.b16 %v4594
  %v5997 = vunpack.c.l.b16 %v4595
  %v5998 = vunpack.c.h.b16 %v4595
  %v5999 = vunpack.c.l.b16 %v4596
  %v6000 = vunpack.c.h.b16 %v4596
  %v6001 = vunpack.c.l.b16 %v4597
  %v6002 = vunpack.c.h.b16 %v4597
  %v6003 = vunpack.c.l.b16 %v4598
  %v6004 = vunpack.c.h.b16 %v4598
  %v6005 = vunpack.c.l.b16 %v4599
  %v6006 = vunpack.c.h.b16 %v4599
  %v6007 = vunpack.c.l.b16 %v4600
  %v6008 = vunpack.c.h.b16 %v4600
  %v6009 = vunpack.c.l.b16 %v4601
  %v6010 = vunpack.c.h.b16 %v4601
  %v6011 = vunpack.c.l.b16 %v4602
  %v6012 = vunpack.c.h.b16 %v4602
  %v6013 = vunpack.c.l.b16 %v4603
  %v6014 = vunpack.c.h.b16 %v4603
  %v6015 = vunpack.c.l.b16 %v4604
  %v6016 = vunpack.c.h.b16 %v4604
  %v6017 = vunpack.c.l.b16 %v4605
  %v6018 = vunpack.c.h.b16 %v4605
  %v6019 = vunpack.c.l.b16 %v4606
  %v6020 = vunpack.c.h.b16 %v4606
  %v6021 = vunpack.c.l.b16 %v4607
  %v6022 = vunpack.c.h.b16 %v4607
  %v6023 = vunpack.c.l.b16 %v4608
  %v6024 = vunpack.c.h.b16 %v4608
  %v6025 = vunpack.c.l.b16 %v4609
  %v6026 = vunpack.c.h.b16 %v4609
  %v6027 = vunpack.c.l.b16 %v4610
  %v6028 = vunpack.c.h.b16 %v4610
  %v6029 = vunpack.c.l.b16 %v4611
  %v6030 = vunpack.c.h.b16 %v4611
  %v6031 = vunpack.c.l.b16 %v4612
  %v6032 = vunpack.c.h.b16 %v4612
  %v6033 = vunpack.c.l.b16 %v4613
  %v6034 = vunpack.c.h.b16 %v4613
  %v6035 = vunpack.c.l.b16 %v4614
  %v6036 = vunpack.c.h.b16 %v4614
  %v6037 = vunpack.c.l.b16 %v4615
  %v6038 = vunpack.c.h.b16 %v4615
  %v6039 = vunpack.c.l.b16 %v4616
  %v6040 = vunpack.c.h.b16 %v4616
  %v6041 = vunpack.c.l.b16 %v4617
  %v6042 = vunpack.c.h.b16 %v4617
  %v6043 = vunpack.c.l.b16 %v4618
  %v6044 = vunpack.c.h.b16 %v4618
  %v6045 = vunpack.c.l.b16 %v4619
  %v6046 = vunpack.c.h.b16 %v4619
  %v6047 = vunpack.c.l.b16 %v4620
  %v6048 = vunpack.c.h.b16 %v4620
  %v6049 = vunpack.c.l.b16 %v4621
  %v6050 = vunpack.c.h.b16 %v4621
  %v6051 = vunpack.c.l.b16 %v4622
  %v6052 = vunpack.c.h.b16 %v4622
  %v6053 = vunpack.c.l.b16 %v4623
  %v6054 = vunpack.c.h.b16 %v4623
  %v6055 = vunpack.c.l.b16 %v4624
  %v6056 = vunpack.c.h.b16 %v4624
  %v6057 = vunpack.c.l.b16 %v4625
  %v6058 = vunpack.c.h.b16 %v4625
  %v6059 = vunpack.c.l.b16 %v4626
  %v6060 = vunpack.c.h.b16 %v4626
  %v6061 = vunpack.c.l.b16 %v4627
  %v6062 = vunpack.c.h.b16 %v4627
  %v6063 = vunpack.c.l.b16 %v4628
  %v6064 = vunpack.c.h.b16 %v4628
  %v6065 = vunpack.c.l.b16 %v4629
  %v6066 = vunpack.c.h.b16 %v4629
  %v6067 = vunpack.c.l.b16 %v4630
  %v6068 = vunpack.c.h.b16 %v4630
  %v6069 = vunpack.c.l.b16 %v4631
  %v6070 = vunpack.c.h.b16 %v4631
  %v6071 = vunpack.c.l.b16 %v4632
  %v6072 = vunpack.c.h.b16 %v4632
  %v6073 = vunpack.c.l.b16 %v4633
  %v6074 = vunpack.c.h.b16 %v4633
  %v6075 = vunpack.c.l.b16 %v4634
  %v6076 = vunpack.c.h.b16 %v4634
  %v6077 = vunpack.c.l.b16 %v4635
  %v6078 = vunpack.c.h.b16 %v4635
  %v6079 = vunpack.c.l.b16 %v4636
  %v6080 = vunpack.c.h.b16 %v4636
  %v6081 = vunpack.c.l.b16 %v4637
  %v6082 = vunpack.c.h.b16 %v4637
  %v6083 = vunpack.c.l.b16 %v4638
  %v6084 = vunpack.c.h.b16 %v4638
  %v6085 = vunpack.c.l.b16 %v4639
  %v6086 = vunpack.c.h.b16 %v4639
  %v6087 = vunpack.c.l.b16 %v4640
  %v6088 = vunpack.c.h.b16 %v4640
  %v6089 = vunpack.c.l.b16 %v4641
  %v6090 = vunpack.c.h.b16 %v4641
  %v6091 = vunpack.c.l.b16 %v4642
  %v6092 = vunpack.c.h.b16 %v4642
  %v6093 = vunpack.c.l.b16 %v4643
  %v6094 = vunpack.c.h.b16 %v4643
  %v6095 = vunpack.c.l.b16 %v4644
  %v6096 = vunpack.c.h.b16 %v4644
  %v6097 = vunpack.c.l.b16 %v4645
  %v6098 = vunpack.c.h.b16 %v4645
  %v6099 = vunpack.c.l.b16 %v4646
  %v6100 = vunpack.c.h.b16 %v4646
  %v6101 = vunpack.c.l.b16 %v4647
  %v6102 = vunpack.c.h.b16 %v4647
  %v6103 = vunpack.c.l.b16 %v4648
  %v6104 = vunpack.c.h.b16 %v4648
  %v6105 = vunpack.c.l.b16 %v4649
  %v6106 = vunpack.c.h.b16 %v4649
  %v6107 = vunpack.c.l.b16 %v4650
  %v6108 = vunpack.c.h.b16 %v4650
  %v6109 = vunpack.c.l.b16 %v4651
  %v6110 = vunpack.c.h.b16 %v4651
  %v6111 = vunpack.c.l.b16 %v4652
  %v6112 = vunpack.c.h.b16 %v4652
  %v6113 = vunpack.c.l.b16 %v4653
  %v6114 = vunpack.c.h.b16 %v4653
  %v6115 = vunpack.c.l.b16 %v4654
  %v6116 = vunpack.c.h.b16 %v4654
  %v6117 = vunpack.c.l.b16 %v4655
  %v6118 = vunpack.c.h.b16 %v4655
  %v6119 = vunpack.c.l.b16 %v4656
  %v6120 = vunpack.c.h.b16 %v4656
  %v6121 = vunpack.c.l.b16 %v4657
  %v6122 = vunpack.c.h.b16 %v4657
  %v6123 = vunpack.c.l.b16 %v4658
  %v6124 = vunpack.c.h.b16 %v4658
  %v6125 = vunpack.c.l.b16 %v4659
  %v6126 = vunpack.c.h.b16 %v4659
  %v6127 = vunpack.c.l.b16 %v4660
  %v6128 = vunpack.c.h.b16 %v4660
  %v6129 = vunpack.c.l.b16 %v4661
  %v6130 = vunpack.c.h.b16 %v4661
  %v6131 = vunpack.c.l.b16 %v4662
  %v6132 = vunpack.c.h.b16 %v4662
  %v6133 = vunpack.c.l.b16 %v4663
  %v6134 = vunpack.c.h.b16 %v4663
  %v6135 = vunpack.c.l.b16 %v4664
  %v6136 = vunpack.c.h.b16 %v4664
  %v6137 = vunpack.c.l.b16 %v4665
  %v6138 = vunpack.c.h.b16 %v4665
  %v6139 = vunpack.c.l.b16 %v4666
  %v6140 = vunpack.c.h.b16 %v4666
  %v6141 = vunpack.c.l.b16 %v4667
  %v6142 = vunpack.c.h.b16 %v4667
  %v6143 = vunpack.c.l.b16 %v4668
  %v6144 = vunpack.c.h.b16 %v4668
  %v6145 = vunpack.c.l.b16 %v4669
  %v6146 = vunpack.c.h.b16 %v4669
  %v6147 = vunpack.c.l.b16 %v4670
  %v6148 = vunpack.c.h.b16 %v4670
  %v6149 = vunpack.c.l.b16 %v4671
  %v6150 = vunpack.c.h.b16 %v4671
  %v6151 = vunpack.c.l.b16 %v4672
  %v6152 = vunpack.c.h.b16 %v4672
  %v6153 = vunpack.c.l.b16 %v4673
  %v6154 = vunpack.c.h.b16 %v4673
  %v6155 = vunpack.c.l.b16 %v4674
  %v6156 = vunpack.c.h.b16 %v4674
  %v6157 = vunpack.c.l.b16 %v4675
  %v6158 = vunpack.c.h.b16 %v4675
  %v6159 = vunpack.c.l.b16 %v4676
  %v6160 = vunpack.c.h.b16 %v4676
  %v6161 = vunpack.c.l.b16 %v4677
  %v6162 = vunpack.c.h.b16 %v4677
  %v6163 = vunpack.c.l.b16 %v4678
  %v6164 = vunpack.c.h.b16 %v4678
  %v6165 = vunpack.c.l.b16 %v4679
  %v6166 = vunpack.c.h.b16 %v4679
  %v6167 = vunpack.c.l.b16 %v4680
  %v6168 = vunpack.c.h.b16 %v4680
  %v6169 = vunpack.c.l.b16 %v4681
  %v6170 = vunpack.c.h.b16 %v4681
  %v6171 = vunpack.c.l.b16 %v4682
  %v6172 = vunpack.c.h.b16 %v4682
  %v6173 = vunpack.c.l.b16 %v4683
  %v6174 = vunpack.c.h.b16 %v4683
  %v6175 = vunpack.c.l.b16 %v4684
  %v6176 = vunpack.c.h.b16 %v4684
  %v6177 = vunpack.c.l.b16 %v4685
  %v6178 = vunpack.c.h.b16 %v4685
  %v6179 = vunpack.c.l.b16 %v4686
  %v6180 = vunpack.c.h.b16 %v4686
  %v6181 = vunpack.c.l.b16 %v4687
  %v6182 = vunpack.c.h.b16 %v4687
  %v6183 = vunpack.c.l.b16 %v4688
  %v6184 = vunpack.c.h.b16 %v4688
  %v6185 = vunpack.c.l.b16 %v4689
  %v6186 = vunpack.c.h.b16 %v4689
  %v6187 = vunpack.c.l.b16 %v4690
  %v6188 = vunpack.c.h.b16 %v4690
  %v6189 = vunpack.c.l.b16 %v4691
  %v6190 = vunpack.c.h.b16 %v4691
  %v6191 = vunpack.c.l.b16 %v4692
  %v6192 = vunpack.c.h.b16 %v4692
  %v6193 = vunpack.c.l.b16 %v4693
  %v6194 = vunpack.c.h.b16 %v4693
  %v6195 = vunpack.c.l.b16 %v4694
  %v6196 = vunpack.c.h.b16 %v4694
  %v6197 = vunpack.c.l.b16 %v4695
  %v6198 = vunpack.c.h.b16 %v4695
  %v6199 = vunpack.c.l.b16 %v4696
  %v6200 = vunpack.c.h.b16 %v4696
  %v6201 = vunpack.c.l.b16 %v4697
  %v6202 = vunpack.c.h.b16 %v4697
  %v6203 = vunpack.c.l.b16 %v4698
  %v6204 = vunpack.c.h.b16 %v4698
  %v6205 = vunpack.c.l.b16 %v4699
  %v6206 = vunpack.c.h.b16 %v4699
  %v6207 = vunpack.c.l.b16 %v4700
  %v6208 = vunpack.c.h.b16 %v4700
  %v6209 = vunpack.c.l.b16 %v4701
  %v6210 = vunpack.c.h.b16 %v4701
  %v6211 = vunpack.c.l.b16 %v4702
  %v6212 = vunpack.c.h.b16 %v4702
  %v6213 = vunpack.c.l.b16 %v4703
  %v6214 = vunpack.c.h.b16 %v4703
  %v6215 = vunpack.c.l.b16 %v4704
  %v6216 = vunpack.c.h.b16 %v4704
  %v6217 = vunpack.c.l.b16 %v4705
  %v6218 = vunpack.c.h.b16 %v4705
  %v6219 = vunpack.c.l.b16 %v4706
  %v6220 = vunpack.c.h.b16 %v4706
  %v6221 = vunpack.c.l.b16 %v4707
  %v6222 = vunpack.c.h.b16 %v4707
  %v6223 = vunpack.c.l.b16 %v4708
  %v6224 = vunpack.c.h.b16 %v4708
  %v6225 = vunpack.c.l.b16 %v4709
  %v6226 = vunpack.c.h.b16 %v4709
  %v6227 = vunpack.c.l.b16 %v4710
  %v6228 = vunpack.c.h.b16 %v4710
  %v6229 = vunpack.c.l.b16 %v4711
  %v6230 = vunpack.c.h.b16 %v4711
  %v6231 = vunpack.c.l.b16 %v4712
  %v6232 = vunpack.c.h.b16 %v4712
  %v6233 = vunpack.c.l.b16 %v4713
  %v6234 = vunpack.c.h.b16 %v4713
  %v6235 = vunpack.c.l.b16 %v4714
  %v6236 = vunpack.c.h.b16 %v4714
  %v6237 = vunpack.c.l.b16 %v4715
  %v6238 = vunpack.c.h.b16 %v4715
  %v6239 = vunpack.c.l.b16 %v4716
  %v6240 = vunpack.c.h.b16 %v4716
  %v6241 = vunpack.c.l.b16 %v4717
  %v6242 = vunpack.c.h.b16 %v4717
  %v6243 = vunpack.c.l.b16 %v4718
  %v6244 = vunpack.c.h.b16 %v4718
  %v6245 = vunpack.c.l.b16 %v4719
  %v6246 = vunpack.c.h.b16 %v4719
  %v6247 = vunpack.c.l.b16 %v4720
  %v6248 = vunpack.c.h.b16 %v4720
  %v6249 = vunpack.c.l.b16 %v4721
  %v6250 = vunpack.c.h.b16 %v4721
  %v6251 = vunpack.c.l.b16 %v4722
  %v6252 = vunpack.c.h.b16 %v4722
  %v6253 = vunpack.c.l.b16 %v4723
  %v6254 = vunpack.c.h.b16 %v4723
  %v6255 = vunpack.c.l.b16 %v4724
  %v6256 = vunpack.c.h.b16 %v4724
  %v6257 = vunpack.c.l.b16 %v4725
  %v6258 = vunpack.c.h.b16 %v4725
  %v6259 = vunpack.c.l.b16 %v4726
  %v6260 = vunpack.c.h.b16 %v4726
  %v6261 = vunpack.c.l.b16 %v4727
  %v6262 = vunpack.c.h.b16 %v4727
  %v6263 = vunpack.c.l.b16 %v4728
  %v6264 = vunpack.c.h.b16 %v4728
  %v6265 = vunpack.c.l.b16 %v4729
  %v6266 = vunpack.c.h.b16 %v4729
  %v6267 = vunpack.c.l.b16 %v4730
  %v6268 = vunpack.c.h.b16 %v4730
  %v6269 = vunpack.c.l.b16 %v4731
  %v6270 = vunpack.c.h.b16 %v4731
  %v6271 = vunpack.c.l.b16 %v4732
  %v6272 = vunpack.c.h.b16 %v4732
  %v6273 = vunpack.c.l.b16 %v4733
  %v6274 = vunpack.c.h.b16 %v4733
  %v6275 = vunpack.c.l.b16 %v4734
  %v6276 = vunpack.c.h.b16 %v4734
  %v6277 = vunpack.c.l.b16 %v4735
  %v6278 = vunpack.c.h.b16 %v4735
  %v6279 = vunpack.c.l.b16 %v4736
  %v6280 = vunpack.c.h.b16 %v4736
  %v6281 = vunpack.c.l.b16 %v4737
  %v6282 = vunpack.c.h.b16 %v4737
  %v6283 = vunpack.c.l.b16 %v4738
  %v6284 = vunpack.c.h.b16 %v4738
  %v6285 = vunpack.c.l.b16 %v4739
  %v6286 = vunpack.c.h.b16 %v4739
  %v6287 = vunpack.c.l.b16 %v4740
  %v6288 = vunpack.c.h.b16 %v4740
  %v6289 = vunpack.c.l.b16 %v4741
  %v6290 = vunpack.c.h.b16 %v4741
  %v6291 = vunpack.c.l.b16 %v4742
  %v6292 = vunpack.c.h.b16 %v4742
  %v6293 = vunpack.c.l.b16 %v4743
  %v6294 = vunpack.c.h.b16 %v4743
  %v6295 = vunpack.c.l.b16 %v4744
  %v6296 = vunpack.c.h.b16 %v4744
  %v6297 = vunpack.c.l.b16 %v4745
  %v6298 = vunpack.c.h.b16 %v4745
  %v6299 = vunpack.c.l.b16 %v4746
  %v6300 = vunpack.c.h.b16 %v4746
  %v6301 = vpack.c.b16 %v5285, %v5277
  %v6302 = vpack.c.b16 %v5286, %v5278
  %v6303 = vpack.c.b16 %v5287, %v5279
  %v6304 = vpack.c.b16 %v5288, %v5280
  %v6305 = vpack.c.b16 %v5289, %v5281
  %v6306 = vpack.c.b16 %v5290, %v5282
  %v6307 = vpack.c.b16 %v5291, %v5283
  %v6308 = vpack.c.b16 %v5292, %v5284
  %v6309 = vpack.c.b16 %v5301, %v5293
  %v6310 = vpack.c.b16 %v5302, %v5294
  %v6311 = vpack.c.b16 %v5303, %v5295
  %v6312 = vpack.c.b16 %v5304, %v5296
  %v6313 = vpack.c.b16 %v5305, %v5297
  %v6314 = vpack.c.b16 %v5306, %v5298
  %v6315 = vpack.c.b16 %v5307, %v5299
  %v6316 = vpack.c.b16 %v5308, %v5300
  %v6317 = vpack.c.b16 %v5317, %v5309
  %v6318 = vpack.c.b16 %v5318, %v5310
  %v6319 = vpack.c.b16 %v5319, %v5311
  %v6320 = vpack.c.b16 %v5320, %v5312
  %v6321 = vpack.c.b16 %v5321, %v5313
  %v6322 = vpack.c.b16 %v5322, %v5314
  %v6323 = vpack.c.b16 %v5323, %v5315
  %v6324 = vpack.c.b16 %v5324, %v5316
  %v6325 = vpack.c.b16 %v5333, %v5325
  %v6326 = vpack.c.b16 %v5334, %v5326
  %v6327 = vpack.c.b16 %v5335, %v5327
  %v6328 = vpack.c.b16 %v5336, %v5328
  %v6329 = vpack.c.b16 %v5337, %v5329
  %v6330 = vpack.c.b16 %v5338, %v5330
  %v6331 = vpack.c.b16 %v5339, %v5331
  %v6332 = vpack.c.b16 %v5340, %v5332
  %v6333 = vpack.c.b16 %v5349, %v5341
  %v6334 = vpack.c.b16 %v5350, %v5342
  %v6335 = vpack.c.b16 %v5351, %v5343
  %v6336 = vpack.c.b16 %v5352, %v5344
  %v6337 = vpack.c.b16 %v5353, %v5345
  %v6338 = vpack.c.b16 %v5354, %v5346
  %v6339 = vpack.c.b16 %v5355, %v5347
  %v6340 = vpack.c.b16 %v5356, %v5348
  %v6341 = vpack.c.b16 %v5365, %v5357
  %v6342 = vpack.c.b16 %v5366, %v5358
  %v6343 = vpack.c.b16 %v5367, %v5359
  %v6344 = vpack.c.b16 %v5368, %v5360
  %v6345 = vpack.c.b16 %v5369, %v5361
  %v6346 = vpack.c.b16 %v5370, %v5362
  %v6347 = vpack.c.b16 %v5371, %v5363
  %v6348 = vpack.c.b16 %v5372, %v5364
  %v6349 = vpack.c.b16 %v5381, %v5373
  %v6350 = vpack.c.b16 %v5382, %v5374
  %v6351 = vpack.c.b16 %v5383, %v5375
  %v6352 = vpack.c.b16 %v5384, %v5376
  %v6353 = vpack.c.b16 %v5385, %v5377
  %v6354 = vpack.c.b16 %v5386, %v5378
  %v6355 = vpack.c.b16 %v5387, %v5379
  %v6356 = vpack.c.b16 %v5388, %v5380
  %v6357 = vpack.c.b16 %v5397, %v5389
  %v6358 = vpack.c.b16 %v5398, %v5390
  %v6359 = vpack.c.b16 %v5399, %v5391
  %v6360 = vpack.c.b16 %v5400, %v5392
  %v6361 = vpack.c.b16 %v5401, %v5393
  %v6362 = vpack.c.b16 %v5402, %v5394
  %v6363 = vpack.c.b16 %v5403, %v5395
  %v6364 = vpack.c.b16 %v5404, %v5396
  %v6365 = vpack.c.b16 %v5413, %v5405
  %v6366 = vpack.c.b16 %v5414, %v5406
  %v6367 = vpack.c.b16 %v5415, %v5407
  %v6368 = vpack.c.b16 %v5416, %v5408
  %v6369 = vpack.c.b16 %v5417, %v5409
  %v6370 = vpack.c.b16 %v5418, %v5410
  %v6371 = vpack.c.b16 %v5419, %v5411
  %v6372 = vpack.c.b16 %v5420, %v5412
  %v6373 = vpack.c.b16 %v5429, %v5421
  %v6374 = vpack.c.b16 %v5430, %v5422
  %v6375 = vpack.c.b16 %v5431, %v5423
  %v6376 = vpack.c.b16 %v5432, %v5424
  %v6377 = vpack.c.b16 %v5433, %v5425
  %v6378 = vpack.c.b16 %v5434, %v5426
  %v6379 = vpack.c.b16 %v5435, %v5427
  %v6380 = vpack.c.b16 %v5436, %v5428
  %v6381 = vpack.c.b16 %v5445, %v5437
  %v6382 = vpack.c.b16 %v5446, %v5438
  %v6383 = vpack.c.b16 %v5447, %v5439
  %v6384 = vpack.c.b16 %v5448, %v5440
  %v6385 = vpack.c.b16 %v5449, %v5441
  %v6386 = vpack.c.b16 %v5450, %v5442
  %v6387 = vpack.c.b16 %v5451, %v5443
  %v6388 = vpack.c.b16 %v5452, %v5444
  %v6389 = vpack.c.b16 %v5461, %v5453
  %v6390 = vpack.c.b16 %v5462, %v5454
  %v6391 = vpack.c.b16 %v5463, %v5455
  %v6392 = vpack.c.b16 %v5464, %v5456
  %v6393 = vpack.c.b16 %v5465, %v5457
  %v6394 = vpack.c.b16 %v5466, %v5458
  %v6395 = vpack.c.b16 %v5467, %v5459
  %v6396 = vpack.c.b16 %v5468, %v5460
  %v6397 = vpack.c.b16 %v5477, %v5469
  %v6398 = vpack.c.b16 %v5478, %v5470
  %v6399 = vpack.c.b16 %v5479, %v5471
  %v6400 = vpack.c.b16 %v5480, %v5472
  %v6401 = vpack.c.b16 %v5481, %v5473
  %v6402 = vpack.c.b16 %v5482, %v5474
  %v6403 = vpack.c.b16 %v5483, %v5475
  %v6404 = vpack.c.b16 %v5484, %v5476
  %v6405 = vpack.c.b16 %v5493, %v5485
  %v6406 = vpack.c.b16 %v5494, %v5486
  %v6407 = vpack.c.b16 %v5495, %v5487
  %v6408 = vpack.c.b16 %v5496, %v5488
  %v6409 = vpack.c.b16 %v5497, %v5489
  %v6410 = vpack.c.b16 %v5498, %v5490
  %v6411 = vpack.c.b16 %v5499, %v5491
  %v6412 = vpack.c.b16 %v5500, %v5492
  %v6413 = vpack.c.b16 %v5509, %v5501
  %v6414 = vpack.c.b16 %v5510, %v5502
  %v6415 = vpack.c.b16 %v5511, %v5503
  %v6416 = vpack.c.b16 %v5512, %v5504
  %v6417 = vpack.c.b16 %v5513, %v5505
  %v6418 = vpack.c.b16 %v5514, %v5506
  %v6419 = vpack.c.b16 %v5515, %v5507
  %v6420 = vpack.c.b16 %v5516, %v5508
  %v6421 = vpack.c.b16 %v5525, %v5517
  %v6422 = vpack.c.b16 %v5526, %v5518
  %v6423 = vpack.c.b16 %v5527, %v5519
  %v6424 = vpack.c.b16 %v5528, %v5520
  %v6425 = vpack.c.b16 %v5529, %v5521
  %v6426 = vpack.c.b16 %v5530, %v5522
  %v6427 = vpack.c.b16 %v5531, %v5523
  %v6428 = vpack.c.b16 %v5532, %v5524
  %v6429 = vpack.c.b16 %v5541, %v5533
  %v6430 = vpack.c.b16 %v5542, %v5534
  %v6431 = vpack.c.b16 %v5543, %v5535
  %v6432 = vpack.c.b16 %v5544, %v5536
  %v6433 = vpack.c.b16 %v5545, %v5537
  %v6434 = vpack.c.b16 %v5546, %v5538
  %v6435 = vpack.c.b16 %v5547, %v5539
  %v6436 = vpack.c.b16 %v5548, %v5540
  %v6437 = vpack.c.b16 %v5557, %v5549
  %v6438 = vpack.c.b16 %v5558, %v5550
  %v6439 = vpack.c.b16 %v5559, %v5551
  %v6440 = vpack.c.b16 %v5560, %v5552
  %v6441 = vpack.c.b16 %v5561, %v5553
  %v6442 = vpack.c.b16 %v5562, %v5554
  %v6443 = vpack.c.b16 %v5563, %v5555
  %v6444 = vpack.c.b16 %v5564, %v5556
  %v6445 = vpack.c.b16 %v5573, %v5565
  %v6446 = vpack.c.b16 %v5574, %v5566
  %v6447 = vpack.c.b16 %v5575, %v5567
  %v6448 = vpack.c.b16 %v5576, %v5568
  %v6449 = vpack.c.b16 %v5577, %v5569
  %v6450 = vpack.c.b16 %v5578, %v5570
  %v6451 = vpack.c.b16 %v5579, %v5571
  %v6452 = vpack.c.b16 %v5580, %v5572
  %v6453 = vpack.c.b16 %v5589, %v5581
  %v6454 = vpack.c.b16 %v5590, %v5582
  %v6455 = vpack.c.b16 %v5591, %v5583
  %v6456 = vpack.c.b16 %v5592, %v5584
  %v6457 = vpack.c.b16 %v5593, %v5585
  %v6458 = vpack.c.b16 %v5594, %v5586
  %v6459 = vpack.c.b16 %v5595, %v5587
  %v6460 = vpack.c.b16 %v5596, %v5588
  %v6461 = vpack.c.b16 %v5605, %v5597
  %v6462 = vpack.c.b16 %v5606, %v5598
  %v6463 = vpack.c.b16 %v5607, %v5599
  %v6464 = vpack.c.b16 %v5608, %v5600
  %v6465 = vpack.c.b16 %v5609, %v5601
  %v6466 = vpack.c.b16 %v5610, %v5602
  %v6467 = vpack.c.b16 %v5611, %v5603
  %v6468 = vpack.c.b16 %v5612, %v5604
  %v6469 = vpack.c.b16 %v5621, %v5613
  %v6470 = vpack.c.b16 %v5622, %v5614
  %v6471 = vpack.c.b16 %v5623, %v5615
  %v6472 = vpack.c.b16 %v5624, %v5616
  %v6473 = vpack.c.b16 %v5625, %v5617
  %v6474 = vpack.c.b16 %v5626, %v5618
  %v6475 = vpack.c.b16 %v5627, %v5619
  %v6476 = vpack.c.b16 %v5628, %v5620
  %v6477 = vpack.c.b16 %v5637, %v5629
  %v6478 = vpack.c.b16 %v5638, %v5630
  %v6479 = vpack.c.b16 %v5639, %v5631
  %v6480 = vpack.c.b16 %v5640, %v5632
  %v6481 = vpack.c.b16 %v5641, %v5633
  %v6482 = vpack.c.b16 %v5642, %v5634
  %v6483 = vpack.c.b16 %v5643, %v5635
  %v6484 = vpack.c.b16 %v5644, %v5636
  %v6485 = vpack.c.b16 %v5653, %v5645
  %v6486 = vpack.c.b16 %v5654, %v5646
  %v6487 = vpack.c.b16 %v5655, %v5647
  %v6488 = vpack.c.b16 %v5656, %v5648
  %v6489 = vpack.c.b16 %v5657, %v5649
  %v6490 = vpack.c.b16 %v5658, %v5650
  %v6491 = vpack.c.b16 %v5659, %v5651
  %v6492 = vpack.c.b16 %v5660, %v5652
  %v6493 = vpack.c.b16 %v5669, %v5661
  %v6494 = vpack.c.b16 %v5670, %v5662
  %v6495 = vpack.c.b16 %v5671, %v5663
  %v6496 = vpack.c.b16 %v5672, %v5664
  %v6497 = vpack.c.b16 %v5673, %v5665
  %v6498 = vpack.c.b16 %v5674, %v5666
  %v6499 = vpack.c.b16 %v5675, %v5667
  %v6500 = vpack.c.b16 %v5676, %v5668
  %v6501 = vpack.c.b16 %v5685, %v5677
  %v6502 = vpack.c.b16 %v5686, %v5678
  %v6503 = vpack.c.b16 %v5687, %v5679
  %v6504 = vpack.c.b16 %v5688, %v5680
  %v6505 = vpack.c.b16 %v5689, %v5681
  %v6506 = vpack.c.b16 %v5690, %v5682
  %v6507 = vpack.c.b16 %v5691, %v5683
  %v6508 = vpack.c.b16 %v5692, %v5684
  %v6509 = vpack.c.b16 %v5701, %v5693
  %v6510 = vpack.c.b16 %v5702, %v5694
  %v6511 = vpack.c.b16 %v5703, %v5695
  %v6512 = vpack.c.b16 %v5704, %v5696
  %v6513 = vpack.c.b16 %v5705, %v5697
  %v6514 = vpack.c.b16 %v5706, %v5698
  %v6515 = vpack.c.b16 %v5707, %v5699
  %v6516 = vpack.c.b16 %v5708, %v5700
  %v6517 = vpack.c.b16 %v5717, %v5709
  %v6518 = vpack.c.b16 %v5718, %v5710
  %v6519 = vpack.c.b16 %v5719, %v5711
  %v6520 = vpack.c.b16 %v5720, %v5712
  %v6521 = vpack.c.b16 %v5721, %v5713
  %v6522 = vpack.c.b16 %v5722, %v5714
  %v6523 = vpack.c.b16 %v5723, %v5715
  %v6524 = vpack.c.b16 %v5724, %v5716
  %v6525 = vpack.c.b16 %v5733, %v5725
  %v6526 = vpack.c.b16 %v5734, %v5726
  %v6527 = vpack.c.b16 %v5735, %v5727
  %v6528 = vpack.c.b16 %v5736, %v5728
  %v6529 = vpack.c.b16 %v5737, %v5729
  %v6530 = vpack.c.b16 %v5738, %v5730
  %v6531 = vpack.c.b16 %v5739, %v5731
  %v6532 = vpack.c.b16 %v5740, %v5732
  %v6533 = vpack.c.b16 %v5749, %v5741
  %v6534 = vpack.c.b16 %v5750, %v5742
  %v6535 = vpack.c.b16 %v5751, %v5743
  %v6536 = vpack.c.b16 %v5752, %v5744
  %v6537 = vpack.c.b16 %v5753, %v5745
  %v6538 = vpack.c.b16 %v5754, %v5746
  %v6539 = vpack.c.b16 %v5755, %v5747
  %v6540 = vpack.c.b16 %v5756, %v5748
  %v6541 = vpack.c.b16 %v5765, %v5757
  %v6542 = vpack.c.b16 %v5766, %v5758
  %v6543 = vpack.c.b16 %v5767, %v5759
  %v6544 = vpack.c.b16 %v5768, %v5760
  %v6545 = vpack.c.b16 %v5769, %v5761
  %v6546 = vpack.c.b16 %v5770, %v5762
  %v6547 = vpack.c.b16 %v5771, %v5763
  %v6548 = vpack.c.b16 %v5772, %v5764
  %v6549 = vpack.c.b16 %v5781, %v5773
  %v6550 = vpack.c.b16 %v5782, %v5774
  %v6551 = vpack.c.b16 %v5783, %v5775
  %v6552 = vpack.c.b16 %v5784, %v5776
  %v6553 = vpack.c.b16 %v5785, %v5777
  %v6554 = vpack.c.b16 %v5786, %v5778
  %v6555 = vpack.c.b16 %v5787, %v5779
  %v6556 = vpack.c.b16 %v5788, %v5780
  %v6557 = vpack.c.b16 %v5797, %v5789
  %v6558 = vpack.c.b16 %v5798, %v5790
  %v6559 = vpack.c.b16 %v5799, %v5791
  %v6560 = vpack.c.b16 %v5800, %v5792
  %v6561 = vpack.c.b16 %v5801, %v5793
  %v6562 = vpack.c.b16 %v5802, %v5794
  %v6563 = vpack.c.b16 %v5803, %v5795
  %v6564 = vpack.c.b16 %v5804, %v5796
  %v6565 = vpack.c.b16 %v5813, %v5805
  %v6566 = vpack.c.b16 %v5814, %v5806
  %v6567 = vpack.c.b16 %v5815, %v5807
  %v6568 = vpack.c.b16 %v5816, %v5808
  %v6569 = vpack.c.b16 %v5817, %v5809
  %v6570 = vpack.c.b16 %v5818, %v5810
  %v6571 = vpack.c.b16 %v5819, %v5811
  %v6572 = vpack.c.b16 %v5820, %v5812
  %v6573 = vpack.c.b16 %v5829, %v5821
  %v6574 = vpack.c.b16 %v5830, %v5822
  %v6575 = vpack.c.b16 %v5831, %v5823
  %v6576 = vpack.c.b16 %v5832, %v5824
  %v6577 = vpack.c.b16 %v5833, %v5825
  %v6578 = vpack.c.b16 %v5834, %v5826
  %v6579 = vpack.c.b16 %v5835, %v5827
  %v6580 = vpack.c.b16 %v5836, %v5828
  %v6581 = vpack.c.b16 %v5845, %v5837
  %v6582 = vpack.c.b16 %v5846, %v5838
  %v6583 = vpack.c.b16 %v5847, %v5839
  %v6584 = vpack.c.b16 %v5848, %v5840
  %v6585 = vpack.c.b16 %v5849, %v5841
  %v6586 = vpack.c.b16 %v5850, %v5842
  %v6587 = vpack.c.b16 %v5851, %v5843
  %v6588 = vpack.c.b16 %v5852, %v5844
  %v6589 = vpack.c.b16 %v5861, %v5853
  %v6590 = vpack.c.b16 %v5862, %v5854
  %v6591 = vpack.c.b16 %v5863, %v5855
  %v6592 = vpack.c.b16 %v5864, %v5856
  %v6593 = vpack.c.b16 %v5865, %v5857
  %v6594 = vpack.c.b16 %v5866, %v5858
  %v6595 = vpack.c.b16 %v5867, %v5859
  %v6596 = vpack.c.b16 %v5868, %v5860
  %v6597 = vpack.c.b16 %v5877, %v5869
  %v6598 = vpack.c.b16 %v5878, %v5870
  %v6599 = vpack.c.b16 %v5879, %v5871
  %v6600 = vpack.c.b16 %v5880, %v5872
  %v6601 = vpack.c.b16 %v5881, %v5873
  %v6602 = vpack.c.b16 %v5882, %v5874
  %v6603 = vpack.c.b16 %v5883, %v5875
  %v6604 = vpack.c.b16 %v5884, %v5876
  %v6605 = vpack.c.b16 %v5893, %v5885
  %v6606 = vpack.c.b16 %v5894, %v5886
  %v6607 = vpack.c.b16 %v5895, %v5887
  %v6608 = vpack.c.b16 %v5896, %v5888
  %v6609 = vpack.c.b16 %v5897, %v5889
  %v6610 = vpack.c.b16 %v5898, %v5890
  %v6611 = vpack.c.b16 %v5899, %v5891
  %v6612 = vpack.c.b16 %v5900, %v5892
  %v6613 = vpack.c.b16 %v5909, %v5901
  %v6614 = vpack.c.b16 %v5910, %v5902
  %v6615 = vpack.c.b16 %v5911, %v5903
  %v6616 = vpack.c.b16 %v5912, %v5904
  %v6617 = vpack.c.b16 %v5913, %v5905
  %v6618 = vpack.c.b16 %v5914, %v5906
  %v6619 = vpack.c.b16 %v5915, %v5907
  %v6620 = vpack.c.b16 %v5916, %v5908
  %v6621 = vpack.c.b16 %v5925, %v5917
  %v6622 = vpack.c.b16 %v5926, %v5918
  %v6623 = vpack.c.b16 %v5927, %v5919
  %v6624 = vpack.c.b16 %v5928, %v5920
  %v6625 = vpack.c.b16 %v5929, %v5921
  %v6626 = vpack.c.b16 %v5930, %v5922
  %v6627 = vpack.c.b16 %v5931, %v5923
  %v6628 = vpack.c.b16 %v5932, %v5924
  %v6629 = vpack.c.b16 %v5941, %v5933
  %v6630 = vpack.c.b16 %v5942, %v5934
  %v6631 = vpack.c.b16 %v5943, %v5935
  %v6632 = vpack.c.b16 %v5944, %v5936
  %v6633 = vpack.c.b16 %v5945, %v5937
  %v6634 = vpack.c.b16 %v5946, %v5938
  %v6635 = vpack.c.b16 %v5947, %v5939
  %v6636 = vpack.c.b16 %v5948, %v5940
  %v6637 = vpack.c.b16 %v5957, %v5949
  %v6638 = vpack.c.b16 %v5958, %v5950
  %v6639 = vpack.c.b16 %v5959, %v5951
  %v6640 = vpack.c.b16 %v5960, %v5952
  %v6641 = vpack.c.b16 %v5961, %v5953
  %v6642 = vpack.c.b16 %v5962, %v5954
  %v6643 = vpack.c.b16 %v5963, %v5955
  %v6644 = vpack.c.b16 %v5964, %v5956
  %v6645 = vpack.c.b16 %v5973, %v5965
  %v6646 = vpack.c.b16 %v5974, %v5966
  %v6647 = vpack.c.b16 %v5975, %v5967
  %v6648 = vpack.c.b16 %v5976, %v5968
  %v6649 = vpack.c.b16 %v5977, %v5969
  %v6650 = vpack.c.b16 %v5978, %v5970
  %v6651 = vpack.c.b16 %v5979, %v5971
  %v6652 = vpack.c.b16 %v5980, %v5972
  %v6653 = vpack.c.b16 %v5989, %v5981
  %v6654 = vpack.c.b16 %v5990, %v5982
  %v6655 = vpack.c.b16 %v5991, %v5983
  %v6656 = vpack.c.b16 %v5992, %v5984
  %v6657 = vpack.c.b16 %v5993, %v5985
  %v6658 = vpack.c.b16 %v5994, %v5986
  %v6659 = vpack.c.b16 %v5995, %v5987
  %v6660 = vpack.c.b16 %v5996, %v5988
  %v6661 = vpack.c.b16 %v6005, %v5997
  %v6662 = vpack.c.b16 %v6006, %v5998
  %v6663 = vpack.c.b16 %v6007, %v5999
  %v6664 = vpack.c.b16 %v6008, %v6000
  %v6665 = vpack.c.b16 %v6009, %v6001
  %v6666 = vpack.c.b16 %v6010, %v6002
  %v6667 = vpack.c.b16 %v6011, %v6003
  %v6668 = vpack.c.b16 %v6012, %v6004
  %v6669 = vpack.c.b16 %v6021, %v6013
  %v6670 = vpack.c.b16 %v6022, %v6014
  %v6671 = vpack.c.b16 %v6023, %v6015
  %v6672 = vpack.c.b16 %v6024, %v6016
  %v6673 = vpack.c.b16 %v6025, %v6017
  %v6674 = vpack.c.b16 %v6026, %v6018
  %v6675 = vpack.c.b16 %v6027, %v6019
  %v6676 = vpack.c.b16 %v6028, %v6020
  %v6677 = vpack.c.b16 %v6037, %v6029
  %v6678 = vpack.c.b16 %v6038, %v6030
  %v6679 = vpack.c.b16 %v6039, %v6031
  %v6680 = vpack.c.b16 %v6040, %v6032
  %v6681 = vpack.c.b16 %v6041, %v6033
  %v6682 = vpack.c.b16 %v6042, %v6034
  %v6683 = vpack.c.b16 %v6043, %v6035
  %v6684 = vpack.c.b16 %v6044, %v6036
  %v6685 = vpack.c.b16 %v6053, %v6045
  %v6686 = vpack.c.b16 %v6054, %v6046
  %v6687 = vpack.c.b16 %v6055, %v6047
  %v6688 = vpack.c.b16 %v6056, %v6048
  %v6689 = vpack.c.b16 %v6057, %v6049
  %v6690 = vpack.c.b16 %v6058, %v6050
  %v6691 = vpack.c.b16 %v6059, %v6051
  %v6692 = vpack.c.b16 %v6060, %v6052
  %v6693 = vpack.c.b16 %v6069, %v6061
  %v6694 = vpack.c.b16 %v6070, %v6062
  %v6695 = vpack.c.b16 %v6071, %v6063
  %v6696 = vpack.c.b16 %v6072, %v6064
  %v6697 = vpack.c.b16 %v6073, %v6065
  %v6698 = vpack.c.b16 %v6074, %v6066
  %v6699 = vpack.c.b16 %v6075, %v6067
  %v6700 = vpack.c.b16 %v6076, %v6068
  %v6701 = vpack.c.b16 %v6085, %v6077
  %v6702 = vpack.c.b16 %v6086, %v6078
  %v6703 = vpack.c.b16 %v6087, %v6079
  %v6704 = vpack.c.b16 %v6088, %v6080
  %v6705 = vpack.c.b16 %v6089, %v6081
  %v6706 = vpack.c.b16 %v6090, %v6082
  %v6707 = vpack.c.b16 %v6091, %v6083
  %v6708 = vpack.c.b16 %v6092, %v6084
  %v6709 = vpack.c.b16 %v6101, %v6093
  %v6710 = vpack.c.b16 %v6102, %v6094
  %v6711 = vpack.c.b16 %v6103, %v6095
  %v6712 = vpack.c.b16 %v6104, %v6096
  %v6713 = vpack.c.b16 %v6105, %v6097
  %v6714 = vpack.c.b16 %v6106, %v6098
  %v6715 = vpack.c.b16 %v6107, %v6099
  %v6716 = vpack.c.b16 %v6108, %v6100
  %v6717 = vpack.c.b16 %v6117, %v6109
  %v6718 = vpack.c.b16 %v6118, %v6110
  %v6719 = vpack.c.b16 %v6119, %v6111
  %v6720 = vpack.c.b16 %v6120, %v6112
  %v6721 = vpack.c.b16 %v6121, %v6113
  %v6722 = vpack.c.b16 %v6122, %v6114
  %v6723 = vpack.c.b16 %v6123, %v6115
  %v6724 = vpack.c.b16 %v6124, %v6116
  %v6725 = vpack.c.b16 %v6133, %v6125
  %v6726 = vpack.c.b16 %v6134, %v6126
  %v6727 = vpack.c.b16 %v6135, %v6127
  %v6728 = vpack.c.b16 %v6136, %v6128
  %v6729 = vpack.c.b16 %v6137, %v6129
  %v6730 = vpack.c.b16 %v6138, %v6130
  %v6731 = vpack.c.b16 %v6139, %v6131
  %v6732 = vpack.c.b16 %v6140, %v6132
  %v6733 = vpack.c.b16 %v6149, %v6141
  %v6734 = vpack.c.b16 %v6150, %v6142
  %v6735 = vpack.c.b16 %v6151, %v6143
  %v6736 = vpack.c.b16 %v6152, %v6144
  %v6737 = vpack.c.b16 %v6153, %v6145
  %v6738 = vpack.c.b16 %v6154, %v6146
  %v6739 = vpack.c.b16 %v6155, %v6147
  %v6740 = vpack.c.b16 %v6156, %v6148
  %v6741 = vpack.c.b16 %v6165, %v6157
  %v6742 = vpack.c.b16 %v6166, %v6158
  %v6743 = vpack.c.b16 %v6167, %v6159
  %v6744 = vpack.c.b16 %v6168, %v6160
  %v6745 = vpack.c.b16 %v6169, %v6161
  %v6746 = vpack.c.b16 %v6170, %v6162
  %v6747 = vpack.c.b16 %v6171, %v6163
  %v6748 = vpack.c.b16 %v6172, %v6164
  %v6749 = vpack.c.b16 %v6181, %v6173
  %v6750 = vpack.c.b16 %v6182, %v6174
  %v6751 = vpack.c.b16 %v6183, %v6175
  %v6752 = vpack.c.b16 %v6184, %v6176
  %v6753 = vpack.c.b16 %v6185, %v6177
  %v6754 = vpack.c.b16 %v6186, %v6178
  %v6755 = vpack.c.b16 %v6187, %v6179
  %v6756 = vpack.c.b16 %v6188, %v6180
  %v6757 = vpack.c.b16 %v6197, %v6189
  %v6758 = vpack.c.b16 %v6198, %v6190
  %v6759 = vpack.c.b16 %v6199, %v6191
  %v6760 = vpack.c.b16 %v6200, %v6192
  %v6761 = vpack.c.b16 %v6201, %v6193
  %v6762 = vpack.c.b16 %v6202, %v6194
  %v6763 = vpack.c.b16 %v6203, %v6195
  %v6764 = vpack.c.b16 %v6204, %v6196
  %v6765 = vpack.c.b16 %v6213, %v6205
  %v6766 = vpack.c.b16 %v6214, %v6206
  %v6767 = vpack.c.b16 %v6215, %v6207
  %v6768 = vpack.c.b16 %v6216, %v6208
  %v6769 = vpack.c.b16 %v6217, %v6209
  %v6770 = vpack.c.b16 %v6218, %v6210
  %v6771 = vpack.c.b16 %v6219, %v6211
  %v6772 = vpack.c.b16 %v6220, %v6212
  %v6773 = vpack.c.b16 %v6229, %v6221
  %v6774 = vpack.c.b16 %v6230, %v6222
  %v6775 = vpack.c.b16 %v6231, %v6223
  %v6776 = vpack.c.b16 %v6232, %v6224
  %v6777 = vpack.c.b16 %v6233, %v6225
  %v6778 = vpack.c.b16 %v6234, %v6226
  %v6779 = vpack.c.b16 %v6235, %v6227
  %v6780 = vpack.c.b16 %v6236, %v6228
  %v6781 = vpack.c.b16 %v6245, %v6237
  %v6782 = vpack.c.b16 %v6246, %v6238
  %v6783 = vpack.c.b16 %v6247, %v6239
  %v6784 = vpack.c.b16 %v6248, %v6240
  %v6785 = vpack.c.b16 %v6249, %v6241
  %v6786 = vpack.c.b16 %v6250, %v6242
  %v6787 = vpack.c.b16 %v6251, %v6243
  %v6788 = vpack.c.b16 %v6252, %v6244
  %v6789 = vpack.c.b16 %v6261, %v6253
  %v6790 = vpack.c.b16 %v6262, %v6254
  %v6791 = vpack.c.b16 %v6263, %v6255
  %v6792 = vpack.c.b16 %v6264, %v6256
  %v6793 = vpack.c.b16 %v6265, %v6257
  %v6794 = vpack.c.b16 %v6266, %v6258
  %v6795 = vpack.c.b16 %v6267, %v6259
  %v6796 = vpack.c.b16 %v6268, %v6260
  %v6797 = vpack.c.b16 %v6277, %v6269
  %v6798 = vpack.c.b16 %v6278, %v6270
  %v6799 = vpack.c.b16 %v6279, %v6271
  %v6800 = vpack.c.b16 %v6280, %v6272
  %v6801 = vpack.c.b16 %v6281, %v6273
  %v6802 = vpack.c.b16 %v6282, %v6274
  %v6803 = vpack.c.b16 %v6283, %v6275
  %v6804 = vpack.c.b16 %v6284, %v6276
  %v6805 = vpack.c.b16 %v6293, %v6285
  %v6806 = vpack.c.b16 %v6294, %v6286
  %v6807 = vpack.c.b16 %v6295, %v6287
  %v6808 = vpack.c.b16 %v6296, %v6288
  %v6809 = vpack.c.b16 %v6297, %v6289
  %v6810 = vpack.c.b16 %v6298, %v6290
  %v6811 = vpack.c.b16 %v6299, %v6291
  %v6812 = vpack.c.b16 %v6300, %v6292
  %7325 = vmatpush.bf16.msra.mxu0 %v6357
  %7326 = vmatpush.bf16.msra.mxu0 %v6349
  %7327 = vmatpush.bf16.msra.mxu0 %v6341
  %7328 = vmatpush.bf16.msra.mxu0 %v6333
  %7329 = vmatpush.bf16.msra.mxu0 %v6325
  %7330 = vmatpush.bf16.msra.mxu0 %v6317
  %7331 = vmatpush.bf16.msra.mxu0 %v6309
  %7332 = vmatpush.bf16.msra.mxu0 %v6301
  %7333 = vmatmul.bf16.gmra.mxu0 %v4227
  %v7334 = vpop.f32.mrf.mxu0
  %v7335 = vadd.f32 %v4749, %v7334
  %v7336 = vpop.f32.mrf.mxu0
  %7337 = vdwg.mxu0
  %7338 = vmatpush.bf16.msra.mxu0 %v6421
  %7339 = vmatpush.bf16.msra.mxu0 %v6413
  %7340 = vmatpush.bf16.msra.mxu0 %v6405
  %7341 = vmatpush.bf16.msra.mxu0 %v6397
  %7342 = vmatpush.bf16.msra.mxu0 %v6389
  %7343 = vmatpush.bf16.msra.mxu0 %v6381
  %7344 = vmatpush.bf16.msra.mxu0 %v6373
  %7345 = vmatpush.bf16.msra.mxu0 %v6365
  %7346 = vmatmul.bf16.gmra.mxu0 %v4228
  %v7347 = vpop.f32.mrf.mxu0
  %v7348 = vadd.f32 %v7335, %v7347
  %v7349 = vpop.f32.mrf.mxu0
  %7350 = vdwg.mxu0
  %7351 = vmatpush.bf16.msra.mxu0 %v6485
  %7352 = vmatpush.bf16.msra.mxu0 %v6477
  %7353 = vmatpush.bf16.msra.mxu0 %v6469
  %7354 = vmatpush.bf16.msra.mxu0 %v6461
  %7355 = vmatpush.bf16.msra.mxu0 %v6453
  %7356 = vmatpush.bf16.msra.mxu0 %v6445
  %7357 = vmatpush.bf16.msra.mxu0 %v6437
  %7358 = vmatpush.bf16.msra.mxu0 %v6429
  %7359 = vmatmul.bf16.gmra.mxu0 %v4229
  %v7360 = vpop.f32.mrf.mxu0
  %v7361 = vadd.f32 %v7348, %v7360
  %v7362 = vpop.f32.mrf.mxu0
  %7363 = vdwg.mxu0
  %7364 = vmatpush.bf16.msra.mxu0 %v6549
  %7365 = vmatpush.bf16.msra.mxu0 %v6541
  %7366 = vmatpush.bf16.msra.mxu0 %v6533
  %7367 = vmatpush.bf16.msra.mxu0 %v6525
  %7368 = vmatpush.bf16.msra.mxu0 %v6517
  %7369 = vmatpush.bf16.msra.mxu0 %v6509
  %7370 = vmatpush.bf16.msra.mxu0 %v6501
  %7371 = vmatpush.bf16.msra.mxu0 %v6493
  %7372 = vmatmul.bf16.gmra.mxu0 %v4230
  %v7373 = vpop.f32.mrf.mxu0
  %v7374 = vadd.f32 %v7361, %v7373
  %v7375 = vpop.f32.mrf.mxu0
  %7376 = vdwg.mxu0
  %7377 = vmatpush.bf16.msra.mxu0 %v6613
  %7378 = vmatpush.bf16.msra.mxu0 %v6605
  %7379 = vmatpush.bf16.msra.mxu0 %v6597
  %7380 = vmatpush.bf16.msra.mxu0 %v6589
  %7381 = vmatpush.bf16.msra.mxu0 %v6581
  %7382 = vmatpush.bf16.msra.mxu0 %v6573
  %7383 = vmatpush.bf16.msra.mxu0 %v6565
  %7384 = vmatpush.bf16.msra.mxu0 %v6557
  %7385 = vmatmul.bf16.gmra.mxu0 %v4231
  %v7386 = vpop.f32.mrf.mxu0
  %v7387 = vadd.f32 %v7374, %v7386
  %v7388 = vpop.f32.mrf.mxu0
  %7389 = vdwg.mxu0
  %7390 = vmatpush.bf16.msra.mxu0 %v6677
  %7391 = vmatpush.bf16.msra.mxu0 %v6669
  %7392 = vmatpush.bf16.msra.mxu0 %v6661
  %7393 = vmatpush.bf16.msra.mxu0 %v6653
  %7394 = vmatpush.bf16.msra.mxu0 %v6645
  %7395 = vmatpush.bf16.msra.mxu0 %v6637
  %7396 = vmatpush.bf16.msra.mxu0 %v6629
  %7397 = vmatpush.bf16.msra.mxu0 %v6621
  %7398 = vmatmul.bf16.gmra.mxu0 %v4232
  %v7399 = vpop.f32.mrf.mxu0
  %v7400 = vadd.f32 %v7387, %v7399
  %v7401 = vpop.f32.mrf.mxu0
  %7402 = vdwg.mxu0
  %7403 = vmatpush.bf16.msra.mxu0 %v6741
  %7404 = vmatpush.bf16.msra.mxu0 %v6733
  %7405 = vmatpush.bf16.msra.mxu0 %v6725
  %7406 = vmatpush.bf16.msra.mxu0 %v6717
  %7407 = vmatpush.bf16.msra.mxu0 %v6709
  %7408 = vmatpush.bf16.msra.mxu0 %v6701
  %7409 = vmatpush.bf16.msra.mxu0 %v6693
  %7410 = vmatpush.bf16.msra.mxu0 %v6685
  %7411 = vmatmul.bf16.gmra.mxu0 %v4233
  %v7412 = vpop.f32.mrf.mxu0
  %v7413 = vadd.f32 %v7400, %v7412
  %v7414 = vpop.f32.mrf.mxu0
  %7415 = vdwg.mxu0
  %7416 = vmatpush.bf16.msra.mxu0 %v6805
  %7417 = vmatpush.bf16.msra.mxu0 %v6797
  %7418 = vmatpush.bf16.msra.mxu0 %v6789
  %7419 = vmatpush.bf16.msra.mxu0 %v6781
  %7420 = vmatpush.bf16.msra.mxu0 %v6773
  %7421 = vmatpush.bf16.msra.mxu0 %v6765
  %7422 = vmatpush.bf16.msra.mxu0 %v6757
  %7423 = vmatpush.bf16.msra.mxu0 %v6749
  %7424 = vmatmul.bf16.gmra.mxu0 %v4234
  %v7425 = vpop.f32.mrf.mxu0
  %v7426 = vadd.f32 %v7413, %v7425
  %v7427 = vpop.f32.mrf.mxu0
  %7428 = vdwg.mxu0
  %7429 = vmatpush.bf16.msra.mxu0 %v6358
  %7430 = vmatpush.bf16.msra.mxu0 %v6350
  %7431 = vmatpush.bf16.msra.mxu0 %v6342
  %7432 = vmatpush.bf16.msra.mxu0 %v6334
  %7433 = vmatpush.bf16.msra.mxu0 %v6326
  %7434 = vmatpush.bf16.msra.mxu0 %v6318
  %7435 = vmatpush.bf16.msra.mxu0 %v6310
  %7436 = vmatpush.bf16.msra.mxu0 %v6302
  %7437 = vmatmul.bf16.gmra.mxu0 %v4227
  %v7438 = vpop.f32.mrf.mxu0
  %v7439 = vadd.f32 %v4750, %v7438
  %v7440 = vpop.f32.mrf.mxu0
  %7441 = vdwg.mxu0
  %7442 = vmatpush.bf16.msra.mxu0 %v6422
  %7443 = vmatpush.bf16.msra.mxu0 %v6414
  %7444 = vmatpush.bf16.msra.mxu0 %v6406
  %7445 = vmatpush.bf16.msra.mxu0 %v6398
  %7446 = vmatpush.bf16.msra.mxu0 %v6390
  %7447 = vmatpush.bf16.msra.mxu0 %v6382
  %7448 = vmatpush.bf16.msra.mxu0 %v6374
  %7449 = vmatpush.bf16.msra.mxu0 %v6366
  %7450 = vmatmul.bf16.gmra.mxu0 %v4228
  %v7451 = vpop.f32.mrf.mxu0
  %v7452 = vadd.f32 %v7439, %v7451
  %v7453 = vpop.f32.mrf.mxu0
  %7454 = vdwg.mxu0
  %7455 = vmatpush.bf16.msra.mxu0 %v6486
  %7456 = vmatpush.bf16.msra.mxu0 %v6478
  %7457 = vmatpush.bf16.msra.mxu0 %v6470
  %7458 = vmatpush.bf16.msra.mxu0 %v6462
  %7459 = vmatpush.bf16.msra.mxu0 %v6454
  %7460 = vmatpush.bf16.msra.mxu0 %v6446
  %7461 = vmatpush.bf16.msra.mxu0 %v6438
  %7462 = vmatpush.bf16.msra.mxu0 %v6430
  %7463 = vmatmul.bf16.gmra.mxu0 %v4229
  %v7464 = vpop.f32.mrf.mxu0
  %v7465 = vadd.f32 %v7452, %v7464
  %v7466 = vpop.f32.mrf.mxu0
  %7467 = vdwg.mxu0
  %7468 = vmatpush.bf16.msra.mxu0 %v6550
  %7469 = vmatpush.bf16.msra.mxu0 %v6542
  %7470 = vmatpush.bf16.msra.mxu0 %v6534
  %7471 = vmatpush.bf16.msra.mxu0 %v6526
  %7472 = vmatpush.bf16.msra.mxu0 %v6518
  %7473 = vmatpush.bf16.msra.mxu0 %v6510
  %7474 = vmatpush.bf16.msra.mxu0 %v6502
  %7475 = vmatpush.bf16.msra.mxu0 %v6494
  %7476 = vmatmul.bf16.gmra.mxu0 %v4230
  %v7477 = vpop.f32.mrf.mxu0
  %v7478 = vadd.f32 %v7465, %v7477
  %v7479 = vpop.f32.mrf.mxu0
  %7480 = vdwg.mxu0
  %7481 = vmatpush.bf16.msra.mxu0 %v6614
  %7482 = vmatpush.bf16.msra.mxu0 %v6606
  %7483 = vmatpush.bf16.msra.mxu0 %v6598
  %7484 = vmatpush.bf16.msra.mxu0 %v6590
  %7485 = vmatpush.bf16.msra.mxu0 %v6582
  %7486 = vmatpush.bf16.msra.mxu0 %v6574
  %7487 = vmatpush.bf16.msra.mxu0 %v6566
  %7488 = vmatpush.bf16.msra.mxu0 %v6558
  %7489 = vmatmul.bf16.gmra.mxu0 %v4231
  %v7490 = vpop.f32.mrf.mxu0
  %v7491 = vadd.f32 %v7478, %v7490
  %v7492 = vpop.f32.mrf.mxu0
  %7493 = vdwg.mxu0
  %7494 = vmatpush.bf16.msra.mxu0 %v6678
  %7495 = vmatpush.bf16.msra.mxu0 %v6670
  %7496 = vmatpush.bf16.msra.mxu0 %v6662
  %7497 = vmatpush.bf16.msra.mxu0 %v6654
  %7498 = vmatpush.bf16.msra.mxu0 %v6646
  %7499 = vmatpush.bf16.msra.mxu0 %v6638
  %7500 = vmatpush.bf16.msra.mxu0 %v6630
  %7501 = vmatpush.bf16.msra.mxu0 %v6622
  %7502 = vmatmul.bf16.gmra.mxu0 %v4232
  %v7503 = vpop.f32.mrf.mxu0
  %v7504 = vadd.f32 %v7491, %v7503
  %v7505 = vpop.f32.mrf.mxu0
  %7506 = vdwg.mxu0
  %7507 = vmatpush.bf16.msra.mxu0 %v6742
  %7508 = vmatpush.bf16.msra.mxu0 %v6734
  %7509 = vmatpush.bf16.msra.mxu0 %v6726
  %7510 = vmatpush.bf16.msra.mxu0 %v6718
  %7511 = vmatpush.bf16.msra.mxu0 %v6710
  %7512 = vmatpush.bf16.msra.mxu0 %v6702
  %7513 = vmatpush.bf16.msra.mxu0 %v6694
  %7514 = vmatpush.bf16.msra.mxu0 %v6686
  %7515 = vmatmul.bf16.gmra.mxu0 %v4233
  %v7516 = vpop.f32.mrf.mxu0
  %v7517 = vadd.f32 %v7504, %v7516
  %v7518 = vpop.f32.mrf.mxu0
  %7519 = vdwg.mxu0
  %7520 = vmatpush.bf16.msra.mxu0 %v6806
  %7521 = vmatpush.bf16.msra.mxu0 %v6798
  %7522 = vmatpush.bf16.msra.mxu0 %v6790
  %7523 = vmatpush.bf16.msra.mxu0 %v6782
  %7524 = vmatpush.bf16.msra.mxu0 %v6774
  %7525 = vmatpush.bf16.msra.mxu0 %v6766
  %7526 = vmatpush.bf16.msra.mxu0 %v6758
  %7527 = vmatpush.bf16.msra.mxu0 %v6750
  %7528 = vmatmul.bf16.gmra.mxu0 %v4234
  %v7529 = vpop.f32.mrf.mxu0
  %v7530 = vadd.f32 %v7517, %v7529
  %v7531 = vpop.f32.mrf.mxu0
  %7532 = vdwg.mxu0
  %7533 = vmatpush.bf16.msra.mxu0 %v6359
  %7534 = vmatpush.bf16.msra.mxu0 %v6351
  %7535 = vmatpush.bf16.msra.mxu0 %v6343
  %7536 = vmatpush.bf16.msra.mxu0 %v6335
  %7537 = vmatpush.bf16.msra.mxu0 %v6327
  %7538 = vmatpush.bf16.msra.mxu0 %v6319
  %7539 = vmatpush.bf16.msra.mxu0 %v6311
  %7540 = vmatpush.bf16.msra.mxu0 %v6303
  %7541 = vmatmul.bf16.gmra.mxu0 %v4227
  %v7542 = vpop.f32.mrf.mxu0
  %v7543 = vadd.f32 %v4751, %v7542
  %v7544 = vpop.f32.mrf.mxu0
  %7545 = vdwg.mxu0
  %7546 = vmatpush.bf16.msra.mxu0 %v6423
  %7547 = vmatpush.bf16.msra.mxu0 %v6415
  %7548 = vmatpush.bf16.msra.mxu0 %v6407
  %7549 = vmatpush.bf16.msra.mxu0 %v6399
  %7550 = vmatpush.bf16.msra.mxu0 %v6391
  %7551 = vmatpush.bf16.msra.mxu0 %v6383
  %7552 = vmatpush.bf16.msra.mxu0 %v6375
  %7553 = vmatpush.bf16.msra.mxu0 %v6367
  %7554 = vmatmul.bf16.gmra.mxu0 %v4228
  %v7555 = vpop.f32.mrf.mxu0
  %v7556 = vadd.f32 %v7543, %v7555
  %v7557 = vpop.f32.mrf.mxu0
  %7558 = vdwg.mxu0
  %7559 = vmatpush.bf16.msra.mxu0 %v6487
  %7560 = vmatpush.bf16.msra.mxu0 %v6479
  %7561 = vmatpush.bf16.msra.mxu0 %v6471
  %7562 = vmatpush.bf16.msra.mxu0 %v6463
  %7563 = vmatpush.bf16.msra.mxu0 %v6455
  %7564 = vmatpush.bf16.msra.mxu0 %v6447
  %7565 = vmatpush.bf16.msra.mxu0 %v6439
  %7566 = vmatpush.bf16.msra.mxu0 %v6431
  %7567 = vmatmul.bf16.gmra.mxu0 %v4229
  %v7568 = vpop.f32.mrf.mxu0
  %v7569 = vadd.f32 %v7556, %v7568
  %v7570 = vpop.f32.mrf.mxu0
  %7571 = vdwg.mxu0
  %7572 = vmatpush.bf16.msra.mxu0 %v6551
  %7573 = vmatpush.bf16.msra.mxu0 %v6543
  %7574 = vmatpush.bf16.msra.mxu0 %v6535
  %7575 = vmatpush.bf16.msra.mxu0 %v6527
  %7576 = vmatpush.bf16.msra.mxu0 %v6519
  %7577 = vmatpush.bf16.msra.mxu0 %v6511
  %7578 = vmatpush.bf16.msra.mxu0 %v6503
  %7579 = vmatpush.bf16.msra.mxu0 %v6495
  %7580 = vmatmul.bf16.gmra.mxu0 %v4230
  %v7581 = vpop.f32.mrf.mxu0
  %v7582 = vadd.f32 %v7569, %v7581
  %v7583 = vpop.f32.mrf.mxu0
  %7584 = vdwg.mxu0
  %7585 = vmatpush.bf16.msra.mxu0 %v6615
  %7586 = vmatpush.bf16.msra.mxu0 %v6607
  %7587 = vmatpush.bf16.msra.mxu0 %v6599
  %7588 = vmatpush.bf16.msra.mxu0 %v6591
  %7589 = vmatpush.bf16.msra.mxu0 %v6583
  %7590 = vmatpush.bf16.msra.mxu0 %v6575
  %7591 = vmatpush.bf16.msra.mxu0 %v6567
  %7592 = vmatpush.bf16.msra.mxu0 %v6559
  %7593 = vmatmul.bf16.gmra.mxu0 %v4231
  %v7594 = vpop.f32.mrf.mxu0
  %v7595 = vadd.f32 %v7582, %v7594
  %v7596 = vpop.f32.mrf.mxu0
  %7597 = vdwg.mxu0
  %7598 = vmatpush.bf16.msra.mxu0 %v6679
  %7599 = vmatpush.bf16.msra.mxu0 %v6671
  %7600 = vmatpush.bf16.msra.mxu0 %v6663
  %7601 = vmatpush.bf16.msra.mxu0 %v6655
  %7602 = vmatpush.bf16.msra.mxu0 %v6647
  %7603 = vmatpush.bf16.msra.mxu0 %v6639
  %7604 = vmatpush.bf16.msra.mxu0 %v6631
  %7605 = vmatpush.bf16.msra.mxu0 %v6623
  %7606 = vmatmul.bf16.gmra.mxu0 %v4232
  %v7607 = vpop.f32.mrf.mxu0
  %v7608 = vadd.f32 %v7595, %v7607
  %v7609 = vpop.f32.mrf.mxu0
  %7610 = vdwg.mxu0
  %7611 = vmatpush.bf16.msra.mxu0 %v6743
  %7612 = vmatpush.bf16.msra.mxu0 %v6735
  %7613 = vmatpush.bf16.msra.mxu0 %v6727
  %7614 = vmatpush.bf16.msra.mxu0 %v6719
  %7615 = vmatpush.bf16.msra.mxu0 %v6711
  %7616 = vmatpush.bf16.msra.mxu0 %v6703
  %7617 = vmatpush.bf16.msra.mxu0 %v6695
  %7618 = vmatpush.bf16.msra.mxu0 %v6687
  %7619 = vmatmul.bf16.gmra.mxu0 %v4233
  %v7620 = vpop.f32.mrf.mxu0
  %v7621 = vadd.f32 %v7608, %v7620
  %v7622 = vpop.f32.mrf.mxu0
  %7623 = vdwg.mxu0
  %7624 = vmatpush.bf16.msra.mxu0 %v6807
  %7625 = vmatpush.bf16.msra.mxu0 %v6799
  %7626 = vmatpush.bf16.msra.mxu0 %v6791
  %7627 = vmatpush.bf16.msra.mxu0 %v6783
  %7628 = vmatpush.bf16.msra.mxu0 %v6775
  %7629 = vmatpush.bf16.msra.mxu0 %v6767
  %7630 = vmatpush.bf16.msra.mxu0 %v6759
  %7631 = vmatpush.bf16.msra.mxu0 %v6751
  %7632 = vmatmul.bf16.gmra.mxu0 %v4234
  %v7633 = vpop.f32.mrf.mxu0
  %v7634 = vadd.f32 %v7621, %v7633
  %v7635 = vpop.f32.mrf.mxu0
  %7636 = vdwg.mxu0
  %7637 = vmatpush.bf16.msra.mxu0 %v6360
  %7638 = vmatpush.bf16.msra.mxu0 %v6352
  %7639 = vmatpush.bf16.msra.mxu0 %v6344
  %7640 = vmatpush.bf16.msra.mxu0 %v6336
  %7641 = vmatpush.bf16.msra.mxu0 %v6328
  %7642 = vmatpush.bf16.msra.mxu0 %v6320
  %7643 = vmatpush.bf16.msra.mxu0 %v6312
  %7644 = vmatpush.bf16.msra.mxu0 %v6304
  %7645 = vmatmul.bf16.gmra.mxu0 %v4227
  %v7646 = vpop.f32.mrf.mxu0
  %v7647 = vadd.f32 %v4752, %v7646
  %v7648 = vpop.f32.mrf.mxu0
  %7649 = vdwg.mxu0
  %7650 = vmatpush.bf16.msra.mxu0 %v6424
  %7651 = vmatpush.bf16.msra.mxu0 %v6416
  %7652 = vmatpush.bf16.msra.mxu0 %v6408
  %7653 = vmatpush.bf16.msra.mxu0 %v6400
  %7654 = vmatpush.bf16.msra.mxu0 %v6392
  %7655 = vmatpush.bf16.msra.mxu0 %v6384
  %7656 = vmatpush.bf16.msra.mxu0 %v6376
  %7657 = vmatpush.bf16.msra.mxu0 %v6368
  %7658 = vmatmul.bf16.gmra.mxu0 %v4228
  %v7659 = vpop.f32.mrf.mxu0
  %v7660 = vadd.f32 %v7647, %v7659
  %v7661 = vpop.f32.mrf.mxu0
  %7662 = vdwg.mxu0
  %7663 = vmatpush.bf16.msra.mxu0 %v6488
  %7664 = vmatpush.bf16.msra.mxu0 %v6480
  %7665 = vmatpush.bf16.msra.mxu0 %v6472
  %7666 = vmatpush.bf16.msra.mxu0 %v6464
  %7667 = vmatpush.bf16.msra.mxu0 %v6456
  %7668 = vmatpush.bf16.msra.mxu0 %v6448
  %7669 = vmatpush.bf16.msra.mxu0 %v6440
  %7670 = vmatpush.bf16.msra.mxu0 %v6432
  %7671 = vmatmul.bf16.gmra.mxu0 %v4229
  %v7672 = vpop.f32.mrf.mxu0
  %v7673 = vadd.f32 %v7660, %v7672
  %v7674 = vpop.f32.mrf.mxu0
  %7675 = vdwg.mxu0
  %7676 = vmatpush.bf16.msra.mxu0 %v6552
  %7677 = vmatpush.bf16.msra.mxu0 %v6544
  %7678 = vmatpush.bf16.msra.mxu0 %v6536
  %7679 = vmatpush.bf16.msra.mxu0 %v6528
  %7680 = vmatpush.bf16.msra.mxu0 %v6520
  %7681 = vmatpush.bf16.msra.mxu0 %v6512
  %7682 = vmatpush.bf16.msra.mxu0 %v6504
  %7683 = vmatpush.bf16.msra.mxu0 %v6496
  %7684 = vmatmul.bf16.gmra.mxu0 %v4230
  %v7685 = vpop.f32.mrf.mxu0
  %v7686 = vadd.f32 %v7673, %v7685
  %v7687 = vpop.f32.mrf.mxu0
  %7688 = vdwg.mxu0
  %7689 = vmatpush.bf16.msra.mxu0 %v6616
  %7690 = vmatpush.bf16.msra.mxu0 %v6608
  %7691 = vmatpush.bf16.msra.mxu0 %v6600
  %7692 = vmatpush.bf16.msra.mxu0 %v6592
  %7693 = vmatpush.bf16.msra.mxu0 %v6584
  %7694 = vmatpush.bf16.msra.mxu0 %v6576
  %7695 = vmatpush.bf16.msra.mxu0 %v6568
  %7696 = vmatpush.bf16.msra.mxu0 %v6560
  %7697 = vmatmul.bf16.gmra.mxu0 %v4231
  %v7698 = vpop.f32.mrf.mxu0
  %v7699 = vadd.f32 %v7686, %v7698
  %v7700 = vpop.f32.mrf.mxu0
  %7701 = vdwg.mxu0
  %7702 = vmatpush.bf16.msra.mxu0 %v6680
  %7703 = vmatpush.bf16.msra.mxu0 %v6672
  %7704 = vmatpush.bf16.msra.mxu0 %v6664
  %7705 = vmatpush.bf16.msra.mxu0 %v6656
  %7706 = vmatpush.bf16.msra.mxu0 %v6648
  %7707 = vmatpush.bf16.msra.mxu0 %v6640
  %7708 = vmatpush.bf16.msra.mxu0 %v6632
  %7709 = vmatpush.bf16.msra.mxu0 %v6624
  %7710 = vmatmul.bf16.gmra.mxu0 %v4232
  %v7711 = vpop.f32.mrf.mxu0
  %v7712 = vadd.f32 %v7699, %v7711
  %v7713 = vpop.f32.mrf.mxu0
  %7714 = vdwg.mxu0
  %7715 = vmatpush.bf16.msra.mxu0 %v6744
  %7716 = vmatpush.bf16.msra.mxu0 %v6736
  %7717 = vmatpush.bf16.msra.mxu0 %v6728
  %7718 = vmatpush.bf16.msra.mxu0 %v6720
  %7719 = vmatpush.bf16.msra.mxu0 %v6712
  %7720 = vmatpush.bf16.msra.mxu0 %v6704
  %7721 = vmatpush.bf16.msra.mxu0 %v6696
  %7722 = vmatpush.bf16.msra.mxu0 %v6688
  %7723 = vmatmul.bf16.gmra.mxu0 %v4233
  %v7724 = vpop.f32.mrf.mxu0
  %v7725 = vadd.f32 %v7712, %v7724
  %v7726 = vpop.f32.mrf.mxu0
  %7727 = vdwg.mxu0
  %7728 = vmatpush.bf16.msra.mxu0 %v6808
  %7729 = vmatpush.bf16.msra.mxu0 %v6800
  %7730 = vmatpush.bf16.msra.mxu0 %v6792
  %7731 = vmatpush.bf16.msra.mxu0 %v6784
  %7732 = vmatpush.bf16.msra.mxu0 %v6776
  %7733 = vmatpush.bf16.msra.mxu0 %v6768
  %7734 = vmatpush.bf16.msra.mxu0 %v6760
  %7735 = vmatpush.bf16.msra.mxu0 %v6752
  %7736 = vmatmul.bf16.gmra.mxu0 %v4234
  %v7737 = vpop.f32.mrf.mxu0
  %v7738 = vadd.f32 %v7725, %v7737
  %v7739 = vpop.f32.mrf.mxu0
  %7740 = vdwg.mxu0
  %7741 = vmatpush.bf16.msra.mxu0 %v6361
  %7742 = vmatpush.bf16.msra.mxu0 %v6353
  %7743 = vmatpush.bf16.msra.mxu0 %v6345
  %7744 = vmatpush.bf16.msra.mxu0 %v6337
  %7745 = vmatpush.bf16.msra.mxu0 %v6329
  %7746 = vmatpush.bf16.msra.mxu0 %v6321
  %7747 = vmatpush.bf16.msra.mxu0 %v6313
  %7748 = vmatpush.bf16.msra.mxu0 %v6305
  %7749 = vmatmul.bf16.gmra.mxu0 %v4227
  %v7750 = vpop.f32.mrf.mxu0
  %v7751 = vadd.f32 %v4753, %v7750
  %v7752 = vpop.f32.mrf.mxu0
  %7753 = vdwg.mxu0
  %7754 = vmatpush.bf16.msra.mxu0 %v6425
  %7755 = vmatpush.bf16.msra.mxu0 %v6417
  %7756 = vmatpush.bf16.msra.mxu0 %v6409
  %7757 = vmatpush.bf16.msra.mxu0 %v6401
  %7758 = vmatpush.bf16.msra.mxu0 %v6393
  %7759 = vmatpush.bf16.msra.mxu0 %v6385
  %7760 = vmatpush.bf16.msra.mxu0 %v6377
  %7761 = vmatpush.bf16.msra.mxu0 %v6369
  %7762 = vmatmul.bf16.gmra.mxu0 %v4228
  %v7763 = vpop.f32.mrf.mxu0
  %v7764 = vadd.f32 %v7751, %v7763
  %v7765 = vpop.f32.mrf.mxu0
  %7766 = vdwg.mxu0
  %7767 = vmatpush.bf16.msra.mxu0 %v6489
  %7768 = vmatpush.bf16.msra.mxu0 %v6481
  %7769 = vmatpush.bf16.msra.mxu0 %v6473
  %7770 = vmatpush.bf16.msra.mxu0 %v6465
  %7771 = vmatpush.bf16.msra.mxu0 %v6457
  %7772 = vmatpush.bf16.msra.mxu0 %v6449
  %7773 = vmatpush.bf16.msra.mxu0 %v6441
  %7774 = vmatpush.bf16.msra.mxu0 %v6433
  %7775 = vmatmul.bf16.gmra.mxu0 %v4229
  %v7776 = vpop.f32.mrf.mxu0
  %v7777 = vadd.f32 %v7764, %v7776
  %v7778 = vpop.f32.mrf.mxu0
  %7779 = vdwg.mxu0
  %7780 = vmatpush.bf16.msra.mxu0 %v6553
  %7781 = vmatpush.bf16.msra.mxu0 %v6545
  %7782 = vmatpush.bf16.msra.mxu0 %v6537
  %7783 = vmatpush.bf16.msra.mxu0 %v6529
  %7784 = vmatpush.bf16.msra.mxu0 %v6521
  %7785 = vmatpush.bf16.msra.mxu0 %v6513
  %7786 = vmatpush.bf16.msra.mxu0 %v6505
  %7787 = vmatpush.bf16.msra.mxu0 %v6497
  %7788 = vmatmul.bf16.gmra.mxu0 %v4230
  %v7789 = vpop.f32.mrf.mxu0
  %v7790 = vadd.f32 %v7777, %v7789
  %v7791 = vpop.f32.mrf.mxu0
  %7792 = vdwg.mxu0
  %7793 = vmatpush.bf16.msra.mxu0 %v6617
  %7794 = vmatpush.bf16.msra.mxu0 %v6609
  %7795 = vmatpush.bf16.msra.mxu0 %v6601
  %7796 = vmatpush.bf16.msra.mxu0 %v6593
  %7797 = vmatpush.bf16.msra.mxu0 %v6585
  %7798 = vmatpush.bf16.msra.mxu0 %v6577
  %7799 = vmatpush.bf16.msra.mxu0 %v6569
  %7800 = vmatpush.bf16.msra.mxu0 %v6561
  %7801 = vmatmul.bf16.gmra.mxu0 %v4231
  %v7802 = vpop.f32.mrf.mxu0
  %v7803 = vadd.f32 %v7790, %v7802
  %v7804 = vpop.f32.mrf.mxu0
  %7805 = vdwg.mxu0
  %7806 = vmatpush.bf16.msra.mxu0 %v6681
  %7807 = vmatpush.bf16.msra.mxu0 %v6673
  %7808 = vmatpush.bf16.msra.mxu0 %v6665
  %7809 = vmatpush.bf16.msra.mxu0 %v6657
  %7810 = vmatpush.bf16.msra.mxu0 %v6649
  %7811 = vmatpush.bf16.msra.mxu0 %v6641
  %7812 = vmatpush.bf16.msra.mxu0 %v6633
  %7813 = vmatpush.bf16.msra.mxu0 %v6625
  %7814 = vmatmul.bf16.gmra.mxu0 %v4232
  %v7815 = vpop.f32.mrf.mxu0
  %v7816 = vadd.f32 %v7803, %v7815
  %v7817 = vpop.f32.mrf.mxu0
  %7818 = vdwg.mxu0
  %7819 = vmatpush.bf16.msra.mxu0 %v6745
  %7820 = vmatpush.bf16.msra.mxu0 %v6737
  %7821 = vmatpush.bf16.msra.mxu0 %v6729
  %7822 = vmatpush.bf16.msra.mxu0 %v6721
  %7823 = vmatpush.bf16.msra.mxu0 %v6713
  %7824 = vmatpush.bf16.msra.mxu0 %v6705
  %7825 = vmatpush.bf16.msra.mxu0 %v6697
  %7826 = vmatpush.bf16.msra.mxu0 %v6689
  %7827 = vmatmul.bf16.gmra.mxu0 %v4233
  %v7828 = vpop.f32.mrf.mxu0
  %v7829 = vadd.f32 %v7816, %v7828
  %v7830 = vpop.f32.mrf.mxu0
  %7831 = vdwg.mxu0
  %7832 = vmatpush.bf16.msra.mxu0 %v6809
  %7833 = vmatpush.bf16.msra.mxu0 %v6801
  %7834 = vmatpush.bf16.msra.mxu0 %v6793
  %7835 = vmatpush.bf16.msra.mxu0 %v6785
  %7836 = vmatpush.bf16.msra.mxu0 %v6777
  %7837 = vmatpush.bf16.msra.mxu0 %v6769
  %7838 = vmatpush.bf16.msra.mxu0 %v6761
  %7839 = vmatpush.bf16.msra.mxu0 %v6753
  %7840 = vmatmul.bf16.gmra.mxu0 %v4234
  %v7841 = vpop.f32.mrf.mxu0
  %v7842 = vadd.f32 %v7829, %v7841
  %v7843 = vpop.f32.mrf.mxu0
  %7844 = vdwg.mxu0
  %7845 = vmatpush.bf16.msra.mxu0 %v6362
  %7846 = vmatpush.bf16.msra.mxu0 %v6354
  %7847 = vmatpush.bf16.msra.mxu0 %v6346
  %7848 = vmatpush.bf16.msra.mxu0 %v6338
  %7849 = vmatpush.bf16.msra.mxu0 %v6330
  %7850 = vmatpush.bf16.msra.mxu0 %v6322
  %7851 = vmatpush.bf16.msra.mxu0 %v6314
  %7852 = vmatpush.bf16.msra.mxu0 %v6306
  %7853 = vmatmul.bf16.gmra.mxu0 %v4227
  %v7854 = vpop.f32.mrf.mxu0
  %v7855 = vadd.f32 %v4754, %v7854
  %v7856 = vpop.f32.mrf.mxu0
  %7857 = vdwg.mxu0
  %7858 = vmatpush.bf16.msra.mxu0 %v6426
  %7859 = vmatpush.bf16.msra.mxu0 %v6418
  %7860 = vmatpush.bf16.msra.mxu0 %v6410
  %7861 = vmatpush.bf16.msra.mxu0 %v6402
  %7862 = vmatpush.bf16.msra.mxu0 %v6394
  %7863 = vmatpush.bf16.msra.mxu0 %v6386
  %7864 = vmatpush.bf16.msra.mxu0 %v6378
  %7865 = vmatpush.bf16.msra.mxu0 %v6370
  %7866 = vmatmul.bf16.gmra.mxu0 %v4228
  %v7867 = vpop.f32.mrf.mxu0
  %v7868 = vadd.f32 %v7855, %v7867
  %v7869 = vpop.f32.mrf.mxu0
  %7870 = vdwg.mxu0
  %7871 = vmatpush.bf16.msra.mxu0 %v6490
  %7872 = vmatpush.bf16.msra.mxu0 %v6482
  %7873 = vmatpush.bf16.msra.mxu0 %v6474
  %7874 = vmatpush.bf16.msra.mxu0 %v6466
  %7875 = vmatpush.bf16.msra.mxu0 %v6458
  %7876 = vmatpush.bf16.msra.mxu0 %v6450
  %7877 = vmatpush.bf16.msra.mxu0 %v6442
  %7878 = vmatpush.bf16.msra.mxu0 %v6434
  %7879 = vmatmul.bf16.gmra.mxu0 %v4229
  %v7880 = vpop.f32.mrf.mxu0
  %v7881 = vadd.f32 %v7868, %v7880
  %v7882 = vpop.f32.mrf.mxu0
  %7883 = vdwg.mxu0
  %7884 = vmatpush.bf16.msra.mxu0 %v6554
  %7885 = vmatpush.bf16.msra.mxu0 %v6546
  %7886 = vmatpush.bf16.msra.mxu0 %v6538
  %7887 = vmatpush.bf16.msra.mxu0 %v6530
  %7888 = vmatpush.bf16.msra.mxu0 %v6522
  %7889 = vmatpush.bf16.msra.mxu0 %v6514
  %7890 = vmatpush.bf16.msra.mxu0 %v6506
  %7891 = vmatpush.bf16.msra.mxu0 %v6498
  %7892 = vmatmul.bf16.gmra.mxu0 %v4230
  %v7893 = vpop.f32.mrf.mxu0
  %v7894 = vadd.f32 %v7881, %v7893
  %v7895 = vpop.f32.mrf.mxu0
  %7896 = vdwg.mxu0
  %7897 = vmatpush.bf16.msra.mxu0 %v6618
  %7898 = vmatpush.bf16.msra.mxu0 %v6610
  %7899 = vmatpush.bf16.msra.mxu0 %v6602
  %7900 = vmatpush.bf16.msra.mxu0 %v6594
  %7901 = vmatpush.bf16.msra.mxu0 %v6586
  %7902 = vmatpush.bf16.msra.mxu0 %v6578
  %7903 = vmatpush.bf16.msra.mxu0 %v6570
  %7904 = vmatpush.bf16.msra.mxu0 %v6562
  %7905 = vmatmul.bf16.gmra.mxu0 %v4231
  %v7906 = vpop.f32.mrf.mxu0
  %v7907 = vadd.f32 %v7894, %v7906
  %v7908 = vpop.f32.mrf.mxu0
  %7909 = vdwg.mxu0
  %7910 = vmatpush.bf16.msra.mxu0 %v6682
  %7911 = vmatpush.bf16.msra.mxu0 %v6674
  %7912 = vmatpush.bf16.msra.mxu0 %v6666
  %7913 = vmatpush.bf16.msra.mxu0 %v6658
  %7914 = vmatpush.bf16.msra.mxu0 %v6650
  %7915 = vmatpush.bf16.msra.mxu0 %v6642
  %7916 = vmatpush.bf16.msra.mxu0 %v6634
  %7917 = vmatpush.bf16.msra.mxu0 %v6626
  %7918 = vmatmul.bf16.gmra.mxu0 %v4232
  %v7919 = vpop.f32.mrf.mxu0
  %v7920 = vadd.f32 %v7907, %v7919
  %v7921 = vpop.f32.mrf.mxu0
  %7922 = vdwg.mxu0
  %7923 = vmatpush.bf16.msra.mxu0 %v6746
  %7924 = vmatpush.bf16.msra.mxu0 %v6738
  %7925 = vmatpush.bf16.msra.mxu0 %v6730
  %7926 = vmatpush.bf16.msra.mxu0 %v6722
  %7927 = vmatpush.bf16.msra.mxu0 %v6714
  %7928 = vmatpush.bf16.msra.mxu0 %v6706
  %7929 = vmatpush.bf16.msra.mxu0 %v6698
  %7930 = vmatpush.bf16.msra.mxu0 %v6690
  %7931 = vmatmul.bf16.gmra.mxu0 %v4233
  %v7932 = vpop.f32.mrf.mxu0
  %v7933 = vadd.f32 %v7920, %v7932
  %v7934 = vpop.f32.mrf.mxu0
  %7935 = vdwg.mxu0
  %7936 = vmatpush.bf16.msra.mxu0 %v6810
  %7937 = vmatpush.bf16.msra.mxu0 %v6802
  %7938 = vmatpush.bf16.msra.mxu0 %v6794
  %7939 = vmatpush.bf16.msra.mxu0 %v6786
  %7940 = vmatpush.bf16.msra.mxu0 %v6778
  %7941 = vmatpush.bf16.msra.mxu0 %v6770
  %7942 = vmatpush.bf16.msra.mxu0 %v6762
  %7943 = vmatpush.bf16.msra.mxu0 %v6754
  %7944 = vmatmul.bf16.gmra.mxu0 %v4234
  %v7945 = vpop.f32.mrf.mxu0
  %v7946 = vadd.f32 %v7933, %v7945
  %v7947 = vpop.f32.mrf.mxu0
  %7948 = vdwg.mxu0
  %7949 = vmatpush.bf16.msra.mxu0 %v6363
  %7950 = vmatpush.bf16.msra.mxu0 %v6355
  %7951 = vmatpush.bf16.msra.mxu0 %v6347
  %7952 = vmatpush.bf16.msra.mxu0 %v6339
  %7953 = vmatpush.bf16.msra.mxu0 %v6331
  %7954 = vmatpush.bf16.msra.mxu0 %v6323
  %7955 = vmatpush.bf16.msra.mxu0 %v6315
  %7956 = vmatpush.bf16.msra.mxu0 %v6307
  %7957 = vmatmul.bf16.gmra.mxu0 %v4227
  %v7958 = vpop.f32.mrf.mxu0
  %v7959 = vadd.f32 %v4755, %v7958
  %v7960 = vpop.f32.mrf.mxu0
  %7961 = vdwg.mxu0
  %7962 = vmatpush.bf16.msra.mxu0 %v6427
  %7963 = vmatpush.bf16.msra.mxu0 %v6419
  %7964 = vmatpush.bf16.msra.mxu0 %v6411
  %7965 = vmatpush.bf16.msra.mxu0 %v6403
  %7966 = vmatpush.bf16.msra.mxu0 %v6395
  %7967 = vmatpush.bf16.msra.mxu0 %v6387
  %7968 = vmatpush.bf16.msra.mxu0 %v6379
  %7969 = vmatpush.bf16.msra.mxu0 %v6371
  %7970 = vmatmul.bf16.gmra.mxu0 %v4228
  %v7971 = vpop.f32.mrf.mxu0
  %v7972 = vadd.f32 %v7959, %v7971
  %v7973 = vpop.f32.mrf.mxu0
  %7974 = vdwg.mxu0
  %7975 = vmatpush.bf16.msra.mxu0 %v6491
  %7976 = vmatpush.bf16.msra.mxu0 %v6483
  %7977 = vmatpush.bf16.msra.mxu0 %v6475
  %7978 = vmatpush.bf16.msra.mxu0 %v6467
  %7979 = vmatpush.bf16.msra.mxu0 %v6459
  %7980 = vmatpush.bf16.msra.mxu0 %v6451
  %7981 = vmatpush.bf16.msra.mxu0 %v6443
  %7982 = vmatpush.bf16.msra.mxu0 %v6435
  %7983 = vmatmul.bf16.gmra.mxu0 %v4229
  %v7984 = vpop.f32.mrf.mxu0
  %v7985 = vadd.f32 %v7972, %v7984
  %v7986 = vpop.f32.mrf.mxu0
  %7987 = vdwg.mxu0
  %7988 = vmatpush.bf16.msra.mxu0 %v6555
  %7989 = vmatpush.bf16.msra.mxu0 %v6547
  %7990 = vmatpush.bf16.msra.mxu0 %v6539
  %7991 = vmatpush.bf16.msra.mxu0 %v6531
  %7992 = vmatpush.bf16.msra.mxu0 %v6523
  %7993 = vmatpush.bf16.msra.mxu0 %v6515
  %7994 = vmatpush.bf16.msra.mxu0 %v6507
  %7995 = vmatpush.bf16.msra.mxu0 %v6499
  %7996 = vmatmul.bf16.gmra.mxu0 %v4230
  %v7997 = vpop.f32.mrf.mxu0
  %v7998 = vadd.f32 %v7985, %v7997
  %v7999 = vpop.f32.mrf.mxu0
  %8000 = vdwg.mxu0
  %8001 = vmatpush.bf16.msra.mxu0 %v6619
  %8002 = vmatpush.bf16.msra.mxu0 %v6611
  %8003 = vmatpush.bf16.msra.mxu0 %v6603
  %8004 = vmatpush.bf16.msra.mxu0 %v6595
  %8005 = vmatpush.bf16.msra.mxu0 %v6587
  %8006 = vmatpush.bf16.msra.mxu0 %v6579
  %8007 = vmatpush.bf16.msra.mxu0 %v6571
  %8008 = vmatpush.bf16.msra.mxu0 %v6563
  %8009 = vmatmul.bf16.gmra.mxu0 %v4231
  %v8010 = vpop.f32.mrf.mxu0
  %v8011 = vadd.f32 %v7998, %v8010
  %v8012 = vpop.f32.mrf.mxu0
  %8013 = vdwg.mxu0
  %8014 = vmatpush.bf16.msra.mxu0 %v6683
  %8015 = vmatpush.bf16.msra.mxu0 %v6675
  %8016 = vmatpush.bf16.msra.mxu0 %v6667
  %8017 = vmatpush.bf16.msra.mxu0 %v6659
  %8018 = vmatpush.bf16.msra.mxu0 %v6651
  %8019 = vmatpush.bf16.msra.mxu0 %v6643
  %8020 = vmatpush.bf16.msra.mxu0 %v6635
  %8021 = vmatpush.bf16.msra.mxu0 %v6627
  %8022 = vmatmul.bf16.gmra.mxu0 %v4232
  %v8023 = vpop.f32.mrf.mxu0
  %v8024 = vadd.f32 %v8011, %v8023
  %v8025 = vpop.f32.mrf.mxu0
  %8026 = vdwg.mxu0
  %8027 = vmatpush.bf16.msra.mxu0 %v6747
  %8028 = vmatpush.bf16.msra.mxu0 %v6739
  %8029 = vmatpush.bf16.msra.mxu0 %v6731
  %8030 = vmatpush.bf16.msra.mxu0 %v6723
  %8031 = vmatpush.bf16.msra.mxu0 %v6715
  %8032 = vmatpush.bf16.msra.mxu0 %v6707
  %8033 = vmatpush.bf16.msra.mxu0 %v6699
  %8034 = vmatpush.bf16.msra.mxu0 %v6691
  %8035 = vmatmul.bf16.gmra.mxu0 %v4233
  %v8036 = vpop.f32.mrf.mxu0
  %v8037 = vadd.f32 %v8024, %v8036
  %v8038 = vpop.f32.mrf.mxu0
  %8039 = vdwg.mxu0
  %8040 = vmatpush.bf16.msra.mxu0 %v6811
  %8041 = vmatpush.bf16.msra.mxu0 %v6803
  %8042 = vmatpush.bf16.msra.mxu0 %v6795
  %8043 = vmatpush.bf16.msra.mxu0 %v6787
  %8044 = vmatpush.bf16.msra.mxu0 %v6779
  %8045 = vmatpush.bf16.msra.mxu0 %v6771
  %8046 = vmatpush.bf16.msra.mxu0 %v6763
  %8047 = vmatpush.bf16.msra.mxu0 %v6755
  %8048 = vmatmul.bf16.gmra.mxu0 %v4234
  %v8049 = vpop.f32.mrf.mxu0
  %v8050 = vadd.f32 %v8037, %v8049
  %v8051 = vpop.f32.mrf.mxu0
  %8052 = vdwg.mxu0
  %8053 = vmatpush.bf16.msra.mxu0 %v6364
  %8054 = vmatpush.bf16.msra.mxu0 %v6356
  %8055 = vmatpush.bf16.msra.mxu0 %v6348
  %8056 = vmatpush.bf16.msra.mxu0 %v6340
  %8057 = vmatpush.bf16.msra.mxu0 %v6332
  %8058 = vmatpush.bf16.msra.mxu0 %v6324
  %8059 = vmatpush.bf16.msra.mxu0 %v6316
  %8060 = vmatpush.bf16.msra.mxu0 %v6308
  %8061 = vmatmul.bf16.gmra.mxu0 %v4227
  %v8062 = vpop.f32.mrf.mxu0
  %v8063 = vadd.f32 %v4756, %v8062
  %v8064 = vpop.f32.mrf.mxu0
  %8065 = vdwg.mxu0
  %8066 = vmatpush.bf16.msra.mxu0 %v6428
  %8067 = vmatpush.bf16.msra.mxu0 %v6420
  %8068 = vmatpush.bf16.msra.mxu0 %v6412
  %8069 = vmatpush.bf16.msra.mxu0 %v6404
  %8070 = vmatpush.bf16.msra.mxu0 %v6396
  %8071 = vmatpush.bf16.msra.mxu0 %v6388
  %8072 = vmatpush.bf16.msra.mxu0 %v6380
  %8073 = vmatpush.bf16.msra.mxu0 %v6372
  %8074 = vmatmul.bf16.gmra.mxu0 %v4228
  %v8075 = vpop.f32.mrf.mxu0
  %v8076 = vadd.f32 %v8063, %v8075
  %v8077 = vpop.f32.mrf.mxu0
  %8078 = vdwg.mxu0
  %8079 = vmatpush.bf16.msra.mxu0 %v6492
  %8080 = vmatpush.bf16.msra.mxu0 %v6484
  %8081 = vmatpush.bf16.msra.mxu0 %v6476
  %8082 = vmatpush.bf16.msra.mxu0 %v6468
  %8083 = vmatpush.bf16.msra.mxu0 %v6460
  %8084 = vmatpush.bf16.msra.mxu0 %v6452
  %8085 = vmatpush.bf16.msra.mxu0 %v6444
  %8086 = vmatpush.bf16.msra.mxu0 %v6436
  %8087 = vmatmul.bf16.gmra.mxu0 %v4229
  %v8088 = vpop.f32.mrf.mxu0
  %v8089 = vadd.f32 %v8076, %v8088
  %v8090 = vpop.f32.mrf.mxu0
  %8091 = vdwg.mxu0
  %8092 = vmatpush.bf16.msra.mxu0 %v6556
  %8093 = vmatpush.bf16.msra.mxu0 %v6548
  %8094 = vmatpush.bf16.msra.mxu0 %v6540
  %8095 = vmatpush.bf16.msra.mxu0 %v6532
  %8096 = vmatpush.bf16.msra.mxu0 %v6524
  %8097 = vmatpush.bf16.msra.mxu0 %v6516
  %8098 = vmatpush.bf16.msra.mxu0 %v6508
  %8099 = vmatpush.bf16.msra.mxu0 %v6500
  %8100 = vmatmul.bf16.gmra.mxu0 %v4230
  %v8101 = vpop.f32.mrf.mxu0
  %v8102 = vadd.f32 %v8089, %v8101
  %v8103 = vpop.f32.mrf.mxu0
  %8104 = vdwg.mxu0
  %8105 = vmatpush.bf16.msra.mxu0 %v6620
  %8106 = vmatpush.bf16.msra.mxu0 %v6612
  %8107 = vmatpush.bf16.msra.mxu0 %v6604
  %8108 = vmatpush.bf16.msra.mxu0 %v6596
  %8109 = vmatpush.bf16.msra.mxu0 %v6588
  %8110 = vmatpush.bf16.msra.mxu0 %v6580
  %8111 = vmatpush.bf16.msra.mxu0 %v6572
  %8112 = vmatpush.bf16.msra.mxu0 %v6564
  %8113 = vmatmul.bf16.gmra.mxu0 %v4231
  %v8114 = vpop.f32.mrf.mxu0
  %v8115 = vadd.f32 %v8102, %v8114
  %v8116 = vpop.f32.mrf.mxu0
  %8117 = vdwg.mxu0
  %8118 = vmatpush.bf16.msra.mxu0 %v6684
  %8119 = vmatpush.bf16.msra.mxu0 %v6676
  %8120 = vmatpush.bf16.msra.mxu0 %v6668
  %8121 = vmatpush.bf16.msra.mxu0 %v6660
  %8122 = vmatpush.bf16.msra.mxu0 %v6652
  %8123 = vmatpush.bf16.msra.mxu0 %v6644
  %8124 = vmatpush.bf16.msra.mxu0 %v6636
  %8125 = vmatpush.bf16.msra.mxu0 %v6628
  %8126 = vmatmul.bf16.gmra.mxu0 %v4232
  %v8127 = vpop.f32.mrf.mxu0
  %v8128 = vadd.f32 %v8115, %v8127
  %v8129 = vpop.f32.mrf.mxu0
  %8130 = vdwg.mxu0
  %8131 = vmatpush.bf16.msra.mxu0 %v6748
  %8132 = vmatpush.bf16.msra.mxu0 %v6740
  %8133 = vmatpush.bf16.msra.mxu0 %v6732
  %8134 = vmatpush.bf16.msra.mxu0 %v6724
  %8135 = vmatpush.bf16.msra.mxu0 %v6716
  %8136 = vmatpush.bf16.msra.mxu0 %v6708
  %8137 = vmatpush.bf16.msra.mxu0 %v6700
  %8138 = vmatpush.bf16.msra.mxu0 %v6692
  %8139 = vmatmul.bf16.gmra.mxu0 %v4233
  %v8140 = vpop.f32.mrf.mxu0
  %v8141 = vadd.f32 %v8128, %v8140
  %v8142 = vpop.f32.mrf.mxu0
  %8143 = vdwg.mxu0
  %8144 = vmatpush.bf16.msra.mxu0 %v6812
  %8145 = vmatpush.bf16.msra.mxu0 %v6804
  %8146 = vmatpush.bf16.msra.mxu0 %v6796
  %8147 = vmatpush.bf16.msra.mxu0 %v6788
  %8148 = vmatpush.bf16.msra.mxu0 %v6780
  %8149 = vmatpush.bf16.msra.mxu0 %v6772
  %8150 = vmatpush.bf16.msra.mxu0 %v6764
  %8151 = vmatpush.bf16.msra.mxu0 %v6756
  %8152 = vmatmul.bf16.gmra.mxu0 %v4234
  %v8153 = vpop.f32.mrf.mxu0
  %v8154 = vadd.f32 %v8141, %v8153
  %v8155 = vpop.f32.mrf.mxu0
  %8156 = vdwg.mxu0
  %vm8157 = vcmp.ge.f32.partialorder %v7426, 0.0
  %vm8158 = vcmp.ge.f32.partialorder %v7530, 0.0
  %vm8159 = vcmp.ge.f32.partialorder %v7634, 0.0
  %vm8160 = vcmp.ge.f32.partialorder %v7738, 0.0
  %vm8161 = vcmp.ge.f32.partialorder %v7842, 0.0
  %vm8162 = vcmp.ge.f32.partialorder %v7946, 0.0
  %vm8163 = vcmp.ge.f32.partialorder %v8050, 0.0
  %vm8164 = vcmp.ge.f32.partialorder %v8154, 0.0
  %v8165 = vmul.f32 %v7426, 0.01
  %v8166 = vmul.f32 %v7530, 0.01
  %v8167 = vmul.f32 %v7634, 0.01
  %v8168 = vmul.f32 %v7738, 0.01
  %v8169 = vmul.f32 %v7842, 0.01
  %v8170 = vmul.f32 %v7946, 0.01
  %v8171 = vmul.f32 %v8050, 0.01
  %v8172 = vmul.f32 %v8154, 0.01
  %v8173 = vsel %vm8157, %v7426, %v8165
  %v8174 = vsel %vm8158, %v7530, %v8166
  %v8175 = vsel %vm8159, %v7634, %v8167
  %v8176 = vsel %vm8160, %v7738, %v8168
  %v8177 = vsel %vm8161, %v7842, %v8169
  %v8178 = vsel %vm8162, %v7946, %v8170
  %v8179 = vsel %vm8163, %v8050, %v8171
  %v8180 = vsel %vm8164, %v8154, %v8172
  %v8181 = vpack.c.bf16 %v8173, %v8173
  %v8182 = vpack.c.bf16 %v8174, %v8174
  %v8183 = vpack.c.bf16 %v8175, %v8175
  %v8184 = vpack.c.bf16 %v8176, %v8176
  %v8185 = vpack.c.bf16 %v8177, %v8177
  %v8186 = vpack.c.bf16 %v8178, %v8178
  %v8187 = vpack.c.bf16 %v8179, %v8179
  %v8188 = vpack.c.bf16 %v8180, %v8180
  %v8189 = vld [vmem:[%s8] sm:$0xf]
  %v8190 = vld [vmem:[%s8 + $0x4] sm:$0xf]
  %v8191 = vld [vmem:[%s8 + $0x8] sm:$0xf]
  %v8192 = vld [vmem:[%s8 + $0xc] sm:$0xf]
  %v8193 = vld [vmem:[%s8 + $0x10] sm:$0xf]
  %v8194 = vld [vmem:[%s8 + $0x14] sm:$0xf]
  %v8195 = vld [vmem:[%s8 + $0x18] sm:$0xf]
  %v8196 = vld [vmem:[%s8 + $0x1c] sm:$0xf]
  %v8197 = vld [vmem:[%s8 + $0x20] sm:$0xf]
  %v8198 = vld [vmem:[%s8 + $0x24] sm:$0xf]
  %v8199 = vld [vmem:[%s8 + $0x28] sm:$0xf]
  %v8200 = vld [vmem:[%s8 + $0x2c] sm:$0xf]
  %v8201 = vld [vmem:[%s8 + $0x30] sm:$0xf]
  %v8202 = vld [vmem:[%s8 + $0x34] sm:$0xf]
  %v8203 = vld [vmem:[%s8 + $0x38] sm:$0xf]
  %v8204 = vld [vmem:[%s8 + $0x3c] sm:$0xf]
  %v8205 = vld [vmem:[%s8 + $0x40] sm:$0xf]
  %v8206 = vld [vmem:[%s8 + $0x44] sm:$0xf]
  %v8207 = vld [vmem:[%s8 + $0x48] sm:$0xf]
  %v8208 = vld [vmem:[%s8 + $0x4c] sm:$0xf]
  %v8209 = vld [vmem:[%s8 + $0x50] sm:$0xf]
  %v8210 = vld [vmem:[%s8 + $0x54] sm:$0xf]
  %v8211 = vld [vmem:[%s8 + $0x58] sm:$0xf]
  %v8212 = vld [vmem:[%s8 + $0x5c] sm:$0xf]
  %v8213 = vld [vmem:[%s8 + $0x60] sm:$0xf]
  %v8214 = vld [vmem:[%s8 + $0x64] sm:$0xf]
  %v8215 = vld [vmem:[%s8 + $0x68] sm:$0xf]
  %v8216 = vld [vmem:[%s8 + $0x6c] sm:$0xf]
  %v8217 = vld [vmem:[%s8 + $0x70] sm:$0xf]
  %v8218 = vld [vmem:[%s8 + $0x74] sm:$0xf]
  %v8219 = vld [vmem:[%s8 + $0x78] sm:$0xf]
  %v8220 = vld [vmem:[%s8 + $0x7c] sm:$0xf]
  %v8221 = vld [vmem:[%s8 + $0x80] sm:$0xf]
  %v8222 = vld [vmem:[%s8 + $0x84] sm:$0xf]
  %v8223 = vld [vmem:[%s8 + $0x88] sm:$0xf]
  %v8224 = vld [vmem:[%s8 + $0x8c] sm:$0xf]
  %v8225 = vld [vmem:[%s8 + $0x90] sm:$0xf]
  %v8226 = vld [vmem:[%s8 + $0x94] sm:$0xf]
  %v8227 = vld [vmem:[%s8 + $0x98] sm:$0xf]
  %v8228 = vld [vmem:[%s8 + $0x9c] sm:$0xf]
  %v8229 = vld [vmem:[%s8 + $0xa0] sm:$0xf]
  %v8230 = vld [vmem:[%s8 + $0xa4] sm:$0xf]
  %v8231 = vld [vmem:[%s8 + $0xa8] sm:$0xf]
  %v8232 = vld [vmem:[%s8 + $0xac] sm:$0xf]
  %v8233 = vld [vmem:[%s8 + $0xb0] sm:$0xf]
  %v8234 = vld [vmem:[%s8 + $0xb4] sm:$0xf]
  %v8235 = vld [vmem:[%s8 + $0xb8] sm:$0xf]
  %v8236 = vld [vmem:[%s8 + $0xbc] sm:$0xf]
  %v8237 = vld [vmem:[%s8 + $0xc0] sm:$0xf]
  %v8238 = vld [vmem:[%s8 + $0xc4] sm:$0xf]
  %v8239 = vld [vmem:[%s8 + $0xc8] sm:$0xf]
  %v8240 = vld [vmem:[%s8 + $0xcc] sm:$0xf]
  %v8241 = vld [vmem:[%s8 + $0xd0] sm:$0xf]
  %v8242 = vld [vmem:[%s8 + $0xd4] sm:$0xf]
  %v8243 = vld [vmem:[%s8 + $0xd8] sm:$0xf]
  %v8244 = vld [vmem:[%s8 + $0xdc] sm:$0xf]
  %v8245 = vld [vmem:[%s8 + $0xe0] sm:$0xf]
  %v8246 = vld [vmem:[%s8 + $0xe4] sm:$0xf]
  %v8247 = vld [vmem:[%s8 + $0xe8] sm:$0xf]
  %v8248 = vld [vmem:[%s8 + $0xec] sm:$0xf]
  %v8249 = vld [vmem:[%s8 + $0xf0] sm:$0xf]
  %v8250 = vld [vmem:[%s8 + $0xf4] sm:$0xf]
  %v8251 = vld [vmem:[%s8 + $0xf8] sm:$0xf]
  %v8252 = vld [vmem:[%s8 + $0xfc] sm:$0xf]
  %v8253 = vld [vmem:[%s8 + $0x100] sm:$0xf]
  %v8254 = vld [vmem:[%s8 + $0x104] sm:$0xf]
  %v8255 = vld [vmem:[%s8 + $0x108] sm:$0xf]
  %v8256 = vld [vmem:[%s8 + $0x10c] sm:$0xf]
  %v8257 = vld [vmem:[%s8 + $0x110] sm:$0xf]
  %v8258 = vld [vmem:[%s8 + $0x114] sm:$0xf]
  %v8259 = vld [vmem:[%s8 + $0x118] sm:$0xf]
  %v8260 = vld [vmem:[%s8 + $0x11c] sm:$0xf]
  %v8261 = vld [vmem:[%s8 + $0x120] sm:$0xf]
  %v8262 = vld [vmem:[%s8 + $0x124] sm:$0xf]
  %v8263 = vld [vmem:[%s8 + $0x128] sm:$0xf]
  %v8264 = vld [vmem:[%s8 + $0x12c] sm:$0xf]
  %v8265 = vld [vmem:[%s8 + $0x130] sm:$0xf]
  %v8266 = vld [vmem:[%s8 + $0x134] sm:$0xf]
  %v8267 = vld [vmem:[%s8 + $0x138] sm:$0xf]
  %v8268 = vld [vmem:[%s8 + $0x13c] sm:$0xf]
  %v8269 = vld [vmem:[%s8 + $0x140] sm:$0xf]
  %v8270 = vld [vmem:[%s8 + $0x144] sm:$0xf]
  %v8271 = vld [vmem:[%s8 + $0x148] sm:$0xf]
  %v8272 = vld [vmem:[%s8 + $0x14c] sm:$0xf]
  %v8273 = vld [vmem:[%s8 + $0x150] sm:$0xf]
  %v8274 = vld [vmem:[%s8 + $0x154] sm:$0xf]
  %v8275 = vld [vmem:[%s8 + $0x158] sm:$0xf]
  %v8276 = vld [vmem:[%s8 + $0x15c] sm:$0xf]
  %v8277 = vld [vmem:[%s8 + $0x160] sm:$0xf]
  %v8278 = vld [vmem:[%s8 + $0x164] sm:$0xf]
  %v8279 = vld [vmem:[%s8 + $0x168] sm:$0xf]
  %v8280 = vld [vmem:[%s8 + $0x16c] sm:$0xf]
  %v8281 = vld [vmem:[%s8 + $0x170] sm:$0xf]
  %v8282 = vld [vmem:[%s8 + $0x174] sm:$0xf]
  %v8283 = vld [vmem:[%s8 + $0x178] sm:$0xf]
  %v8284 = vld [vmem:[%s8 + $0x17c] sm:$0xf]
  %v8285 = vld [vmem:[%s8 + $0x180] sm:$0xf]
  %v8286 = vld [vmem:[%s8 + $0x184] sm:$0xf]
  %v8287 = vld [vmem:[%s8 + $0x188] sm:$0xf]
  %v8288 = vld [vmem:[%s8 + $0x18c] sm:$0xf]
  %v8289 = vld [vmem:[%s8 + $0x190] sm:$0xf]
  %v8290 = vld [vmem:[%s8 + $0x194] sm:$0xf]
  %v8291 = vld [vmem:[%s8 + $0x198] sm:$0xf]
  %v8292 = vld [vmem:[%s8 + $0x19c] sm:$0xf]
  %v8293 = vld [vmem:[%s8 + $0x1a0] sm:$0xf]
  %v8294 = vld [vmem:[%s8 + $0x1a4] sm:$0xf]
  %v8295 = vld [vmem:[%s8 + $0x1a8] sm:$0xf]
  %v8296 = vld [vmem:[%s8 + $0x1ac] sm:$0xf]
  %v8297 = vld [vmem:[%s8 + $0x1b0] sm:$0xf]
  %v8298 = vld [vmem:[%s8 + $0x1b4] sm:$0xf]
  %v8299 = vld [vmem:[%s8 + $0x1b8] sm:$0xf]
  %v8300 = vld [vmem:[%s8 + $0x1bc] sm:$0xf]
  %v8301 = vld [vmem:[%s8 + $0x1c0] sm:$0xf]
  %v8302 = vld [vmem:[%s8 + $0x1c4] sm:$0xf]
  %v8303 = vld [vmem:[%s8 + $0x1c8] sm:$0xf]
  %v8304 = vld [vmem:[%s8 + $0x1cc] sm:$0xf]
  %v8305 = vld [vmem:[%s8 + $0x1d0] sm:$0xf]
  %v8306 = vld [vmem:[%s8 + $0x1d4] sm:$0xf]
  %v8307 = vld [vmem:[%s8 + $0x1d8] sm:$0xf]
  %v8308 = vld [vmem:[%s8 + $0x1dc] sm:$0xf]
  %v8309 = vld [vmem:[%s8 + $0x1e0] sm:$0xf]
  %v8310 = vld [vmem:[%s8 + $0x1e4] sm:$0xf]
  %v8311 = vld [vmem:[%s8 + $0x1e8] sm:$0xf]
  %v8312 = vld [vmem:[%s8 + $0x1ec] sm:$0xf]
  %v8313 = vld [vmem:[%s8 + $0x1f0] sm:$0xf]
  %v8314 = vld [vmem:[%s8 + $0x1f4] sm:$0xf]
  %v8315 = vld [vmem:[%s8 + $0x1f8] sm:$0xf]
  %v8316 = vld [vmem:[%s8 + $0x1fc] sm:$0xf]
  %v8317 = vld [vmem:[#allocation2] sm:$0x1]
  %v8319 = vperm.slane %v8317, 0
  %v8449 = vunpack.c.l.b16 %v8189
  %v8450 = vunpack.c.l.b16 %v8190
  %v8451 = vunpack.c.l.b16 %v8191
  %v8452 = vunpack.c.l.b16 %v8192
  %v8453 = vunpack.c.l.b16 %v8193
  %v8454 = vunpack.c.l.b16 %v8194
  %v8455 = vunpack.c.l.b16 %v8195
  %v8456 = vunpack.c.l.b16 %v8196
  %v8457 = vunpack.c.l.b16 %v8197
  %v8458 = vunpack.c.l.b16 %v8198
  %v8459 = vunpack.c.l.b16 %v8199
  %v8460 = vunpack.c.l.b16 %v8200
  %v8461 = vunpack.c.l.b16 %v8201
  %v8462 = vunpack.c.l.b16 %v8202
  %v8463 = vunpack.c.l.b16 %v8203
  %v8464 = vunpack.c.l.b16 %v8204
  %v8465 = vunpack.c.l.b16 %v8205
  %v8466 = vunpack.c.l.b16 %v8206
  %v8467 = vunpack.c.l.b16 %v8207
  %v8468 = vunpack.c.l.b16 %v8208
  %v8469 = vunpack.c.l.b16 %v8209
  %v8470 = vunpack.c.l.b16 %v8210
  %v8471 = vunpack.c.l.b16 %v8211
  %v8472 = vunpack.c.l.b16 %v8212
  %v8473 = vunpack.c.l.b16 %v8213
  %v8474 = vunpack.c.l.b16 %v8214
  %v8475 = vunpack.c.l.b16 %v8215
  %v8476 = vunpack.c.l.b16 %v8216
  %v8477 = vunpack.c.l.b16 %v8217
  %v8478 = vunpack.c.l.b16 %v8218
  %v8479 = vunpack.c.l.b16 %v8219
  %v8480 = vunpack.c.l.b16 %v8220
  %v8481 = vunpack.c.l.b16 %v8221
  %v8482 = vunpack.c.l.b16 %v8222
  %v8483 = vunpack.c.l.b16 %v8223
  %v8484 = vunpack.c.l.b16 %v8224
  %v8485 = vunpack.c.l.b16 %v8225
  %v8486 = vunpack.c.l.b16 %v8226
  %v8487 = vunpack.c.l.b16 %v8227
  %v8488 = vunpack.c.l.b16 %v8228
  %v8489 = vunpack.c.l.b16 %v8229
  %v8490 = vunpack.c.l.b16 %v8230
  %v8491 = vunpack.c.l.b16 %v8231
  %v8492 = vunpack.c.l.b16 %v8232
  %v8493 = vunpack.c.l.b16 %v8233
  %v8494 = vunpack.c.l.b16 %v8234
  %v8495 = vunpack.c.l.b16 %v8235
  %v8496 = vunpack.c.l.b16 %v8236
  %v8497 = vunpack.c.l.b16 %v8237
  %v8498 = vunpack.c.l.b16 %v8238
  %v8499 = vunpack.c.l.b16 %v8239
  %v8500 = vunpack.c.l.b16 %v8240
  %v8501 = vunpack.c.l.b16 %v8241
  %v8502 = vunpack.c.l.b16 %v8242
  %v8503 = vunpack.c.l.b16 %v8243
  %v8504 = vunpack.c.l.b16 %v8244
  %v8505 = vunpack.c.l.b16 %v8245
  %v8506 = vunpack.c.l.b16 %v8246
  %v8507 = vunpack.c.l.b16 %v8247
  %v8508 = vunpack.c.l.b16 %v8248
  %v8509 = vunpack.c.l.b16 %v8249
  %v8510 = vunpack.c.l.b16 %v8250
  %v8511 = vunpack.c.l.b16 %v8251
  %v8512 = vunpack.c.l.b16 %v8252
  %v8513 = vunpack.c.l.b16 %v8253
  %v8514 = vunpack.c.l.b16 %v8254
  %v8515 = vunpack.c.l.b16 %v8255
  %v8516 = vunpack.c.l.b16 %v8256
  %v8517 = vunpack.c.l.b16 %v8257
  %v8518 = vunpack.c.l.b16 %v8258
  %v8519 = vunpack.c.l.b16 %v8259
  %v8520 = vunpack.c.l.b16 %v8260
  %v8521 = vunpack.c.l.b16 %v8261
  %v8522 = vunpack.c.l.b16 %v8262
  %v8523 = vunpack.c.l.b16 %v8263
  %v8524 = vunpack.c.l.b16 %v8264
  %v8525 = vunpack.c.l.b16 %v8265
  %v8526 = vunpack.c.l.b16 %v8266
  %v8527 = vunpack.c.l.b16 %v8267
  %v8528 = vunpack.c.l.b16 %v8268
  %v8529 = vunpack.c.l.b16 %v8269
  %v8530 = vunpack.c.l.b16 %v8270
  %v8531 = vunpack.c.l.b16 %v8271
  %v8532 = vunpack.c.l.b16 %v8272
  %v8533 = vunpack.c.l.b16 %v8273
  %v8534 = vunpack.c.l.b16 %v8274
  %v8535 = vunpack.c.l.b16 %v8275
  %v8536 = vunpack.c.l.b16 %v8276
  %v8537 = vunpack.c.l.b16 %v8277
  %v8538 = vunpack.c.l.b16 %v8278
  %v8539 = vunpack.c.l.b16 %v8279
  %v8540 = vunpack.c.l.b16 %v8280
  %v8541 = vunpack.c.l.b16 %v8281
  %v8542 = vunpack.c.l.b16 %v8282
  %v8543 = vunpack.c.l.b16 %v8283
  %v8544 = vunpack.c.l.b16 %v8284
  %v8545 = vunpack.c.l.b16 %v8285
  %v8546 = vunpack.c.l.b16 %v8286
  %v8547 = vunpack.c.l.b16 %v8287
  %v8548 = vunpack.c.l.b16 %v8288
  %v8549 = vunpack.c.l.b16 %v8289
  %v8550 = vunpack.c.l.b16 %v8290
  %v8551 = vunpack.c.l.b16 %v8291
  %v8552 = vunpack.c.l.b16 %v8292
  %v8553 = vunpack.c.l.b16 %v8293
  %v8554 = vunpack.c.l.b16 %v8294
  %v8555 = vunpack.c.l.b16 %v8295
  %v8556 = vunpack.c.l.b16 %v8296
  %v8557 = vunpack.c.l.b16 %v8297
  %v8558 = vunpack.c.l.b16 %v8298
  %v8559 = vunpack.c.l.b16 %v8299
  %v8560 = vunpack.c.l.b16 %v8300
  %v8561 = vunpack.c.l.b16 %v8301
  %v8562 = vunpack.c.l.b16 %v8302
  %v8563 = vunpack.c.l.b16 %v8303
  %v8564 = vunpack.c.l.b16 %v8304
  %v8565 = vunpack.c.l.b16 %v8305
  %v8566 = vunpack.c.l.b16 %v8306
  %v8567 = vunpack.c.l.b16 %v8307
  %v8568 = vunpack.c.l.b16 %v8308
  %v8569 = vunpack.c.l.b16 %v8309
  %v8570 = vunpack.c.l.b16 %v8310
  %v8571 = vunpack.c.l.b16 %v8311
  %v8572 = vunpack.c.l.b16 %v8312
  %v8573 = vunpack.c.l.b16 %v8313
  %v8574 = vunpack.c.l.b16 %v8314
  %v8575 = vunpack.c.l.b16 %v8315
  %v8576 = vunpack.c.l.b16 %v8316
  %v8577 = vpack.c.b16 %v8450, %v8449
  %v8578 = vpack.c.b16 %v8452, %v8451
  %v8579 = vpack.c.b16 %v8454, %v8453
  %v8580 = vpack.c.b16 %v8456, %v8455
  %v8581 = vpack.c.b16 %v8458, %v8457
  %v8582 = vpack.c.b16 %v8460, %v8459
  %v8583 = vpack.c.b16 %v8462, %v8461
  %v8584 = vpack.c.b16 %v8464, %v8463
  %v8585 = vpack.c.b16 %v8466, %v8465
  %v8586 = vpack.c.b16 %v8468, %v8467
  %v8587 = vpack.c.b16 %v8470, %v8469
  %v8588 = vpack.c.b16 %v8472, %v8471
  %v8589 = vpack.c.b16 %v8474, %v8473
  %v8590 = vpack.c.b16 %v8476, %v8475
  %v8591 = vpack.c.b16 %v8478, %v8477
  %v8592 = vpack.c.b16 %v8480, %v8479
  %v8593 = vpack.c.b16 %v8482, %v8481
  %v8594 = vpack.c.b16 %v8484, %v8483
  %v8595 = vpack.c.b16 %v8486, %v8485
  %v8596 = vpack.c.b16 %v8488, %v8487
  %v8597 = vpack.c.b16 %v8490, %v8489
  %v8598 = vpack.c.b16 %v8492, %v8491
  %v8599 = vpack.c.b16 %v8494, %v8493
  %v8600 = vpack.c.b16 %v8496, %v8495
  %v8601 = vpack.c.b16 %v8498, %v8497
  %v8602 = vpack.c.b16 %v8500, %v8499
  %v8603 = vpack.c.b16 %v8502, %v8501
  %v8604 = vpack.c.b16 %v8504, %v8503
  %v8605 = vpack.c.b16 %v8506, %v8505
  %v8606 = vpack.c.b16 %v8508, %v8507
  %v8607 = vpack.c.b16 %v8510, %v8509
  %v8608 = vpack.c.b16 %v8512, %v8511
  %v8609 = vpack.c.b16 %v8514, %v8513
  %v8610 = vpack.c.b16 %v8516, %v8515
  %v8611 = vpack.c.b16 %v8518, %v8517
  %v8612 = vpack.c.b16 %v8520, %v8519
  %v8613 = vpack.c.b16 %v8522, %v8521
  %v8614 = vpack.c.b16 %v8524, %v8523
  %v8615 = vpack.c.b16 %v8526, %v8525
  %v8616 = vpack.c.b16 %v8528, %v8527
  %v8617 = vpack.c.b16 %v8530, %v8529
  %v8618 = vpack.c.b16 %v8532, %v8531
  %v8619 = vpack.c.b16 %v8534, %v8533
  %v8620 = vpack.c.b16 %v8536, %v8535
  %v8621 = vpack.c.b16 %v8538, %v8537
  %v8622 = vpack.c.b16 %v8540, %v8539
  %v8623 = vpack.c.b16 %v8542, %v8541
  %v8624 = vpack.c.b16 %v8544, %v8543
  %v8625 = vpack.c.b16 %v8546, %v8545
  %v8626 = vpack.c.b16 %v8548, %v8547
  %v8627 = vpack.c.b16 %v8550, %v8549
  %v8628 = vpack.c.b16 %v8552, %v8551
  %v8629 = vpack.c.b16 %v8554, %v8553
  %v8630 = vpack.c.b16 %v8556, %v8555
  %v8631 = vpack.c.b16 %v8558, %v8557
  %v8632 = vpack.c.b16 %v8560, %v8559
  %v8633 = vpack.c.b16 %v8562, %v8561
  %v8634 = vpack.c.b16 %v8564, %v8563
  %v8635 = vpack.c.b16 %v8566, %v8565
  %v8636 = vpack.c.b16 %v8568, %v8567
  %v8637 = vpack.c.b16 %v8570, %v8569
  %v8638 = vpack.c.b16 %v8572, %v8571
  %v8639 = vpack.c.b16 %v8574, %v8573
  %v8640 = vpack.c.b16 %v8576, %v8575
  %8705 = vmatpush.bf16.msra.mxu0 %v8584
  %8706 = vmatpush.bf16.msra.mxu0 %v8583
  %8707 = vmatpush.bf16.msra.mxu0 %v8582
  %8708 = vmatpush.bf16.msra.mxu0 %v8581
  %8709 = vmatpush.bf16.msra.mxu0 %v8580
  %8710 = vmatpush.bf16.msra.mxu0 %v8579
  %8711 = vmatpush.bf16.msra.mxu0 %v8578
  %8712 = vmatpush.bf16.msra.mxu0 %v8577
  %8713 = vmatmul.bf16.gmra.mxu0 %v8181
  %v8714 = vpop.f32.mrf.mxu0
  %v8715 = vadd.f32 %v8319, %v8714
  %v8716 = vpop.f32.mrf.mxu0
  %8717 = vdwg.mxu0
  %8718 = vmatpush.bf16.msra.mxu0 %v8592
  %8719 = vmatpush.bf16.msra.mxu0 %v8591
  %8720 = vmatpush.bf16.msra.mxu0 %v8590
  %8721 = vmatpush.bf16.msra.mxu0 %v8589
  %8722 = vmatpush.bf16.msra.mxu0 %v8588
  %8723 = vmatpush.bf16.msra.mxu0 %v8587
  %8724 = vmatpush.bf16.msra.mxu0 %v8586
  %8725 = vmatpush.bf16.msra.mxu0 %v8585
  %8726 = vmatmul.bf16.gmra.mxu0 %v8182
  %v8727 = vpop.f32.mrf.mxu0
  %v8728 = vadd.f32 %v8715, %v8727
  %v8729 = vpop.f32.mrf.mxu0
  %8730 = vdwg.mxu0
  %8731 = vmatpush.bf16.msra.mxu0 %v8600
  %8732 = vmatpush.bf16.msra.mxu0 %v8599
  %8733 = vmatpush.bf16.msra.mxu0 %v8598
  %8734 = vmatpush.bf16.msra.mxu0 %v8597
  %8735 = vmatpush.bf16.msra.mxu0 %v8596
  %8736 = vmatpush.bf16.msra.mxu0 %v8595
  %8737 = vmatpush.bf16.msra.mxu0 %v8594
  %8738 = vmatpush.bf16.msra.mxu0 %v8593
  %8739 = vmatmul.bf16.gmra.mxu0 %v8183
  %v8740 = vpop.f32.mrf.mxu0
  %v8741 = vadd.f32 %v8728, %v8740
  %v8742 = vpop.f32.mrf.mxu0
  %8743 = vdwg.mxu0
  %8744 = vmatpush.bf16.msra.mxu0 %v8608
  %8745 = vmatpush.bf16.msra.mxu0 %v8607
  %8746 = vmatpush.bf16.msra.mxu0 %v8606
  %8747 = vmatpush.bf16.msra.mxu0 %v8605
  %8748 = vmatpush.bf16.msra.mxu0 %v8604
  %8749 = vmatpush.bf16.msra.mxu0 %v8603
  %8750 = vmatpush.bf16.msra.mxu0 %v8602
  %8751 = vmatpush.bf16.msra.mxu0 %v8601
  %8752 = vmatmul.bf16.gmra.mxu0 %v8184
  %v8753 = vpop.f32.mrf.mxu0
  %v8754 = vadd.f32 %v8741, %v8753
  %v8755 = vpop.f32.mrf.mxu0
  %8756 = vdwg.mxu0
  %8757 = vmatpush.bf16.msra.mxu0 %v8616
  %8758 = vmatpush.bf16.msra.mxu0 %v8615
  %8759 = vmatpush.bf16.msra.mxu0 %v8614
  %8760 = vmatpush.bf16.msra.mxu0 %v8613
  %8761 = vmatpush.bf16.msra.mxu0 %v8612
  %8762 = vmatpush.bf16.msra.mxu0 %v8611
  %8763 = vmatpush.bf16.msra.mxu0 %v8610
  %8764 = vmatpush.bf16.msra.mxu0 %v8609
  %8765 = vmatmul.bf16.gmra.mxu0 %v8185
  %v8766 = vpop.f32.mrf.mxu0
  %v8767 = vadd.f32 %v8754, %v8766
  %v8768 = vpop.f32.mrf.mxu0
  %8769 = vdwg.mxu0
  %8770 = vmatpush.bf16.msra.mxu0 %v8624
  %8771 = vmatpush.bf16.msra.mxu0 %v8623
  %8772 = vmatpush.bf16.msra.mxu0 %v8622
  %8773 = vmatpush.bf16.msra.mxu0 %v8621
  %8774 = vmatpush.bf16.msra.mxu0 %v8620
  %8775 = vmatpush.bf16.msra.mxu0 %v8619
  %8776 = vmatpush.bf16.msra.mxu0 %v8618
  %8777 = vmatpush.bf16.msra.mxu0 %v8617
  %8778 = vmatmul.bf16.gmra.mxu0 %v8186
  %v8779 = vpop.f32.mrf.mxu0
  %v8780 = vadd.f32 %v8767, %v8779
  %v8781 = vpop.f32.mrf.mxu0
  %8782 = vdwg.mxu0
  %8783 = vmatpush.bf16.msra.mxu0 %v8632
  %8784 = vmatpush.bf16.msra.mxu0 %v8631
  %8785 = vmatpush.bf16.msra.mxu0 %v8630
  %8786 = vmatpush.bf16.msra.mxu0 %v8629
  %8787 = vmatpush.bf16.msra.mxu0 %v8628
  %8788 = vmatpush.bf16.msra.mxu0 %v8627
  %8789 = vmatpush.bf16.msra.mxu0 %v8626
  %8790 = vmatpush.bf16.msra.mxu0 %v8625
  %8791 = vmatmul.bf16.gmra.mxu0 %v8187
  %v8792 = vpop.f32.mrf.mxu0
  %v8793 = vadd.f32 %v8780, %v8792
  %v8794 = vpop.f32.mrf.mxu0
  %8795 = vdwg.mxu0
  %8796 = vmatpush.bf16.msra.mxu0 %v8640
  %8797 = vmatpush.bf16.msra.mxu0 %v8639
  %8798 = vmatpush.bf16.msra.mxu0 %v8638
  %8799 = vmatpush.bf16.msra.mxu0 %v8637
  %8800 = vmatpush.bf16.msra.mxu0 %v8636
  %8801 = vmatpush.bf16.msra.mxu0 %v8635
  %8802 = vmatpush.bf16.msra.mxu0 %v8634
  %8803 = vmatpush.bf16.msra.mxu0 %v8633
  %8804 = vmatmul.bf16.gmra.mxu0 %v8188
  %v8805 = vpop.f32.mrf.mxu0
  %v8806 = vadd.f32 %v8793, %v8805
  %v8807 = vpop.f32.mrf.mxu0
  %8808 = vdwg.mxu0
  %vm8809 = vcmask 1024
  %8810 = vst.msk [vmem:[%s10] sm:$0x3] %vm8809, %v8806
  // Predicated region
  $region42: #{discriminator_forward.5} parent=0 // pred_check
    _
  $region43: #{discriminator_forward.5} parent=0 // pred_check_branch
    %8812 = sbr.rel (0) target = $region45
  $region44: #{discriminator_forward.5} parent=0 // pred_region
    _
  $region45: #{discriminator_forward.5} parent=0 // pred_fallthru
    _
  // Predicated region
  $region46: #{discriminator_forward.5} parent=0 // pred_check
    _
  $region47: #{discriminator_forward.5} parent=0 // pred_check_branch
    %8814 = sbr.rel (0) target = $region49
  $region48: #{discriminator_forward.5} parent=0 // pred_region
    _
  $region49: #{discriminator_forward.5} parent=0 // pred_fallthru
    _

</llo_original>
